<compile_context>
chip_gen: v6e
topology: v6e:2x2x1
jax: 0.10.0
libtpu: 0.0.40
codegen_flags: <defaults>
</compile_context>

<pallas_src>
import functools

import numpy as np
import jax
import jax.numpy as jnp
from jax.experimental import pallas as pl
from jax.experimental.pallas import tpu as pltpu

_VMEM_LIMIT = 32 * 1024 * 1024  # explicit scoped-VMEM budget, safe on v5e/v6e/v7x


# -----------------------------------------------------------------------------
# helpers
# -----------------------------------------------------------------------------
def _round_up(x, m):
    return (x + m - 1) // m * m


def _pick_tile(dim, unit, max_tile):
    """Largest multiple of `unit` that divides `dim` (dim % unit == 0), <= max_tile."""
    best = unit
    t = unit
    top = min(dim, max_tile)
    while t <= top:
        if dim % t == 0:
            best = t
        t += unit
    return best


# -----------------------------------------------------------------------------
# Pallas kernels
# -----------------------------------------------------------------------------
def _mm_affine_kernel(x_ref, w_ref, scale_ref, shift_ref, o_ref, acc_ref, *, relu):
    """Tiled o = [relu]((x @ w) * scale + shift) with K-accumulation in f32 scratch."""
    @pl.when(pl.program_id(2) == 0)
    def _():
        acc_ref[...] = jnp.zeros_like(acc_ref)

    acc_ref[...] += jnp.dot(x_ref[...], w_ref[...],
                            preferred_element_type=jnp.float32)

    @pl.when(pl.program_id(2) == pl.num_programs(2) - 1)
    def _():
        y = acc_ref[...] * scale_ref[...] + shift_ref[...]
        if relu:
            y = jnp.maximum(y, 0.0)
        o_ref[...] = y.astype(o_ref.dtype)


def _fc_head_kernel(x_ref, w1_ref, b1_ref, w2_ref, b2_ref, o_ref):
    """Fused localization head: out = relu(x@W1 + b1) @ W2 + b2 (tiny M, single call)."""
    h = jnp.dot(x_ref[...], w1_ref[...], preferred_element_type=jnp.float32)
    h = jnp.maximum(h + b1_ref[...], 0.0)
    y = jnp.dot(h, w2_ref[...], preferred_element_type=jnp.float32) + b2_ref[...]
    o_ref[...] = y.astype(o_ref.dtype)


def _tps_sample_kernel(at_ref, cpt_ref, img_ref, o_ref, *, C, H, W):
    """Fused TPS grid generation + bilinear grid_sample (border, align_corners=True).

    at_ref : (F+3, n_tile)  block of A^T where A = P_hat @ inv_delta_C (host const)
    cpt_ref: (1, 2, F+3)    per-batch C'_padded, transposed
    img_ref: (1, C*H, W)    source image (rows = (c, y), cols = x), resident over n
    o_ref  : (1, C, n_tile) sampled output
    """
    # P'^T tile: (2, n_tile) — x coords in row 0, y coords in row 1 (lane-major).
    pT = jnp.dot(cpt_ref[0], at_ref[...], preferred_element_type=jnp.float32)
    nt = pT.shape[1]
    gx = pT[0:1, :]
    gy = pT[1:2, :]

    # align_corners=True un-normalization + border clamp of continuous coords.
    x = jnp.clip((gx + 1.0) * 0.5 * (W - 1), 0.0, W - 1.0)
    y = jnp.clip((gy + 1.0) * 0.5 * (H - 1), 0.0, H - 1.0)
    x0 = jnp.floor(x)
    y0 = jnp.floor(y)
    wx1 = x - x0
    wx0 = 1.0 - wx1
    wy1 = y - y0
    wy0 = 1.0 - wy1
    ix0 = x0.astype(jnp.int32)
    iy0 = y0.astype(jnp.int32)
    ix1 = jnp.minimum(ix0 + 1, W - 1)
    iy1 = jnp.minimum(iy0 + 1, H - 1)

    # Separable interpolation matrices (W, nt) / (H, nt) instead of (nt, H*W).
    row_w = jax.lax.broadcasted_iota(jnp.int32, (W, nt), 0)
    row_h = jax.lax.broadcasted_iota(jnp.int32, (H, nt), 0)
    SxT = (wx0 * (row_w == ix0).astype(jnp.float32)
           + wx1 * (row_w == ix1).astype(jnp.float32))          # (W, nt)
    SyT = (wy0 * (row_h == iy0).astype(jnp.float32)
           + wy1 * (row_h == iy1).astype(jnp.float32))          # (H, nt)

    img = img_ref[0]                                            # (C*H, W)
    # Stage 1: contract over x on the MXU.
    t1 = jnp.dot(img, SxT, preferred_element_type=jnp.float32)  # (C*H, nt)
    # Stage 2: weighted reduce over y.
    if C == 1:
        out = jnp.sum(t1 * SyT, axis=0, keepdims=True)          # (1, nt)
    else:
        out = jnp.sum(t1.reshape(C, H, nt) * SyT[None, :, :], axis=1)  # (C, nt)
    o_ref[0] = out.astype(o_ref.dtype)


# -----------------------------------------------------------------------------
# Pallas-call wrappers
# -----------------------------------------------------------------------------
def matmul_affine(X, W, scale, shift, relu,
                  max_tm=256, max_tn=256, max_tk=1152):
    """o = [relu]((X @ W) * scale + shift), tiled over M/N/K; bf16 MXU, f32 accumulate."""
    M, K = X.shape
    K2, N = W.shape
    assert K == K2
    M_pad = _round_up(M, 8)
    N_pad = _round_up(N, 128)
    K_pad = _round_up(K, 128)
    TM = _pick_tile(M_pad, 8, max_tm)
    TN = _pick_tile(N_pad, 128, max_tn)
    TK = _pick_tile(K_pad, 128, max_tk)

    Xp = jnp.pad(X.astype(jnp.float32),
                 ((0, M_pad - M), (0, K_pad - K))).astype(jnp.bfloat16)
    Wp = jnp.pad(W.astype(jnp.float32),
                 ((0, K_pad - K), (0, N_pad - N))).astype(jnp.bfloat16)
    sp = jnp.pad(scale.reshape(1, N).astype(jnp.float32),
                 ((0, 0), (0, N_pad - N)), constant_values=1.0)
    bp = jnp.pad(shift.reshape(1, N).astype(jnp.float32),
                 ((0, 0), (0, N_pad - N)))

    grid = (M_pad // TM, N_pad // TN, K_pad // TK)
    kernel = functools.partial(_mm_affine_kernel, relu=relu)
    cost = pl.CostEstimate(
        flops=2 * M_pad * N_pad * K_pad,
        transcendentals=0,
        bytes_accessed=Xp.size * 2 + Wp.size * 2 + M_pad * N_pad * 4)

    out = pl.pallas_call(
        kernel,
        out_shape=jax.ShapeDtypeStruct((M_pad, N_pad), jnp.float32),
        grid=grid,
        in_specs=[pl.BlockSpec((TM, TK), lambda i, j, k: (i, k)),
                  pl.BlockSpec((TK, TN), lambda i, j, k: (k, j)),
                  pl.BlockSpec((1, TN), lambda i, j, k: (0, j)),
                  pl.BlockSpec((1, TN), lambda i, j, k: (0, j))],
        out_specs=pl.BlockSpec((TM, TN), lambda i, j, k: (i, j)),
        scratch_shapes=[pltpu.VMEM((TM, TN), jnp.float32)],
        compiler_params=pltpu.CompilerParams(
            dimension_semantics=("parallel", "parallel", "arbitrary"),
            vmem_limit_bytes=_VMEM_LIMIT),
        cost_estimate=cost,
    )(Xp, Wp, sp, bp)
    return out[:M, :N]


def fc_head(feat, w1, b1, w2, b2):
    """Fused fc1(relu) + fc2 in one launch; tiny M so a single full-array block."""
    B, K = feat.shape
    N1 = w1.shape[1]
    N2 = w2.shape[1]
    B_pad = _round_up(B, 8)
    xp = jnp.pad(feat.astype(jnp.float32), ((0, B_pad - B), (0, 0)))
    out = pl.pallas_call(
        _fc_head_kernel,
        out_shape=jax.ShapeDtypeStruct((B_pad, N2), jnp.float32),
        grid=(1,),
        in_specs=[pl.BlockSpec((B_pad, K), lambda i: (0, 0)),
                  pl.BlockSpec((K, N1), lambda i: (0, 0)),
                  pl.BlockSpec((1, N1), lambda i: (0, 0)),
                  pl.BlockSpec((N1, N2), lambda i: (0, 0)),
                  pl.BlockSpec((1, N2), lambda i: (0, 0))],
        out_specs=pl.BlockSpec((B_pad, N2), lambda i: (0, 0)),
        compiler_params=pltpu.CompilerParams(
            dimension_semantics=("arbitrary",),
            vmem_limit_bytes=_VMEM_LIMIT),
    )(xp, w1.astype(jnp.float32), b1.reshape(1, N1).astype(jnp.float32),
      w2.astype(jnp.float32), b2.reshape(1, N2).astype(jnp.float32))
    return out[:B]


def tps_grid_sample(batch_I, A_T, c_prime, I_r_size):
    """Fused P' = A @ C'_pad + bilinear grid_sample (border, align_corners=True)."""
    B, C, H, W = batch_I.shape
    F_pts = c_prime.shape[1]
    n = A_T.shape[1]
    H_r, W_r = I_r_size

    cp_pad = jnp.concatenate([c_prime, jnp.zeros((B, 3, 2), jnp.float32)], axis=1)
    cpT = jnp.transpose(cp_pad, (0, 2, 1))            # (B, 2, F+3)
    img = batch_I.reshape(B, C * H, W).astype(jnp.float32)

    n_tile = _pick_tile(n, 128, 512) if n % 128 == 0 else n
    grid = (B, n // n_tile)
    kernel = functools.partial(_tps_sample_kernel, C=C, H=H, W=W)

    out = pl.pallas_call(
        kernel,
        out_shape=jax.ShapeDtypeStruct((B, C, n), jnp.float32),
        grid=grid,
        in_specs=[pl.BlockSpec((F_pts + 3, n_tile), lambda b, j: (0, j)),
                  pl.BlockSpec((1, 2, F_pts + 3), lambda b, j: (b, 0, 0)),
                  pl.BlockSpec((1, C * H, W), lambda b, j: (b, 0, 0))],
        out_specs=pl.BlockSpec((1, C, n_tile), lambda b, j: (b, 0, j)),
        compiler_params=pltpu.CompilerParams(
            dimension_semantics=("parallel", "parallel"),
            vmem_limit_bytes=_VMEM_LIMIT),
    )(A_T, cpT, img)
    return out.reshape(B, C, H_r, W_r)


# -----------------------------------------------------------------------------
# Plain-JAX glue (NHWC, lane-dense channels)
# -----------------------------------------------------------------------------
def conv3x3_bn_relu(x_nhwc, w_hwio, bn_scale, bn_shift):
    """x: (B,H,W,C) NHWC; w: (3,3,IC,OC); pad=1, stride=1, bias=False, BN folded."""
    B, H, W, C = x_nhwc.shape
    OC = w_hwio.shape[-1]
    xp = jnp.pad(x_nhwc, ((0, 0), (1, 1), (1, 1), (0, 0)))
    # im2col with K order = (kh, kw, ic) -> channels innermost (lane-dense).
    # TODO(synk): extract 3x3 patches inside the Pallas kernel (shifted VMEM loads)
    # to remove the 9x HBM duplication (most valuable on v5e).
    patches = jnp.concatenate(
        [xp[:, kh:kh + H, kw:kw + W, :] for kh in range(3) for kw in range(3)],
        axis=-1)                                        # (B, H, W, 9*C)
    Xm = patches.reshape(B * H * W, 9 * C)
    Wm = w_hwio.reshape(9 * C, OC)
    out = matmul_affine(Xm, Wm, bn_scale, bn_shift, relu=True)
    return out.reshape(B, H, W, OC)


def maxpool2_nhwc(x):
    B, H, W, C = x.shape
    return x.reshape(B, H // 2, 2, W // 2, 2, C).max(axis=(2, 4))


# -----------------------------------------------------------------------------
# GridGenerator constant buffers (exactly mirrors the PyTorch numpy code)
# -----------------------------------------------------------------------------
def build_C(F):
    ctrl_pts_x = np.linspace(-1.0, 1.0, int(F / 2))
    ctrl_pts_y_top = -1 * np.ones(int(F / 2))
    ctrl_pts_y_bottom = np.ones(int(F / 2))
    ctrl_pts_top = np.stack([ctrl_pts_x, ctrl_pts_y_top], axis=1)
    ctrl_pts_bottom = np.stack([ctrl_pts_x, ctrl_pts_y_bottom], axis=1)
    return np.concatenate([ctrl_pts_top, ctrl_pts_bottom], axis=0)


def build_inv_delta_C(F, C):
    hat_C = np.zeros((F, F), dtype=float)
    for i in range(F):
        for j in range(i, F):
            r = np.linalg.norm(C[i] - C[j])
            hat_C[i, j] = r
            hat_C[j, i] = r
    np.fill_diagonal(hat_C, 1)
    hat_C = hat_C ** 2 * np.log(hat_C)
    delta_C = np.concatenate([
        np.concatenate([np.ones((F, 1)), C, hat_C], axis=1),
        np.concatenate([np.zeros((2, 3)), np.transpose(C)], axis=1),
        np.concatenate([np.zeros((1, 3)), np.ones((1, F))], axis=1)], axis=0)
    return np.linalg.inv(delta_C)


def build_P(I_r_width, I_r_height):
    I_r_grid_x = (np.arange(-I_r_width, I_r_width, 2) + 1.0) / I_r_width
    I_r_grid_y = (np.arange(-I_r_height, I_r_height, 2) + 1.0) / I_r_height
    P = np.stack(np.meshgrid(I_r_grid_x, I_r_grid_y), axis=2)
    return P.reshape([-1, 2])


def build_P_hat(F, C, P, eps=1e-6):
    n = P.shape[0]
    P_tile = np.tile(np.expand_dims(P, axis=1), (1, F, 1))
    C_tile = np.expand_dims(C, axis=0)
    P_diff = P_tile - C_tile
    rbf_norm = np.linalg.norm(P_diff, ord=2, axis=2)
    rbf = np.square(rbf_norm) * np.log(rbf_norm + eps)
    return np.concatenate([np.ones((n, 1)), P, rbf], axis=1)


# -----------------------------------------------------------------------------
# Parameters & full forward
# -----------------------------------------------------------------------------
def make_params(F_pts, I_channel, key):
    ks = jax.random.split(key, 6)
    chans = [I_channel, 64, 128, 256, 512]
    params = {}
    for li in range(4):
        # conv weights stored in (kh, kw, ic, oc) to match the im2col K order.
        w = 0.05 * jax.random.normal(ks[li], (3, 3, chans[li], chans[li + 1]),
                                     dtype=jnp.float32)
        # eval-mode BN with default running stats folded into scale/shift
        bn_scale = jnp.full((chans[li + 1],), 1.0 / np.sqrt(1.0 + 1e-5),
                            dtype=jnp.float32)
        bn_shift = jnp.zeros((chans[li + 1],), dtype=jnp.float32)
        params[f"conv{li}"] = (w, bn_scale, bn_shift)

    params["fc1_w"] = 0.05 * jax.random.normal(ks[4], (512, 256), jnp.float32)
    params["fc1_b"] = 0.05 * jax.random.normal(ks[5], (256,), jnp.float32)

    # fc2: weight = 0, bias = initial fiducial points (as in the PyTorch code)
    ctrl_pts_x = np.linspace(-1.0, 1.0, int(F_pts / 2))
    ctrl_pts_y_top = np.linspace(0.0, -1.0, num=int(F_pts / 2))
    ctrl_pts_y_bottom = np.linspace(1.0, 0.0, num=int(F_pts / 2))
    ctrl_pts_top = np.stack([ctrl_pts_x, ctrl_pts_y_top], axis=1)
    ctrl_pts_bottom = np.stack([ctrl_pts_x, ctrl_pts_y_bottom], axis=1)
    initial_bias = np.concatenate([ctrl_pts_top, ctrl_pts_bottom],
                                  axis=0).reshape(-1)
    params["fc2_w"] = jnp.zeros((256, F_pts * 2), dtype=jnp.float32)
    params["fc2_b"] = jnp.asarray(initial_bias, dtype=jnp.float32)
    return params


def tps_stn_forward(batch_I, params, A_T, F_pts, I_r_size):
    B = batch_I.shape[0]

    # --- LocalizationNetwork (NHWC internally, lane-dense channels) ---
    x = jnp.transpose(batch_I, (0, 2, 3, 1))
    for li in range(4):
        w, s, sh = params[f"conv{li}"]
        x = conv3x3_bn_relu(x, w, s, sh)
        if li < 3:
            x = maxpool2_nhwc(x)
    feat = x.mean(axis=(1, 2))                     # AdaptiveAvgPool2d(1) -> (B, 512)

    c_prime = fc_head(feat, params["fc1_w"], params["fc1_b"],
                      params["fc2_w"], params["fc2_b"]).reshape(B, F_pts, 2)

    # --- fused GridGenerator.build_P_prime + grid_sample(border, align_corners) ---
    return tps_grid_sample(batch_I, A_T, c_prime, I_r_size)


# -----------------------------------------------------------------------------
# Main
# -----------------------------------------------------------------------------
if __name__ == "__main__":
    F_pts = 20
    I_size = (16, 16)
    I_r_size = (16, 16)
    I_channel = 1
    B = 2

    key = jax.random.PRNGKey(0)
    k_in, k_p = jax.random.split(key)
    batch_I = jax.random.normal(k_in, (B, I_channel, I_size[0], I_size[1]),
                                dtype=jnp.float32)

    params = make_params(F_pts, I_channel, k_p)

    # Host-side TPS constants; fold the two TPS matmuls into one constant A.
    C_ctrl = build_C(F_pts)
    inv_delta_C = build_inv_delta_C(F_pts, C_ctrl)                  # (F+3, F+3)
    P = build_P(I_r_size[1], I_r_size[0])                           # (n, 2)
    P_hat = build_P_hat(F_pts, C_ctrl, P)                           # (n, F+3)
    A = P_hat @ inv_delta_C                                         # (n, F+3)
    A_T = jnp.asarray(A.T, dtype=jnp.float32)                       # (F+3, n)

    fwd = jax.jit(functools.partial(tps_stn_forward, F_pts=F_pts,
                                    I_r_size=I_r_size))
    out = fwd(batch_I, params, A_T)
    out = jax.block_until_ready(out)
    assert out.shape == (B, I_channel, I_r_size[0], I_r_size[1])
    assert bool(jnp.all(jnp.isfinite(out)))
    print("KERNEL_OK")
</pallas_src>

<mosaic_0001>
module attributes {stable_mosaic.version = 11 : i64} {
  func.func @_mm_affine_kernel(%arg0: i32, %arg1: i32, %arg2: i32, %arg3: memref<256x128xbf16, #tpu.memory_space<vmem>>, %arg4: memref<128x128xbf16, #tpu.memory_space<vmem>>, %arg5: memref<1x128xf32, #tpu.memory_space<vmem>>, %arg6: memref<1x128xf32, #tpu.memory_space<vmem>>, %arg7: memref<256x128xf32, #tpu.memory_space<vmem>>, %arg8: memref<256x128xf32, #tpu.memory_space<vmem>>) attributes {dimension_semantics = [#tpu.dimension_semantics<parallel>, #tpu.dimension_semantics<parallel>, #tpu.dimension_semantics<arbitrary>], iteration_bounds = array<i64: 2, 1, 1>, scalar_prefetch = 0 : i64, scratch_operands = 1 : i64, tpu.core_type = #tpu.core_type<tc>, window_params = [{transform_indices = @transform_0, window_bounds = array<i64: 256, 128>}, {transform_indices = @transform_1, window_bounds = array<i64: 128, 128>}, {transform_indices = @transform_2, window_bounds = array<i64: 1, 128>}, {transform_indices = @transform_3, window_bounds = array<i64: 1, 128>}, {transform_indices = @transform_4, window_bounds = array<i64: 256, 128>}]} {
    %c0_i32 = arith.constant 0 : i32
    %0 = arith.cmpi eq, %arg2, %c0_i32 : i32
    %1 = arith.extui %0 : i1 to i32
    %c0_i32_0 = arith.constant 0 : i32
    %2 = arith.cmpi ne, %1, %c0_i32_0 : i32
    scf.if %2 {
      %cst_10 = arith.constant 0.000000e+00 : f32
      %12 = vector.broadcast %cst_10 : f32 to vector<256x128xf32>
      %c0_11 = arith.constant 0 : index
      %c0_12 = arith.constant 0 : index
      %13 = vector.load %arg8[%c0_11, %c0_12] : memref<256x128xf32, #tpu.memory_space<vmem>>, vector<256x128xf32>
      tpu.vector_store %arg8[%c0_11, %c0_12], %12 {strides = array<i32>} : memref<256x128xf32, #tpu.memory_space<vmem>>, vector<256x128xf32>,
    } else {
    }
    %c0 = arith.constant 0 : index
    %c0_1 = arith.constant 0 : index
    %3 = vector.load %arg8[%c0, %c0_1] : memref<256x128xf32, #tpu.memory_space<vmem>>, vector<256x128xf32>
    %c0_2 = arith.constant 0 : index
    %c0_3 = arith.constant 0 : index
    %4 = vector.load %arg3[%c0_2, %c0_3] : memref<256x128xbf16, #tpu.memory_space<vmem>>, vector<256x128xbf16>
    %c0_4 = arith.constant 0 : index
    %c0_5 = arith.constant 0 : index
    %5 = vector.load %arg4[%c0_4, %c0_5] : memref<128x128xbf16, #tpu.memory_space<vmem>>, vector<128x128xbf16>
    %cst = arith.constant dense<0.000000e+00> : vector<256x128xf32>
    %6 = tpu.matmul %4, %5, %cst {dimension_numbers = #tpu.dot_dimension_numbers<[1], [0], [0], [1], [0, 0, 1, 1], [], []>} : vector<256x128xbf16>, vector<128x128xbf16>, vector<256x128xf32> -> vector<256x128xf32>
    %7 = arith.addf %3, %6 : vector<256x128xf32>
    %c0_6 = arith.constant 0 : index
    %c0_7 = arith.constant 0 : index
    %8 = vector.load %arg8[%c0_6, %c0_7] : memref<256x128xf32, #tpu.memory_space<vmem>>, vector<256x128xf32>
    tpu.vector_store %arg8[%c0_6, %c0_7], %7 {strides = array<i32>} : memref<256x128xf32, #tpu.memory_space<vmem>>, vector<256x128xf32>,
    %c0_i32_8 = arith.constant 0 : i32
    %9 = arith.cmpi eq, %arg2, %c0_i32_8 : i32
    %10 = arith.extui %9 : i1 to i32
    %c0_i32_9 = arith.constant 0 : i32
    %11 = arith.cmpi ne, %10, %c0_i32_9 : i32
    scf.if %11 {
      %c0_10 = arith.constant 0 : index
      %c0_11 = arith.constant 0 : index
      %12 = vector.load %arg8[%c0_10, %c0_11] : memref<256x128xf32, #tpu.memory_space<vmem>>, vector<256x128xf32>
      %c0_12 = arith.constant 0 : index
      %c0_13 = arith.constant 0 : index
      %13 = vector.load %arg5[%c0_12, %c0_13] : memref<1x128xf32, #tpu.memory_space<vmem>>, vector<1x128xf32>
      %14 = vector.broadcast %13 : vector<1x128xf32> to vector<256x128xf32>
      %15 = arith.mulf %12, %14 : vector<256x128xf32>
      %c0_14 = arith.constant 0 : index
      %c0_15 = arith.constant 0 : index
      %16 = vector.load %arg6[%c0_14, %c0_15] : memref<1x128xf32, #tpu.memory_space<vmem>>, vector<1x128xf32>
      %17 = vector.broadcast %16 : vector<1x128xf32> to vector<256x128xf32>
      %18 = arith.addf %15, %17 : vector<256x128xf32>
      %cst_16 = arith.constant 0.000000e+00 : f32
      %19 = vector.broadcast %cst_16 : f32 to vector<256x128xf32>
      %20 = arith.maximumf %18, %19 : vector<256x128xf32>
      %c0_17 = arith.constant 0 : index
      %c0_18 = arith.constant 0 : index
      %21 = vector.load %arg7[%c0_17, %c0_18] : memref<256x128xf32, #tpu.memory_space<vmem>>, vector<256x128xf32>
      tpu.vector_store %arg7[%c0_17, %c0_18], %20 {strides = array<i32>} : memref<256x128xf32, #tpu.memory_space<vmem>>, vector<256x128xf32>,
    } else {
    }
    return
  }
  func.func @transform_0(%arg0: i32, %arg1: i32, %arg2: i32) -> (i32, i32) {
    %c0_i32 = arith.constant 0 : i32
    return %arg0, %arg2 : i32, i32
  }
  func.func @transform_1(%arg0: i32, %arg1: i32, %arg2: i32) -> (i32, i32) {
    %c0_i32 = arith.constant 0 : i32
    return %arg2, %arg1 : i32, i32
  }
  func.func @transform_2(%arg0: i32, %arg1: i32, %arg2: i32) -> (i32, i32) {
    %c0_i32 = arith.constant 0 : i32
    %c0_i32_0 = arith.constant 0 : i32
    return %c0_i32, %arg1 : i32, i32
  }
  func.func @transform_3(%arg0: i32, %arg1: i32, %arg2: i32) -> (i32, i32) {
    %c0_i32 = arith.constant 0 : i32
    %c0_i32_0 = arith.constant 0 : i32
    return %c0_i32, %arg1 : i32, i32
  }
  func.func @transform_4(%arg0: i32, %arg1: i32, %arg2: i32) -> (i32, i32) {
    %c0_i32 = arith.constant 0 : i32
    return %arg0, %arg1 : i32, i32
  }
}

module attributes {stable_mosaic.version = 11 : i64} {
  func.func @_mm_affine_kernel(%arg0: i32, %arg1: i32, %arg2: i32, %arg3: memref<128x640xbf16, #tpu.memory_space<vmem>>, %arg4: memref<640x128xbf16, #tpu.memory_space<vmem>>, %arg5: memref<1x128xf32, #tpu.memory_space<vmem>>, %arg6: memref<1x128xf32, #tpu.memory_space<vmem>>, %arg7: memref<128x128xf32, #tpu.memory_space<vmem>>, %arg8: memref<128x128xf32, #tpu.memory_space<vmem>>) attributes {dimension_semantics = [#tpu.dimension_semantics<parallel>, #tpu.dimension_semantics<parallel>, #tpu.dimension_semantics<arbitrary>], iteration_bounds = array<i64: 1, 1, 1>, scalar_prefetch = 0 : i64, scratch_operands = 1 : i64, tpu.core_type = #tpu.core_type<tc>, window_params = [{transform_indices = @transform_0, window_bounds = array<i64: 128, 640>}, {transform_indices = @transform_1, window_bounds = array<i64: 640, 128>}, {transform_indices = @transform_2, window_bounds = array<i64: 1, 128>}, {transform_indices = @transform_3, window_bounds = array<i64: 1, 128>}, {transform_indices = @transform_4, window_bounds = array<i64: 128, 128>}]} {
    %c0_i32 = arith.constant 0 : i32
    %0 = arith.cmpi eq, %arg2, %c0_i32 : i32
    %1 = arith.extui %0 : i1 to i32
    %c0_i32_0 = arith.constant 0 : i32
    %2 = arith.cmpi ne, %1, %c0_i32_0 : i32
    scf.if %2 {
      %cst_10 = arith.constant 0.000000e+00 : f32
      %12 = vector.broadcast %cst_10 : f32 to vector<128x128xf32>
      %c0_11 = arith.constant 0 : index
      %c0_12 = arith.constant 0 : index
      %13 = vector.load %arg8[%c0_11, %c0_12] : memref<128x128xf32, #tpu.memory_space<vmem>>, vector<128x128xf32>
      tpu.vector_store %arg8[%c0_11, %c0_12], %12 {strides = array<i32>} : memref<128x128xf32, #tpu.memory_space<vmem>>, vector<128x128xf32>,
    } else {
    }
    %c0 = arith.constant 0 : index
    %c0_1 = arith.constant 0 : index
    %3 = vector.load %arg8[%c0, %c0_1] : memref<128x128xf32, #tpu.memory_space<vmem>>, vector<128x128xf32>
    %c0_2 = arith.constant 0 : index
    %c0_3 = arith.constant 0 : index
    %4 = vector.load %arg3[%c0_2, %c0_3] : memref<128x640xbf16, #tpu.memory_space<vmem>>, vector<128x640xbf16>
    %c0_4 = arith.constant 0 : index
    %c0_5 = arith.constant 0 : index
    %5 = vector.load %arg4[%c0_4, %c0_5] : memref<640x128xbf16, #tpu.memory_space<vmem>>, vector<640x128xbf16>
    %cst = arith.constant dense<0.000000e+00> : vector<128x128xf32>
    %6 = tpu.matmul %4, %5, %cst {dimension_numbers = #tpu.dot_dimension_numbers<[1], [0], [0], [1], [0, 0, 1, 1], [], []>} : vector<128x640xbf16>, vector<640x128xbf16>, vector<128x128xf32> -> vector<128x128xf32>
    %7 = arith.addf %3, %6 : vector<128x128xf32>
    %c0_6 = arith.constant 0 : index
    %c0_7 = arith.constant 0 : index
    %8 = vector.load %arg8[%c0_6, %c0_7] : memref<128x128xf32, #tpu.memory_space<vmem>>, vector<128x128xf32>
    tpu.vector_store %arg8[%c0_6, %c0_7], %7 {strides = array<i32>} : memref<128x128xf32, #tpu.memory_space<vmem>>, vector<128x128xf32>,
    %c0_i32_8 = arith.constant 0 : i32
    %9 = arith.cmpi eq, %arg2, %c0_i32_8 : i32
    %10 = arith.extui %9 : i1 to i32
    %c0_i32_9 = arith.constant 0 : i32
    %11 = arith.cmpi ne, %10, %c0_i32_9 : i32
    scf.if %11 {
      %c0_10 = arith.constant 0 : index
      %c0_11 = arith.constant 0 : index
      %12 = vector.load %arg8[%c0_10, %c0_11] : memref<128x128xf32, #tpu.memory_space<vmem>>, vector<128x128xf32>
      %c0_12 = arith.constant 0 : index
      %c0_13 = arith.constant 0 : index
      %13 = vector.load %arg5[%c0_12, %c0_13] : memref<1x128xf32, #tpu.memory_space<vmem>>, vector<1x128xf32>
      %14 = vector.broadcast %13 : vector<1x128xf32> to vector<128x128xf32>
      %15 = arith.mulf %12, %14 : vector<128x128xf32>
      %c0_14 = arith.constant 0 : index
      %c0_15 = arith.constant 0 : index
      %16 = vector.load %arg6[%c0_14, %c0_15] : memref<1x128xf32, #tpu.memory_space<vmem>>, vector<1x128xf32>
      %17 = vector.broadcast %16 : vector<1x128xf32> to vector<128x128xf32>
      %18 = arith.addf %15, %17 : vector<128x128xf32>
      %cst_16 = arith.constant 0.000000e+00 : f32
      %19 = vector.broadcast %cst_16 : f32 to vector<128x128xf32>
      %20 = arith.maximumf %18, %19 : vector<128x128xf32>
      %c0_17 = arith.constant 0 : index
      %c0_18 = arith.constant 0 : index
      %21 = vector.load %arg7[%c0_17, %c0_18] : memref<128x128xf32, #tpu.memory_space<vmem>>, vector<128x128xf32>
      tpu.vector_store %arg7[%c0_17, %c0_18], %20 {strides = array<i32>} : memref<128x128xf32, #tpu.memory_space<vmem>>, vector<128x128xf32>,
    } else {
    }
    return
  }
  func.func @transform_0(%arg0: i32, %arg1: i32, %arg2: i32) -> (i32, i32) {
    %c0_i32 = arith.constant 0 : i32
    return %arg0, %arg2 : i32, i32
  }
  func.func @transform_1(%arg0: i32, %arg1: i32, %arg2: i32) -> (i32, i32) {
    %c0_i32 = arith.constant 0 : i32
    return %arg2, %arg1 : i32, i32
  }
  func.func @transform_2(%arg0: i32, %arg1: i32, %arg2: i32) -> (i32, i32) {
    %c0_i32 = arith.constant 0 : i32
    %c0_i32_0 = arith.constant 0 : i32
    return %c0_i32, %arg1 : i32, i32
  }
  func.func @transform_3(%arg0: i32, %arg1: i32, %arg2: i32) -> (i32, i32) {
    %c0_i32 = arith.constant 0 : i32
    %c0_i32_0 = arith.constant 0 : i32
    return %c0_i32, %arg1 : i32, i32
  }
  func.func @transform_4(%arg0: i32, %arg1: i32, %arg2: i32) -> (i32, i32) {
    %c0_i32 = arith.constant 0 : i32
    return %arg0, %arg1 : i32, i32
  }
}

module attributes {stable_mosaic.version = 11 : i64} {
  func.func @_mm_affine_kernel(%arg0: i32, %arg1: i32, %arg2: i32, %arg3: memref<32x1152xbf16, #tpu.memory_space<vmem>>, %arg4: memref<1152x256xbf16, #tpu.memory_space<vmem>>, %arg5: memref<1x256xf32, #tpu.memory_space<vmem>>, %arg6: memref<1x256xf32, #tpu.memory_space<vmem>>, %arg7: memref<32x256xf32, #tpu.memory_space<vmem>>, %arg8: memref<32x256xf32, #tpu.memory_space<vmem>>) attributes {dimension_semantics = [#tpu.dimension_semantics<parallel>, #tpu.dimension_semantics<parallel>, #tpu.dimension_semantics<arbitrary>], iteration_bounds = array<i64: 1, 1, 1>, scalar_prefetch = 0 : i64, scratch_operands = 1 : i64, tpu.core_type = #tpu.core_type<tc>, window_params = [{transform_indices = @transform_0, window_bounds = array<i64: 32, 1152>}, {transform_indices = @transform_1, window_bounds = array<i64: 1152, 256>}, {transform_indices = @transform_2, window_bounds = array<i64: 1, 256>}, {transform_indices = @transform_3, window_bounds = array<i64: 1, 256>}, {transform_indices = @transform_4, window_bounds = array<i64: 32, 256>}]} {
    %c0_i32 = arith.constant 0 : i32
    %0 = arith.cmpi eq, %arg2, %c0_i32 : i32
    %1 = arith.extui %0 : i1 to i32
    %c0_i32_0 = arith.constant 0 : i32
    %2 = arith.cmpi ne, %1, %c0_i32_0 : i32
    scf.if %2 {
      %cst_10 = arith.constant 0.000000e+00 : f32
      %12 = vector.broadcast %cst_10 : f32 to vector<32x256xf32>
      %c0_11 = arith.constant 0 : index
      %c0_12 = arith.constant 0 : index
      %13 = vector.load %arg8[%c0_11, %c0_12] : memref<32x256xf32, #tpu.memory_space<vmem>>, vector<32x256xf32>
      tpu.vector_store %arg8[%c0_11, %c0_12], %12 {strides = array<i32>} : memref<32x256xf32, #tpu.memory_space<vmem>>, vector<32x256xf32>,
    } else {
    }
    %c0 = arith.constant 0 : index
    %c0_1 = arith.constant 0 : index
    %3 = vector.load %arg8[%c0, %c0_1] : memref<32x256xf32, #tpu.memory_space<vmem>>, vector<32x256xf32>
    %c0_2 = arith.constant 0 : index
    %c0_3 = arith.constant 0 : index
    %4 = vector.load %arg3[%c0_2, %c0_3] : memref<32x1152xbf16, #tpu.memory_space<vmem>>, vector<32x1152xbf16>
    %c0_4 = arith.constant 0 : index
    %c0_5 = arith.constant 0 : index
    %5 = vector.load %arg4[%c0_4, %c0_5] : memref<1152x256xbf16, #tpu.memory_space<vmem>>, vector<1152x256xbf16>
    %cst = arith.constant dense<0.000000e+00> : vector<32x256xf32>
    %6 = tpu.matmul %4, %5, %cst {dimension_numbers = #tpu.dot_dimension_numbers<[1], [0], [0], [1], [0, 0, 1, 1], [], []>} : vector<32x1152xbf16>, vector<1152x256xbf16>, vector<32x256xf32> -> vector<32x256xf32>
    %7 = arith.addf %3, %6 : vector<32x256xf32>
    %c0_6 = arith.constant 0 : index
    %c0_7 = arith.constant 0 : index
    %8 = vector.load %arg8[%c0_6, %c0_7] : memref<32x256xf32, #tpu.memory_space<vmem>>, vector<32x256xf32>
    tpu.vector_store %arg8[%c0_6, %c0_7], %7 {strides = array<i32>} : memref<32x256xf32, #tpu.memory_space<vmem>>, vector<32x256xf32>,
    %c0_i32_8 = arith.constant 0 : i32
    %9 = arith.cmpi eq, %arg2, %c0_i32_8 : i32
    %10 = arith.extui %9 : i1 to i32
    %c0_i32_9 = arith.constant 0 : i32
    %11 = arith.cmpi ne, %10, %c0_i32_9 : i32
    scf.if %11 {
      %c0_10 = arith.constant 0 : index
      %c0_11 = arith.constant 0 : index
      %12 = vector.load %arg8[%c0_10, %c0_11] : memref<32x256xf32, #tpu.memory_space<vmem>>, vector<32x256xf32>
      %c0_12 = arith.constant 0 : index
      %c0_13 = arith.constant 0 : index
      %13 = vector.load %arg5[%c0_12, %c0_13] : memref<1x256xf32, #tpu.memory_space<vmem>>, vector<1x256xf32>
      %14 = vector.broadcast %13 : vector<1x256xf32> to vector<32x256xf32>
      %15 = arith.mulf %12, %14 : vector<32x256xf32>
      %c0_14 = arith.constant 0 : index
      %c0_15 = arith.constant 0 : index
      %16 = vector.load %arg6[%c0_14, %c0_15] : memref<1x256xf32, #tpu.memory_space<vmem>>, vector<1x256xf32>
      %17 = vector.broadcast %16 : vector<1x256xf32> to vector<32x256xf32>
      %18 = arith.addf %15, %17 : vector<32x256xf32>
      %cst_16 = arith.constant 0.000000e+00 : f32
      %19 = vector.broadcast %cst_16 : f32 to vector<32x256xf32>
      %20 = arith.maximumf %18, %19 : vector<32x256xf32>
      %c0_17 = arith.constant 0 : index
      %c0_18 = arith.constant 0 : index
      %21 = vector.load %arg7[%c0_17, %c0_18] : memref<32x256xf32, #tpu.memory_space<vmem>>, vector<32x256xf32>
      tpu.vector_store %arg7[%c0_17, %c0_18], %20 {strides = array<i32>} : memref<32x256xf32, #tpu.memory_space<vmem>>, vector<32x256xf32>,
    } else {
    }
    return
  }
  func.func @transform_0(%arg0: i32, %arg1: i32, %arg2: i32) -> (i32, i32) {
    %c0_i32 = arith.constant 0 : i32
    return %arg0, %arg2 : i32, i32
  }
  func.func @transform_1(%arg0: i32, %arg1: i32, %arg2: i32) -> (i32, i32) {
    %c0_i32 = arith.constant 0 : i32
    return %arg2, %arg1 : i32, i32
  }
  func.func @transform_2(%arg0: i32, %arg1: i32, %arg2: i32) -> (i32, i32) {
    %c0_i32 = arith.constant 0 : i32
    %c0_i32_0 = arith.constant 0 : i32
    return %c0_i32, %arg1 : i32, i32
  }
  func.func @transform_3(%arg0: i32, %arg1: i32, %arg2: i32) -> (i32, i32) {
    %c0_i32 = arith.constant 0 : i32
    %c0_i32_0 = arith.constant 0 : i32
    return %c0_i32, %arg1 : i32, i32
  }
  func.func @transform_4(%arg0: i32, %arg1: i32, %arg2: i32) -> (i32, i32) {
    %c0_i32 = arith.constant 0 : i32
    return %arg0, %arg1 : i32, i32
  }
}

module attributes {stable_mosaic.version = 11 : i64} {
  func.func @_mm_affine_kernel(%arg0: i32, %arg1: i32, %arg2: i32, %arg3: memref<8x1152xbf16, #tpu.memory_space<vmem>>, %arg4: memref<1152x256xbf16, #tpu.memory_space<vmem>>, %arg5: memref<1x256xf32, #tpu.memory_space<vmem>>, %arg6: memref<1x256xf32, #tpu.memory_space<vmem>>, %arg7: memref<8x256xf32, #tpu.memory_space<vmem>>, %arg8: memref<8x256xf32, #tpu.memory_space<vmem>>) attributes {dimension_semantics = [#tpu.dimension_semantics<parallel>, #tpu.dimension_semantics<parallel>, #tpu.dimension_semantics<arbitrary>], iteration_bounds = array<i64: 1, 2, 2>, scalar_prefetch = 0 : i64, scratch_operands = 1 : i64, tpu.core_type = #tpu.core_type<tc>, window_params = [{transform_indices = @transform_0, window_bounds = array<i64: 8, 1152>}, {transform_indices = @transform_1, window_bounds = array<i64: 1152, 256>}, {transform_indices = @transform_2, window_bounds = array<i64: 1, 256>}, {transform_indices = @transform_3, window_bounds = array<i64: 1, 256>}, {transform_indices = @transform_4, window_bounds = array<i64: 8, 256>}]} {
    %c0_i32 = arith.constant 0 : i32
    %0 = arith.cmpi eq, %arg2, %c0_i32 : i32
    %1 = arith.extui %0 : i1 to i32
    %c0_i32_0 = arith.constant 0 : i32
    %2 = arith.cmpi ne, %1, %c0_i32_0 : i32
    scf.if %2 {
      %cst_9 = arith.constant 0.000000e+00 : f32
      %12 = vector.broadcast %cst_9 : f32 to vector<8x256xf32>
      %c0_10 = arith.constant 0 : index
      %c0_11 = arith.constant 0 : index
      %13 = vector.load %arg8[%c0_10, %c0_11] : memref<8x256xf32, #tpu.memory_space<vmem>>, vector<8x256xf32>
      tpu.vector_store %arg8[%c0_10, %c0_11], %12 {strides = array<i32>} : memref<8x256xf32, #tpu.memory_space<vmem>>, vector<8x256xf32>,
    } else {
    }
    %c0 = arith.constant 0 : index
    %c0_1 = arith.constant 0 : index
    %3 = vector.load %arg8[%c0, %c0_1] : memref<8x256xf32, #tpu.memory_space<vmem>>, vector<8x256xf32>
    %c0_2 = arith.constant 0 : index
    %c0_3 = arith.constant 0 : index
    %4 = vector.load %arg3[%c0_2, %c0_3] : memref<8x1152xbf16, #tpu.memory_space<vmem>>, vector<8x1152xbf16>
    %c0_4 = arith.constant 0 : index
    %c0_5 = arith.constant 0 : index
    %5 = vector.load %arg4[%c0_4, %c0_5] : memref<1152x256xbf16, #tpu.memory_space<vmem>>, vector<1152x256xbf16>
    %cst = arith.constant dense<0.000000e+00> : vector<8x256xf32>
    %6 = tpu.matmul %4, %5, %cst {dimension_numbers = #tpu.dot_dimension_numbers<[1], [0], [0], [1], [0, 0, 1, 1], [], []>} : vector<8x1152xbf16>, vector<1152x256xbf16>, vector<8x256xf32> -> vector<8x256xf32>
    %7 = arith.addf %3, %6 : vector<8x256xf32>
    %c0_6 = arith.constant 0 : index
    %c0_7 = arith.constant 0 : index
    %8 = vector.load %arg8[%c0_6, %c0_7] : memref<8x256xf32, #tpu.memory_space<vmem>>, vector<8x256xf32>
    tpu.vector_store %arg8[%c0_6, %c0_7], %7 {strides = array<i32>} : memref<8x256xf32, #tpu.memory_space<vmem>>, vector<8x256xf32>,
    %c1_i32 = arith.constant 1 : i32
    %9 = arith.cmpi eq, %arg2, %c1_i32 : i32
    %10 = arith.extui %9 : i1 to i32
    %c0_i32_8 = arith.constant 0 : i32
    %11 = arith.cmpi ne, %10, %c0_i32_8 : i32
    scf.if %11 {
      %c0_9 = arith.constant 0 : index
      %c0_10 = arith.constant 0 : index
      %12 = vector.load %arg8[%c0_9, %c0_10] : memref<8x256xf32, #tpu.memory_space<vmem>>, vector<8x256xf32>
      %c0_11 = arith.constant 0 : index
      %c0_12 = arith.constant 0 : index
      %13 = vector.load %arg5[%c0_11, %c0_12] : memref<1x256xf32, #tpu.memory_space<vmem>>, vector<1x256xf32>
      %14 = vector.broadcast %13 : vector<1x256xf32> to vector<8x256xf32>
      %15 = arith.mulf %12, %14 : vector<8x256xf32>
      %c0_13 = arith.constant 0 : index
      %c0_14 = arith.constant 0 : index
      %16 = vector.load %arg6[%c0_13, %c0_14] : memref<1x256xf32, #tpu.memory_space<vmem>>, vector<1x256xf32>
      %17 = vector.broadcast %16 : vector<1x256xf32> to vector<8x256xf32>
      %18 = arith.addf %15, %17 : vector<8x256xf32>
      %cst_15 = arith.constant 0.000000e+00 : f32
      %19 = vector.broadcast %cst_15 : f32 to vector<8x256xf32>
      %20 = arith.maximumf %18, %19 : vector<8x256xf32>
      %c0_16 = arith.constant 0 : index
      %c0_17 = arith.constant 0 : index
      %21 = vector.load %arg7[%c0_16, %c0_17] : memref<8x256xf32, #tpu.memory_space<vmem>>, vector<8x256xf32>
      tpu.vector_store %arg7[%c0_16, %c0_17], %20 {strides = array<i32>} : memref<8x256xf32, #tpu.memory_space<vmem>>, vector<8x256xf32>,
    } else {
    }
    return
  }
  func.func @transform_0(%arg0: i32, %arg1: i32, %arg2: i32) -> (i32, i32) {
    %c0_i32 = arith.constant 0 : i32
    return %arg0, %arg2 : i32, i32
  }
  func.func @transform_1(%arg0: i32, %arg1: i32, %arg2: i32) -> (i32, i32) {
    %c0_i32 = arith.constant 0 : i32
    return %arg2, %arg1 : i32, i32
  }
  func.func @transform_2(%arg0: i32, %arg1: i32, %arg2: i32) -> (i32, i32) {
    %c0_i32 = arith.constant 0 : i32
    %c0_i32_0 = arith.constant 0 : i32
    return %c0_i32, %arg1 : i32, i32
  }
  func.func @transform_3(%arg0: i32, %arg1: i32, %arg2: i32) -> (i32, i32) {
    %c0_i32 = arith.constant 0 : i32
    %c0_i32_0 = arith.constant 0 : i32
    return %c0_i32, %arg1 : i32, i32
  }
  func.func @transform_4(%arg0: i32, %arg1: i32, %arg2: i32) -> (i32, i32) {
    %c0_i32 = arith.constant 0 : i32
    return %arg0, %arg1 : i32, i32
  }
}

module attributes {stable_mosaic.version = 11 : i64} {
  func.func @_fc_head_kernel(%arg0: i32, %arg1: memref<8x512xf32, #tpu.memory_space<vmem>>, %arg2: memref<512x256xf32, #tpu.memory_space<vmem>>, %arg3: memref<1x256xf32, #tpu.memory_space<vmem>>, %arg4: memref<256x40xf32, #tpu.memory_space<vmem>>, %arg5: memref<1x40xf32, #tpu.memory_space<vmem>>, %arg6: memref<8x40xf32, #tpu.memory_space<vmem>>) attributes {dimension_semantics = [#tpu.dimension_semantics<arbitrary>], iteration_bounds = array<i64: 1>, scalar_prefetch = 0 : i64, scratch_operands = 0 : i64, tpu.core_type = #tpu.core_type<tc>, window_params = [{pipeline_mode = #tpu.pipeline_mode<synchronous>, transform_indices = @transform_0, window_bounds = array<i64: 8, 512>}, {pipeline_mode = #tpu.pipeline_mode<synchronous>, transform_indices = @transform_1, window_bounds = array<i64: 512, 256>}, {pipeline_mode = #tpu.pipeline_mode<synchronous>, transform_indices = @transform_2, window_bounds = array<i64: 1, 256>}, {pipeline_mode = #tpu.pipeline_mode<synchronous>, transform_indices = @transform_3, window_bounds = array<i64: 256, 40>}, {pipeline_mode = #tpu.pipeline_mode<synchronous>, transform_indices = @transform_4, window_bounds = array<i64: 1, 40>}, {pipeline_mode = #tpu.pipeline_mode<synchronous>, transform_indices = @transform_5, window_bounds = array<i64: 8, 40>}]} {
    %c0 = arith.constant 0 : index
    %c0_0 = arith.constant 0 : index
    %0 = vector.load %arg1[%c0, %c0_0] : memref<8x512xf32, #tpu.memory_space<vmem>>, vector<8x512xf32>
    %c0_1 = arith.constant 0 : index
    %c0_2 = arith.constant 0 : index
    %1 = vector.load %arg2[%c0_1, %c0_2] : memref<512x256xf32, #tpu.memory_space<vmem>>, vector<512x256xf32>
    %cst = arith.constant dense<0.000000e+00> : vector<8x256xf32>
    %2 = tpu.matmul %0, %1, %cst {dimension_numbers = #tpu.dot_dimension_numbers<[1], [0], [0], [1], [0, 0, 1, 1], [], []>} : vector<8x512xf32>, vector<512x256xf32>, vector<8x256xf32> -> vector<8x256xf32>
    %c0_3 = arith.constant 0 : index
    %c0_4 = arith.constant 0 : index
    %3 = vector.load %arg3[%c0_3, %c0_4] : memref<1x256xf32, #tpu.memory_space<vmem>>, vector<1x256xf32>
    %4 = vector.broadcast %3 : vector<1x256xf32> to vector<8x256xf32>
    %5 = arith.addf %2, %4 : vector<8x256xf32>
    %cst_5 = arith.constant 0.000000e+00 : f32
    %6 = vector.broadcast %cst_5 : f32 to vector<8x256xf32>
    %7 = arith.maximumf %5, %6 : vector<8x256xf32>
    %c0_6 = arith.constant 0 : index
    %c0_7 = arith.constant 0 : index
    %8 = vector.load %arg4[%c0_6, %c0_7] : memref<256x40xf32, #tpu.memory_space<vmem>>, vector<256x40xf32>
    %cst_8 = arith.constant dense<0.000000e+00> : vector<8x40xf32>
    %9 = tpu.matmul %7, %8, %cst_8 {dimension_numbers = #tpu.dot_dimension_numbers<[1], [0], [0], [1], [0, 0, 1, 1], [], []>} : vector<8x256xf32>, vector<256x40xf32>, vector<8x40xf32> -> vector<8x40xf32>
    %c0_9 = arith.constant 0 : index
    %c0_10 = arith.constant 0 : index
    %10 = vector.load %arg5[%c0_9, %c0_10] : memref<1x40xf32, #tpu.memory_space<vmem>>, vector<1x40xf32>
    %11 = vector.broadcast %10 : vector<1x40xf32> to vector<8x40xf32>
    %12 = arith.addf %9, %11 : vector<8x40xf32>
    %c0_11 = arith.constant 0 : index
    %c0_12 = arith.constant 0 : index
    %13 = vector.load %arg6[%c0_11, %c0_12] : memref<8x40xf32, #tpu.memory_space<vmem>>, vector<8x40xf32>
    tpu.vector_store %arg6[%c0_11, %c0_12], %12 {strides = array<i32>} : memref<8x40xf32, #tpu.memory_space<vmem>>, vector<8x40xf32>,
    return
  }
  func.func @transform_0(%arg0: i32) -> (i32, i32) {
    %c0_i32 = arith.constant 0 : i32
    %c0_i32_0 = arith.constant 0 : i32
    %c0_i32_1 = arith.constant 0 : i32
    return %c0_i32, %c0_i32_0 : i32, i32
  }
  func.func @transform_1(%arg0: i32) -> (i32, i32) {
    %c0_i32 = arith.constant 0 : i32
    %c0_i32_0 = arith.constant 0 : i32
    %c0_i32_1 = arith.constant 0 : i32
    return %c0_i32, %c0_i32_0 : i32, i32
  }
  func.func @transform_2(%arg0: i32) -> (i32, i32) {
    %c0_i32 = arith.constant 0 : i32
    %c0_i32_0 = arith.constant 0 : i32
    %c0_i32_1 = arith.constant 0 : i32
    return %c0_i32, %c0_i32_0 : i32, i32
  }
  func.func @transform_3(%arg0: i32) -> (i32, i32) {
    %c0_i32 = arith.constant 0 : i32
    %c0_i32_0 = arith.constant 0 : i32
    %c0_i32_1 = arith.constant 0 : i32
    return %c0_i32, %c0_i32_0 : i32, i32
  }
  func.func @transform_4(%arg0: i32) -> (i32, i32) {
    %c0_i32 = arith.constant 0 : i32
    %c0_i32_0 = arith.constant 0 : i32
    %c0_i32_1 = arith.constant 0 : i32
    return %c0_i32, %c0_i32_0 : i32, i32
  }
  func.func @transform_5(%arg0: i32) -> (i32, i32) {
    %c0_i32 = arith.constant 0 : i32
    %c0_i32_0 = arith.constant 0 : i32
    %c0_i32_1 = arith.constant 0 : i32
    return %c0_i32, %c0_i32_0 : i32, i32
  }
}

module attributes {stable_mosaic.version = 11 : i64} {
  func.func @_tps_sample_kernel(%arg0: i32, %arg1: i32, %arg2: memref<23x256xf32, #tpu.memory_space<vmem>>, %arg3: memref<1x2x23xf32, #tpu.memory_space<vmem>>, %arg4: memref<1x16x16xf32, #tpu.memory_space<vmem>>, %arg5: memref<1x1x256xf32, #tpu.memory_space<vmem>>) attributes {dimension_semantics = [#tpu.dimension_semantics<parallel>, #tpu.dimension_semantics<parallel>], iteration_bounds = array<i64: 2, 1>, scalar_prefetch = 0 : i64, scratch_operands = 0 : i64, tpu.core_type = #tpu.core_type<tc>, window_params = [{transform_indices = @transform_0, window_bounds = array<i64: 23, 256>}, {transform_indices = @transform_1, window_bounds = array<i64: 1, 2, 23>}, {transform_indices = @transform_2, window_bounds = array<i64: 1, 16, 16>}, {transform_indices = @transform_3, window_bounds = array<i64: 1, 1, 256>}]} {
    %c0 = arith.constant 0 : index
    %c0_0 = arith.constant 0 : index
    %c0_1 = arith.constant 0 : index
    %0 = vector.load %arg3[%c0, %c0_0, %c0_1] : memref<1x2x23xf32, #tpu.memory_space<vmem>>, vector<1x2x23xf32>
    %1 = vector.shape_cast %0 : vector<1x2x23xf32> to vector<2x23xf32>
    %c0_2 = arith.constant 0 : index
    %c0_3 = arith.constant 0 : index
    %2 = vector.load %arg2[%c0_2, %c0_3] : memref<23x256xf32, #tpu.memory_space<vmem>>, vector<23x256xf32>
    %cst = arith.constant dense<0.000000e+00> : vector<2x256xf32>
    %3 = tpu.matmul %1, %2, %cst {dimension_numbers = #tpu.dot_dimension_numbers<[1], [0], [0], [1], [0, 0, 1, 1], [], []>} : vector<2x23xf32>, vector<23x256xf32>, vector<2x256xf32> -> vector<2x256xf32>
    %4 = vector.extract_strided_slice %3 {offsets = [0, 0], sizes = [1, 256], strides = [1, 1]} : vector<2x256xf32> to vector<1x256xf32>
    %5 = vector.extract_strided_slice %3 {offsets = [1, 0], sizes = [1, 256], strides = [1, 1]} : vector<2x256xf32> to vector<1x256xf32>
    %cst_4 = arith.constant 1.000000e+00 : f32
    %6 = vector.broadcast %cst_4 : f32 to vector<1x256xf32>
    %7 = arith.addf %4, %6 : vector<1x256xf32>
    %cst_5 = arith.constant 5.000000e-01 : f32
    %8 = vector.broadcast %cst_5 : f32 to vector<1x256xf32>
    %9 = arith.mulf %7, %8 : vector<1x256xf32>
    %cst_6 = arith.constant 1.500000e+01 : f32
    %10 = vector.broadcast %cst_6 : f32 to vector<1x256xf32>
    %11 = arith.mulf %9, %10 : vector<1x256xf32>
    %cst_7 = arith.constant 0.000000e+00 : f32
    %cst_8 = arith.constant 1.500000e+01 : f32
    %12 = vector.broadcast %cst_7 : f32 to vector<1x256xf32>
    %13 = arith.maximumf %12, %11 : vector<1x256xf32>
    %14 = vector.broadcast %cst_8 : f32 to vector<1x256xf32>
    %15 = arith.minimumf %14, %13 : vector<1x256xf32>
    %cst_9 = arith.constant 1.000000e+00 : f32
    %16 = vector.broadcast %cst_9 : f32 to vector<1x256xf32>
    %17 = arith.addf %5, %16 : vector<1x256xf32>
    %cst_10 = arith.constant 5.000000e-01 : f32
    %18 = vector.broadcast %cst_10 : f32 to vector<1x256xf32>
    %19 = arith.mulf %17, %18 : vector<1x256xf32>
    %cst_11 = arith.constant 1.500000e+01 : f32
    %20 = vector.broadcast %cst_11 : f32 to vector<1x256xf32>
    %21 = arith.mulf %19, %20 : vector<1x256xf32>
    %cst_12 = arith.constant 0.000000e+00 : f32
    %cst_13 = arith.constant 1.500000e+01 : f32
    %22 = vector.broadcast %cst_12 : f32 to vector<1x256xf32>
    %23 = arith.maximumf %22, %21 : vector<1x256xf32>
    %24 = vector.broadcast %cst_13 : f32 to vector<1x256xf32>
    %25 = arith.minimumf %24, %23 : vector<1x256xf32>
    %26 = math.floor %15 : vector<1x256xf32>
    %27 = math.floor %25 : vector<1x256xf32>
    %28 = arith.subf %15, %26 : vector<1x256xf32>
    %cst_14 = arith.constant 1.000000e+00 : f32
    %29 = vector.broadcast %cst_14 : f32 to vector<1x256xf32>
    %30 = arith.subf %29, %28 : vector<1x256xf32>
    %31 = arith.subf %25, %27 : vector<1x256xf32>
    %cst_15 = arith.constant 1.000000e+00 : f32
    %32 = vector.broadcast %cst_15 : f32 to vector<1x256xf32>
    %33 = arith.subf %32, %31 : vector<1x256xf32>
    %34 = arith.fptosi %26 : vector<1x256xf32> to vector<1x256xi32>
    %35 = arith.fptosi %27 : vector<1x256xf32> to vector<1x256xi32>
    %c1_i32 = arith.constant 1 : i32
    %36 = vector.broadcast %c1_i32 : i32 to vector<1x256xi32>
    %37 = arith.addi %34, %36 : vector<1x256xi32>
    %c15_i32 = arith.constant 15 : i32
    %38 = vector.broadcast %c15_i32 : i32 to vector<1x256xi32>
    %39 = arith.minsi %37, %38 : vector<1x256xi32>
    %c1_i32_16 = arith.constant 1 : i32
    %40 = vector.broadcast %c1_i32_16 : i32 to vector<1x256xi32>
    %41 = arith.addi %35, %40 : vector<1x256xi32>
    %c15_i32_17 = arith.constant 15 : i32
    %42 = vector.broadcast %c15_i32_17 : i32 to vector<1x256xi32>
    %43 = arith.minsi %41, %42 : vector<1x256xi32>
    %44 = tpu.iota {dimensions = array<i32: 0>} : vector<16x256xi32>
    %45 = tpu.iota {dimensions = array<i32: 0>} : vector<16x256xi32>
    %46 = vector.broadcast %34 : vector<1x256xi32> to vector<16x256xi32>
    %47 = arith.cmpi eq, %44, %46 : vector<16x256xi32>
    %48 = arith.extui %47 : vector<16x256xi1> to vector<16x256xi32>
    %49 = arith.sitofp %48 : vector<16x256xi32> to vector<16x256xf32>
    %50 = vector.broadcast %30 : vector<1x256xf32> to vector<16x256xf32>
    %51 = arith.mulf %50, %49 : vector<16x256xf32>
    %52 = vector.broadcast %39 : vector<1x256xi32> to vector<16x256xi32>
    %53 = arith.cmpi eq, %44, %52 : vector<16x256xi32>
    %54 = arith.extui %53 : vector<16x256xi1> to vector<16x256xi32>
    %55 = arith.sitofp %54 : vector<16x256xi32> to vector<16x256xf32>
    %56 = vector.broadcast %28 : vector<1x256xf32> to vector<16x256xf32>
    %57 = arith.mulf %56, %55 : vector<16x256xf32>
    %58 = arith.addf %51, %57 : vector<16x256xf32>
    %59 = vector.broadcast %35 : vector<1x256xi32> to vector<16x256xi32>
    %60 = arith.cmpi eq, %45, %59 : vector<16x256xi32>
    %61 = arith.extui %60 : vector<16x256xi1> to vector<16x256xi32>
    %62 = arith.sitofp %61 : vector<16x256xi32> to vector<16x256xf32>
    %63 = vector.broadcast %33 : vector<1x256xf32> to vector<16x256xf32>
    %64 = arith.mulf %63, %62 : vector<16x256xf32>
    %65 = vector.broadcast %43 : vector<1x256xi32> to vector<16x256xi32>
    %66 = arith.cmpi eq, %45, %65 : vector<16x256xi32>
    %67 = arith.extui %66 : vector<16x256xi1> to vector<16x256xi32>
    %68 = arith.sitofp %67 : vector<16x256xi32> to vector<16x256xf32>
    %69 = vector.broadcast %31 : vector<1x256xf32> to vector<16x256xf32>
    %70 = arith.mulf %69, %68 : vector<16x256xf32>
    %71 = arith.addf %64, %70 : vector<16x256xf32>
    %c0_18 = arith.constant 0 : index
    %c0_19 = arith.constant 0 : index
    %c0_20 = arith.constant 0 : index
    %72 = vector.load %arg4[%c0_18, %c0_19, %c0_20] : memref<1x16x16xf32, #tpu.memory_space<vmem>>, vector<1x16x16xf32>
    %73 = vector.shape_cast %72 : vector<1x16x16xf32> to vector<16x16xf32>
    %cst_21 = arith.constant dense<0.000000e+00> : vector<16x256xf32>
    %74 = tpu.matmul %73, %58, %cst_21 {dimension_numbers = #tpu.dot_dimension_numbers<[1], [0], [0], [1], [0, 0, 1, 1], [], []>} : vector<16x16xf32>, vector<16x256xf32>, vector<16x256xf32> -> vector<16x256xf32>
    %75 = arith.mulf %74, %71 : vector<16x256xf32>
    %cst_22 = arith.constant dense<0.000000e+00> : vector<256xf32>
    %76 = vector.multi_reduction <add>, %75, %cst_22 [0] : vector<16x256xf32> to vector<256xf32>
    %77 = vector.shape_cast %76 : vector<256xf32> to vector<1x256xf32>
    %c0_23 = arith.constant 0 : index
    %c0_24 = arith.constant 0 : index
    %c0_25 = arith.constant 0 : index
    %78 = vector.load %arg5[%c0_23, %c0_24, %c0_25] : memref<1x1x256xf32, #tpu.memory_space<vmem>>, vector<1x1x256xf32>
    %79 = vector.shape_cast %78 : vector<1x1x256xf32> to vector<1x256xf32>
    %80 = vector.shape_cast %77 : vector<1x256xf32> to vector<1x1x256xf32>
    tpu.vector_store %arg5[%c0_23, %c0_24, %c0_25], %80 {strides = array<i32>} : memref<1x1x256xf32, #tpu.memory_space<vmem>>, vector<1x1x256xf32>,
    return
  }
  func.func @transform_0(%arg0: i32, %arg1: i32) -> (i32, i32) {
    %c0_i32 = arith.constant 0 : i32
    %c0_i32_0 = arith.constant 0 : i32
    return %c0_i32, %arg1 : i32, i32
  }
  func.func @transform_1(%arg0: i32, %arg1: i32) -> (i32, i32, i32) {
    %c0_i32 = arith.constant 0 : i32
    %c0_i32_0 = arith.constant 0 : i32
    %c0_i32_1 = arith.constant 0 : i32
    return %arg0, %c0_i32, %c0_i32_0 : i32, i32, i32
  }
  func.func @transform_2(%arg0: i32, %arg1: i32) -> (i32, i32, i32) {
    %c0_i32 = arith.constant 0 : i32
    %c0_i32_0 = arith.constant 0 : i32
    %c0_i32_1 = arith.constant 0 : i32
    return %arg0, %c0_i32, %c0_i32_0 : i32, i32, i32
  }
  func.func @transform_3(%arg0: i32, %arg1: i32) -> (i32, i32, i32) {
    %c0_i32 = arith.constant 0 : i32
    %c0_i32_0 = arith.constant 0 : i32
    return %arg0, %c0_i32, %arg1 : i32, i32, i32
  }
}

</mosaic_0001>

<llo_original>
// kernel: tps_stn_forward.6
$region0: #{tps_stn_forward.6}
  #allocation0 [shape = 'u32[]', space=smem, size = 0x4, offset = 0x4, fixed_abs, tag = 'smem constant byte address 0x4 - core index']
  #allocation1 [shape = 'u32[144,128]{1,0:T(1,128)}', space=vmem, size = 0x12000, scoped, tag = 'internal scratch']
  #allocation2 [shape = 'f32[256,128]{1,0:T(8,128)}', space=vmem, size = 0x20000, scoped, tag = 'scratch operand']
  %s0 = inlined_call_operand.vmem [shape: bf16[512,128], index: 0, kind: input, shape index: {}]
  %s1 = inlined_call_operand.vmem [shape: bf16[128,128], index: 1, kind: input, shape index: {}]
  %s2 = inlined_call_operand.vmem [shape: f32[1,128], index: 2, kind: input, shape index: {}]
  %s3 = inlined_call_operand.vmem [shape: f32[1,128], index: 3, kind: input, shape index: {}]
  %s4 = inlined_call_operand.vmem [shape: f32[512,128], index: 4, kind: output, shape index: {}]
  %s5 = sld [smem:[#allocation0]]
  $region57: #{tps_stn_forward.6} parent=0
    _
  %s7 = ssub.s32 1, %s5
  %s8 = scalar_select 0, %s7, %s5
  loop: start=0, step=1, limit=4
  $region2: #{tps_stn_forward.6} parent=0 // loop_pre_header
    _
  $region3: #{tps_stn_forward.6} parent=0 // loop_header
    %s10 = sphi 0, %s14
    %p11 = scmp.ge.s32.totalorder %s10, 4
    %s17 = sphi 0, %s36
    %s18 = sphi 0, %s32
    %s19 = sphi 0, %s28
    %s20 = sphi 0, %s17
    %s21 = sphi 0, %s18
    %s22 = sphi 0, %s19
    %s23 = sphi 0, %s20
    %s24 = sphi 0, %s21
    %s25 = sphi 0, %s22
    %s41 = sphi 0, %s43
    %s44 = sphi 0, %s41
    %s45 = sphi 0, %s44
    %s61 = sphi 0, %s45
    %s69 = sphi 0, %s71
    %s72 = sphi 0, %s69
    %s73 = sphi 0, %s72
    %s89 = sphi 0, %s73
    %s95 = sphi 0, %s97
    %s98 = sphi 0, %s95
    %s99 = sphi 0, %s98
    %s115 = sphi 0, %s99
    %s121 = sphi 0, %s123
    %s124 = sphi 0, %s121
    %s125 = sphi 0, %s124
    %s141 = sphi 0, %s125
    %s149 = sphi 0, %s151
    %s152 = sphi 0, %s149
    %s153 = sphi 0, %s152
    %s169 = sphi 0, %s153
  $region4: #{tps_stn_forward.6} parent=0 // loop_header_branch
    %13 = sbr.rel (%p11) target = $region8
  $region5: #{tps_stn_forward.6} parent=0 // loop_body
    %s15 = ssub.s32 %s10, 1
    %s16 = ssub.s32 %s10, 2
    %s26 = sadd.s32 1, %s19
    %p27 = scmp.ge.s32.totalorder %s26, 1
    %s28 = scalar_select %p27, 0, %s26
    %s29 = sadd.s32 1, %s18
    %s30 = scalar_select %p27, %s29, %s18
    %p31 = scmp.ge.s32.totalorder %s30, 1
    %s32 = scalar_select %p31, 0, %s30
    %s33 = sadd.s32 1, %s17
    %s34 = scalar_select %p31, %s33, %s17
    %p35 = scmp.ge.s32.totalorder %s34, 2
    %s36 = scalar_select %p35, 0, %s34
    %s37 = ssub.s32 %s17, %s36
    %s38 = ssub.s32 %s19, %s28
    %s39 = sor.u32 %s37, %s38
    %p40 = scmp.eq.s32.totalorder %s39, 0
    %s42 = sadd.s32 %s41, 1
    %s43 = scalar_select %p40, %s41, %s42
    %p46 = pneg %p40
    %p47 = scmp.eq.s32.totalorder %s10, 1
    %p48 = por %p46, %p47
    %p49 = scmp.ne.s32.totalorder %s41, %s44
    %p50 = scmp.eq.s32.totalorder %s10, 0
    %p51 = por %p49, %p50
    %p52 = scmp.ne.s32.totalorder %s41, %s44
    %p53 = scmp.eq.s32.totalorder %s15, 1
    %p54 = por %p52, %p53
    %p55 = scmp.ne.s32.totalorder %s44, %s45
    %p56 = scmp.eq.s32.totalorder %s15, 0
    %p57 = por %p55, %p56
    %p58 = scmp.ne.s32.totalorder %s44, %s45
    %p59 = scmp.eq.s32.totalorder %s16, 1
    %p60 = por %p58, %p59
    %p62 = scmp.ne.s32.totalorder %s45, %s61
    %p63 = scmp.eq.s32.totalorder %s16, 0
    %p64 = por %p62, %p63
    %s65 = ssub.s32 %s19, %s28
    %s66 = ssub.s32 %s18, %s32
    %s67 = sor.u32 %s65, %s66
    %p68 = scmp.eq.s32.totalorder %s67, 0
    %s70 = sadd.s32 %s69, 1
    %s71 = scalar_select %p68, %s69, %s70
    %p74 = pneg %p68
    %p75 = scmp.eq.s32.totalorder %s10, 1
    %p76 = por %p74, %p75
    %p77 = scmp.ne.s32.totalorder %s69, %s72
    %p78 = scmp.eq.s32.totalorder %s10, 0
    %p79 = por %p77, %p78
    %p80 = scmp.ne.s32.totalorder %s69, %s72
    %p81 = scmp.eq.s32.totalorder %s15, 1
    %p82 = por %p80, %p81
    %p83 = scmp.ne.s32.totalorder %s72, %s73
    %p84 = scmp.eq.s32.totalorder %s15, 0
    %p85 = por %p83, %p84
    %p86 = scmp.ne.s32.totalorder %s72, %s73
    %p87 = scmp.eq.s32.totalorder %s16, 1
    %p88 = por %p86, %p87
    %p90 = scmp.ne.s32.totalorder %s73, %s89
    %p91 = scmp.eq.s32.totalorder %s16, 0
    %p92 = por %p90, %p91
    %s93 = ssub.s32 %s18, %s32
    %p94 = scmp.eq.s32.totalorder %s93, 0
    %s96 = sadd.s32 %s95, 1
    %s97 = scalar_select %p94, %s95, %s96
    %p100 = pneg %p94
    %p101 = scmp.eq.s32.totalorder %s10, 1
    %p102 = por %p100, %p101
    %p103 = scmp.ne.s32.totalorder %s95, %s98
    %p104 = scmp.eq.s32.totalorder %s10, 0
    %p105 = por %p103, %p104
    %p106 = scmp.ne.s32.totalorder %s95, %s98
    %p107 = scmp.eq.s32.totalorder %s15, 1
    %p108 = por %p106, %p107
    %p109 = scmp.ne.s32.totalorder %s98, %s99
    %p110 = scmp.eq.s32.totalorder %s15, 0
    %p111 = por %p109, %p110
    %p112 = scmp.ne.s32.totalorder %s98, %s99
    %p113 = scmp.eq.s32.totalorder %s16, 1
    %p114 = por %p112, %p113
    %p116 = scmp.ne.s32.totalorder %s99, %s115
    %p117 = scmp.eq.s32.totalorder %s16, 0
    %p118 = por %p116, %p117
    %s119 = ssub.s32 %s18, %s32
    %p120 = scmp.eq.s32.totalorder %s119, 0
    %s122 = sadd.s32 %s121, 1
    %s123 = scalar_select %p120, %s121, %s122
    %p126 = pneg %p120
    %p127 = scmp.eq.s32.totalorder %s10, 1
    %p128 = por %p126, %p127
    %p129 = scmp.ne.s32.totalorder %s121, %s124
    %p130 = scmp.eq.s32.totalorder %s10, 0
    %p131 = por %p129, %p130
    %p132 = scmp.ne.s32.totalorder %s121, %s124
    %p133 = scmp.eq.s32.totalorder %s15, 1
    %p134 = por %p132, %p133
    %p135 = scmp.ne.s32.totalorder %s124, %s125
    %p136 = scmp.eq.s32.totalorder %s15, 0
    %p137 = por %p135, %p136
    %p138 = scmp.ne.s32.totalorder %s124, %s125
    %p139 = scmp.eq.s32.totalorder %s16, 1
    %p140 = por %p138, %p139
    %p142 = scmp.ne.s32.totalorder %s125, %s141
    %p143 = scmp.eq.s32.totalorder %s16, 0
    %p144 = por %p142, %p143
    %s145 = ssub.s32 %s17, %s36
    %s146 = ssub.s32 %s18, %s32
    %s147 = sor.u32 %s145, %s146
    %p148 = scmp.eq.s32.totalorder %s147, 0
    %s150 = sadd.s32 %s149, 1
    %s151 = scalar_select %p148, %s149, %s150
    %p154 = pneg %p148
    %p155 = scmp.eq.s32.totalorder %s10, 1
    %p156 = por %p154, %p155
    %p157 = scmp.ne.s32.totalorder %s149, %s152
    %p158 = scmp.eq.s32.totalorder %s10, 0
    %p159 = por %p157, %p158
    %p160 = scmp.ne.s32.totalorder %s149, %s152
    %p161 = scmp.eq.s32.totalorder %s15, 1
    %p162 = por %p160, %p161
    %p163 = scmp.ne.s32.totalorder %s152, %s153
    %p164 = scmp.eq.s32.totalorder %s15, 0
    %p165 = por %p163, %p164
    %p166 = scmp.ne.s32.totalorder %s152, %s153
    %p167 = scmp.eq.s32.totalorder %s16, 1
    %p168 = por %p166, %p167
    %p170 = scmp.ne.s32.totalorder %s153, %s169
    %p171 = scmp.eq.s32.totalorder %s16, 0
    %p172 = por %p170, %p171
    %p173 = scmp.le.s32.totalorder 1, %s10
    %p174 = scmp.lt.s32.totalorder %s10, 3
    %p175 = pnand %p173, %p174
    %p176 = pneg %p175
    // Predicated region
    $region9: #{tps_stn_forward.6} parent=5 // pred_check
      _
    $region10: #{tps_stn_forward.6} parent=5 // pred_check_branch
      %178 = sbr.rel (%p175) target = $region12
    $region11: #{tps_stn_forward.6} parent=5 // pred_region
      %s179 = ssub.s32 %s10, 1
      // Predicated region
      $region13: #{tps_stn_forward.6} parent=11 // pred_check
        %p180 = pneg %p85
      $region14: #{tps_stn_forward.6} parent=11 // pred_check_branch
        %182 = sbr.rel (%p180) target = $region16
      $region15: #{tps_stn_forward.6} parent=11 // pred_region
        %s183 = smul.u32 16, %s22
        %p184 = scmp.lt.s32.totalorder %s183, 15
        %s185 = scalar_select %p184, %s183, 15
        %p186 = scmp.lt.s32.totalorder %s21, 0
        %s187 = scalar_select %p186, %s21, 0
        %s188 = sadd.s32 %s187, %s185
        %s189 = smul.addr %s188, 4
        %s190 = scalar_lea.vmem %s1, %s189
        %s191 = smul.u32 16, %s22
      $region16: #{tps_stn_forward.6} parent=11 // pred_fallthru
        _
      // Predicated region
      $region17: #{tps_stn_forward.6} parent=11 // pred_check
        %p192 = pneg %p111
      $region18: #{tps_stn_forward.6} parent=11 // pred_check_branch
        %194 = sbr.rel (%p192) target = $region20
      $region19: #{tps_stn_forward.6} parent=11 // pred_region
        %p195 = scmp.lt.s32.totalorder %s21, 0
        %s196 = scalar_select %p195, %s21, 0
        %s197 = scalar_lea.vmem %s2, %s196
      $region20: #{tps_stn_forward.6} parent=11 // pred_fallthru
        _
      // Predicated region
      $region21: #{tps_stn_forward.6} parent=11 // pred_check
        %p198 = pneg %p137
      $region22: #{tps_stn_forward.6} parent=11 // pred_check_branch
        %200 = sbr.rel (%p198) target = $region24
      $region23: #{tps_stn_forward.6} parent=11 // pred_region
        %p201 = scmp.lt.s32.totalorder %s21, 0
        %s202 = scalar_select %p201, %s21, 0
        %s203 = scalar_lea.vmem %s3, %s202
      $region24: #{tps_stn_forward.6} parent=11 // pred_fallthru
        _
    $region12: #{tps_stn_forward.6} parent=5 // pred_fallthru
      _
    %p204 = scmp.lt.s32.totalorder %s10, 2
    // Predicated region
    $region25: #{tps_stn_forward.6} parent=5 // pred_check
      %p205 = pneg %p204
    $region26: #{tps_stn_forward.6} parent=5 // pred_check_branch
      %207 = sbr.rel (%p205) target = $region28
    $region27: #{tps_stn_forward.6} parent=5 // pred_region
      // Predicated region
      $region29: #{tps_stn_forward.6} parent=27 // pred_check
        %p208 = pneg %p51
      $region30: #{tps_stn_forward.6} parent=27 // pred_check_branch
        %210 = sbr.rel (%p208) target = $region32
      $region31: #{tps_stn_forward.6} parent=27 // pred_region
        %s211 = smul.u32 32, %s17
        %p212 = scmp.lt.s32.totalorder %s211, 63
        %s213 = scalar_select %p212, %s211, 63
        %p214 = scmp.lt.s32.totalorder %s19, 0
        %s215 = scalar_select %p214, %s19, 0
        %s216 = sadd.s32 %s215, %s213
        %s217 = smul.addr %s216, 4
        %s218 = scalar_lea.vmem %s0, %s217
        %s219 = smul.u32 32, %s17
      $region32: #{tps_stn_forward.6} parent=27 // pred_fallthru
        _
    $region28: #{tps_stn_forward.6} parent=5 // pred_fallthru
      _
    %p220 = scmp.le.s32.totalorder 1, %s10
    %p221 = scmp.lt.s32.totalorder %s10, 3
    %p222 = pnand %p220, %p221
    %p223 = pneg %p222
    // Predicated region
    $region33: #{tps_stn_forward.6} parent=5 // pred_check
      _
    $region34: #{tps_stn_forward.6} parent=5 // pred_check_branch
      %225 = sbr.rel (%p222) target = $region36
    $region35: #{tps_stn_forward.6} parent=5 // pred_region
      %s226 = ssub.s32 %s10, 1
      %s227 = smul.u32 32, %s20
      %p228 = scmp.lt.s32.totalorder %s227, 63
      %s229 = scalar_select %p228, %s227, 63
      %p230 = scmp.lt.s32.totalorder %s22, 0
      %s231 = scalar_select %p230, %s22, 0
      %s232 = sadd.s32 %s231, %s229
      %s233 = smul.addr %s232, 4
      %s234 = scalar_lea.vmem %s0, %s233
      %p235 = pneg %p57
      %p236 = pneg %p54
      %s237 = smul.u32 16, %s22
      %p238 = scmp.lt.s32.totalorder %s237, 15
      %s239 = scalar_select %p238, %s237, 15
      %p240 = scmp.lt.s32.totalorder %s21, 0
      %s241 = scalar_select %p240, %s21, 0
      %s242 = sadd.s32 %s241, %s239
      %s243 = smul.addr %s242, 4
      %s244 = scalar_lea.vmem %s1, %s243
      %p245 = pneg %p85
      %p246 = pneg %p82
      %p247 = scmp.lt.s32.totalorder %s21, 0
      %s248 = scalar_select %p247, %s21, 0
      %s249 = scalar_lea.vmem %s2, %s248
      %p250 = pneg %p111
      %p251 = pneg %p108
      %p252 = scmp.lt.s32.totalorder %s21, 0
      %s253 = scalar_select %p252, %s21, 0
      %s254 = scalar_lea.vmem %s3, %s253
      %p255 = pneg %p137
      %p256 = pneg %p134
      %p257 = pneg %p165
      %p258 = pneg %p162
      %s259 = smul.u32 32, %s20
      %p260 = scmp.lt.s32.totalorder %s259, 63
      %s261 = scalar_select %p260, %s259, 63
      %p262 = scmp.lt.s32.totalorder %s21, 0
      %s263 = scalar_select %p262, %s21, 0
      %s264 = sadd.s32 %s263, %s261
      %s265 = smul.addr %s264, 8
      %s266 = scalar_lea.vmem %s4, %s265
      %s267 = smul.u32 32, %s20
      %p268 = scmp.lt.s32.totalorder %s267, 63
      %s269 = scalar_select %p268, %s267, 63
      %p270 = scmp.lt.s32.totalorder %s22, 0
      %s271 = scalar_select %p270, %s22, 0
      %s272 = sadd.s32 %s271, %s269
      %s273 = smul.addr %s272, 4
      %s274 = scalar_lea.vmem %s0, %s273
      %s275 = smul.u32 32, %s20
      %s276 = smul.u32 16, %s22
      %p277 = scmp.lt.s32.totalorder %s276, 15
      %s278 = scalar_select %p277, %s276, 15
      %p279 = scmp.lt.s32.totalorder %s21, 0
      %s280 = scalar_select %p279, %s21, 0
      %s281 = sadd.s32 %s280, %s278
      %s282 = smul.addr %s281, 4
      %s283 = scalar_lea.vmem %s1, %s282
      %s284 = smul.u32 16, %s22
      %p285 = scmp.lt.s32.totalorder %s21, 0
      %s286 = scalar_select %p285, %s21, 0
      %s287 = scalar_lea.vmem %s2, %s286
      %p288 = scmp.lt.s32.totalorder %s21, 0
      %s289 = scalar_select %p288, %s21, 0
      %s290 = scalar_lea.vmem %s3, %s289
      %s291 = smul.u32 32, %s20
      %p292 = scmp.lt.s32.totalorder %s291, 63
      %s293 = scalar_select %p292, %s291, 63
      %p294 = scmp.lt.s32.totalorder %s21, 0
      %s295 = scalar_select %p294, %s21, 0
      %s296 = sadd.s32 %s295, %s293
      %s297 = smul.addr %s296, 8
      %s298 = scalar_lea.vmem %s4, %s297
      %s299 = smul.u32 32, %s20
      %p301 = scmp.eq.s32.totalorder %s22, 0
      // Predicated region
      $region37: #{tps_stn_forward.6} parent=35 // pred_check
        %p302 = pneg %p301
      $region38: #{tps_stn_forward.6} parent=35 // pred_check_branch
        %304 = sbr.rel (%p302) target = $region40
      $region39: #{tps_stn_forward.6} parent=35 // pred_region
        %305 = vst [vmem:[#allocation2] sm:$0xff] 0.0
        %306 = vst [vmem:[#allocation2 + $0x8] sm:$0xff] 0.0
        %307 = vst [vmem:[#allocation2 + $0x10] sm:$0xff] 0.0
        %308 = vst [vmem:[#allocation2 + $0x18] sm:$0xff] 0.0
        %309 = vst [vmem:[#allocation2 + $0x20] sm:$0xff] 0.0
        %310 = vst [vmem:[#allocation2 + $0x28] sm:$0xff] 0.0
        %311 = vst [vmem:[#allocation2 + $0x30] sm:$0xff] 0.0
        %312 = vst [vmem:[#allocation2 + $0x38] sm:$0xff] 0.0
        %313 = vst [vmem:[#allocation2 + $0x40] sm:$0xff] 0.0
        %314 = vst [vmem:[#allocation2 + $0x48] sm:$0xff] 0.0
        %315 = vst [vmem:[#allocation2 + $0x50] sm:$0xff] 0.0
        %316 = vst [vmem:[#allocation2 + $0x58] sm:$0xff] 0.0
        %317 = vst [vmem:[#allocation2 + $0x60] sm:$0xff] 0.0
        %318 = vst [vmem:[#allocation2 + $0x68] sm:$0xff] 0.0
        %319 = vst [vmem:[#allocation2 + $0x70] sm:$0xff] 0.0
        %320 = vst [vmem:[#allocation2 + $0x78] sm:$0xff] 0.0
        %321 = vst [vmem:[#allocation2 + $0x80] sm:$0xff] 0.0
        %322 = vst [vmem:[#allocation2 + $0x88] sm:$0xff] 0.0
        %323 = vst [vmem:[#allocation2 + $0x90] sm:$0xff] 0.0
        %324 = vst [vmem:[#allocation2 + $0x98] sm:$0xff] 0.0
        %325 = vst [vmem:[#allocation2 + $0xa0] sm:$0xff] 0.0
        %326 = vst [vmem:[#allocation2 + $0xa8] sm:$0xff] 0.0
        %327 = vst [vmem:[#allocation2 + $0xb0] sm:$0xff] 0.0
        %328 = vst [vmem:[#allocation2 + $0xb8] sm:$0xff] 0.0
        %329 = vst [vmem:[#allocation2 + $0xc0] sm:$0xff] 0.0
        %330 = vst [vmem:[#allocation2 + $0xc8] sm:$0xff] 0.0
        %331 = vst [vmem:[#allocation2 + $0xd0] sm:$0xff] 0.0
        %332 = vst [vmem:[#allocation2 + $0xd8] sm:$0xff] 0.0
        %333 = vst [vmem:[#allocation2 + $0xe0] sm:$0xff] 0.0
        %334 = vst [vmem:[#allocation2 + $0xe8] sm:$0xff] 0.0
        %335 = vst [vmem:[#allocation2 + $0xf0] sm:$0xff] 0.0
        %336 = vst [vmem:[#allocation2 + $0xf8] sm:$0xff] 0.0
      $region40: #{tps_stn_forward.6} parent=35 // pred_fallthru
        _
      %v337 = vld [vmem:[#allocation2] sm:$0xff]
      %v338 = vld [vmem:[#allocation2 + $0x8] sm:$0xff]
      %v339 = vld [vmem:[#allocation2 + $0x10] sm:$0xff]
      %v340 = vld [vmem:[#allocation2 + $0x18] sm:$0xff]
      %v341 = vld [vmem:[#allocation2 + $0x20] sm:$0xff]
      %v342 = vld [vmem:[#allocation2 + $0x28] sm:$0xff]
      %v343 = vld [vmem:[#allocation2 + $0x30] sm:$0xff]
      %v344 = vld [vmem:[#allocation2 + $0x38] sm:$0xff]
      %v345 = vld [vmem:[#allocation2 + $0x40] sm:$0xff]
      %v346 = vld [vmem:[#allocation2 + $0x48] sm:$0xff]
      %v347 = vld [vmem:[#allocation2 + $0x50] sm:$0xff]
      %v348 = vld [vmem:[#allocation2 + $0x58] sm:$0xff]
      %v349 = vld [vmem:[#allocation2 + $0x60] sm:$0xff]
      %v350 = vld [vmem:[#allocation2 + $0x68] sm:$0xff]
      %v351 = vld [vmem:[#allocation2 + $0x70] sm:$0xff]
      %v352 = vld [vmem:[#allocation2 + $0x78] sm:$0xff]
      %v353 = vld [vmem:[#allocation2 + $0x80] sm:$0xff]
      %v354 = vld [vmem:[#allocation2 + $0x88] sm:$0xff]
      %v355 = vld [vmem:[#allocation2 + $0x90] sm:$0xff]
      %v356 = vld [vmem:[#allocation2 + $0x98] sm:$0xff]
      %v357 = vld [vmem:[#allocation2 + $0xa0] sm:$0xff]
      %v358 = vld [vmem:[#allocation2 + $0xa8] sm:$0xff]
      %v359 = vld [vmem:[#allocation2 + $0xb0] sm:$0xff]
      %v360 = vld [vmem:[#allocation2 + $0xb8] sm:$0xff]
      %v361 = vld [vmem:[#allocation2 + $0xc0] sm:$0xff]
      %v362 = vld [vmem:[#allocation2 + $0xc8] sm:$0xff]
      %v363 = vld [vmem:[#allocation2 + $0xd0] sm:$0xff]
      %v364 = vld [vmem:[#allocation2 + $0xd8] sm:$0xff]
      %v365 = vld [vmem:[#allocation2 + $0xe0] sm:$0xff]
      %v366 = vld [vmem:[#allocation2 + $0xe8] sm:$0xff]
      %v367 = vld [vmem:[#allocation2 + $0xf0] sm:$0xff]
      %v368 = vld [vmem:[#allocation2 + $0xf8] sm:$0xff]
      %v369 = vld [vmem:[%s274] sm:$0xf]
      %v370 = vld [vmem:[%s274 + $0x4] sm:$0xf]
      %v371 = vld [vmem:[%s274 + $0x8] sm:$0xf]
      %v372 = vld [vmem:[%s274 + $0xc] sm:$0xf]
      %v373 = vld [vmem:[%s274 + $0x10] sm:$0xf]
      %v374 = vld [vmem:[%s274 + $0x14] sm:$0xf]
      %v375 = vld [vmem:[%s274 + $0x18] sm:$0xf]
      %v376 = vld [vmem:[%s274 + $0x1c] sm:$0xf]
      %v377 = vld [vmem:[%s274 + $0x20] sm:$0xf]
      %v378 = vld [vmem:[%s274 + $0x24] sm:$0xf]
      %v379 = vld [vmem:[%s274 + $0x28] sm:$0xf]
      %v380 = vld [vmem:[%s274 + $0x2c] sm:$0xf]
      %v381 = vld [vmem:[%s274 + $0x30] sm:$0xf]
      %v382 = vld [vmem:[%s274 + $0x34] sm:$0xf]
      %v383 = vld [vmem:[%s274 + $0x38] sm:$0xf]
      %v384 = vld [vmem:[%s274 + $0x3c] sm:$0xf]
      %v385 = vld [vmem:[%s274 + $0x40] sm:$0xf]
      %v386 = vld [vmem:[%s274 + $0x44] sm:$0xf]
      %v387 = vld [vmem:[%s274 + $0x48] sm:$0xf]
      %v388 = vld [vmem:[%s274 + $0x4c] sm:$0xf]
      %v389 = vld [vmem:[%s274 + $0x50] sm:$0xf]
      %v390 = vld [vmem:[%s274 + $0x54] sm:$0xf]
      %v391 = vld [vmem:[%s274 + $0x58] sm:$0xf]
      %v392 = vld [vmem:[%s274 + $0x5c] sm:$0xf]
      %v393 = vld [vmem:[%s274 + $0x60] sm:$0xf]
      %v394 = vld [vmem:[%s274 + $0x64] sm:$0xf]
      %v395 = vld [vmem:[%s274 + $0x68] sm:$0xf]
      %v396 = vld [vmem:[%s274 + $0x6c] sm:$0xf]
      %v397 = vld [vmem:[%s274 + $0x70] sm:$0xf]
      %v398 = vld [vmem:[%s274 + $0x74] sm:$0xf]
      %v399 = vld [vmem:[%s274 + $0x78] sm:$0xf]
      %v400 = vld [vmem:[%s274 + $0x7c] sm:$0xf]
      %v401 = vld [vmem:[%s283] sm:$0xf]
      %v402 = vld [vmem:[%s283 + $0x4] sm:$0xf]
      %v403 = vld [vmem:[%s283 + $0x8] sm:$0xf]
      %v404 = vld [vmem:[%s283 + $0xc] sm:$0xf]
      %v405 = vld [vmem:[%s283 + $0x10] sm:$0xf]
      %v406 = vld [vmem:[%s283 + $0x14] sm:$0xf]
      %v407 = vld [vmem:[%s283 + $0x18] sm:$0xf]
      %v408 = vld [vmem:[%s283 + $0x1c] sm:$0xf]
      %v409 = vld [vmem:[%s283 + $0x20] sm:$0xf]
      %v410 = vld [vmem:[%s283 + $0x24] sm:$0xf]
      %v411 = vld [vmem:[%s283 + $0x28] sm:$0xf]
      %v412 = vld [vmem:[%s283 + $0x2c] sm:$0xf]
      %v413 = vld [vmem:[%s283 + $0x30] sm:$0xf]
      %v414 = vld [vmem:[%s283 + $0x34] sm:$0xf]
      %v415 = vld [vmem:[%s283 + $0x38] sm:$0xf]
      %v416 = vld [vmem:[%s283 + $0x3c] sm:$0xf]
      %v449 = vunpack.c.l.b16 %v369
      %v450 = vunpack.c.l.b16 %v370
      %v451 = vunpack.c.l.b16 %v371
      %v452 = vunpack.c.l.b16 %v372
      %v453 = vunpack.c.l.b16 %v373
      %v454 = vunpack.c.l.b16 %v374
      %v455 = vunpack.c.l.b16 %v375
      %v456 = vunpack.c.l.b16 %v376
      %v457 = vunpack.c.l.b16 %v377
      %v458 = vunpack.c.l.b16 %v378
      %v459 = vunpack.c.l.b16 %v379
      %v460 = vunpack.c.l.b16 %v380
      %v461 = vunpack.c.l.b16 %v381
      %v462 = vunpack.c.l.b16 %v382
      %v463 = vunpack.c.l.b16 %v383
      %v464 = vunpack.c.l.b16 %v384
      %v465 = vunpack.c.l.b16 %v385
      %v466 = vunpack.c.l.b16 %v386
      %v467 = vunpack.c.l.b16 %v387
      %v468 = vunpack.c.l.b16 %v388
      %v469 = vunpack.c.l.b16 %v389
      %v470 = vunpack.c.l.b16 %v390
      %v471 = vunpack.c.l.b16 %v391
      %v472 = vunpack.c.l.b16 %v392
      %v473 = vunpack.c.l.b16 %v393
      %v474 = vunpack.c.l.b16 %v394
      %v475 = vunpack.c.l.b16 %v395
      %v476 = vunpack.c.l.b16 %v396
      %v477 = vunpack.c.l.b16 %v397
      %v478 = vunpack.c.l.b16 %v398
      %v479 = vunpack.c.l.b16 %v399
      %v480 = vunpack.c.l.b16 %v400
      %v481 = vpack.c.b16 %v450, %v449
      %v482 = vpack.c.b16 %v452, %v451
      %v483 = vpack.c.b16 %v454, %v453
      %v484 = vpack.c.b16 %v456, %v455
      %v485 = vpack.c.b16 %v458, %v457
      %v486 = vpack.c.b16 %v460, %v459
      %v487 = vpack.c.b16 %v462, %v461
      %v488 = vpack.c.b16 %v464, %v463
      %v489 = vpack.c.b16 %v466, %v465
      %v490 = vpack.c.b16 %v468, %v467
      %v491 = vpack.c.b16 %v470, %v469
      %v492 = vpack.c.b16 %v472, %v471
      %v493 = vpack.c.b16 %v474, %v473
      %v494 = vpack.c.b16 %v476, %v475
      %v495 = vpack.c.b16 %v478, %v477
      %v496 = vpack.c.b16 %v480, %v479
      %v529 = vunpack.c.l.b16 %v401
      %v530 = vunpack.c.l.b16 %v402
      %v531 = vunpack.c.l.b16 %v403
      %v532 = vunpack.c.l.b16 %v404
      %v533 = vunpack.c.l.b16 %v405
      %v534 = vunpack.c.l.b16 %v406
      %v535 = vunpack.c.l.b16 %v407
      %v536 = vunpack.c.l.b16 %v408
      %v537 = vunpack.c.l.b16 %v409
      %v538 = vunpack.c.l.b16 %v410
      %v539 = vunpack.c.l.b16 %v411
      %v540 = vunpack.c.l.b16 %v412
      %v541 = vunpack.c.l.b16 %v413
      %v542 = vunpack.c.l.b16 %v414
      %v543 = vunpack.c.l.b16 %v415
      %v544 = vunpack.c.l.b16 %v416
      %v545 = vpack.c.b16 %v530, %v529
      %v546 = vpack.c.b16 %v532, %v531
      %v547 = vpack.c.b16 %v534, %v533
      %v548 = vpack.c.b16 %v536, %v535
      %v549 = vpack.c.b16 %v538, %v537
      %v550 = vpack.c.b16 %v540, %v539
      %v551 = vpack.c.b16 %v542, %v541
      %v552 = vpack.c.b16 %v544, %v543
      %561 = vmatprep.subr.bf16.mxu0 0
      %562 = vmatpush1.bf16.msra.mxu0 %v552
      %563 = vmatprep.subr.bf16.mxu0 0
      %564 = vmatpush1.bf16.msra.mxu0 %v551
      %565 = vmatprep.subr.bf16.mxu0 0
      %566 = vmatpush1.bf16.msra.mxu0 %v550
      %567 = vmatprep.subr.bf16.mxu0 0
      %568 = vmatpush1.bf16.msra.mxu0 %v549
      %569 = vmatprep.subr.bf16.mxu0 0
      %570 = vmatpush1.bf16.msra.mxu0 %v548
      %571 = vmatprep.subr.bf16.mxu0 0
      %572 = vmatpush1.bf16.msra.mxu0 %v547
      %573 = vmatprep.subr.bf16.mxu0 0
      %574 = vmatpush1.bf16.msra.mxu0 %v546
      %575 = vmatprep.subr.bf16.mxu0 0
      %576 = vmatpush1.bf16.msra.mxu0 %v545
      %577 = vmatprep.subr.bf16.mxu0 0
      %578 = vmatpush2.bf16.msra.mxu0 0
      %579 = vmatprep.subr.bf16.mxu0 0
      %580 = vmatpush2.bf16.msra.mxu0 0
      %581 = vmatprep.subr.bf16.mxu0 0
      %582 = vmatpush2.bf16.msra.mxu0 0
      %583 = vmatprep.subr.bf16.mxu0 0
      %584 = vmatpush2.bf16.msra.mxu0 0
      %585 = vmatprep.subr.bf16.mxu0 0
      %586 = vmatpush2.bf16.msra.mxu0 0
      %587 = vmatprep.subr.bf16.mxu0 0
      %588 = vmatpush2.bf16.msra.mxu0 0
      %589 = vmatprep.subr.bf16.mxu0 0
      %590 = vmatpush2.bf16.msra.mxu0 0
      %591 = vmatprep.subr.bf16.mxu0 0
      %592 = vmatpush2.bf16.msra.mxu0 0
      %593 = vmatprep.mubr.bf16.mxu0 0
      %594 = vmatmul.mubr.bf16.gmra.mxu0 %v481
      %v595 = vpop.f32.mrf.mxu0
      %v596 = vadd.f32 0.0, %v595
      %v597 = vpop.f32.mrf.mxu0
      %v598 = vpop.f32.mrf.mxu0
      %v599 = vadd.f32 0.0, %v598
      %v600 = vpop.f32.mrf.mxu0
      %601 = vmatprep.mubr.bf16.mxu0 0
      %602 = vmatmul.mubr.bf16.gmra.mxu0 %v482
      %v603 = vpop.f32.mrf.mxu0
      %v604 = vadd.f32 0.0, %v603
      %v605 = vpop.f32.mrf.mxu0
      %v606 = vpop.f32.mrf.mxu0
      %v607 = vadd.f32 0.0, %v606
      %v608 = vpop.f32.mrf.mxu0
      %609 = vmatprep.mubr.bf16.mxu0 0
      %610 = vmatmul.mubr.bf16.gmra.mxu0 %v483
      %v611 = vpop.f32.mrf.mxu0
      %v612 = vadd.f32 0.0, %v611
      %v613 = vpop.f32.mrf.mxu0
      %v614 = vpop.f32.mrf.mxu0
      %v615 = vadd.f32 0.0, %v614
      %v616 = vpop.f32.mrf.mxu0
      %617 = vmatprep.mubr.bf16.mxu0 0
      %618 = vmatmul.mubr.bf16.gmra.mxu0 %v484
      %v619 = vpop.f32.mrf.mxu0
      %v620 = vadd.f32 0.0, %v619
      %v621 = vpop.f32.mrf.mxu0
      %v622 = vpop.f32.mrf.mxu0
      %v623 = vadd.f32 0.0, %v622
      %v624 = vpop.f32.mrf.mxu0
      %625 = vmatprep.mubr.bf16.mxu0 0
      %626 = vmatmul.mubr.bf16.gmra.mxu0 %v485
      %v627 = vpop.f32.mrf.mxu0
      %v628 = vadd.f32 0.0, %v627
      %v629 = vpop.f32.mrf.mxu0
      %v630 = vpop.f32.mrf.mxu0
      %v631 = vadd.f32 0.0, %v630
      %v632 = vpop.f32.mrf.mxu0
      %633 = vmatprep.mubr.bf16.mxu0 0
      %634 = vmatmul.mubr.bf16.gmra.mxu0 %v486
      %v635 = vpop.f32.mrf.mxu0
      %v636 = vadd.f32 0.0, %v635
      %v637 = vpop.f32.mrf.mxu0
      %v638 = vpop.f32.mrf.mxu0
      %v639 = vadd.f32 0.0, %v638
      %v640 = vpop.f32.mrf.mxu0
      %641 = vmatprep.mubr.bf16.mxu0 0
      %642 = vmatmul.mubr.bf16.gmra.mxu0 %v487
      %v643 = vpop.f32.mrf.mxu0
      %v644 = vadd.f32 0.0, %v643
      %v645 = vpop.f32.mrf.mxu0
      %v646 = vpop.f32.mrf.mxu0
      %v647 = vadd.f32 0.0, %v646
      %v648 = vpop.f32.mrf.mxu0
      %649 = vmatprep.mubr.bf16.mxu0 0
      %650 = vmatmul.mubr.bf16.gmra.mxu0 %v488
      %v651 = vpop.f32.mrf.mxu0
      %v652 = vadd.f32 0.0, %v651
      %v653 = vpop.f32.mrf.mxu0
      %v654 = vpop.f32.mrf.mxu0
      %v655 = vadd.f32 0.0, %v654
      %v656 = vpop.f32.mrf.mxu0
      %657 = vmatprep.mubr.bf16.mxu0 0
      %658 = vmatmul.mubr.bf16.gmra.mxu0 %v489
      %v659 = vpop.f32.mrf.mxu0
      %v660 = vadd.f32 0.0, %v659
      %v661 = vpop.f32.mrf.mxu0
      %v662 = vpop.f32.mrf.mxu0
      %v663 = vadd.f32 0.0, %v662
      %v664 = vpop.f32.mrf.mxu0
      %665 = vmatprep.mubr.bf16.mxu0 0
      %666 = vmatmul.mubr.bf16.gmra.mxu0 %v490
      %v667 = vpop.f32.mrf.mxu0
      %v668 = vadd.f32 0.0, %v667
      %v669 = vpop.f32.mrf.mxu0
      %v670 = vpop.f32.mrf.mxu0
      %v671 = vadd.f32 0.0, %v670
      %v672 = vpop.f32.mrf.mxu0
      %673 = vmatprep.mubr.bf16.mxu0 0
      %674 = vmatmul.mubr.bf16.gmra.mxu0 %v491
      %v675 = vpop.f32.mrf.mxu0
      %v676 = vadd.f32 0.0, %v675
      %v677 = vpop.f32.mrf.mxu0
      %v678 = vpop.f32.mrf.mxu0
      %v679 = vadd.f32 0.0, %v678
      %v680 = vpop.f32.mrf.mxu0
      %681 = vmatprep.mubr.bf16.mxu0 0
      %682 = vmatmul.mubr.bf16.gmra.mxu0 %v492
      %v683 = vpop.f32.mrf.mxu0
      %v684 = vadd.f32 0.0, %v683
      %v685 = vpop.f32.mrf.mxu0
      %v686 = vpop.f32.mrf.mxu0
      %v687 = vadd.f32 0.0, %v686
      %v688 = vpop.f32.mrf.mxu0
      %689 = vmatprep.mubr.bf16.mxu0 0
      %690 = vmatmul.mubr.bf16.gmra.mxu0 %v493
      %v691 = vpop.f32.mrf.mxu0
      %v692 = vadd.f32 0.0, %v691
      %v693 = vpop.f32.mrf.mxu0
      %v694 = vpop.f32.mrf.mxu0
      %v695 = vadd.f32 0.0, %v694
      %v696 = vpop.f32.mrf.mxu0
      %697 = vmatprep.mubr.bf16.mxu0 0
      %698 = vmatmul.mubr.bf16.gmra.mxu0 %v494
      %v699 = vpop.f32.mrf.mxu0
      %v700 = vadd.f32 0.0, %v699
      %v701 = vpop.f32.mrf.mxu0
      %v702 = vpop.f32.mrf.mxu0
      %v703 = vadd.f32 0.0, %v702
      %v704 = vpop.f32.mrf.mxu0
      %705 = vmatprep.mubr.bf16.mxu0 0
      %706 = vmatmul.mubr.bf16.gmra.mxu0 %v495
      %v707 = vpop.f32.mrf.mxu0
      %v708 = vadd.f32 0.0, %v707
      %v709 = vpop.f32.mrf.mxu0
      %v710 = vpop.f32.mrf.mxu0
      %v711 = vadd.f32 0.0, %v710
      %v712 = vpop.f32.mrf.mxu0
      %713 = vmatprep.mubr.bf16.mxu0 0
      %714 = vmatmul.mubr.bf16.gmra.mxu0 %v496
      %v715 = vpop.f32.mrf.mxu0
      %v716 = vadd.f32 0.0, %v715
      %v717 = vpop.f32.mrf.mxu0
      %v718 = vpop.f32.mrf.mxu0
      %v719 = vadd.f32 0.0, %v718
      %v720 = vpop.f32.mrf.mxu0
      %721 = vdwg.mxu0
      %v722 = vadd.f32 %v337, %v596
      %v723 = vadd.f32 %v338, %v599
      %v724 = vadd.f32 %v339, %v604
      %v725 = vadd.f32 %v340, %v607
      %v726 = vadd.f32 %v341, %v612
      %v727 = vadd.f32 %v342, %v615
      %v728 = vadd.f32 %v343, %v620
      %v729 = vadd.f32 %v344, %v623
      %v730 = vadd.f32 %v345, %v628
      %v731 = vadd.f32 %v346, %v631
      %v732 = vadd.f32 %v347, %v636
      %v733 = vadd.f32 %v348, %v639
      %v734 = vadd.f32 %v349, %v644
      %v735 = vadd.f32 %v350, %v647
      %v736 = vadd.f32 %v351, %v652
      %v737 = vadd.f32 %v352, %v655
      %v738 = vadd.f32 %v353, %v660
      %v739 = vadd.f32 %v354, %v663
      %v740 = vadd.f32 %v355, %v668
      %v741 = vadd.f32 %v356, %v671
      %v742 = vadd.f32 %v357, %v676
      %v743 = vadd.f32 %v358, %v679
      %v744 = vadd.f32 %v359, %v684
      %v745 = vadd.f32 %v360, %v687
      %v746 = vadd.f32 %v361, %v692
      %v747 = vadd.f32 %v362, %v695
      %v748 = vadd.f32 %v363, %v700
      %v749 = vadd.f32 %v364, %v703
      %v750 = vadd.f32 %v365, %v708
      %v751 = vadd.f32 %v366, %v711
      %v752 = vadd.f32 %v367, %v716
      %v753 = vadd.f32 %v368, %v719
      %754 = vst [vmem:[#allocation2] sm:$0xff] %v722
      %755 = vst [vmem:[#allocation2 + $0x8] sm:$0xff] %v723
      %756 = vst [vmem:[#allocation2 + $0x10] sm:$0xff] %v724
      %757 = vst [vmem:[#allocation2 + $0x18] sm:$0xff] %v725
      %758 = vst [vmem:[#allocation2 + $0x20] sm:$0xff] %v726
      %759 = vst [vmem:[#allocation2 + $0x28] sm:$0xff] %v727
      %760 = vst [vmem:[#allocation2 + $0x30] sm:$0xff] %v728
      %761 = vst [vmem:[#allocation2 + $0x38] sm:$0xff] %v729
      %762 = vst [vmem:[#allocation2 + $0x40] sm:$0xff] %v730
      %763 = vst [vmem:[#allocation2 + $0x48] sm:$0xff] %v731
      %764 = vst [vmem:[#allocation2 + $0x50] sm:$0xff] %v732
      %765 = vst [vmem:[#allocation2 + $0x58] sm:$0xff] %v733
      %766 = vst [vmem:[#allocation2 + $0x60] sm:$0xff] %v734
      %767 = vst [vmem:[#allocation2 + $0x68] sm:$0xff] %v735
      %768 = vst [vmem:[#allocation2 + $0x70] sm:$0xff] %v736
      %769 = vst [vmem:[#allocation2 + $0x78] sm:$0xff] %v737
      %770 = vst [vmem:[#allocation2 + $0x80] sm:$0xff] %v738
      %771 = vst [vmem:[#allocation2 + $0x88] sm:$0xff] %v739
      %772 = vst [vmem:[#allocation2 + $0x90] sm:$0xff] %v740
      %773 = vst [vmem:[#allocation2 + $0x98] sm:$0xff] %v741
      %774 = vst [vmem:[#allocation2 + $0xa0] sm:$0xff] %v742
      %775 = vst [vmem:[#allocation2 + $0xa8] sm:$0xff] %v743
      %776 = vst [vmem:[#allocation2 + $0xb0] sm:$0xff] %v744
      %777 = vst [vmem:[#allocation2 + $0xb8] sm:$0xff] %v745
      %778 = vst [vmem:[#allocation2 + $0xc0] sm:$0xff] %v746
      %779 = vst [vmem:[#allocation2 + $0xc8] sm:$0xff] %v747
      %780 = vst [vmem:[#allocation2 + $0xd0] sm:$0xff] %v748
      %781 = vst [vmem:[#allocation2 + $0xd8] sm:$0xff] %v749
      %782 = vst [vmem:[#allocation2 + $0xe0] sm:$0xff] %v750
      %783 = vst [vmem:[#allocation2 + $0xe8] sm:$0xff] %v751
      %784 = vst [vmem:[#allocation2 + $0xf0] sm:$0xff] %v752
      %785 = vst [vmem:[#allocation2 + $0xf8] sm:$0xff] %v753
      // Predicated region
      $region41: #{tps_stn_forward.6} parent=35 // pred_check
        %p786 = pneg %p301
      $region42: #{tps_stn_forward.6} parent=35 // pred_check_branch
        %788 = sbr.rel (%p786) target = $region44
      $region43: #{tps_stn_forward.6} parent=35 // pred_region
        %v789 = vld [vmem:[#allocation2] sm:$0xff]
        %v790 = vld [vmem:[#allocation2 + $0x8] sm:$0xff]
        %v791 = vld [vmem:[#allocation2 + $0x10] sm:$0xff]
        %v792 = vld [vmem:[#allocation2 + $0x18] sm:$0xff]
        %v793 = vld [vmem:[#allocation2 + $0x20] sm:$0xff]
        %v794 = vld [vmem:[#allocation2 + $0x28] sm:$0xff]
        %v795 = vld [vmem:[#allocation2 + $0x30] sm:$0xff]
        %v796 = vld [vmem:[#allocation2 + $0x38] sm:$0xff]
        %v797 = vld [vmem:[#allocation2 + $0x40] sm:$0xff]
        %v798 = vld [vmem:[#allocation2 + $0x48] sm:$0xff]
        %v799 = vld [vmem:[#allocation2 + $0x50] sm:$0xff]
        %v800 = vld [vmem:[#allocation2 + $0x58] sm:$0xff]
        %v801 = vld [vmem:[#allocation2 + $0x60] sm:$0xff]
        %v802 = vld [vmem:[#allocation2 + $0x68] sm:$0xff]
        %v803 = vld [vmem:[#allocation2 + $0x70] sm:$0xff]
        %v804 = vld [vmem:[#allocation2 + $0x78] sm:$0xff]
        %v805 = vld [vmem:[#allocation2 + $0x80] sm:$0xff]
        %v806 = vld [vmem:[#allocation2 + $0x88] sm:$0xff]
        %v807 = vld [vmem:[#allocation2 + $0x90] sm:$0xff]
        %v808 = vld [vmem:[#allocation2 + $0x98] sm:$0xff]
        %v809 = vld [vmem:[#allocation2 + $0xa0] sm:$0xff]
        %v810 = vld [vmem:[#allocation2 + $0xa8] sm:$0xff]
        %v811 = vld [vmem:[#allocation2 + $0xb0] sm:$0xff]
        %v812 = vld [vmem:[#allocation2 + $0xb8] sm:$0xff]
        %v813 = vld [vmem:[#allocation2 + $0xc0] sm:$0xff]
        %v814 = vld [vmem:[#allocation2 + $0xc8] sm:$0xff]
        %v815 = vld [vmem:[#allocation2 + $0xd0] sm:$0xff]
        %v816 = vld [vmem:[#allocation2 + $0xd8] sm:$0xff]
        %v817 = vld [vmem:[#allocation2 + $0xe0] sm:$0xff]
        %v818 = vld [vmem:[#allocation2 + $0xe8] sm:$0xff]
        %v819 = vld [vmem:[#allocation2 + $0xf0] sm:$0xff]
        %v820 = vld [vmem:[#allocation2 + $0xf8] sm:$0xff]
        %v821 = vld [vmem:[%s287] sm:$0x1]
        %v823 = vlaneseq
        %v824 = vshrl.u32 %v823, 7
        %v825 = vsub.s32 0, %v824
        %v826 = vrot.slane %v821, %v825
        %v828 = vmul.f32 %v789, %v826
        %v829 = vmul.f32 %v790, %v826
        %v830 = vmul.f32 %v791, %v826
        %v831 = vmul.f32 %v792, %v826
        %v832 = vmul.f32 %v793, %v826
        %v833 = vmul.f32 %v794, %v826
        %v834 = vmul.f32 %v795, %v826
        %v835 = vmul.f32 %v796, %v826
        %v836 = vmul.f32 %v797, %v826
        %v837 = vmul.f32 %v798, %v826
        %v838 = vmul.f32 %v799, %v826
        %v839 = vmul.f32 %v800, %v826
        %v840 = vmul.f32 %v801, %v826
        %v841 = vmul.f32 %v802, %v826
        %v842 = vmul.f32 %v803, %v826
        %v843 = vmul.f32 %v804, %v826
        %v844 = vmul.f32 %v805, %v826
        %v845 = vmul.f32 %v806, %v826
        %v846 = vmul.f32 %v807, %v826
        %v847 = vmul.f32 %v808, %v826
        %v848 = vmul.f32 %v809, %v826
        %v849 = vmul.f32 %v810, %v826
        %v850 = vmul.f32 %v811, %v826
        %v851 = vmul.f32 %v812, %v826
        %v852 = vmul.f32 %v813, %v826
        %v853 = vmul.f32 %v814, %v826
        %v854 = vmul.f32 %v815, %v826
        %v855 = vmul.f32 %v816, %v826
        %v856 = vmul.f32 %v817, %v826
        %v857 = vmul.f32 %v818, %v826
        %v858 = vmul.f32 %v819, %v826
        %v859 = vmul.f32 %v820, %v826
        %v860 = vld [vmem:[%s290] sm:$0x1]
        %v862 = vlaneseq
        %v863 = vshrl.u32 %v862, 7
        %v864 = vsub.s32 0, %v863
        %v865 = vrot.slane %v860, %v864
        %v867 = vadd.f32 %v828, %v865
        %v868 = vadd.f32 %v829, %v865
        %v869 = vadd.f32 %v830, %v865
        %v870 = vadd.f32 %v831, %v865
        %v871 = vadd.f32 %v832, %v865
        %v872 = vadd.f32 %v833, %v865
        %v873 = vadd.f32 %v834, %v865
        %v874 = vadd.f32 %v835, %v865
        %v875 = vadd.f32 %v836, %v865
        %v876 = vadd.f32 %v837, %v865
        %v877 = vadd.f32 %v838, %v865
        %v878 = vadd.f32 %v839, %v865
        %v879 = vadd.f32 %v840, %v865
        %v880 = vadd.f32 %v841, %v865
        %v881 = vadd.f32 %v842, %v865
        %v882 = vadd.f32 %v843, %v865
        %v883 = vadd.f32 %v844, %v865
        %v884 = vadd.f32 %v845, %v865
        %v885 = vadd.f32 %v846, %v865
        %v886 = vadd.f32 %v847, %v865
        %v887 = vadd.f32 %v848, %v865
        %v888 = vadd.f32 %v849, %v865
        %v889 = vadd.f32 %v850, %v865
        %v890 = vadd.f32 %v851, %v865
        %v891 = vadd.f32 %v852, %v865
        %v892 = vadd.f32 %v853, %v865
        %v893 = vadd.f32 %v854, %v865
        %v894 = vadd.f32 %v855, %v865
        %v895 = vadd.f32 %v856, %v865
        %v896 = vadd.f32 %v857, %v865
        %v897 = vadd.f32 %v858, %v865
        %v898 = vadd.f32 %v859, %v865
        %v899 = vmax.f32 %v867, 0.0
        %v900 = vmax.f32 %v868, 0.0
        %v901 = vmax.f32 %v869, 0.0
        %v902 = vmax.f32 %v870, 0.0
        %v903 = vmax.f32 %v871, 0.0
        %v904 = vmax.f32 %v872, 0.0
        %v905 = vmax.f32 %v873, 0.0
        %v906 = vmax.f32 %v874, 0.0
        %v907 = vmax.f32 %v875, 0.0
        %v908 = vmax.f32 %v876, 0.0
        %v909 = vmax.f32 %v877, 0.0
        %v910 = vmax.f32 %v878, 0.0
        %v911 = vmax.f32 %v879, 0.0
        %v912 = vmax.f32 %v880, 0.0
        %v913 = vmax.f32 %v881, 0.0
        %v914 = vmax.f32 %v882, 0.0
        %v915 = vmax.f32 %v883, 0.0
        %v916 = vmax.f32 %v884, 0.0
        %v917 = vmax.f32 %v885, 0.0
        %v918 = vmax.f32 %v886, 0.0
        %v919 = vmax.f32 %v887, 0.0
        %v920 = vmax.f32 %v888, 0.0
        %v921 = vmax.f32 %v889, 0.0
        %v922 = vmax.f32 %v890, 0.0
        %v923 = vmax.f32 %v891, 0.0
        %v924 = vmax.f32 %v892, 0.0
        %v925 = vmax.f32 %v893, 0.0
        %v926 = vmax.f32 %v894, 0.0
        %v927 = vmax.f32 %v895, 0.0
        %v928 = vmax.f32 %v896, 0.0
        %v929 = vmax.f32 %v897, 0.0
        %v930 = vmax.f32 %v898, 0.0
        %931 = vst [vmem:[%s298] sm:$0xff] %v899
        %932 = vst [vmem:[%s298 + $0x8] sm:$0xff] %v900
        %933 = vst [vmem:[%s298 + $0x10] sm:$0xff] %v901
        %934 = vst [vmem:[%s298 + $0x18] sm:$0xff] %v902
        %935 = vst [vmem:[%s298 + $0x20] sm:$0xff] %v903
        %936 = vst [vmem:[%s298 + $0x28] sm:$0xff] %v904
        %937 = vst [vmem:[%s298 + $0x30] sm:$0xff] %v905
        %938 = vst [vmem:[%s298 + $0x38] sm:$0xff] %v906
        %939 = vst [vmem:[%s298 + $0x40] sm:$0xff] %v907
        %940 = vst [vmem:[%s298 + $0x48] sm:$0xff] %v908
        %941 = vst [vmem:[%s298 + $0x50] sm:$0xff] %v909
        %942 = vst [vmem:[%s298 + $0x58] sm:$0xff] %v910
        %943 = vst [vmem:[%s298 + $0x60] sm:$0xff] %v911
        %944 = vst [vmem:[%s298 + $0x68] sm:$0xff] %v912
        %945 = vst [vmem:[%s298 + $0x70] sm:$0xff] %v913
        %946 = vst [vmem:[%s298 + $0x78] sm:$0xff] %v914
        %947 = vst [vmem:[%s298 + $0x80] sm:$0xff] %v915
        %948 = vst [vmem:[%s298 + $0x88] sm:$0xff] %v916
        %949 = vst [vmem:[%s298 + $0x90] sm:$0xff] %v917
        %950 = vst [vmem:[%s298 + $0x98] sm:$0xff] %v918
        %951 = vst [vmem:[%s298 + $0xa0] sm:$0xff] %v919
        %952 = vst [vmem:[%s298 + $0xa8] sm:$0xff] %v920
        %953 = vst [vmem:[%s298 + $0xb0] sm:$0xff] %v921
        %954 = vst [vmem:[%s298 + $0xb8] sm:$0xff] %v922
        %955 = vst [vmem:[%s298 + $0xc0] sm:$0xff] %v923
        %956 = vst [vmem:[%s298 + $0xc8] sm:$0xff] %v924
        %957 = vst [vmem:[%s298 + $0xd0] sm:$0xff] %v925
        %958 = vst [vmem:[%s298 + $0xd8] sm:$0xff] %v926
        %959 = vst [vmem:[%s298 + $0xe0] sm:$0xff] %v927
        %960 = vst [vmem:[%s298 + $0xe8] sm:$0xff] %v928
        %961 = vst [vmem:[%s298 + $0xf0] sm:$0xff] %v929
        %962 = vst [vmem:[%s298 + $0xf8] sm:$0xff] %v930
      $region44: #{tps_stn_forward.6} parent=35 // pred_fallthru
        _
      %s963 = smul.u32 32, %s20
      %p964 = scmp.lt.s32.totalorder %s963, 63
      %s965 = scalar_select %p964, %s963, 63
      %p966 = scmp.lt.s32.totalorder %s21, 0
      %s967 = scalar_select %p966, %s21, 0
      %s968 = sadd.s32 %s967, %s965
      %s969 = smul.addr %s968, 8
      %s970 = scalar_lea.vmem %s4, %s969
      // Predicated region
      $region45: #{tps_stn_forward.6} parent=35 // pred_check
        %p971 = pneg %p162
      $region46: #{tps_stn_forward.6} parent=35 // pred_check_branch
        %973 = sbr.rel (%p971) target = $region48
      $region47: #{tps_stn_forward.6} parent=35 // pred_region
        %s974 = smul.u32 32, %s20
      $region48: #{tps_stn_forward.6} parent=35 // pred_fallthru
        _
    $region36: #{tps_stn_forward.6} parent=5 // pred_fallthru
      _
    %p975 = scmp.le.s32.totalorder 2, %s10
    // Predicated region
    $region49: #{tps_stn_forward.6} parent=5 // pred_check
      %p976 = pneg %p975
    $region50: #{tps_stn_forward.6} parent=5 // pred_check_branch
      %978 = sbr.rel (%p976) target = $region52
    $region51: #{tps_stn_forward.6} parent=5 // pred_region
      %s979 = ssub.s32 %s10, 2
      // Predicated region
      $region53: #{tps_stn_forward.6} parent=51 // pred_check
        %p980 = pneg %p168
      $region54: #{tps_stn_forward.6} parent=51 // pred_check_branch
        %982 = sbr.rel (%p980) target = $region56
      $region55: #{tps_stn_forward.6} parent=51 // pred_region
        %s983 = smul.u32 32, %s23
        %p984 = scmp.lt.s32.totalorder %s983, 63
        %s985 = scalar_select %p984, %s983, 63
        %p986 = scmp.lt.s32.totalorder %s24, 0
        %s987 = scalar_select %p986, %s24, 0
        %s988 = sadd.s32 %s987, %s985
        %s989 = smul.addr %s988, 8
        %s990 = scalar_lea.vmem %s4, %s989
      $region56: #{tps_stn_forward.6} parent=51 // pred_fallthru
        _
    $region52: #{tps_stn_forward.6} parent=5 // pred_fallthru
      _
  $region6: #{tps_stn_forward.6} parent=0 // loop_footer
    %s14 = sadd.s32 1, %s10
  $region7: #{tps_stn_forward.6} parent=0 // loop_footer_branch
    %9 = sbr.rel target = $region3
  $region8: #{tps_stn_forward.6} parent=0 // loop_exit
    _

// kernel: tps_stn_forward.7
$region0: #{tps_stn_forward.7}
  #allocation0 [shape = 'u32[]', space=smem, size = 0x4, offset = 0x4, fixed_abs, tag = 'smem constant byte address 0x4 - core index']
  #allocation1 [shape = 'u32[144,128]{1,0:T(1,128)}', space=vmem, size = 0x12000, scoped, tag = 'internal scratch']
  #allocation2 [shape = 'f32[128,128]{1,0:T(8,128)}', space=vmem, size = 0x10000, scoped, tag = 'scratch operand']
  %s0 = inlined_call_operand.vmem [shape: bf16[128,640], index: 0, kind: input, shape index: {}]
  %s1 = inlined_call_operand.vmem [shape: bf16[640,128], index: 1, kind: input, shape index: {}]
  %s2 = inlined_call_operand.vmem [shape: f32[1,128], index: 2, kind: input, shape index: {}]
  %s3 = inlined_call_operand.vmem [shape: f32[1,128], index: 3, kind: input, shape index: {}]
  %s4 = inlined_call_operand.vmem [shape: f32[128,128], index: 4, kind: output, shape index: {}]
  %s5 = sld [smem:[#allocation0]]
  $region34: #{tps_stn_forward.7} parent=0
    _
  %s7 = ssub.s32 1, %s5
  %s8 = scalar_select 0, %s7, %s5
  // Predicated region
  $region2: #{tps_stn_forward.7} parent=0 // pred_check
    _
  $region3: #{tps_stn_forward.7} parent=0 // pred_check_branch
    %10 = sbr.rel (0) target = $region5
  $region4: #{tps_stn_forward.7} parent=0 // pred_region
    _
  $region5: #{tps_stn_forward.7} parent=0 // pred_fallthru
    _
  // Predicated region
  $region6: #{tps_stn_forward.7} parent=0 // pred_check
    _
  $region7: #{tps_stn_forward.7} parent=0 // pred_check_branch
    %12 = sbr.rel (0) target = $region9
  $region8: #{tps_stn_forward.7} parent=0 // pred_region
    _
  $region9: #{tps_stn_forward.7} parent=0 // pred_fallthru
    _
  // Predicated region
  $region10: #{tps_stn_forward.7} parent=0 // pred_check
    _
  $region11: #{tps_stn_forward.7} parent=0 // pred_check_branch
    %14 = sbr.rel (0) target = $region13
  $region12: #{tps_stn_forward.7} parent=0 // pred_region
    _
  $region13: #{tps_stn_forward.7} parent=0 // pred_fallthru
    _
  // Predicated region
  $region14: #{tps_stn_forward.7} parent=0 // pred_check
    _
  $region15: #{tps_stn_forward.7} parent=0 // pred_check_branch
    %16 = sbr.rel (0) target = $region17
  $region16: #{tps_stn_forward.7} parent=0 // pred_region
    _
  $region17: #{tps_stn_forward.7} parent=0 // pred_fallthru
    _
  %p18 = scmp.eq.s32.totalorder 0, 0
  // Predicated region
  $region18: #{tps_stn_forward.7} parent=0 // pred_check
    %p19 = pneg %p18
  $region19: #{tps_stn_forward.7} parent=0 // pred_check_branch
    %21 = sbr.rel (%p19) target = $region21
  $region20: #{tps_stn_forward.7} parent=0 // pred_region
    %22 = vst [vmem:[#allocation2] sm:$0xff] 0.0
    %23 = vst [vmem:[#allocation2 + $0x8] sm:$0xff] 0.0
    %24 = vst [vmem:[#allocation2 + $0x10] sm:$0xff] 0.0
    %25 = vst [vmem:[#allocation2 + $0x18] sm:$0xff] 0.0
    %26 = vst [vmem:[#allocation2 + $0x20] sm:$0xff] 0.0
    %27 = vst [vmem:[#allocation2 + $0x28] sm:$0xff] 0.0
    %28 = vst [vmem:[#allocation2 + $0x30] sm:$0xff] 0.0
    %29 = vst [vmem:[#allocation2 + $0x38] sm:$0xff] 0.0
    %30 = vst [vmem:[#allocation2 + $0x40] sm:$0xff] 0.0
    %31 = vst [vmem:[#allocation2 + $0x48] sm:$0xff] 0.0
    %32 = vst [vmem:[#allocation2 + $0x50] sm:$0xff] 0.0
    %33 = vst [vmem:[#allocation2 + $0x58] sm:$0xff] 0.0
    %34 = vst [vmem:[#allocation2 + $0x60] sm:$0xff] 0.0
    %35 = vst [vmem:[#allocation2 + $0x68] sm:$0xff] 0.0
    %36 = vst [vmem:[#allocation2 + $0x70] sm:$0xff] 0.0
    %37 = vst [vmem:[#allocation2 + $0x78] sm:$0xff] 0.0
  $region21: #{tps_stn_forward.7} parent=0 // pred_fallthru
    _
  %v38 = vld [vmem:[#allocation2] sm:$0xff]
  %v39 = vld [vmem:[#allocation2 + $0x8] sm:$0xff]
  %v40 = vld [vmem:[#allocation2 + $0x10] sm:$0xff]
  %v41 = vld [vmem:[#allocation2 + $0x18] sm:$0xff]
  %v42 = vld [vmem:[#allocation2 + $0x20] sm:$0xff]
  %v43 = vld [vmem:[#allocation2 + $0x28] sm:$0xff]
  %v44 = vld [vmem:[#allocation2 + $0x30] sm:$0xff]
  %v45 = vld [vmem:[#allocation2 + $0x38] sm:$0xff]
  %v46 = vld [vmem:[#allocation2 + $0x40] sm:$0xff]
  %v47 = vld [vmem:[#allocation2 + $0x48] sm:$0xff]
  %v48 = vld [vmem:[#allocation2 + $0x50] sm:$0xff]
  %v49 = vld [vmem:[#allocation2 + $0x58] sm:$0xff]
  %v50 = vld [vmem:[#allocation2 + $0x60] sm:$0xff]
  %v51 = vld [vmem:[#allocation2 + $0x68] sm:$0xff]
  %v52 = vld [vmem:[#allocation2 + $0x70] sm:$0xff]
  %v53 = vld [vmem:[#allocation2 + $0x78] sm:$0xff]
  %v54 = vld [vmem:[%s0] sm:$0xff]
  %v55 = vld [vmem:[%s0 + $0x8] sm:$0xff]
  %v56 = vld [vmem:[%s0 + $0x10] sm:$0xf]
  %v57 = vld [vmem:[%s0 + $0x14] sm:$0xff]
  %v58 = vld [vmem:[%s0 + $0x1c] sm:$0xff]
  %v59 = vld [vmem:[%s0 + $0x24] sm:$0xf]
  %v60 = vld [vmem:[%s0 + $0x28] sm:$0xff]
  %v61 = vld [vmem:[%s0 + $0x30] sm:$0xff]
  %v62 = vld [vmem:[%s0 + $0x38] sm:$0xf]
  %v63 = vld [vmem:[%s0 + $0x3c] sm:$0xff]
  %v64 = vld [vmem:[%s0 + $0x44] sm:$0xff]
  %v65 = vld [vmem:[%s0 + $0x4c] sm:$0xf]
  %v66 = vld [vmem:[%s0 + $0x50] sm:$0xff]
  %v67 = vld [vmem:[%s0 + $0x58] sm:$0xff]
  %v68 = vld [vmem:[%s0 + $0x60] sm:$0xf]
  %v69 = vld [vmem:[%s0 + $0x64] sm:$0xff]
  %v70 = vld [vmem:[%s0 + $0x6c] sm:$0xff]
  %v71 = vld [vmem:[%s0 + $0x74] sm:$0xf]
  %v72 = vld [vmem:[%s0 + $0x78] sm:$0xff]
  %v73 = vld [vmem:[%s0 + $0x80] sm:$0xff]
  %v74 = vld [vmem:[%s0 + $0x88] sm:$0xf]
  %v75 = vld [vmem:[%s0 + $0x8c] sm:$0xff]
  %v76 = vld [vmem:[%s0 + $0x94] sm:$0xff]
  %v77 = vld [vmem:[%s0 + $0x9c] sm:$0xf]
  %v78 = vld [vmem:[%s0 + $0xa0] sm:$0xff]
  %v79 = vld [vmem:[%s0 + $0xa8] sm:$0xff]
  %v80 = vld [vmem:[%s0 + $0xb0] sm:$0xf]
  %v81 = vld [vmem:[%s0 + $0xb4] sm:$0xff]
  %v82 = vld [vmem:[%s0 + $0xbc] sm:$0xff]
  %v83 = vld [vmem:[%s0 + $0xc4] sm:$0xf]
  %v84 = vld [vmem:[%s0 + $0xc8] sm:$0xff]
  %v85 = vld [vmem:[%s0 + $0xd0] sm:$0xff]
  %v86 = vld [vmem:[%s0 + $0xd8] sm:$0xf]
  %v87 = vld [vmem:[%s0 + $0xdc] sm:$0xff]
  %v88 = vld [vmem:[%s0 + $0xe4] sm:$0xff]
  %v89 = vld [vmem:[%s0 + $0xec] sm:$0xf]
  %v90 = vld [vmem:[%s0 + $0xf0] sm:$0xff]
  %v91 = vld [vmem:[%s0 + $0xf8] sm:$0xff]
  %v92 = vld [vmem:[%s0 + $0x100] sm:$0xf]
  %v93 = vld [vmem:[%s0 + $0x104] sm:$0xff]
  %v94 = vld [vmem:[%s0 + $0x10c] sm:$0xff]
  %v95 = vld [vmem:[%s0 + $0x114] sm:$0xf]
  %v96 = vld [vmem:[%s0 + $0x118] sm:$0xff]
  %v97 = vld [vmem:[%s0 + $0x120] sm:$0xff]
  %v98 = vld [vmem:[%s0 + $0x128] sm:$0xf]
  %v99 = vld [vmem:[%s0 + $0x12c] sm:$0xff]
  %v100 = vld [vmem:[%s0 + $0x134] sm:$0xff]
  %v101 = vld [vmem:[%s0 + $0x13c] sm:$0xf]
  %v102 = vld [vmem:[%s1] sm:$0xf]
  %v103 = vld [vmem:[%s1 + $0x4] sm:$0xf]
  %v104 = vld [vmem:[%s1 + $0x8] sm:$0xf]
  %v105 = vld [vmem:[%s1 + $0xc] sm:$0xf]
  %v106 = vld [vmem:[%s1 + $0x10] sm:$0xf]
  %v107 = vld [vmem:[%s1 + $0x14] sm:$0xf]
  %v108 = vld [vmem:[%s1 + $0x18] sm:$0xf]
  %v109 = vld [vmem:[%s1 + $0x1c] sm:$0xf]
  %v110 = vld [vmem:[%s1 + $0x20] sm:$0xf]
  %v111 = vld [vmem:[%s1 + $0x24] sm:$0xf]
  %v112 = vld [vmem:[%s1 + $0x28] sm:$0xf]
  %v113 = vld [vmem:[%s1 + $0x2c] sm:$0xf]
  %v114 = vld [vmem:[%s1 + $0x30] sm:$0xf]
  %v115 = vld [vmem:[%s1 + $0x34] sm:$0xf]
  %v116 = vld [vmem:[%s1 + $0x38] sm:$0xf]
  %v117 = vld [vmem:[%s1 + $0x3c] sm:$0xf]
  %v118 = vld [vmem:[%s1 + $0x40] sm:$0xf]
  %v119 = vld [vmem:[%s1 + $0x44] sm:$0xf]
  %v120 = vld [vmem:[%s1 + $0x48] sm:$0xf]
  %v121 = vld [vmem:[%s1 + $0x4c] sm:$0xf]
  %v122 = vld [vmem:[%s1 + $0x50] sm:$0xf]
  %v123 = vld [vmem:[%s1 + $0x54] sm:$0xf]
  %v124 = vld [vmem:[%s1 + $0x58] sm:$0xf]
  %v125 = vld [vmem:[%s1 + $0x5c] sm:$0xf]
  %v126 = vld [vmem:[%s1 + $0x60] sm:$0xf]
  %v127 = vld [vmem:[%s1 + $0x64] sm:$0xf]
  %v128 = vld [vmem:[%s1 + $0x68] sm:$0xf]
  %v129 = vld [vmem:[%s1 + $0x6c] sm:$0xf]
  %v130 = vld [vmem:[%s1 + $0x70] sm:$0xf]
  %v131 = vld [vmem:[%s1 + $0x74] sm:$0xf]
  %v132 = vld [vmem:[%s1 + $0x78] sm:$0xf]
  %v133 = vld [vmem:[%s1 + $0x7c] sm:$0xf]
  %v134 = vld [vmem:[%s1 + $0x80] sm:$0xf]
  %v135 = vld [vmem:[%s1 + $0x84] sm:$0xf]
  %v136 = vld [vmem:[%s1 + $0x88] sm:$0xf]
  %v137 = vld [vmem:[%s1 + $0x8c] sm:$0xf]
  %v138 = vld [vmem:[%s1 + $0x90] sm:$0xf]
  %v139 = vld [vmem:[%s1 + $0x94] sm:$0xf]
  %v140 = vld [vmem:[%s1 + $0x98] sm:$0xf]
  %v141 = vld [vmem:[%s1 + $0x9c] sm:$0xf]
  %v142 = vld [vmem:[%s1 + $0xa0] sm:$0xf]
  %v143 = vld [vmem:[%s1 + $0xa4] sm:$0xf]
  %v144 = vld [vmem:[%s1 + $0xa8] sm:$0xf]
  %v145 = vld [vmem:[%s1 + $0xac] sm:$0xf]
  %v146 = vld [vmem:[%s1 + $0xb0] sm:$0xf]
  %v147 = vld [vmem:[%s1 + $0xb4] sm:$0xf]
  %v148 = vld [vmem:[%s1 + $0xb8] sm:$0xf]
  %v149 = vld [vmem:[%s1 + $0xbc] sm:$0xf]
  %v150 = vld [vmem:[%s1 + $0xc0] sm:$0xf]
  %v151 = vld [vmem:[%s1 + $0xc4] sm:$0xf]
  %v152 = vld [vmem:[%s1 + $0xc8] sm:$0xf]
  %v153 = vld [vmem:[%s1 + $0xcc] sm:$0xf]
  %v154 = vld [vmem:[%s1 + $0xd0] sm:$0xf]
  %v155 = vld [vmem:[%s1 + $0xd4] sm:$0xf]
  %v156 = vld [vmem:[%s1 + $0xd8] sm:$0xf]
  %v157 = vld [vmem:[%s1 + $0xdc] sm:$0xf]
  %v158 = vld [vmem:[%s1 + $0xe0] sm:$0xf]
  %v159 = vld [vmem:[%s1 + $0xe4] sm:$0xf]
  %v160 = vld [vmem:[%s1 + $0xe8] sm:$0xf]
  %v161 = vld [vmem:[%s1 + $0xec] sm:$0xf]
  %v162 = vld [vmem:[%s1 + $0xf0] sm:$0xf]
  %v163 = vld [vmem:[%s1 + $0xf4] sm:$0xf]
  %v164 = vld [vmem:[%s1 + $0xf8] sm:$0xf]
  %v165 = vld [vmem:[%s1 + $0xfc] sm:$0xf]
  %v166 = vld [vmem:[%s1 + $0x100] sm:$0xf]
  %v167 = vld [vmem:[%s1 + $0x104] sm:$0xf]
  %v168 = vld [vmem:[%s1 + $0x108] sm:$0xf]
  %v169 = vld [vmem:[%s1 + $0x10c] sm:$0xf]
  %v170 = vld [vmem:[%s1 + $0x110] sm:$0xf]
  %v171 = vld [vmem:[%s1 + $0x114] sm:$0xf]
  %v172 = vld [vmem:[%s1 + $0x118] sm:$0xf]
  %v173 = vld [vmem:[%s1 + $0x11c] sm:$0xf]
  %v174 = vld [vmem:[%s1 + $0x120] sm:$0xf]
  %v175 = vld [vmem:[%s1 + $0x124] sm:$0xf]
  %v176 = vld [vmem:[%s1 + $0x128] sm:$0xf]
  %v177 = vld [vmem:[%s1 + $0x12c] sm:$0xf]
  %v178 = vld [vmem:[%s1 + $0x130] sm:$0xf]
  %v179 = vld [vmem:[%s1 + $0x134] sm:$0xf]
  %v180 = vld [vmem:[%s1 + $0x138] sm:$0xf]
  %v181 = vld [vmem:[%s1 + $0x13c] sm:$0xf]
  %v230 = vunpack.c.l.b16 %v54
  %v231 = vunpack.c.h.b16 %v54
  %v232 = vunpack.c.l.b16 %v55
  %v233 = vunpack.c.h.b16 %v55
  %v234 = vunpack.c.l.b16 %v56
  %v235 = vunpack.c.l.b16 %v57
  %v236 = vunpack.c.h.b16 %v57
  %v237 = vunpack.c.l.b16 %v58
  %v238 = vunpack.c.h.b16 %v58
  %v239 = vunpack.c.l.b16 %v59
  %v240 = vunpack.c.l.b16 %v60
  %v241 = vunpack.c.h.b16 %v60
  %v242 = vunpack.c.l.b16 %v61
  %v243 = vunpack.c.h.b16 %v61
  %v244 = vunpack.c.l.b16 %v62
  %v245 = vunpack.c.l.b16 %v63
  %v246 = vunpack.c.h.b16 %v63
  %v247 = vunpack.c.l.b16 %v64
  %v248 = vunpack.c.h.b16 %v64
  %v249 = vunpack.c.l.b16 %v65
  %v250 = vunpack.c.l.b16 %v66
  %v251 = vunpack.c.h.b16 %v66
  %v252 = vunpack.c.l.b16 %v67
  %v253 = vunpack.c.h.b16 %v67
  %v254 = vunpack.c.l.b16 %v68
  %v255 = vunpack.c.l.b16 %v69
  %v256 = vunpack.c.h.b16 %v69
  %v257 = vunpack.c.l.b16 %v70
  %v258 = vunpack.c.h.b16 %v70
  %v259 = vunpack.c.l.b16 %v71
  %v260 = vunpack.c.l.b16 %v72
  %v261 = vunpack.c.h.b16 %v72
  %v262 = vunpack.c.l.b16 %v73
  %v263 = vunpack.c.h.b16 %v73
  %v264 = vunpack.c.l.b16 %v74
  %v265 = vunpack.c.l.b16 %v75
  %v266 = vunpack.c.h.b16 %v75
  %v267 = vunpack.c.l.b16 %v76
  %v268 = vunpack.c.h.b16 %v76
  %v269 = vunpack.c.l.b16 %v77
  %v270 = vunpack.c.l.b16 %v78
  %v271 = vunpack.c.h.b16 %v78
  %v272 = vunpack.c.l.b16 %v79
  %v273 = vunpack.c.h.b16 %v79
  %v274 = vunpack.c.l.b16 %v80
  %v275 = vunpack.c.l.b16 %v81
  %v276 = vunpack.c.h.b16 %v81
  %v277 = vunpack.c.l.b16 %v82
  %v278 = vunpack.c.h.b16 %v82
  %v279 = vunpack.c.l.b16 %v83
  %v280 = vunpack.c.l.b16 %v84
  %v281 = vunpack.c.h.b16 %v84
  %v282 = vunpack.c.l.b16 %v85
  %v283 = vunpack.c.h.b16 %v85
  %v284 = vunpack.c.l.b16 %v86
  %v285 = vunpack.c.l.b16 %v87
  %v286 = vunpack.c.h.b16 %v87
  %v287 = vunpack.c.l.b16 %v88
  %v288 = vunpack.c.h.b16 %v88
  %v289 = vunpack.c.l.b16 %v89
  %v290 = vunpack.c.l.b16 %v90
  %v291 = vunpack.c.h.b16 %v90
  %v292 = vunpack.c.l.b16 %v91
  %v293 = vunpack.c.h.b16 %v91
  %v294 = vunpack.c.l.b16 %v92
  %v295 = vunpack.c.l.b16 %v93
  %v296 = vunpack.c.h.b16 %v93
  %v297 = vunpack.c.l.b16 %v94
  %v298 = vunpack.c.h.b16 %v94
  %v299 = vunpack.c.l.b16 %v95
  %v300 = vunpack.c.l.b16 %v96
  %v301 = vunpack.c.h.b16 %v96
  %v302 = vunpack.c.l.b16 %v97
  %v303 = vunpack.c.h.b16 %v97
  %v304 = vunpack.c.l.b16 %v98
  %v305 = vunpack.c.l.b16 %v99
  %v306 = vunpack.c.h.b16 %v99
  %v307 = vunpack.c.l.b16 %v100
  %v308 = vunpack.c.h.b16 %v100
  %v309 = vunpack.c.l.b16 %v101
  %v310 = vpack.c.b16 %v235, %v230
  %v311 = vpack.c.b16 %v236, %v231
  %v312 = vpack.c.b16 %v237, %v232
  %v313 = vpack.c.b16 %v238, %v233
  %v314 = vpack.c.b16 %v239, %v234
  %v315 = vpack.c.b16 %v245, %v240
  %v316 = vpack.c.b16 %v246, %v241
  %v317 = vpack.c.b16 %v247, %v242
  %v318 = vpack.c.b16 %v248, %v243
  %v319 = vpack.c.b16 %v249, %v244
  %v320 = vpack.c.b16 %v255, %v250
  %v321 = vpack.c.b16 %v256, %v251
  %v322 = vpack.c.b16 %v257, %v252
  %v323 = vpack.c.b16 %v258, %v253
  %v324 = vpack.c.b16 %v259, %v254
  %v325 = vpack.c.b16 %v265, %v260
  %v326 = vpack.c.b16 %v266, %v261
  %v327 = vpack.c.b16 %v267, %v262
  %v328 = vpack.c.b16 %v268, %v263
  %v329 = vpack.c.b16 %v269, %v264
  %v330 = vpack.c.b16 %v275, %v270
  %v331 = vpack.c.b16 %v276, %v271
  %v332 = vpack.c.b16 %v277, %v272
  %v333 = vpack.c.b16 %v278, %v273
  %v334 = vpack.c.b16 %v279, %v274
  %v335 = vpack.c.b16 %v285, %v280
  %v336 = vpack.c.b16 %v286, %v281
  %v337 = vpack.c.b16 %v287, %v282
  %v338 = vpack.c.b16 %v288, %v283
  %v339 = vpack.c.b16 %v289, %v284
  %v340 = vpack.c.b16 %v295, %v290
  %v341 = vpack.c.b16 %v296, %v291
  %v342 = vpack.c.b16 %v297, %v292
  %v343 = vpack.c.b16 %v298, %v293
  %v344 = vpack.c.b16 %v299, %v294
  %v345 = vpack.c.b16 %v305, %v300
  %v346 = vpack.c.b16 %v306, %v301
  %v347 = vpack.c.b16 %v307, %v302
  %v348 = vpack.c.b16 %v308, %v303
  %v349 = vpack.c.b16 %v309, %v304
  %v470 = vunpack.c.l.b16 %v102
  %v471 = vunpack.c.l.b16 %v103
  %v472 = vunpack.c.l.b16 %v104
  %v473 = vunpack.c.l.b16 %v105
  %v474 = vunpack.c.l.b16 %v106
  %v475 = vunpack.c.l.b16 %v107
  %v476 = vunpack.c.l.b16 %v108
  %v477 = vunpack.c.l.b16 %v109
  %v478 = vunpack.c.l.b16 %v110
  %v479 = vunpack.c.l.b16 %v111
  %v480 = vunpack.c.l.b16 %v112
  %v481 = vunpack.c.l.b16 %v113
  %v482 = vunpack.c.l.b16 %v114
  %v483 = vunpack.c.l.b16 %v115
  %v484 = vunpack.c.l.b16 %v116
  %v485 = vunpack.c.l.b16 %v117
  %v486 = vunpack.c.l.b16 %v118
  %v487 = vunpack.c.l.b16 %v119
  %v488 = vunpack.c.l.b16 %v120
  %v489 = vunpack.c.l.b16 %v121
  %v490 = vunpack.c.l.b16 %v122
  %v491 = vunpack.c.l.b16 %v123
  %v492 = vunpack.c.l.b16 %v124
  %v493 = vunpack.c.l.b16 %v125
  %v494 = vunpack.c.l.b16 %v126
  %v495 = vunpack.c.l.b16 %v127
  %v496 = vunpack.c.l.b16 %v128
  %v497 = vunpack.c.l.b16 %v129
  %v498 = vunpack.c.l.b16 %v130
  %v499 = vunpack.c.l.b16 %v131
  %v500 = vunpack.c.l.b16 %v132
  %v501 = vunpack.c.l.b16 %v133
  %v502 = vunpack.c.l.b16 %v134
  %v503 = vunpack.c.l.b16 %v135
  %v504 = vunpack.c.l.b16 %v136
  %v505 = vunpack.c.l.b16 %v137
  %v506 = vunpack.c.l.b16 %v138
  %v507 = vunpack.c.l.b16 %v139
  %v508 = vunpack.c.l.b16 %v140
  %v509 = vunpack.c.l.b16 %v141
  %v510 = vunpack.c.l.b16 %v142
  %v511 = vunpack.c.l.b16 %v143
  %v512 = vunpack.c.l.b16 %v144
  %v513 = vunpack.c.l.b16 %v145
  %v514 = vunpack.c.l.b16 %v146
  %v515 = vunpack.c.l.b16 %v147
  %v516 = vunpack.c.l.b16 %v148
  %v517 = vunpack.c.l.b16 %v149
  %v518 = vunpack.c.l.b16 %v150
  %v519 = vunpack.c.l.b16 %v151
  %v520 = vunpack.c.l.b16 %v152
  %v521 = vunpack.c.l.b16 %v153
  %v522 = vunpack.c.l.b16 %v154
  %v523 = vunpack.c.l.b16 %v155
  %v524 = vunpack.c.l.b16 %v156
  %v525 = vunpack.c.l.b16 %v157
  %v526 = vunpack.c.l.b16 %v158
  %v527 = vunpack.c.l.b16 %v159
  %v528 = vunpack.c.l.b16 %v160
  %v529 = vunpack.c.l.b16 %v161
  %v530 = vunpack.c.l.b16 %v162
  %v531 = vunpack.c.l.b16 %v163
  %v532 = vunpack.c.l.b16 %v164
  %v533 = vunpack.c.l.b16 %v165
  %v534 = vunpack.c.l.b16 %v166
  %v535 = vunpack.c.l.b16 %v167
  %v536 = vunpack.c.l.b16 %v168
  %v537 = vunpack.c.l.b16 %v169
  %v538 = vunpack.c.l.b16 %v170
  %v539 = vunpack.c.l.b16 %v171
  %v540 = vunpack.c.l.b16 %v172
  %v541 = vunpack.c.l.b16 %v173
  %v542 = vunpack.c.l.b16 %v174
  %v543 = vunpack.c.l.b16 %v175
  %v544 = vunpack.c.l.b16 %v176
  %v545 = vunpack.c.l.b16 %v177
  %v546 = vunpack.c.l.b16 %v178
  %v547 = vunpack.c.l.b16 %v179
  %v548 = vunpack.c.l.b16 %v180
  %v549 = vunpack.c.l.b16 %v181
  %v550 = vpack.c.b16 %v471, %v470
  %v551 = vpack.c.b16 %v473, %v472
  %v552 = vpack.c.b16 %v475, %v474
  %v553 = vpack.c.b16 %v477, %v476
  %v554 = vpack.c.b16 %v479, %v478
  %v555 = vpack.c.b16 %v481, %v480
  %v556 = vpack.c.b16 %v483, %v482
  %v557 = vpack.c.b16 %v485, %v484
  %v558 = vpack.c.b16 %v487, %v486
  %v559 = vpack.c.b16 %v489, %v488
  %v560 = vpack.c.b16 %v491, %v490
  %v561 = vpack.c.b16 %v493, %v492
  %v562 = vpack.c.b16 %v495, %v494
  %v563 = vpack.c.b16 %v497, %v496
  %v564 = vpack.c.b16 %v499, %v498
  %v565 = vpack.c.b16 %v501, %v500
  %v566 = vpack.c.b16 %v503, %v502
  %v567 = vpack.c.b16 %v505, %v504
  %v568 = vpack.c.b16 %v507, %v506
  %v569 = vpack.c.b16 %v509, %v508
  %v570 = vpack.c.b16 %v511, %v510
  %v571 = vpack.c.b16 %v513, %v512
  %v572 = vpack.c.b16 %v515, %v514
  %v573 = vpack.c.b16 %v517, %v516
  %v574 = vpack.c.b16 %v519, %v518
  %v575 = vpack.c.b16 %v521, %v520
  %v576 = vpack.c.b16 %v523, %v522
  %v577 = vpack.c.b16 %v525, %v524
  %v578 = vpack.c.b16 %v527, %v526
  %v579 = vpack.c.b16 %v529, %v528
  %v580 = vpack.c.b16 %v531, %v530
  %v581 = vpack.c.b16 %v533, %v532
  %v582 = vpack.c.b16 %v535, %v534
  %v583 = vpack.c.b16 %v537, %v536
  %v584 = vpack.c.b16 %v539, %v538
  %v585 = vpack.c.b16 %v541, %v540
  %v586 = vpack.c.b16 %v543, %v542
  %v587 = vpack.c.b16 %v545, %v544
  %v588 = vpack.c.b16 %v547, %v546
  %v589 = vpack.c.b16 %v549, %v548
  %630 = vmatprep.subr.bf16.mxu0 0
  %631 = vmatpush1.bf16.msra.mxu0 %v557
  %632 = vmatprep.subr.bf16.mxu0 0
  %633 = vmatpush1.bf16.msra.mxu0 %v556
  %634 = vmatprep.subr.bf16.mxu0 0
  %635 = vmatpush1.bf16.msra.mxu0 %v555
  %636 = vmatprep.subr.bf16.mxu0 0
  %637 = vmatpush1.bf16.msra.mxu0 %v554
  %638 = vmatprep.subr.bf16.mxu0 0
  %639 = vmatpush1.bf16.msra.mxu0 %v553
  %640 = vmatprep.subr.bf16.mxu0 0
  %641 = vmatpush1.bf16.msra.mxu0 %v552
  %642 = vmatprep.subr.bf16.mxu0 0
  %643 = vmatpush1.bf16.msra.mxu0 %v551
  %644 = vmatprep.subr.bf16.mxu0 0
  %645 = vmatpush1.bf16.msra.mxu0 %v550
  %646 = vmatprep.subr.bf16.mxu0 0
  %647 = vmatpush2.bf16.msra.mxu0 %v565
  %648 = vmatprep.subr.bf16.mxu0 0
  %649 = vmatpush2.bf16.msra.mxu0 %v564
  %650 = vmatprep.subr.bf16.mxu0 0
  %651 = vmatpush2.bf16.msra.mxu0 %v563
  %652 = vmatprep.subr.bf16.mxu0 0
  %653 = vmatpush2.bf16.msra.mxu0 %v562
  %654 = vmatprep.subr.bf16.mxu0 0
  %655 = vmatpush2.bf16.msra.mxu0 %v561
  %656 = vmatprep.subr.bf16.mxu0 0
  %657 = vmatpush2.bf16.msra.mxu0 %v560
  %658 = vmatprep.subr.bf16.mxu0 0
  %659 = vmatpush2.bf16.msra.mxu0 %v559
  %660 = vmatprep.subr.bf16.mxu0 0
  %661 = vmatpush2.bf16.msra.mxu0 %v558
  %662 = vmatprep.mubr.bf16.mxu0 %v311
  %663 = vmatmul.mubr.bf16.gmra.mxu0 %v310
  %v664 = vpop.f32.mrf.mxu0
  %v665 = vadd.f32 0.0, %v664
  %v666 = vpop.f32.mrf.mxu0
  %v667 = vpop.f32.mrf.mxu0
  %v668 = vadd.f32 0.0, %v667
  %v669 = vpop.f32.mrf.mxu0
  %670 = vmatprep.mubr.bf16.mxu0 %v316
  %671 = vmatmul.mubr.bf16.gmra.mxu0 %v315
  %v672 = vpop.f32.mrf.mxu0
  %v673 = vadd.f32 0.0, %v672
  %v674 = vpop.f32.mrf.mxu0
  %v675 = vpop.f32.mrf.mxu0
  %v676 = vadd.f32 0.0, %v675
  %v677 = vpop.f32.mrf.mxu0
  %678 = vmatprep.mubr.bf16.mxu0 %v321
  %679 = vmatmul.mubr.bf16.gmra.mxu0 %v320
  %v680 = vpop.f32.mrf.mxu0
  %v681 = vadd.f32 0.0, %v680
  %v682 = vpop.f32.mrf.mxu0
  %v683 = vpop.f32.mrf.mxu0
  %v684 = vadd.f32 0.0, %v683
  %v685 = vpop.f32.mrf.mxu0
  %686 = vmatprep.mubr.bf16.mxu0 %v326
  %687 = vmatmul.mubr.bf16.gmra.mxu0 %v325
  %v688 = vpop.f32.mrf.mxu0
  %v689 = vadd.f32 0.0, %v688
  %v690 = vpop.f32.mrf.mxu0
  %v691 = vpop.f32.mrf.mxu0
  %v692 = vadd.f32 0.0, %v691
  %v693 = vpop.f32.mrf.mxu0
  %694 = vmatprep.mubr.bf16.mxu0 %v331
  %695 = vmatmul.mubr.bf16.gmra.mxu0 %v330
  %v696 = vpop.f32.mrf.mxu0
  %v697 = vadd.f32 0.0, %v696
  %v698 = vpop.f32.mrf.mxu0
  %v699 = vpop.f32.mrf.mxu0
  %v700 = vadd.f32 0.0, %v699
  %v701 = vpop.f32.mrf.mxu0
  %702 = vmatprep.mubr.bf16.mxu0 %v336
  %703 = vmatmul.mubr.bf16.gmra.mxu0 %v335
  %v704 = vpop.f32.mrf.mxu0
  %v705 = vadd.f32 0.0, %v704
  %v706 = vpop.f32.mrf.mxu0
  %v707 = vpop.f32.mrf.mxu0
  %v708 = vadd.f32 0.0, %v707
  %v709 = vpop.f32.mrf.mxu0
  %710 = vmatprep.mubr.bf16.mxu0 %v341
  %711 = vmatmul.mubr.bf16.gmra.mxu0 %v340
  %v712 = vpop.f32.mrf.mxu0
  %v713 = vadd.f32 0.0, %v712
  %v714 = vpop.f32.mrf.mxu0
  %v715 = vpop.f32.mrf.mxu0
  %v716 = vadd.f32 0.0, %v715
  %v717 = vpop.f32.mrf.mxu0
  %718 = vmatprep.mubr.bf16.mxu0 %v346
  %719 = vmatmul.mubr.bf16.gmra.mxu0 %v345
  %v720 = vpop.f32.mrf.mxu0
  %v721 = vadd.f32 0.0, %v720
  %v722 = vpop.f32.mrf.mxu0
  %v723 = vpop.f32.mrf.mxu0
  %v724 = vadd.f32 0.0, %v723
  %v725 = vpop.f32.mrf.mxu0
  %726 = vdwg.mxu0
  %727 = vmatprep.subr.bf16.mxu0 0
  %728 = vmatpush1.bf16.msra.mxu0 %v573
  %729 = vmatprep.subr.bf16.mxu0 0
  %730 = vmatpush1.bf16.msra.mxu0 %v572
  %731 = vmatprep.subr.bf16.mxu0 0
  %732 = vmatpush1.bf16.msra.mxu0 %v571
  %733 = vmatprep.subr.bf16.mxu0 0
  %734 = vmatpush1.bf16.msra.mxu0 %v570
  %735 = vmatprep.subr.bf16.mxu0 0
  %736 = vmatpush1.bf16.msra.mxu0 %v569
  %737 = vmatprep.subr.bf16.mxu0 0
  %738 = vmatpush1.bf16.msra.mxu0 %v568
  %739 = vmatprep.subr.bf16.mxu0 0
  %740 = vmatpush1.bf16.msra.mxu0 %v567
  %741 = vmatprep.subr.bf16.mxu0 0
  %742 = vmatpush1.bf16.msra.mxu0 %v566
  %743 = vmatprep.subr.bf16.mxu0 0
  %744 = vmatpush2.bf16.msra.mxu0 %v581
  %745 = vmatprep.subr.bf16.mxu0 0
  %746 = vmatpush2.bf16.msra.mxu0 %v580
  %747 = vmatprep.subr.bf16.mxu0 0
  %748 = vmatpush2.bf16.msra.mxu0 %v579
  %749 = vmatprep.subr.bf16.mxu0 0
  %750 = vmatpush2.bf16.msra.mxu0 %v578
  %751 = vmatprep.subr.bf16.mxu0 0
  %752 = vmatpush2.bf16.msra.mxu0 %v577
  %753 = vmatprep.subr.bf16.mxu0 0
  %754 = vmatpush2.bf16.msra.mxu0 %v576
  %755 = vmatprep.subr.bf16.mxu0 0
  %756 = vmatpush2.bf16.msra.mxu0 %v575
  %757 = vmatprep.subr.bf16.mxu0 0
  %758 = vmatpush2.bf16.msra.mxu0 %v574
  %759 = vmatprep.mubr.bf16.mxu0 %v313
  %760 = vmatmul.mubr.bf16.gmra.mxu0 %v312
  %v761 = vpop.f32.mrf.mxu0
  %v762 = vadd.f32 %v665, %v761
  %v763 = vpop.f32.mrf.mxu0
  %v764 = vpop.f32.mrf.mxu0
  %v765 = vadd.f32 %v668, %v764
  %v766 = vpop.f32.mrf.mxu0
  %767 = vmatprep.mubr.bf16.mxu0 %v318
  %768 = vmatmul.mubr.bf16.gmra.mxu0 %v317
  %v769 = vpop.f32.mrf.mxu0
  %v770 = vadd.f32 %v673, %v769
  %v771 = vpop.f32.mrf.mxu0
  %v772 = vpop.f32.mrf.mxu0
  %v773 = vadd.f32 %v676, %v772
  %v774 = vpop.f32.mrf.mxu0
  %775 = vmatprep.mubr.bf16.mxu0 %v323
  %776 = vmatmul.mubr.bf16.gmra.mxu0 %v322
  %v777 = vpop.f32.mrf.mxu0
  %v778 = vadd.f32 %v681, %v777
  %v779 = vpop.f32.mrf.mxu0
  %v780 = vpop.f32.mrf.mxu0
  %v781 = vadd.f32 %v684, %v780
  %v782 = vpop.f32.mrf.mxu0
  %783 = vmatprep.mubr.bf16.mxu0 %v328
  %784 = vmatmul.mubr.bf16.gmra.mxu0 %v327
  %v785 = vpop.f32.mrf.mxu0
  %v786 = vadd.f32 %v689, %v785
  %v787 = vpop.f32.mrf.mxu0
  %v788 = vpop.f32.mrf.mxu0
  %v789 = vadd.f32 %v692, %v788
  %v790 = vpop.f32.mrf.mxu0
  %791 = vmatprep.mubr.bf16.mxu0 %v333
  %792 = vmatmul.mubr.bf16.gmra.mxu0 %v332
  %v793 = vpop.f32.mrf.mxu0
  %v794 = vadd.f32 %v697, %v793
  %v795 = vpop.f32.mrf.mxu0
  %v796 = vpop.f32.mrf.mxu0
  %v797 = vadd.f32 %v700, %v796
  %v798 = vpop.f32.mrf.mxu0
  %799 = vmatprep.mubr.bf16.mxu0 %v338
  %800 = vmatmul.mubr.bf16.gmra.mxu0 %v337
  %v801 = vpop.f32.mrf.mxu0
  %v802 = vadd.f32 %v705, %v801
  %v803 = vpop.f32.mrf.mxu0
  %v804 = vpop.f32.mrf.mxu0
  %v805 = vadd.f32 %v708, %v804
  %v806 = vpop.f32.mrf.mxu0
  %807 = vmatprep.mubr.bf16.mxu0 %v343
  %808 = vmatmul.mubr.bf16.gmra.mxu0 %v342
  %v809 = vpop.f32.mrf.mxu0
  %v810 = vadd.f32 %v713, %v809
  %v811 = vpop.f32.mrf.mxu0
  %v812 = vpop.f32.mrf.mxu0
  %v813 = vadd.f32 %v716, %v812
  %v814 = vpop.f32.mrf.mxu0
  %815 = vmatprep.mubr.bf16.mxu0 %v348
  %816 = vmatmul.mubr.bf16.gmra.mxu0 %v347
  %v817 = vpop.f32.mrf.mxu0
  %v818 = vadd.f32 %v721, %v817
  %v819 = vpop.f32.mrf.mxu0
  %v820 = vpop.f32.mrf.mxu0
  %v821 = vadd.f32 %v724, %v820
  %v822 = vpop.f32.mrf.mxu0
  %823 = vdwg.mxu0
  %824 = vmatprep.subr.bf16.mxu0 0
  %825 = vmatpush1.bf16.msra.mxu0 %v589
  %826 = vmatprep.subr.bf16.mxu0 0
  %827 = vmatpush1.bf16.msra.mxu0 %v588
  %828 = vmatprep.subr.bf16.mxu0 0
  %829 = vmatpush1.bf16.msra.mxu0 %v587
  %830 = vmatprep.subr.bf16.mxu0 0
  %831 = vmatpush1.bf16.msra.mxu0 %v586
  %832 = vmatprep.subr.bf16.mxu0 0
  %833 = vmatpush1.bf16.msra.mxu0 %v585
  %834 = vmatprep.subr.bf16.mxu0 0
  %835 = vmatpush1.bf16.msra.mxu0 %v584
  %836 = vmatprep.subr.bf16.mxu0 0
  %837 = vmatpush1.bf16.msra.mxu0 %v583
  %838 = vmatprep.subr.bf16.mxu0 0
  %839 = vmatpush1.bf16.msra.mxu0 %v582
  %840 = vmatprep.subr.bf16.mxu0 0
  %841 = vmatpush2.bf16.msra.mxu0 0
  %842 = vmatprep.subr.bf16.mxu0 0
  %843 = vmatpush2.bf16.msra.mxu0 0
  %844 = vmatprep.subr.bf16.mxu0 0
  %845 = vmatpush2.bf16.msra.mxu0 0
  %846 = vmatprep.subr.bf16.mxu0 0
  %847 = vmatpush2.bf16.msra.mxu0 0
  %848 = vmatprep.subr.bf16.mxu0 0
  %849 = vmatpush2.bf16.msra.mxu0 0
  %850 = vmatprep.subr.bf16.mxu0 0
  %851 = vmatpush2.bf16.msra.mxu0 0
  %852 = vmatprep.subr.bf16.mxu0 0
  %853 = vmatpush2.bf16.msra.mxu0 0
  %854 = vmatprep.subr.bf16.mxu0 0
  %855 = vmatpush2.bf16.msra.mxu0 0
  %856 = vmatprep.mubr.bf16.mxu0 0
  %857 = vmatmul.mubr.bf16.gmra.mxu0 %v314
  %v858 = vpop.f32.mrf.mxu0
  %v859 = vadd.f32 %v762, %v858
  %v860 = vpop.f32.mrf.mxu0
  %v861 = vpop.f32.mrf.mxu0
  %v862 = vadd.f32 %v765, %v861
  %v863 = vpop.f32.mrf.mxu0
  %864 = vmatprep.mubr.bf16.mxu0 0
  %865 = vmatmul.mubr.bf16.gmra.mxu0 %v319
  %v866 = vpop.f32.mrf.mxu0
  %v867 = vadd.f32 %v770, %v866
  %v868 = vpop.f32.mrf.mxu0
  %v869 = vpop.f32.mrf.mxu0
  %v870 = vadd.f32 %v773, %v869
  %v871 = vpop.f32.mrf.mxu0
  %872 = vmatprep.mubr.bf16.mxu0 0
  %873 = vmatmul.mubr.bf16.gmra.mxu0 %v324
  %v874 = vpop.f32.mrf.mxu0
  %v875 = vadd.f32 %v778, %v874
  %v876 = vpop.f32.mrf.mxu0
  %v877 = vpop.f32.mrf.mxu0
  %v878 = vadd.f32 %v781, %v877
  %v879 = vpop.f32.mrf.mxu0
  %880 = vmatprep.mubr.bf16.mxu0 0
  %881 = vmatmul.mubr.bf16.gmra.mxu0 %v329
  %v882 = vpop.f32.mrf.mxu0
  %v883 = vadd.f32 %v786, %v882
  %v884 = vpop.f32.mrf.mxu0
  %v885 = vpop.f32.mrf.mxu0
  %v886 = vadd.f32 %v789, %v885
  %v887 = vpop.f32.mrf.mxu0
  %888 = vmatprep.mubr.bf16.mxu0 0
  %889 = vmatmul.mubr.bf16.gmra.mxu0 %v334
  %v890 = vpop.f32.mrf.mxu0
  %v891 = vadd.f32 %v794, %v890
  %v892 = vpop.f32.mrf.mxu0
  %v893 = vpop.f32.mrf.mxu0
  %v894 = vadd.f32 %v797, %v893
  %v895 = vpop.f32.mrf.mxu0
  %896 = vmatprep.mubr.bf16.mxu0 0
  %897 = vmatmul.mubr.bf16.gmra.mxu0 %v339
  %v898 = vpop.f32.mrf.mxu0
  %v899 = vadd.f32 %v802, %v898
  %v900 = vpop.f32.mrf.mxu0
  %v901 = vpop.f32.mrf.mxu0
  %v902 = vadd.f32 %v805, %v901
  %v903 = vpop.f32.mrf.mxu0
  %904 = vmatprep.mubr.bf16.mxu0 0
  %905 = vmatmul.mubr.bf16.gmra.mxu0 %v344
  %v906 = vpop.f32.mrf.mxu0
  %v907 = vadd.f32 %v810, %v906
  %v908 = vpop.f32.mrf.mxu0
  %v909 = vpop.f32.mrf.mxu0
  %v910 = vadd.f32 %v813, %v909
  %v911 = vpop.f32.mrf.mxu0
  %912 = vmatprep.mubr.bf16.mxu0 0
  %913 = vmatmul.mubr.bf16.gmra.mxu0 %v349
  %v914 = vpop.f32.mrf.mxu0
  %v915 = vadd.f32 %v818, %v914
  %v916 = vpop.f32.mrf.mxu0
  %v917 = vpop.f32.mrf.mxu0
  %v918 = vadd.f32 %v821, %v917
  %v919 = vpop.f32.mrf.mxu0
  %920 = vdwg.mxu0
  %v921 = vadd.f32 %v38, %v859
  %v922 = vadd.f32 %v39, %v862
  %v923 = vadd.f32 %v40, %v867
  %v924 = vadd.f32 %v41, %v870
  %v925 = vadd.f32 %v42, %v875
  %v926 = vadd.f32 %v43, %v878
  %v927 = vadd.f32 %v44, %v883
  %v928 = vadd.f32 %v45, %v886
  %v929 = vadd.f32 %v46, %v891
  %v930 = vadd.f32 %v47, %v894
  %v931 = vadd.f32 %v48, %v899
  %v932 = vadd.f32 %v49, %v902
  %v933 = vadd.f32 %v50, %v907
  %v934 = vadd.f32 %v51, %v910
  %v935 = vadd.f32 %v52, %v915
  %v936 = vadd.f32 %v53, %v918
  %937 = vst [vmem:[#allocation2] sm:$0xff] %v921
  %938 = vst [vmem:[#allocation2 + $0x8] sm:$0xff] %v922
  %939 = vst [vmem:[#allocation2 + $0x10] sm:$0xff] %v923
  %940 = vst [vmem:[#allocation2 + $0x18] sm:$0xff] %v924
  %941 = vst [vmem:[#allocation2 + $0x20] sm:$0xff] %v925
  %942 = vst [vmem:[#allocation2 + $0x28] sm:$0xff] %v926
  %943 = vst [vmem:[#allocation2 + $0x30] sm:$0xff] %v927
  %944 = vst [vmem:[#allocation2 + $0x38] sm:$0xff] %v928
  %945 = vst [vmem:[#allocation2 + $0x40] sm:$0xff] %v929
  %946 = vst [vmem:[#allocation2 + $0x48] sm:$0xff] %v930
  %947 = vst [vmem:[#allocation2 + $0x50] sm:$0xff] %v931
  %948 = vst [vmem:[#allocation2 + $0x58] sm:$0xff] %v932
  %949 = vst [vmem:[#allocation2 + $0x60] sm:$0xff] %v933
  %950 = vst [vmem:[#allocation2 + $0x68] sm:$0xff] %v934
  %951 = vst [vmem:[#allocation2 + $0x70] sm:$0xff] %v935
  %952 = vst [vmem:[#allocation2 + $0x78] sm:$0xff] %v936
  // Predicated region
  $region22: #{tps_stn_forward.7} parent=0 // pred_check
    %p953 = pneg %p18
  $region23: #{tps_stn_forward.7} parent=0 // pred_check_branch
    %955 = sbr.rel (%p953) target = $region25
  $region24: #{tps_stn_forward.7} parent=0 // pred_region
    %v956 = vld [vmem:[#allocation2] sm:$0xff]
    %v957 = vld [vmem:[#allocation2 + $0x8] sm:$0xff]
    %v958 = vld [vmem:[#allocation2 + $0x10] sm:$0xff]
    %v959 = vld [vmem:[#allocation2 + $0x18] sm:$0xff]
    %v960 = vld [vmem:[#allocation2 + $0x20] sm:$0xff]
    %v961 = vld [vmem:[#allocation2 + $0x28] sm:$0xff]
    %v962 = vld [vmem:[#allocation2 + $0x30] sm:$0xff]
    %v963 = vld [vmem:[#allocation2 + $0x38] sm:$0xff]
    %v964 = vld [vmem:[#allocation2 + $0x40] sm:$0xff]
    %v965 = vld [vmem:[#allocation2 + $0x48] sm:$0xff]
    %v966 = vld [vmem:[#allocation2 + $0x50] sm:$0xff]
    %v967 = vld [vmem:[#allocation2 + $0x58] sm:$0xff]
    %v968 = vld [vmem:[#allocation2 + $0x60] sm:$0xff]
    %v969 = vld [vmem:[#allocation2 + $0x68] sm:$0xff]
    %v970 = vld [vmem:[#allocation2 + $0x70] sm:$0xff]
    %v971 = vld [vmem:[#allocation2 + $0x78] sm:$0xff]
    %v972 = vld [vmem:[%s2] sm:$0x1]
    %v974 = vlaneseq
    %v975 = vshrl.u32 %v974, 7
    %v976 = vsub.s32 0, %v975
    %v977 = vrot.slane %v972, %v976
    %v979 = vmul.f32 %v956, %v977
    %v980 = vmul.f32 %v957, %v977
    %v981 = vmul.f32 %v958, %v977
    %v982 = vmul.f32 %v959, %v977
    %v983 = vmul.f32 %v960, %v977
    %v984 = vmul.f32 %v961, %v977
    %v985 = vmul.f32 %v962, %v977
    %v986 = vmul.f32 %v963, %v977
    %v987 = vmul.f32 %v964, %v977
    %v988 = vmul.f32 %v965, %v977
    %v989 = vmul.f32 %v966, %v977
    %v990 = vmul.f32 %v967, %v977
    %v991 = vmul.f32 %v968, %v977
    %v992 = vmul.f32 %v969, %v977
    %v993 = vmul.f32 %v970, %v977
    %v994 = vmul.f32 %v971, %v977
    %v995 = vld [vmem:[%s3] sm:$0x1]
    %v997 = vlaneseq
    %v998 = vshrl.u32 %v997, 7
    %v999 = vsub.s32 0, %v998
    %v1000 = vrot.slane %v995, %v999
    %v1002 = vadd.f32 %v979, %v1000
    %v1003 = vadd.f32 %v980, %v1000
    %v1004 = vadd.f32 %v981, %v1000
    %v1005 = vadd.f32 %v982, %v1000
    %v1006 = vadd.f32 %v983, %v1000
    %v1007 = vadd.f32 %v984, %v1000
    %v1008 = vadd.f32 %v985, %v1000
    %v1009 = vadd.f32 %v986, %v1000
    %v1010 = vadd.f32 %v987, %v1000
    %v1011 = vadd.f32 %v988, %v1000
    %v1012 = vadd.f32 %v989, %v1000
    %v1013 = vadd.f32 %v990, %v1000
    %v1014 = vadd.f32 %v991, %v1000
    %v1015 = vadd.f32 %v992, %v1000
    %v1016 = vadd.f32 %v993, %v1000
    %v1017 = vadd.f32 %v994, %v1000
    %v1018 = vmax.f32 %v1002, 0.0
    %v1019 = vmax.f32 %v1003, 0.0
    %v1020 = vmax.f32 %v1004, 0.0
    %v1021 = vmax.f32 %v1005, 0.0
    %v1022 = vmax.f32 %v1006, 0.0
    %v1023 = vmax.f32 %v1007, 0.0
    %v1024 = vmax.f32 %v1008, 0.0
    %v1025 = vmax.f32 %v1009, 0.0
    %v1026 = vmax.f32 %v1010, 0.0
    %v1027 = vmax.f32 %v1011, 0.0
    %v1028 = vmax.f32 %v1012, 0.0
    %v1029 = vmax.f32 %v1013, 0.0
    %v1030 = vmax.f32 %v1014, 0.0
    %v1031 = vmax.f32 %v1015, 0.0
    %v1032 = vmax.f32 %v1016, 0.0
    %v1033 = vmax.f32 %v1017, 0.0
    %1034 = vst [vmem:[%s4] sm:$0xff] %v1018
    %1035 = vst [vmem:[%s4 + $0x8] sm:$0xff] %v1019
    %1036 = vst [vmem:[%s4 + $0x10] sm:$0xff] %v1020
    %1037 = vst [vmem:[%s4 + $0x18] sm:$0xff] %v1021
    %1038 = vst [vmem:[%s4 + $0x20] sm:$0xff] %v1022
    %1039 = vst [vmem:[%s4 + $0x28] sm:$0xff] %v1023
    %1040 = vst [vmem:[%s4 + $0x30] sm:$0xff] %v1024
    %1041 = vst [vmem:[%s4 + $0x38] sm:$0xff] %v1025
    %1042 = vst [vmem:[%s4 + $0x40] sm:$0xff] %v1026
    %1043 = vst [vmem:[%s4 + $0x48] sm:$0xff] %v1027
    %1044 = vst [vmem:[%s4 + $0x50] sm:$0xff] %v1028
    %1045 = vst [vmem:[%s4 + $0x58] sm:$0xff] %v1029
    %1046 = vst [vmem:[%s4 + $0x60] sm:$0xff] %v1030
    %1047 = vst [vmem:[%s4 + $0x68] sm:$0xff] %v1031
    %1048 = vst [vmem:[%s4 + $0x70] sm:$0xff] %v1032
    %1049 = vst [vmem:[%s4 + $0x78] sm:$0xff] %v1033
  $region25: #{tps_stn_forward.7} parent=0 // pred_fallthru
    _
  // Predicated region
  $region26: #{tps_stn_forward.7} parent=0 // pred_check
    _
  $region27: #{tps_stn_forward.7} parent=0 // pred_check_branch
    %1051 = sbr.rel (0) target = $region29
  $region28: #{tps_stn_forward.7} parent=0 // pred_region
    _
  $region29: #{tps_stn_forward.7} parent=0 // pred_fallthru
    _
  // Predicated region
  $region30: #{tps_stn_forward.7} parent=0 // pred_check
    _
  $region31: #{tps_stn_forward.7} parent=0 // pred_check_branch
    %1053 = sbr.rel (0) target = $region33
  $region32: #{tps_stn_forward.7} parent=0 // pred_region
    _
  $region33: #{tps_stn_forward.7} parent=0 // pred_fallthru
    _

// kernel: tps_stn_forward.8
$region0: #{tps_stn_forward.8}
  #allocation0 [shape = 'u32[]', space=smem, size = 0x4, offset = 0x4, fixed_abs, tag = 'smem constant byte address 0x4 - core index']
  #allocation1 [shape = 'u32[144,128]{1,0:T(1,128)}', space=vmem, size = 0x12000, scoped, tag = 'internal scratch']
  #allocation2 [shape = 'f32[32,256]{1,0:T(8,128)}', space=vmem, size = 0x8000, scoped, tag = 'scratch operand']
  %s0 = inlined_call_operand.vmem [shape: bf16[32,1152], index: 0, kind: input, shape index: {}]
  %s1 = inlined_call_operand.vmem [shape: bf16[1152,256], index: 1, kind: input, shape index: {}]
  %s2 = inlined_call_operand.vmem [shape: f32[1,256], index: 2, kind: input, shape index: {}]
  %s3 = inlined_call_operand.vmem [shape: f32[1,256], index: 3, kind: input, shape index: {}]
  %s4 = inlined_call_operand.vmem [shape: f32[32,256], index: 4, kind: output, shape index: {}]
  %s5 = sld [smem:[#allocation0]]
  $region34: #{tps_stn_forward.8} parent=0
    _
  %s7 = ssub.s32 1, %s5
  %s8 = scalar_select 0, %s7, %s5
  // Predicated region
  $region2: #{tps_stn_forward.8} parent=0 // pred_check
    _
  $region3: #{tps_stn_forward.8} parent=0 // pred_check_branch
    %10 = sbr.rel (0) target = $region5
  $region4: #{tps_stn_forward.8} parent=0 // pred_region
    _
  $region5: #{tps_stn_forward.8} parent=0 // pred_fallthru
    _
  // Predicated region
  $region6: #{tps_stn_forward.8} parent=0 // pred_check
    _
  $region7: #{tps_stn_forward.8} parent=0 // pred_check_branch
    %12 = sbr.rel (0) target = $region9
  $region8: #{tps_stn_forward.8} parent=0 // pred_region
    _
  $region9: #{tps_stn_forward.8} parent=0 // pred_fallthru
    _
  // Predicated region
  $region10: #{tps_stn_forward.8} parent=0 // pred_check
    _
  $region11: #{tps_stn_forward.8} parent=0 // pred_check_branch
    %14 = sbr.rel (0) target = $region13
  $region12: #{tps_stn_forward.8} parent=0 // pred_region
    _
  $region13: #{tps_stn_forward.8} parent=0 // pred_fallthru
    _
  // Predicated region
  $region14: #{tps_stn_forward.8} parent=0 // pred_check
    _
  $region15: #{tps_stn_forward.8} parent=0 // pred_check_branch
    %16 = sbr.rel (0) target = $region17
  $region16: #{tps_stn_forward.8} parent=0 // pred_region
    _
  $region17: #{tps_stn_forward.8} parent=0 // pred_fallthru
    _
  %p18 = scmp.eq.s32.totalorder 0, 0
  // Predicated region
  $region18: #{tps_stn_forward.8} parent=0 // pred_check
    %p19 = pneg %p18
  $region19: #{tps_stn_forward.8} parent=0 // pred_check_branch
    %21 = sbr.rel (%p19) target = $region21
  $region20: #{tps_stn_forward.8} parent=0 // pred_region
    %22 = vst [vmem:[#allocation2] sm:$0xff] 0.0
    %23 = vst [vmem:[#allocation2 + $0x8] sm:$0xff] 0.0
    %24 = vst [vmem:[#allocation2 + $0x10] sm:$0xff] 0.0
    %25 = vst [vmem:[#allocation2 + $0x18] sm:$0xff] 0.0
    %26 = vst [vmem:[#allocation2 + $0x20] sm:$0xff] 0.0
    %27 = vst [vmem:[#allocation2 + $0x28] sm:$0xff] 0.0
    %28 = vst [vmem:[#allocation2 + $0x30] sm:$0xff] 0.0
    %29 = vst [vmem:[#allocation2 + $0x38] sm:$0xff] 0.0
  $region21: #{tps_stn_forward.8} parent=0 // pred_fallthru
    _
  %v30 = vld [vmem:[#allocation2] sm:$0xff]
  %v31 = vld [vmem:[#allocation2 + $0x8] sm:$0xff]
  %v32 = vld [vmem:[#allocation2 + $0x10] sm:$0xff]
  %v33 = vld [vmem:[#allocation2 + $0x18] sm:$0xff]
  %v34 = vld [vmem:[#allocation2 + $0x20] sm:$0xff]
  %v35 = vld [vmem:[#allocation2 + $0x28] sm:$0xff]
  %v36 = vld [vmem:[#allocation2 + $0x30] sm:$0xff]
  %v37 = vld [vmem:[#allocation2 + $0x38] sm:$0xff]
  %v38 = vld [vmem:[%s0] sm:$0xff]
  %v39 = vld [vmem:[%s0 + $0x8] sm:$0xff]
  %v40 = vld [vmem:[%s0 + $0x10] sm:$0xff]
  %v41 = vld [vmem:[%s0 + $0x18] sm:$0xff]
  %v42 = vld [vmem:[%s0 + $0x20] sm:$0xf]
  %v43 = vld [vmem:[%s0 + $0x24] sm:$0xff]
  %v44 = vld [vmem:[%s0 + $0x2c] sm:$0xff]
  %v45 = vld [vmem:[%s0 + $0x34] sm:$0xff]
  %v46 = vld [vmem:[%s0 + $0x3c] sm:$0xff]
  %v47 = vld [vmem:[%s0 + $0x44] sm:$0xf]
  %v48 = vld [vmem:[%s0 + $0x48] sm:$0xff]
  %v49 = vld [vmem:[%s0 + $0x50] sm:$0xff]
  %v50 = vld [vmem:[%s0 + $0x58] sm:$0xff]
  %v51 = vld [vmem:[%s0 + $0x60] sm:$0xff]
  %v52 = vld [vmem:[%s0 + $0x68] sm:$0xf]
  %v53 = vld [vmem:[%s0 + $0x6c] sm:$0xff]
  %v54 = vld [vmem:[%s0 + $0x74] sm:$0xff]
  %v55 = vld [vmem:[%s0 + $0x7c] sm:$0xff]
  %v56 = vld [vmem:[%s0 + $0x84] sm:$0xff]
  %v57 = vld [vmem:[%s0 + $0x8c] sm:$0xf]
  %v58 = vld [vmem:[%s1] sm:$0xff]
  %v59 = vld [vmem:[%s1 + $0x8] sm:$0xff]
  %v60 = vld [vmem:[%s1 + $0x10] sm:$0xff]
  %v61 = vld [vmem:[%s1 + $0x18] sm:$0xff]
  %v62 = vld [vmem:[%s1 + $0x20] sm:$0xff]
  %v63 = vld [vmem:[%s1 + $0x28] sm:$0xff]
  %v64 = vld [vmem:[%s1 + $0x30] sm:$0xff]
  %v65 = vld [vmem:[%s1 + $0x38] sm:$0xff]
  %v66 = vld [vmem:[%s1 + $0x40] sm:$0xff]
  %v67 = vld [vmem:[%s1 + $0x48] sm:$0xff]
  %v68 = vld [vmem:[%s1 + $0x50] sm:$0xff]
  %v69 = vld [vmem:[%s1 + $0x58] sm:$0xff]
  %v70 = vld [vmem:[%s1 + $0x60] sm:$0xff]
  %v71 = vld [vmem:[%s1 + $0x68] sm:$0xff]
  %v72 = vld [vmem:[%s1 + $0x70] sm:$0xff]
  %v73 = vld [vmem:[%s1 + $0x78] sm:$0xff]
  %v74 = vld [vmem:[%s1 + $0x80] sm:$0xff]
  %v75 = vld [vmem:[%s1 + $0x88] sm:$0xff]
  %v76 = vld [vmem:[%s1 + $0x90] sm:$0xff]
  %v77 = vld [vmem:[%s1 + $0x98] sm:$0xff]
  %v78 = vld [vmem:[%s1 + $0xa0] sm:$0xff]
  %v79 = vld [vmem:[%s1 + $0xa8] sm:$0xff]
  %v80 = vld [vmem:[%s1 + $0xb0] sm:$0xff]
  %v81 = vld [vmem:[%s1 + $0xb8] sm:$0xff]
  %v82 = vld [vmem:[%s1 + $0xc0] sm:$0xff]
  %v83 = vld [vmem:[%s1 + $0xc8] sm:$0xff]
  %v84 = vld [vmem:[%s1 + $0xd0] sm:$0xff]
  %v85 = vld [vmem:[%s1 + $0xd8] sm:$0xff]
  %v86 = vld [vmem:[%s1 + $0xe0] sm:$0xff]
  %v87 = vld [vmem:[%s1 + $0xe8] sm:$0xff]
  %v88 = vld [vmem:[%s1 + $0xf0] sm:$0xff]
  %v89 = vld [vmem:[%s1 + $0xf8] sm:$0xff]
  %v90 = vld [vmem:[%s1 + $0x100] sm:$0xff]
  %v91 = vld [vmem:[%s1 + $0x108] sm:$0xff]
  %v92 = vld [vmem:[%s1 + $0x110] sm:$0xff]
  %v93 = vld [vmem:[%s1 + $0x118] sm:$0xff]
  %v94 = vld [vmem:[%s1 + $0x120] sm:$0xff]
  %v95 = vld [vmem:[%s1 + $0x128] sm:$0xff]
  %v96 = vld [vmem:[%s1 + $0x130] sm:$0xff]
  %v97 = vld [vmem:[%s1 + $0x138] sm:$0xff]
  %v98 = vld [vmem:[%s1 + $0x140] sm:$0xff]
  %v99 = vld [vmem:[%s1 + $0x148] sm:$0xff]
  %v100 = vld [vmem:[%s1 + $0x150] sm:$0xff]
  %v101 = vld [vmem:[%s1 + $0x158] sm:$0xff]
  %v102 = vld [vmem:[%s1 + $0x160] sm:$0xff]
  %v103 = vld [vmem:[%s1 + $0x168] sm:$0xff]
  %v104 = vld [vmem:[%s1 + $0x170] sm:$0xff]
  %v105 = vld [vmem:[%s1 + $0x178] sm:$0xff]
  %v106 = vld [vmem:[%s1 + $0x180] sm:$0xff]
  %v107 = vld [vmem:[%s1 + $0x188] sm:$0xff]
  %v108 = vld [vmem:[%s1 + $0x190] sm:$0xff]
  %v109 = vld [vmem:[%s1 + $0x198] sm:$0xff]
  %v110 = vld [vmem:[%s1 + $0x1a0] sm:$0xff]
  %v111 = vld [vmem:[%s1 + $0x1a8] sm:$0xff]
  %v112 = vld [vmem:[%s1 + $0x1b0] sm:$0xff]
  %v113 = vld [vmem:[%s1 + $0x1b8] sm:$0xff]
  %v114 = vld [vmem:[%s1 + $0x1c0] sm:$0xff]
  %v115 = vld [vmem:[%s1 + $0x1c8] sm:$0xff]
  %v116 = vld [vmem:[%s1 + $0x1d0] sm:$0xff]
  %v117 = vld [vmem:[%s1 + $0x1d8] sm:$0xff]
  %v118 = vld [vmem:[%s1 + $0x1e0] sm:$0xff]
  %v119 = vld [vmem:[%s1 + $0x1e8] sm:$0xff]
  %v120 = vld [vmem:[%s1 + $0x1f0] sm:$0xff]
  %v121 = vld [vmem:[%s1 + $0x1f8] sm:$0xff]
  %v122 = vld [vmem:[%s1 + $0x200] sm:$0xff]
  %v123 = vld [vmem:[%s1 + $0x208] sm:$0xff]
  %v124 = vld [vmem:[%s1 + $0x210] sm:$0xff]
  %v125 = vld [vmem:[%s1 + $0x218] sm:$0xff]
  %v126 = vld [vmem:[%s1 + $0x220] sm:$0xff]
  %v127 = vld [vmem:[%s1 + $0x228] sm:$0xff]
  %v128 = vld [vmem:[%s1 + $0x230] sm:$0xff]
  %v129 = vld [vmem:[%s1 + $0x238] sm:$0xff]
  %v130 = vld [vmem:[%s1 + $0x240] sm:$0xff]
  %v131 = vld [vmem:[%s1 + $0x248] sm:$0xff]
  %v132 = vld [vmem:[%s1 + $0x250] sm:$0xff]
  %v133 = vld [vmem:[%s1 + $0x258] sm:$0xff]
  %v134 = vld [vmem:[%s1 + $0x260] sm:$0xff]
  %v135 = vld [vmem:[%s1 + $0x268] sm:$0xff]
  %v136 = vld [vmem:[%s1 + $0x270] sm:$0xff]
  %v137 = vld [vmem:[%s1 + $0x278] sm:$0xff]
  %v138 = vld [vmem:[%s1 + $0x280] sm:$0xff]
  %v139 = vld [vmem:[%s1 + $0x288] sm:$0xff]
  %v140 = vld [vmem:[%s1 + $0x290] sm:$0xff]
  %v141 = vld [vmem:[%s1 + $0x298] sm:$0xff]
  %v142 = vld [vmem:[%s1 + $0x2a0] sm:$0xff]
  %v143 = vld [vmem:[%s1 + $0x2a8] sm:$0xff]
  %v144 = vld [vmem:[%s1 + $0x2b0] sm:$0xff]
  %v145 = vld [vmem:[%s1 + $0x2b8] sm:$0xff]
  %v146 = vld [vmem:[%s1 + $0x2c0] sm:$0xff]
  %v147 = vld [vmem:[%s1 + $0x2c8] sm:$0xff]
  %v148 = vld [vmem:[%s1 + $0x2d0] sm:$0xff]
  %v149 = vld [vmem:[%s1 + $0x2d8] sm:$0xff]
  %v150 = vld [vmem:[%s1 + $0x2e0] sm:$0xff]
  %v151 = vld [vmem:[%s1 + $0x2e8] sm:$0xff]
  %v152 = vld [vmem:[%s1 + $0x2f0] sm:$0xff]
  %v153 = vld [vmem:[%s1 + $0x2f8] sm:$0xff]
  %v154 = vld [vmem:[%s1 + $0x300] sm:$0xff]
  %v155 = vld [vmem:[%s1 + $0x308] sm:$0xff]
  %v156 = vld [vmem:[%s1 + $0x310] sm:$0xff]
  %v157 = vld [vmem:[%s1 + $0x318] sm:$0xff]
  %v158 = vld [vmem:[%s1 + $0x320] sm:$0xff]
  %v159 = vld [vmem:[%s1 + $0x328] sm:$0xff]
  %v160 = vld [vmem:[%s1 + $0x330] sm:$0xff]
  %v161 = vld [vmem:[%s1 + $0x338] sm:$0xff]
  %v162 = vld [vmem:[%s1 + $0x340] sm:$0xff]
  %v163 = vld [vmem:[%s1 + $0x348] sm:$0xff]
  %v164 = vld [vmem:[%s1 + $0x350] sm:$0xff]
  %v165 = vld [vmem:[%s1 + $0x358] sm:$0xff]
  %v166 = vld [vmem:[%s1 + $0x360] sm:$0xff]
  %v167 = vld [vmem:[%s1 + $0x368] sm:$0xff]
  %v168 = vld [vmem:[%s1 + $0x370] sm:$0xff]
  %v169 = vld [vmem:[%s1 + $0x378] sm:$0xff]
  %v170 = vld [vmem:[%s1 + $0x380] sm:$0xff]
  %v171 = vld [vmem:[%s1 + $0x388] sm:$0xff]
  %v172 = vld [vmem:[%s1 + $0x390] sm:$0xff]
  %v173 = vld [vmem:[%s1 + $0x398] sm:$0xff]
  %v174 = vld [vmem:[%s1 + $0x3a0] sm:$0xff]
  %v175 = vld [vmem:[%s1 + $0x3a8] sm:$0xff]
  %v176 = vld [vmem:[%s1 + $0x3b0] sm:$0xff]
  %v177 = vld [vmem:[%s1 + $0x3b8] sm:$0xff]
  %v178 = vld [vmem:[%s1 + $0x3c0] sm:$0xff]
  %v179 = vld [vmem:[%s1 + $0x3c8] sm:$0xff]
  %v180 = vld [vmem:[%s1 + $0x3d0] sm:$0xff]
  %v181 = vld [vmem:[%s1 + $0x3d8] sm:$0xff]
  %v182 = vld [vmem:[%s1 + $0x3e0] sm:$0xff]
  %v183 = vld [vmem:[%s1 + $0x3e8] sm:$0xff]
  %v184 = vld [vmem:[%s1 + $0x3f0] sm:$0xff]
  %v185 = vld [vmem:[%s1 + $0x3f8] sm:$0xff]
  %v186 = vld [vmem:[%s1 + $0x400] sm:$0xff]
  %v187 = vld [vmem:[%s1 + $0x408] sm:$0xff]
  %v188 = vld [vmem:[%s1 + $0x410] sm:$0xff]
  %v189 = vld [vmem:[%s1 + $0x418] sm:$0xff]
  %v190 = vld [vmem:[%s1 + $0x420] sm:$0xff]
  %v191 = vld [vmem:[%s1 + $0x428] sm:$0xff]
  %v192 = vld [vmem:[%s1 + $0x430] sm:$0xff]
  %v193 = vld [vmem:[%s1 + $0x438] sm:$0xff]
  %v194 = vld [vmem:[%s1 + $0x440] sm:$0xff]
  %v195 = vld [vmem:[%s1 + $0x448] sm:$0xff]
  %v196 = vld [vmem:[%s1 + $0x450] sm:$0xff]
  %v197 = vld [vmem:[%s1 + $0x458] sm:$0xff]
  %v198 = vld [vmem:[%s1 + $0x460] sm:$0xff]
  %v199 = vld [vmem:[%s1 + $0x468] sm:$0xff]
  %v200 = vld [vmem:[%s1 + $0x470] sm:$0xff]
  %v201 = vld [vmem:[%s1 + $0x478] sm:$0xff]
  %v222 = vunpack.c.l.b16 %v38
  %v223 = vunpack.c.h.b16 %v38
  %v224 = vunpack.c.l.b16 %v39
  %v225 = vunpack.c.h.b16 %v39
  %v226 = vunpack.c.l.b16 %v40
  %v227 = vunpack.c.h.b16 %v40
  %v228 = vunpack.c.l.b16 %v41
  %v229 = vunpack.c.h.b16 %v41
  %v230 = vunpack.c.l.b16 %v42
  %v231 = vunpack.c.l.b16 %v43
  %v232 = vunpack.c.h.b16 %v43
  %v233 = vunpack.c.l.b16 %v44
  %v234 = vunpack.c.h.b16 %v44
  %v235 = vunpack.c.l.b16 %v45
  %v236 = vunpack.c.h.b16 %v45
  %v237 = vunpack.c.l.b16 %v46
  %v238 = vunpack.c.h.b16 %v46
  %v239 = vunpack.c.l.b16 %v47
  %v240 = vunpack.c.l.b16 %v48
  %v241 = vunpack.c.h.b16 %v48
  %v242 = vunpack.c.l.b16 %v49
  %v243 = vunpack.c.h.b16 %v49
  %v244 = vunpack.c.l.b16 %v50
  %v245 = vunpack.c.h.b16 %v50
  %v246 = vunpack.c.l.b16 %v51
  %v247 = vunpack.c.h.b16 %v51
  %v248 = vunpack.c.l.b16 %v52
  %v249 = vunpack.c.l.b16 %v53
  %v250 = vunpack.c.h.b16 %v53
  %v251 = vunpack.c.l.b16 %v54
  %v252 = vunpack.c.h.b16 %v54
  %v253 = vunpack.c.l.b16 %v55
  %v254 = vunpack.c.h.b16 %v55
  %v255 = vunpack.c.l.b16 %v56
  %v256 = vunpack.c.h.b16 %v56
  %v257 = vunpack.c.l.b16 %v57
  %v258 = vpack.c.b16 %v231, %v222
  %v259 = vpack.c.b16 %v232, %v223
  %v260 = vpack.c.b16 %v233, %v224
  %v261 = vpack.c.b16 %v234, %v225
  %v262 = vpack.c.b16 %v235, %v226
  %v263 = vpack.c.b16 %v236, %v227
  %v264 = vpack.c.b16 %v237, %v228
  %v265 = vpack.c.b16 %v238, %v229
  %v266 = vpack.c.b16 %v239, %v230
  %v267 = vpack.c.b16 %v249, %v240
  %v268 = vpack.c.b16 %v250, %v241
  %v269 = vpack.c.b16 %v251, %v242
  %v270 = vpack.c.b16 %v252, %v243
  %v271 = vpack.c.b16 %v253, %v244
  %v272 = vpack.c.b16 %v254, %v245
  %v273 = vpack.c.b16 %v255, %v246
  %v274 = vpack.c.b16 %v256, %v247
  %v275 = vpack.c.b16 %v257, %v248
  %v438 = vunpack.c.l.b16 %v58
  %v439 = vunpack.c.h.b16 %v58
  %v440 = vunpack.c.l.b16 %v59
  %v441 = vunpack.c.h.b16 %v59
  %v442 = vunpack.c.l.b16 %v60
  %v443 = vunpack.c.h.b16 %v60
  %v444 = vunpack.c.l.b16 %v61
  %v445 = vunpack.c.h.b16 %v61
  %v446 = vunpack.c.l.b16 %v62
  %v447 = vunpack.c.h.b16 %v62
  %v448 = vunpack.c.l.b16 %v63
  %v449 = vunpack.c.h.b16 %v63
  %v450 = vunpack.c.l.b16 %v64
  %v451 = vunpack.c.h.b16 %v64
  %v452 = vunpack.c.l.b16 %v65
  %v453 = vunpack.c.h.b16 %v65
  %v454 = vunpack.c.l.b16 %v66
  %v455 = vunpack.c.h.b16 %v66
  %v456 = vunpack.c.l.b16 %v67
  %v457 = vunpack.c.h.b16 %v67
  %v458 = vunpack.c.l.b16 %v68
  %v459 = vunpack.c.h.b16 %v68
  %v460 = vunpack.c.l.b16 %v69
  %v461 = vunpack.c.h.b16 %v69
  %v462 = vunpack.c.l.b16 %v70
  %v463 = vunpack.c.h.b16 %v70
  %v464 = vunpack.c.l.b16 %v71
  %v465 = vunpack.c.h.b16 %v71
  %v466 = vunpack.c.l.b16 %v72
  %v467 = vunpack.c.h.b16 %v72
  %v468 = vunpack.c.l.b16 %v73
  %v469 = vunpack.c.h.b16 %v73
  %v470 = vunpack.c.l.b16 %v74
  %v471 = vunpack.c.h.b16 %v74
  %v472 = vunpack.c.l.b16 %v75
  %v473 = vunpack.c.h.b16 %v75
  %v474 = vunpack.c.l.b16 %v76
  %v475 = vunpack.c.h.b16 %v76
  %v476 = vunpack.c.l.b16 %v77
  %v477 = vunpack.c.h.b16 %v77
  %v478 = vunpack.c.l.b16 %v78
  %v479 = vunpack.c.h.b16 %v78
  %v480 = vunpack.c.l.b16 %v79
  %v481 = vunpack.c.h.b16 %v79
  %v482 = vunpack.c.l.b16 %v80
  %v483 = vunpack.c.h.b16 %v80
  %v484 = vunpack.c.l.b16 %v81
  %v485 = vunpack.c.h.b16 %v81
  %v486 = vunpack.c.l.b16 %v82
  %v487 = vunpack.c.h.b16 %v82
  %v488 = vunpack.c.l.b16 %v83
  %v489 = vunpack.c.h.b16 %v83
  %v490 = vunpack.c.l.b16 %v84
  %v491 = vunpack.c.h.b16 %v84
  %v492 = vunpack.c.l.b16 %v85
  %v493 = vunpack.c.h.b16 %v85
  %v494 = vunpack.c.l.b16 %v86
  %v495 = vunpack.c.h.b16 %v86
  %v496 = vunpack.c.l.b16 %v87
  %v497 = vunpack.c.h.b16 %v87
  %v498 = vunpack.c.l.b16 %v88
  %v499 = vunpack.c.h.b16 %v88
  %v500 = vunpack.c.l.b16 %v89
  %v501 = vunpack.c.h.b16 %v89
  %v502 = vunpack.c.l.b16 %v90
  %v503 = vunpack.c.h.b16 %v90
  %v504 = vunpack.c.l.b16 %v91
  %v505 = vunpack.c.h.b16 %v91
  %v506 = vunpack.c.l.b16 %v92
  %v507 = vunpack.c.h.b16 %v92
  %v508 = vunpack.c.l.b16 %v93
  %v509 = vunpack.c.h.b16 %v93
  %v510 = vunpack.c.l.b16 %v94
  %v511 = vunpack.c.h.b16 %v94
  %v512 = vunpack.c.l.b16 %v95
  %v513 = vunpack.c.h.b16 %v95
  %v514 = vunpack.c.l.b16 %v96
  %v515 = vunpack.c.h.b16 %v96
  %v516 = vunpack.c.l.b16 %v97
  %v517 = vunpack.c.h.b16 %v97
  %v518 = vunpack.c.l.b16 %v98
  %v519 = vunpack.c.h.b16 %v98
  %v520 = vunpack.c.l.b16 %v99
  %v521 = vunpack.c.h.b16 %v99
  %v522 = vunpack.c.l.b16 %v100
  %v523 = vunpack.c.h.b16 %v100
  %v524 = vunpack.c.l.b16 %v101
  %v525 = vunpack.c.h.b16 %v101
  %v526 = vunpack.c.l.b16 %v102
  %v527 = vunpack.c.h.b16 %v102
  %v528 = vunpack.c.l.b16 %v103
  %v529 = vunpack.c.h.b16 %v103
  %v530 = vunpack.c.l.b16 %v104
  %v531 = vunpack.c.h.b16 %v104
  %v532 = vunpack.c.l.b16 %v105
  %v533 = vunpack.c.h.b16 %v105
  %v534 = vunpack.c.l.b16 %v106
  %v535 = vunpack.c.h.b16 %v106
  %v536 = vunpack.c.l.b16 %v107
  %v537 = vunpack.c.h.b16 %v107
  %v538 = vunpack.c.l.b16 %v108
  %v539 = vunpack.c.h.b16 %v108
  %v540 = vunpack.c.l.b16 %v109
  %v541 = vunpack.c.h.b16 %v109
  %v542 = vunpack.c.l.b16 %v110
  %v543 = vunpack.c.h.b16 %v110
  %v544 = vunpack.c.l.b16 %v111
  %v545 = vunpack.c.h.b16 %v111
  %v546 = vunpack.c.l.b16 %v112
  %v547 = vunpack.c.h.b16 %v112
  %v548 = vunpack.c.l.b16 %v113
  %v549 = vunpack.c.h.b16 %v113
  %v550 = vunpack.c.l.b16 %v114
  %v551 = vunpack.c.h.b16 %v114
  %v552 = vunpack.c.l.b16 %v115
  %v553 = vunpack.c.h.b16 %v115
  %v554 = vunpack.c.l.b16 %v116
  %v555 = vunpack.c.h.b16 %v116
  %v556 = vunpack.c.l.b16 %v117
  %v557 = vunpack.c.h.b16 %v117
  %v558 = vunpack.c.l.b16 %v118
  %v559 = vunpack.c.h.b16 %v118
  %v560 = vunpack.c.l.b16 %v119
  %v561 = vunpack.c.h.b16 %v119
  %v562 = vunpack.c.l.b16 %v120
  %v563 = vunpack.c.h.b16 %v120
  %v564 = vunpack.c.l.b16 %v121
  %v565 = vunpack.c.h.b16 %v121
  %v566 = vunpack.c.l.b16 %v122
  %v567 = vunpack.c.h.b16 %v122
  %v568 = vunpack.c.l.b16 %v123
  %v569 = vunpack.c.h.b16 %v123
  %v570 = vunpack.c.l.b16 %v124
  %v571 = vunpack.c.h.b16 %v124
  %v572 = vunpack.c.l.b16 %v125
  %v573 = vunpack.c.h.b16 %v125
  %v574 = vunpack.c.l.b16 %v126
  %v575 = vunpack.c.h.b16 %v126
  %v576 = vunpack.c.l.b16 %v127
  %v577 = vunpack.c.h.b16 %v127
  %v578 = vunpack.c.l.b16 %v128
  %v579 = vunpack.c.h.b16 %v128
  %v580 = vunpack.c.l.b16 %v129
  %v581 = vunpack.c.h.b16 %v129
  %v582 = vunpack.c.l.b16 %v130
  %v583 = vunpack.c.h.b16 %v130
  %v584 = vunpack.c.l.b16 %v131
  %v585 = vunpack.c.h.b16 %v131
  %v586 = vunpack.c.l.b16 %v132
  %v587 = vunpack.c.h.b16 %v132
  %v588 = vunpack.c.l.b16 %v133
  %v589 = vunpack.c.h.b16 %v133
  %v590 = vunpack.c.l.b16 %v134
  %v591 = vunpack.c.h.b16 %v134
  %v592 = vunpack.c.l.b16 %v135
  %v593 = vunpack.c.h.b16 %v135
  %v594 = vunpack.c.l.b16 %v136
  %v595 = vunpack.c.h.b16 %v136
  %v596 = vunpack.c.l.b16 %v137
  %v597 = vunpack.c.h.b16 %v137
  %v598 = vunpack.c.l.b16 %v138
  %v599 = vunpack.c.h.b16 %v138
  %v600 = vunpack.c.l.b16 %v139
  %v601 = vunpack.c.h.b16 %v139
  %v602 = vunpack.c.l.b16 %v140
  %v603 = vunpack.c.h.b16 %v140
  %v604 = vunpack.c.l.b16 %v141
  %v605 = vunpack.c.h.b16 %v141
  %v606 = vunpack.c.l.b16 %v142
  %v607 = vunpack.c.h.b16 %v142
  %v608 = vunpack.c.l.b16 %v143
  %v609 = vunpack.c.h.b16 %v143
  %v610 = vunpack.c.l.b16 %v144
  %v611 = vunpack.c.h.b16 %v144
  %v612 = vunpack.c.l.b16 %v145
  %v613 = vunpack.c.h.b16 %v145
  %v614 = vunpack.c.l.b16 %v146
  %v615 = vunpack.c.h.b16 %v146
  %v616 = vunpack.c.l.b16 %v147
  %v617 = vunpack.c.h.b16 %v147
  %v618 = vunpack.c.l.b16 %v148
  %v619 = vunpack.c.h.b16 %v148
  %v620 = vunpack.c.l.b16 %v149
  %v621 = vunpack.c.h.b16 %v149
  %v622 = vunpack.c.l.b16 %v150
  %v623 = vunpack.c.h.b16 %v150
  %v624 = vunpack.c.l.b16 %v151
  %v625 = vunpack.c.h.b16 %v151
  %v626 = vunpack.c.l.b16 %v152
  %v627 = vunpack.c.h.b16 %v152
  %v628 = vunpack.c.l.b16 %v153
  %v629 = vunpack.c.h.b16 %v153
  %v630 = vunpack.c.l.b16 %v154
  %v631 = vunpack.c.h.b16 %v154
  %v632 = vunpack.c.l.b16 %v155
  %v633 = vunpack.c.h.b16 %v155
  %v634 = vunpack.c.l.b16 %v156
  %v635 = vunpack.c.h.b16 %v156
  %v636 = vunpack.c.l.b16 %v157
  %v637 = vunpack.c.h.b16 %v157
  %v638 = vunpack.c.l.b16 %v158
  %v639 = vunpack.c.h.b16 %v158
  %v640 = vunpack.c.l.b16 %v159
  %v641 = vunpack.c.h.b16 %v159
  %v642 = vunpack.c.l.b16 %v160
  %v643 = vunpack.c.h.b16 %v160
  %v644 = vunpack.c.l.b16 %v161
  %v645 = vunpack.c.h.b16 %v161
  %v646 = vunpack.c.l.b16 %v162
  %v647 = vunpack.c.h.b16 %v162
  %v648 = vunpack.c.l.b16 %v163
  %v649 = vunpack.c.h.b16 %v163
  %v650 = vunpack.c.l.b16 %v164
  %v651 = vunpack.c.h.b16 %v164
  %v652 = vunpack.c.l.b16 %v165
  %v653 = vunpack.c.h.b16 %v165
  %v654 = vunpack.c.l.b16 %v166
  %v655 = vunpack.c.h.b16 %v166
  %v656 = vunpack.c.l.b16 %v167
  %v657 = vunpack.c.h.b16 %v167
  %v658 = vunpack.c.l.b16 %v168
  %v659 = vunpack.c.h.b16 %v168
  %v660 = vunpack.c.l.b16 %v169
  %v661 = vunpack.c.h.b16 %v169
  %v662 = vunpack.c.l.b16 %v170
  %v663 = vunpack.c.h.b16 %v170
  %v664 = vunpack.c.l.b16 %v171
  %v665 = vunpack.c.h.b16 %v171
  %v666 = vunpack.c.l.b16 %v172
  %v667 = vunpack.c.h.b16 %v172
  %v668 = vunpack.c.l.b16 %v173
  %v669 = vunpack.c.h.b16 %v173
  %v670 = vunpack.c.l.b16 %v174
  %v671 = vunpack.c.h.b16 %v174
  %v672 = vunpack.c.l.b16 %v175
  %v673 = vunpack.c.h.b16 %v175
  %v674 = vunpack.c.l.b16 %v176
  %v675 = vunpack.c.h.b16 %v176
  %v676 = vunpack.c.l.b16 %v177
  %v677 = vunpack.c.h.b16 %v177
  %v678 = vunpack.c.l.b16 %v178
  %v679 = vunpack.c.h.b16 %v178
  %v680 = vunpack.c.l.b16 %v179
  %v681 = vunpack.c.h.b16 %v179
  %v682 = vunpack.c.l.b16 %v180
  %v683 = vunpack.c.h.b16 %v180
  %v684 = vunpack.c.l.b16 %v181
  %v685 = vunpack.c.h.b16 %v181
  %v686 = vunpack.c.l.b16 %v182
  %v687 = vunpack.c.h.b16 %v182
  %v688 = vunpack.c.l.b16 %v183
  %v689 = vunpack.c.h.b16 %v183
  %v690 = vunpack.c.l.b16 %v184
  %v691 = vunpack.c.h.b16 %v184
  %v692 = vunpack.c.l.b16 %v185
  %v693 = vunpack.c.h.b16 %v185
  %v694 = vunpack.c.l.b16 %v186
  %v695 = vunpack.c.h.b16 %v186
  %v696 = vunpack.c.l.b16 %v187
  %v697 = vunpack.c.h.b16 %v187
  %v698 = vunpack.c.l.b16 %v188
  %v699 = vunpack.c.h.b16 %v188
  %v700 = vunpack.c.l.b16 %v189
  %v701 = vunpack.c.h.b16 %v189
  %v702 = vunpack.c.l.b16 %v190
  %v703 = vunpack.c.h.b16 %v190
  %v704 = vunpack.c.l.b16 %v191
  %v705 = vunpack.c.h.b16 %v191
  %v706 = vunpack.c.l.b16 %v192
  %v707 = vunpack.c.h.b16 %v192
  %v708 = vunpack.c.l.b16 %v193
  %v709 = vunpack.c.h.b16 %v193
  %v710 = vunpack.c.l.b16 %v194
  %v711 = vunpack.c.h.b16 %v194
  %v712 = vunpack.c.l.b16 %v195
  %v713 = vunpack.c.h.b16 %v195
  %v714 = vunpack.c.l.b16 %v196
  %v715 = vunpack.c.h.b16 %v196
  %v716 = vunpack.c.l.b16 %v197
  %v717 = vunpack.c.h.b16 %v197
  %v718 = vunpack.c.l.b16 %v198
  %v719 = vunpack.c.h.b16 %v198
  %v720 = vunpack.c.l.b16 %v199
  %v721 = vunpack.c.h.b16 %v199
  %v722 = vunpack.c.l.b16 %v200
  %v723 = vunpack.c.h.b16 %v200
  %v724 = vunpack.c.l.b16 %v201
  %v725 = vunpack.c.h.b16 %v201
  %v726 = vpack.c.b16 %v440, %v438
  %v727 = vpack.c.b16 %v441, %v439
  %v728 = vpack.c.b16 %v444, %v442
  %v729 = vpack.c.b16 %v445, %v443
  %v730 = vpack.c.b16 %v448, %v446
  %v731 = vpack.c.b16 %v449, %v447
  %v732 = vpack.c.b16 %v452, %v450
  %v733 = vpack.c.b16 %v453, %v451
  %v734 = vpack.c.b16 %v456, %v454
  %v735 = vpack.c.b16 %v457, %v455
  %v736 = vpack.c.b16 %v460, %v458
  %v737 = vpack.c.b16 %v461, %v459
  %v738 = vpack.c.b16 %v464, %v462
  %v739 = vpack.c.b16 %v465, %v463
  %v740 = vpack.c.b16 %v468, %v466
  %v741 = vpack.c.b16 %v469, %v467
  %v742 = vpack.c.b16 %v472, %v470
  %v743 = vpack.c.b16 %v473, %v471
  %v744 = vpack.c.b16 %v476, %v474
  %v745 = vpack.c.b16 %v477, %v475
  %v746 = vpack.c.b16 %v480, %v478
  %v747 = vpack.c.b16 %v481, %v479
  %v748 = vpack.c.b16 %v484, %v482
  %v749 = vpack.c.b16 %v485, %v483
  %v750 = vpack.c.b16 %v488, %v486
  %v751 = vpack.c.b16 %v489, %v487
  %v752 = vpack.c.b16 %v492, %v490
  %v753 = vpack.c.b16 %v493, %v491
  %v754 = vpack.c.b16 %v496, %v494
  %v755 = vpack.c.b16 %v497, %v495
  %v756 = vpack.c.b16 %v500, %v498
  %v757 = vpack.c.b16 %v501, %v499
  %v758 = vpack.c.b16 %v504, %v502
  %v759 = vpack.c.b16 %v505, %v503
  %v760 = vpack.c.b16 %v508, %v506
  %v761 = vpack.c.b16 %v509, %v507
  %v762 = vpack.c.b16 %v512, %v510
  %v763 = vpack.c.b16 %v513, %v511
  %v764 = vpack.c.b16 %v516, %v514
  %v765 = vpack.c.b16 %v517, %v515
  %v766 = vpack.c.b16 %v520, %v518
  %v767 = vpack.c.b16 %v521, %v519
  %v768 = vpack.c.b16 %v524, %v522
  %v769 = vpack.c.b16 %v525, %v523
  %v770 = vpack.c.b16 %v528, %v526
  %v771 = vpack.c.b16 %v529, %v527
  %v772 = vpack.c.b16 %v532, %v530
  %v773 = vpack.c.b16 %v533, %v531
  %v774 = vpack.c.b16 %v536, %v534
  %v775 = vpack.c.b16 %v537, %v535
  %v776 = vpack.c.b16 %v540, %v538
  %v777 = vpack.c.b16 %v541, %v539
  %v778 = vpack.c.b16 %v544, %v542
  %v779 = vpack.c.b16 %v545, %v543
  %v780 = vpack.c.b16 %v548, %v546
  %v781 = vpack.c.b16 %v549, %v547
  %v782 = vpack.c.b16 %v552, %v550
  %v783 = vpack.c.b16 %v553, %v551
  %v784 = vpack.c.b16 %v556, %v554
  %v785 = vpack.c.b16 %v557, %v555
  %v786 = vpack.c.b16 %v560, %v558
  %v787 = vpack.c.b16 %v561, %v559
  %v788 = vpack.c.b16 %v564, %v562
  %v789 = vpack.c.b16 %v565, %v563
  %v790 = vpack.c.b16 %v568, %v566
  %v791 = vpack.c.b16 %v569, %v567
  %v792 = vpack.c.b16 %v572, %v570
  %v793 = vpack.c.b16 %v573, %v571
  %v794 = vpack.c.b16 %v576, %v574
  %v795 = vpack.c.b16 %v577, %v575
  %v796 = vpack.c.b16 %v580, %v578
  %v797 = vpack.c.b16 %v581, %v579
  %v798 = vpack.c.b16 %v584, %v582
  %v799 = vpack.c.b16 %v585, %v583
  %v800 = vpack.c.b16 %v588, %v586
  %v801 = vpack.c.b16 %v589, %v587
  %v802 = vpack.c.b16 %v592, %v590
  %v803 = vpack.c.b16 %v593, %v591
  %v804 = vpack.c.b16 %v596, %v594
  %v805 = vpack.c.b16 %v597, %v595
  %v806 = vpack.c.b16 %v600, %v598
  %v807 = vpack.c.b16 %v601, %v599
  %v808 = vpack.c.b16 %v604, %v602
  %v809 = vpack.c.b16 %v605, %v603
  %v810 = vpack.c.b16 %v608, %v606
  %v811 = vpack.c.b16 %v609, %v607
  %v812 = vpack.c.b16 %v612, %v610
  %v813 = vpack.c.b16 %v613, %v611
  %v814 = vpack.c.b16 %v616, %v614
  %v815 = vpack.c.b16 %v617, %v615
  %v816 = vpack.c.b16 %v620, %v618
  %v817 = vpack.c.b16 %v621, %v619
  %v818 = vpack.c.b16 %v624, %v622
  %v819 = vpack.c.b16 %v625, %v623
  %v820 = vpack.c.b16 %v628, %v626
  %v821 = vpack.c.b16 %v629, %v627
  %v822 = vpack.c.b16 %v632, %v630
  %v823 = vpack.c.b16 %v633, %v631
  %v824 = vpack.c.b16 %v636, %v634
  %v825 = vpack.c.b16 %v637, %v635
  %v826 = vpack.c.b16 %v640, %v638
  %v827 = vpack.c.b16 %v641, %v639
  %v828 = vpack.c.b16 %v644, %v642
  %v829 = vpack.c.b16 %v645, %v643
  %v830 = vpack.c.b16 %v648, %v646
  %v831 = vpack.c.b16 %v649, %v647
  %v832 = vpack.c.b16 %v652, %v650
  %v833 = vpack.c.b16 %v653, %v651
  %v834 = vpack.c.b16 %v656, %v654
  %v835 = vpack.c.b16 %v657, %v655
  %v836 = vpack.c.b16 %v660, %v658
  %v837 = vpack.c.b16 %v661, %v659
  %v838 = vpack.c.b16 %v664, %v662
  %v839 = vpack.c.b16 %v665, %v663
  %v840 = vpack.c.b16 %v668, %v666
  %v841 = vpack.c.b16 %v669, %v667
  %v842 = vpack.c.b16 %v672, %v670
  %v843 = vpack.c.b16 %v673, %v671
  %v844 = vpack.c.b16 %v676, %v674
  %v845 = vpack.c.b16 %v677, %v675
  %v846 = vpack.c.b16 %v680, %v678
  %v847 = vpack.c.b16 %v681, %v679
  %v848 = vpack.c.b16 %v684, %v682
  %v849 = vpack.c.b16 %v685, %v683
  %v850 = vpack.c.b16 %v688, %v686
  %v851 = vpack.c.b16 %v689, %v687
  %v852 = vpack.c.b16 %v692, %v690
  %v853 = vpack.c.b16 %v693, %v691
  %v854 = vpack.c.b16 %v696, %v694
  %v855 = vpack.c.b16 %v697, %v695
  %v856 = vpack.c.b16 %v700, %v698
  %v857 = vpack.c.b16 %v701, %v699
  %v858 = vpack.c.b16 %v704, %v702
  %v859 = vpack.c.b16 %v705, %v703
  %v860 = vpack.c.b16 %v708, %v706
  %v861 = vpack.c.b16 %v709, %v707
  %v862 = vpack.c.b16 %v712, %v710
  %v863 = vpack.c.b16 %v713, %v711
  %v864 = vpack.c.b16 %v716, %v714
  %v865 = vpack.c.b16 %v717, %v715
  %v866 = vpack.c.b16 %v720, %v718
  %v867 = vpack.c.b16 %v721, %v719
  %v868 = vpack.c.b16 %v724, %v722
  %v869 = vpack.c.b16 %v725, %v723
  %1014 = vmatprep.subr.bf16.mxu0 %v741
  %1015 = vmatpush1.bf16.msra.mxu0 %v740
  %1016 = vmatprep.subr.bf16.mxu0 %v739
  %1017 = vmatpush1.bf16.msra.mxu0 %v738
  %1018 = vmatprep.subr.bf16.mxu0 %v737
  %1019 = vmatpush1.bf16.msra.mxu0 %v736
  %1020 = vmatprep.subr.bf16.mxu0 %v735
  %1021 = vmatpush1.bf16.msra.mxu0 %v734
  %1022 = vmatprep.subr.bf16.mxu0 %v733
  %1023 = vmatpush1.bf16.msra.mxu0 %v732
  %1024 = vmatprep.subr.bf16.mxu0 %v731
  %1025 = vmatpush1.bf16.msra.mxu0 %v730
  %1026 = vmatprep.subr.bf16.mxu0 %v729
  %1027 = vmatpush1.bf16.msra.mxu0 %v728
  %1028 = vmatprep.subr.bf16.mxu0 %v727
  %1029 = vmatpush1.bf16.msra.mxu0 %v726
  %1030 = vmatprep.subr.bf16.mxu0 %v757
  %1031 = vmatpush2.bf16.msra.mxu0 %v756
  %1032 = vmatprep.subr.bf16.mxu0 %v755
  %1033 = vmatpush2.bf16.msra.mxu0 %v754
  %1034 = vmatprep.subr.bf16.mxu0 %v753
  %1035 = vmatpush2.bf16.msra.mxu0 %v752
  %1036 = vmatprep.subr.bf16.mxu0 %v751
  %1037 = vmatpush2.bf16.msra.mxu0 %v750
  %1038 = vmatprep.subr.bf16.mxu0 %v749
  %1039 = vmatpush2.bf16.msra.mxu0 %v748
  %1040 = vmatprep.subr.bf16.mxu0 %v747
  %1041 = vmatpush2.bf16.msra.mxu0 %v746
  %1042 = vmatprep.subr.bf16.mxu0 %v745
  %1043 = vmatpush2.bf16.msra.mxu0 %v744
  %1044 = vmatprep.subr.bf16.mxu0 %v743
  %1045 = vmatpush2.bf16.msra.mxu0 %v742
  %1046 = vmatprep.mubr.bf16.mxu0 %v259
  %1047 = vmatmul.mubr.bf16.gmra.mxu0 %v258
  %v1048 = vpop.f32.mrf.mxu0
  %v1049 = vadd.f32 0.0, %v1048
  %v1050 = vpop.f32.mrf.mxu0
  %v1051 = vadd.f32 0.0, %v1050
  %v1052 = vpop.f32.mrf.mxu0
  %v1053 = vadd.f32 0.0, %v1052
  %v1054 = vpop.f32.mrf.mxu0
  %v1055 = vadd.f32 0.0, %v1054
  %1056 = vmatprep.mubr.bf16.mxu0 %v268
  %1057 = vmatmul.mubr.bf16.gmra.mxu0 %v267
  %v1058 = vpop.f32.mrf.mxu0
  %v1059 = vadd.f32 0.0, %v1058
  %v1060 = vpop.f32.mrf.mxu0
  %v1061 = vadd.f32 0.0, %v1060
  %v1062 = vpop.f32.mrf.mxu0
  %v1063 = vadd.f32 0.0, %v1062
  %v1064 = vpop.f32.mrf.mxu0
  %v1065 = vadd.f32 0.0, %v1064
  %1066 = vdwg.mxu0
  %1067 = vmatprep.subr.bf16.mxu0 %v773
  %1068 = vmatpush1.bf16.msra.mxu0 %v772
  %1069 = vmatprep.subr.bf16.mxu0 %v771
  %1070 = vmatpush1.bf16.msra.mxu0 %v770
  %1071 = vmatprep.subr.bf16.mxu0 %v769
  %1072 = vmatpush1.bf16.msra.mxu0 %v768
  %1073 = vmatprep.subr.bf16.mxu0 %v767
  %1074 = vmatpush1.bf16.msra.mxu0 %v766
  %1075 = vmatprep.subr.bf16.mxu0 %v765
  %1076 = vmatpush1.bf16.msra.mxu0 %v764
  %1077 = vmatprep.subr.bf16.mxu0 %v763
  %1078 = vmatpush1.bf16.msra.mxu0 %v762
  %1079 = vmatprep.subr.bf16.mxu0 %v761
  %1080 = vmatpush1.bf16.msra.mxu0 %v760
  %1081 = vmatprep.subr.bf16.mxu0 %v759
  %1082 = vmatpush1.bf16.msra.mxu0 %v758
  %1083 = vmatprep.subr.bf16.mxu0 %v789
  %1084 = vmatpush2.bf16.msra.mxu0 %v788
  %1085 = vmatprep.subr.bf16.mxu0 %v787
  %1086 = vmatpush2.bf16.msra.mxu0 %v786
  %1087 = vmatprep.subr.bf16.mxu0 %v785
  %1088 = vmatpush2.bf16.msra.mxu0 %v784
  %1089 = vmatprep.subr.bf16.mxu0 %v783
  %1090 = vmatpush2.bf16.msra.mxu0 %v782
  %1091 = vmatprep.subr.bf16.mxu0 %v781
  %1092 = vmatpush2.bf16.msra.mxu0 %v780
  %1093 = vmatprep.subr.bf16.mxu0 %v779
  %1094 = vmatpush2.bf16.msra.mxu0 %v778
  %1095 = vmatprep.subr.bf16.mxu0 %v777
  %1096 = vmatpush2.bf16.msra.mxu0 %v776
  %1097 = vmatprep.subr.bf16.mxu0 %v775
  %1098 = vmatpush2.bf16.msra.mxu0 %v774
  %1099 = vmatprep.mubr.bf16.mxu0 %v261
  %1100 = vmatmul.mubr.bf16.gmra.mxu0 %v260
  %v1101 = vpop.f32.mrf.mxu0
  %v1102 = vadd.f32 %v1049, %v1101
  %v1103 = vpop.f32.mrf.mxu0
  %v1104 = vadd.f32 %v1051, %v1103
  %v1105 = vpop.f32.mrf.mxu0
  %v1106 = vadd.f32 %v1053, %v1105
  %v1107 = vpop.f32.mrf.mxu0
  %v1108 = vadd.f32 %v1055, %v1107
  %1109 = vmatprep.mubr.bf16.mxu0 %v270
  %1110 = vmatmul.mubr.bf16.gmra.mxu0 %v269
  %v1111 = vpop.f32.mrf.mxu0
  %v1112 = vadd.f32 %v1059, %v1111
  %v1113 = vpop.f32.mrf.mxu0
  %v1114 = vadd.f32 %v1061, %v1113
  %v1115 = vpop.f32.mrf.mxu0
  %v1116 = vadd.f32 %v1063, %v1115
  %v1117 = vpop.f32.mrf.mxu0
  %v1118 = vadd.f32 %v1065, %v1117
  %1119 = vdwg.mxu0
  %1120 = vmatprep.subr.bf16.mxu0 %v805
  %1121 = vmatpush1.bf16.msra.mxu0 %v804
  %1122 = vmatprep.subr.bf16.mxu0 %v803
  %1123 = vmatpush1.bf16.msra.mxu0 %v802
  %1124 = vmatprep.subr.bf16.mxu0 %v801
  %1125 = vmatpush1.bf16.msra.mxu0 %v800
  %1126 = vmatprep.subr.bf16.mxu0 %v799
  %1127 = vmatpush1.bf16.msra.mxu0 %v798
  %1128 = vmatprep.subr.bf16.mxu0 %v797
  %1129 = vmatpush1.bf16.msra.mxu0 %v796
  %1130 = vmatprep.subr.bf16.mxu0 %v795
  %1131 = vmatpush1.bf16.msra.mxu0 %v794
  %1132 = vmatprep.subr.bf16.mxu0 %v793
  %1133 = vmatpush1.bf16.msra.mxu0 %v792
  %1134 = vmatprep.subr.bf16.mxu0 %v791
  %1135 = vmatpush1.bf16.msra.mxu0 %v790
  %1136 = vmatprep.subr.bf16.mxu0 %v821
  %1137 = vmatpush2.bf16.msra.mxu0 %v820
  %1138 = vmatprep.subr.bf16.mxu0 %v819
  %1139 = vmatpush2.bf16.msra.mxu0 %v818
  %1140 = vmatprep.subr.bf16.mxu0 %v817
  %1141 = vmatpush2.bf16.msra.mxu0 %v816
  %1142 = vmatprep.subr.bf16.mxu0 %v815
  %1143 = vmatpush2.bf16.msra.mxu0 %v814
  %1144 = vmatprep.subr.bf16.mxu0 %v813
  %1145 = vmatpush2.bf16.msra.mxu0 %v812
  %1146 = vmatprep.subr.bf16.mxu0 %v811
  %1147 = vmatpush2.bf16.msra.mxu0 %v810
  %1148 = vmatprep.subr.bf16.mxu0 %v809
  %1149 = vmatpush2.bf16.msra.mxu0 %v808
  %1150 = vmatprep.subr.bf16.mxu0 %v807
  %1151 = vmatpush2.bf16.msra.mxu0 %v806
  %1152 = vmatprep.mubr.bf16.mxu0 %v263
  %1153 = vmatmul.mubr.bf16.gmra.mxu0 %v262
  %v1154 = vpop.f32.mrf.mxu0
  %v1155 = vadd.f32 %v1102, %v1154
  %v1156 = vpop.f32.mrf.mxu0
  %v1157 = vadd.f32 %v1104, %v1156
  %v1158 = vpop.f32.mrf.mxu0
  %v1159 = vadd.f32 %v1106, %v1158
  %v1160 = vpop.f32.mrf.mxu0
  %v1161 = vadd.f32 %v1108, %v1160
  %1162 = vmatprep.mubr.bf16.mxu0 %v272
  %1163 = vmatmul.mubr.bf16.gmra.mxu0 %v271
  %v1164 = vpop.f32.mrf.mxu0
  %v1165 = vadd.f32 %v1112, %v1164
  %v1166 = vpop.f32.mrf.mxu0
  %v1167 = vadd.f32 %v1114, %v1166
  %v1168 = vpop.f32.mrf.mxu0
  %v1169 = vadd.f32 %v1116, %v1168
  %v1170 = vpop.f32.mrf.mxu0
  %v1171 = vadd.f32 %v1118, %v1170
  %1172 = vdwg.mxu0
  %1173 = vmatprep.subr.bf16.mxu0 %v837
  %1174 = vmatpush1.bf16.msra.mxu0 %v836
  %1175 = vmatprep.subr.bf16.mxu0 %v835
  %1176 = vmatpush1.bf16.msra.mxu0 %v834
  %1177 = vmatprep.subr.bf16.mxu0 %v833
  %1178 = vmatpush1.bf16.msra.mxu0 %v832
  %1179 = vmatprep.subr.bf16.mxu0 %v831
  %1180 = vmatpush1.bf16.msra.mxu0 %v830
  %1181 = vmatprep.subr.bf16.mxu0 %v829
  %1182 = vmatpush1.bf16.msra.mxu0 %v828
  %1183 = vmatprep.subr.bf16.mxu0 %v827
  %1184 = vmatpush1.bf16.msra.mxu0 %v826
  %1185 = vmatprep.subr.bf16.mxu0 %v825
  %1186 = vmatpush1.bf16.msra.mxu0 %v824
  %1187 = vmatprep.subr.bf16.mxu0 %v823
  %1188 = vmatpush1.bf16.msra.mxu0 %v822
  %1189 = vmatprep.subr.bf16.mxu0 %v853
  %1190 = vmatpush2.bf16.msra.mxu0 %v852
  %1191 = vmatprep.subr.bf16.mxu0 %v851
  %1192 = vmatpush2.bf16.msra.mxu0 %v850
  %1193 = vmatprep.subr.bf16.mxu0 %v849
  %1194 = vmatpush2.bf16.msra.mxu0 %v848
  %1195 = vmatprep.subr.bf16.mxu0 %v847
  %1196 = vmatpush2.bf16.msra.mxu0 %v846
  %1197 = vmatprep.subr.bf16.mxu0 %v845
  %1198 = vmatpush2.bf16.msra.mxu0 %v844
  %1199 = vmatprep.subr.bf16.mxu0 %v843
  %1200 = vmatpush2.bf16.msra.mxu0 %v842
  %1201 = vmatprep.subr.bf16.mxu0 %v841
  %1202 = vmatpush2.bf16.msra.mxu0 %v840
  %1203 = vmatprep.subr.bf16.mxu0 %v839
  %1204 = vmatpush2.bf16.msra.mxu0 %v838
  %1205 = vmatprep.mubr.bf16.mxu0 %v265
  %1206 = vmatmul.mubr.bf16.gmra.mxu0 %v264
  %v1207 = vpop.f32.mrf.mxu0
  %v1208 = vadd.f32 %v1155, %v1207
  %v1209 = vpop.f32.mrf.mxu0
  %v1210 = vadd.f32 %v1157, %v1209
  %v1211 = vpop.f32.mrf.mxu0
  %v1212 = vadd.f32 %v1159, %v1211
  %v1213 = vpop.f32.mrf.mxu0
  %v1214 = vadd.f32 %v1161, %v1213
  %1215 = vmatprep.mubr.bf16.mxu0 %v274
  %1216 = vmatmul.mubr.bf16.gmra.mxu0 %v273
  %v1217 = vpop.f32.mrf.mxu0
  %v1218 = vadd.f32 %v1165, %v1217
  %v1219 = vpop.f32.mrf.mxu0
  %v1220 = vadd.f32 %v1167, %v1219
  %v1221 = vpop.f32.mrf.mxu0
  %v1222 = vadd.f32 %v1169, %v1221
  %v1223 = vpop.f32.mrf.mxu0
  %v1224 = vadd.f32 %v1171, %v1223
  %1225 = vdwg.mxu0
  %1226 = vmatprep.subr.bf16.mxu0 %v869
  %1227 = vmatpush1.bf16.msra.mxu0 %v868
  %1228 = vmatprep.subr.bf16.mxu0 %v867
  %1229 = vmatpush1.bf16.msra.mxu0 %v866
  %1230 = vmatprep.subr.bf16.mxu0 %v865
  %1231 = vmatpush1.bf16.msra.mxu0 %v864
  %1232 = vmatprep.subr.bf16.mxu0 %v863
  %1233 = vmatpush1.bf16.msra.mxu0 %v862
  %1234 = vmatprep.subr.bf16.mxu0 %v861
  %1235 = vmatpush1.bf16.msra.mxu0 %v860
  %1236 = vmatprep.subr.bf16.mxu0 %v859
  %1237 = vmatpush1.bf16.msra.mxu0 %v858
  %1238 = vmatprep.subr.bf16.mxu0 %v857
  %1239 = vmatpush1.bf16.msra.mxu0 %v856
  %1240 = vmatprep.subr.bf16.mxu0 %v855
  %1241 = vmatpush1.bf16.msra.mxu0 %v854
  %1242 = vmatprep.subr.bf16.mxu0 0
  %1243 = vmatpush2.bf16.msra.mxu0 0
  %1244 = vmatprep.subr.bf16.mxu0 0
  %1245 = vmatpush2.bf16.msra.mxu0 0
  %1246 = vmatprep.subr.bf16.mxu0 0
  %1247 = vmatpush2.bf16.msra.mxu0 0
  %1248 = vmatprep.subr.bf16.mxu0 0
  %1249 = vmatpush2.bf16.msra.mxu0 0
  %1250 = vmatprep.subr.bf16.mxu0 0
  %1251 = vmatpush2.bf16.msra.mxu0 0
  %1252 = vmatprep.subr.bf16.mxu0 0
  %1253 = vmatpush2.bf16.msra.mxu0 0
  %1254 = vmatprep.subr.bf16.mxu0 0
  %1255 = vmatpush2.bf16.msra.mxu0 0
  %1256 = vmatprep.subr.bf16.mxu0 0
  %1257 = vmatpush2.bf16.msra.mxu0 0
  %1258 = vmatprep.mubr.bf16.mxu0 0
  %1259 = vmatmul.mubr.bf16.gmra.mxu0 %v266
  %v1260 = vpop.f32.mrf.mxu0
  %v1261 = vadd.f32 %v1208, %v1260
  %v1262 = vpop.f32.mrf.mxu0
  %v1263 = vadd.f32 %v1210, %v1262
  %v1264 = vpop.f32.mrf.mxu0
  %v1265 = vadd.f32 %v1212, %v1264
  %v1266 = vpop.f32.mrf.mxu0
  %v1267 = vadd.f32 %v1214, %v1266
  %1268 = vmatprep.mubr.bf16.mxu0 0
  %1269 = vmatmul.mubr.bf16.gmra.mxu0 %v275
  %v1270 = vpop.f32.mrf.mxu0
  %v1271 = vadd.f32 %v1218, %v1270
  %v1272 = vpop.f32.mrf.mxu0
  %v1273 = vadd.f32 %v1220, %v1272
  %v1274 = vpop.f32.mrf.mxu0
  %v1275 = vadd.f32 %v1222, %v1274
  %v1276 = vpop.f32.mrf.mxu0
  %v1277 = vadd.f32 %v1224, %v1276
  %1278 = vdwg.mxu0
  %v1279 = vadd.f32 %v30, %v1261
  %v1280 = vadd.f32 %v31, %v1263
  %v1281 = vadd.f32 %v32, %v1265
  %v1282 = vadd.f32 %v33, %v1267
  %v1283 = vadd.f32 %v34, %v1271
  %v1284 = vadd.f32 %v35, %v1273
  %v1285 = vadd.f32 %v36, %v1275
  %v1286 = vadd.f32 %v37, %v1277
  %1287 = vst [vmem:[#allocation2] sm:$0xff] %v1279
  %1288 = vst [vmem:[#allocation2 + $0x8] sm:$0xff] %v1280
  %1289 = vst [vmem:[#allocation2 + $0x10] sm:$0xff] %v1281
  %1290 = vst [vmem:[#allocation2 + $0x18] sm:$0xff] %v1282
  %1291 = vst [vmem:[#allocation2 + $0x20] sm:$0xff] %v1283
  %1292 = vst [vmem:[#allocation2 + $0x28] sm:$0xff] %v1284
  %1293 = vst [vmem:[#allocation2 + $0x30] sm:$0xff] %v1285
  %1294 = vst [vmem:[#allocation2 + $0x38] sm:$0xff] %v1286
  // Predicated region
  $region22: #{tps_stn_forward.8} parent=0 // pred_check
    %p1295 = pneg %p18
  $region23: #{tps_stn_forward.8} parent=0 // pred_check_branch
    %1297 = sbr.rel (%p1295) target = $region25
  $region24: #{tps_stn_forward.8} parent=0 // pred_region
    %v1298 = vld [vmem:[#allocation2] sm:$0xff]
    %v1299 = vld [vmem:[#allocation2 + $0x8] sm:$0xff]
    %v1300 = vld [vmem:[#allocation2 + $0x10] sm:$0xff]
    %v1301 = vld [vmem:[#allocation2 + $0x18] sm:$0xff]
    %v1302 = vld [vmem:[#allocation2 + $0x20] sm:$0xff]
    %v1303 = vld [vmem:[#allocation2 + $0x28] sm:$0xff]
    %v1304 = vld [vmem:[#allocation2 + $0x30] sm:$0xff]
    %v1305 = vld [vmem:[#allocation2 + $0x38] sm:$0xff]
    %v1306 = vld [vmem:[%s2] sm:$0x3]
    %v1308 = vlaneseq
    %v1309 = vshrl.u32 %v1308, 7
    %v1310 = vsub.s32 0, %v1309
    %v1311 = vrot.slane %v1306, %v1310
    %v1312 = vlaneseq
    %v1313 = vshrl.u32 %v1312, 7
    %v1314 = vsub.s32 1, %v1313
    %v1315 = vrot.slane %v1306, %v1314
    %v1318 = vmul.f32 %v1298, %v1311
    %v1319 = vmul.f32 %v1299, %v1315
    %v1320 = vmul.f32 %v1300, %v1311
    %v1321 = vmul.f32 %v1301, %v1315
    %v1322 = vmul.f32 %v1302, %v1311
    %v1323 = vmul.f32 %v1303, %v1315
    %v1324 = vmul.f32 %v1304, %v1311
    %v1325 = vmul.f32 %v1305, %v1315
    %v1326 = vld [vmem:[%s3] sm:$0x3]
    %v1328 = vlaneseq
    %v1329 = vshrl.u32 %v1328, 7
    %v1330 = vsub.s32 0, %v1329
    %v1331 = vrot.slane %v1326, %v1330
    %v1332 = vlaneseq
    %v1333 = vshrl.u32 %v1332, 7
    %v1334 = vsub.s32 1, %v1333
    %v1335 = vrot.slane %v1326, %v1334
    %v1338 = vadd.f32 %v1318, %v1331
    %v1339 = vadd.f32 %v1319, %v1335
    %v1340 = vadd.f32 %v1320, %v1331
    %v1341 = vadd.f32 %v1321, %v1335
    %v1342 = vadd.f32 %v1322, %v1331
    %v1343 = vadd.f32 %v1323, %v1335
    %v1344 = vadd.f32 %v1324, %v1331
    %v1345 = vadd.f32 %v1325, %v1335
    %v1346 = vmax.f32 %v1338, 0.0
    %v1347 = vmax.f32 %v1339, 0.0
    %v1348 = vmax.f32 %v1340, 0.0
    %v1349 = vmax.f32 %v1341, 0.0
    %v1350 = vmax.f32 %v1342, 0.0
    %v1351 = vmax.f32 %v1343, 0.0
    %v1352 = vmax.f32 %v1344, 0.0
    %v1353 = vmax.f32 %v1345, 0.0
    %1354 = vst [vmem:[%s4] sm:$0xff] %v1346
    %1355 = vst [vmem:[%s4 + $0x8] sm:$0xff] %v1347
    %1356 = vst [vmem:[%s4 + $0x10] sm:$0xff] %v1348
    %1357 = vst [vmem:[%s4 + $0x18] sm:$0xff] %v1349
    %1358 = vst [vmem:[%s4 + $0x20] sm:$0xff] %v1350
    %1359 = vst [vmem:[%s4 + $0x28] sm:$0xff] %v1351
    %1360 = vst [vmem:[%s4 + $0x30] sm:$0xff] %v1352
    %1361 = vst [vmem:[%s4 + $0x38] sm:$0xff] %v1353
  $region25: #{tps_stn_forward.8} parent=0 // pred_fallthru
    _
  // Predicated region
  $region26: #{tps_stn_forward.8} parent=0 // pred_check
    _
  $region27: #{tps_stn_forward.8} parent=0 // pred_check_branch
    %1363 = sbr.rel (0) target = $region29
  $region28: #{tps_stn_forward.8} parent=0 // pred_region
    _
  $region29: #{tps_stn_forward.8} parent=0 // pred_fallthru
    _
  // Predicated region
  $region30: #{tps_stn_forward.8} parent=0 // pred_check
    _
  $region31: #{tps_stn_forward.8} parent=0 // pred_check_branch
    %1365 = sbr.rel (0) target = $region33
  $region32: #{tps_stn_forward.8} parent=0 // pred_region
    _
  $region33: #{tps_stn_forward.8} parent=0 // pred_fallthru
    _

// kernel: tps_stn_forward.9
$region0: #{tps_stn_forward.9}
  #allocation0 [shape = 'u32[]', space=smem, size = 0x4, offset = 0x4, fixed_abs, tag = 'smem constant byte address 0x4 - core index']
  #allocation1 [shape = 'u32[144,128]{1,0:T(1,128)}', space=vmem, size = 0x12000, scoped, tag = 'internal scratch']
  #allocation2 [shape = 'f32[8,256]{1,0:T(8,128)}', space=vmem, size = 0x2000, scoped, tag = 'scratch operand']
  %s0 = inlined_call_operand.vmem [shape: bf16[8,2304], index: 0, kind: input, shape index: {}]
  %s1 = inlined_call_operand.vmem [shape: bf16[2304,512], index: 1, kind: input, shape index: {}]
  %s2 = inlined_call_operand.vmem [shape: f32[1,512], index: 2, kind: input, shape index: {}]
  %s3 = inlined_call_operand.vmem [shape: f32[1,512], index: 3, kind: input, shape index: {}]
  %s4 = inlined_call_operand.vmem [shape: f32[8,512], index: 4, kind: output, shape index: {}]
  %s5 = sld [smem:[#allocation0]]
  $region95: #{tps_stn_forward.9} parent=0
    _
  %s7 = ssub.s32 1, %s5
  %s8 = scalar_select 0, %s7, %s5
  $region1: #{tps_stn_forward.9} parent=0
    #allocation3 [shape = 'u8[1179648]{0}', space=vmem, size = 0x120000, scoped, tag = 'input window, operand 1']
    loop: start=0, step=1, limit=6
    $region2: #{tps_stn_forward.9} parent=1 // loop_pre_header
      _
    $region3: #{tps_stn_forward.9} parent=1 // loop_header
      %s10 = sphi 0, %s14
      %p11 = scmp.ge.s32.totalorder %s10, 6
      %s17 = sphi 0, %s36
      %s18 = sphi 0, %s32
      %s19 = sphi 0, %s28
      %s20 = sphi 0, %s17
      %s21 = sphi 0, %s18
      %s22 = sphi 0, %s19
      %s23 = sphi 0, %s20
      %s24 = sphi 0, %s21
      %s25 = sphi 0, %s22
      %s41 = sphi 0, %s43
      %s44 = sphi 0, %s41
      %s45 = sphi 0, %s44
      %s61 = sphi 0, %s45
      %s69 = sphi 0, %s71
      %s72 = sphi 0, %s69
      %s73 = sphi 0, %s72
      %s89 = sphi 0, %s73
      %s95 = sphi 0, %s97
      %s98 = sphi 0, %s95
      %s99 = sphi 0, %s98
      %s115 = sphi 0, %s99
      %s121 = sphi 0, %s123
      %s124 = sphi 0, %s121
      %s125 = sphi 0, %s124
      %s141 = sphi 0, %s125
      %s149 = sphi 0, %s151
      %s152 = sphi 0, %s149
      %s153 = sphi 0, %s152
      %s169 = sphi 0, %s153
    $region4: #{tps_stn_forward.9} parent=1 // loop_header_branch
      %13 = sbr.rel (%p11) target = $region8
    $region5: #{tps_stn_forward.9} parent=1 // loop_body
      %s15 = ssub.s32 %s10, 1
      %s16 = ssub.s32 %s10, 2
      %s26 = sadd.s32 1, %s19
      %p27 = scmp.ge.s32.totalorder %s26, 2
      %s28 = scalar_select %p27, 0, %s26
      %s29 = sadd.s32 1, %s18
      %s30 = scalar_select %p27, %s29, %s18
      %p31 = scmp.ge.s32.totalorder %s30, 2
      %s32 = scalar_select %p31, 0, %s30
      %s33 = sadd.s32 1, %s17
      %s34 = scalar_select %p31, %s33, %s17
      %p35 = scmp.ge.s32.totalorder %s34, 1
      %s36 = scalar_select %p35, 0, %s34
      %s37 = ssub.s32 %s17, %s36
      %s38 = ssub.s32 %s19, %s28
      %s39 = sor.u32 %s37, %s38
      %p40 = scmp.eq.s32.totalorder %s39, 0
      %s42 = sadd.s32 %s41, 1
      %s43 = scalar_select %p40, %s41, %s42
      %p46 = pneg %p40
      %p47 = scmp.eq.s32.totalorder %s10, 3
      %p48 = por %p46, %p47
      %p49 = scmp.ne.s32.totalorder %s41, %s44
      %p50 = scmp.eq.s32.totalorder %s10, 0
      %p51 = por %p49, %p50
      %p52 = scmp.ne.s32.totalorder %s41, %s44
      %p53 = scmp.eq.s32.totalorder %s15, 3
      %p54 = por %p52, %p53
      %p55 = scmp.ne.s32.totalorder %s44, %s45
      %p56 = scmp.eq.s32.totalorder %s15, 0
      %p57 = por %p55, %p56
      %p58 = scmp.ne.s32.totalorder %s44, %s45
      %p59 = scmp.eq.s32.totalorder %s16, 3
      %p60 = por %p58, %p59
      %p62 = scmp.ne.s32.totalorder %s45, %s61
      %p63 = scmp.eq.s32.totalorder %s16, 0
      %p64 = por %p62, %p63
      %s65 = ssub.s32 %s19, %s28
      %s66 = ssub.s32 %s18, %s32
      %s67 = sor.u32 %s65, %s66
      %p68 = scmp.eq.s32.totalorder %s67, 0
      %s70 = sadd.s32 %s69, 1
      %s71 = scalar_select %p68, %s69, %s70
      %p74 = pneg %p68
      %p75 = scmp.eq.s32.totalorder %s10, 3
      %p76 = por %p74, %p75
      %p77 = scmp.ne.s32.totalorder %s69, %s72
      %p78 = scmp.eq.s32.totalorder %s10, 0
      %p79 = por %p77, %p78
      %p80 = scmp.ne.s32.totalorder %s69, %s72
      %p81 = scmp.eq.s32.totalorder %s15, 3
      %p82 = por %p80, %p81
      %p83 = scmp.ne.s32.totalorder %s72, %s73
      %p84 = scmp.eq.s32.totalorder %s15, 0
      %p85 = por %p83, %p84
      %p86 = scmp.ne.s32.totalorder %s72, %s73
      %p87 = scmp.eq.s32.totalorder %s16, 3
      %p88 = por %p86, %p87
      %p90 = scmp.ne.s32.totalorder %s73, %s89
      %p91 = scmp.eq.s32.totalorder %s16, 0
      %p92 = por %p90, %p91
      %s93 = ssub.s32 %s18, %s32
      %p94 = scmp.eq.s32.totalorder %s93, 0
      %s96 = sadd.s32 %s95, 1
      %s97 = scalar_select %p94, %s95, %s96
      %p100 = pneg %p94
      %p101 = scmp.eq.s32.totalorder %s10, 3
      %p102 = por %p100, %p101
      %p103 = scmp.ne.s32.totalorder %s95, %s98
      %p104 = scmp.eq.s32.totalorder %s10, 0
      %p105 = por %p103, %p104
      %p106 = scmp.ne.s32.totalorder %s95, %s98
      %p107 = scmp.eq.s32.totalorder %s15, 3
      %p108 = por %p106, %p107
      %p109 = scmp.ne.s32.totalorder %s98, %s99
      %p110 = scmp.eq.s32.totalorder %s15, 0
      %p111 = por %p109, %p110
      %p112 = scmp.ne.s32.totalorder %s98, %s99
      %p113 = scmp.eq.s32.totalorder %s16, 3
      %p114 = por %p112, %p113
      %p116 = scmp.ne.s32.totalorder %s99, %s115
      %p117 = scmp.eq.s32.totalorder %s16, 0
      %p118 = por %p116, %p117
      %s119 = ssub.s32 %s18, %s32
      %p120 = scmp.eq.s32.totalorder %s119, 0
      %s122 = sadd.s32 %s121, 1
      %s123 = scalar_select %p120, %s121, %s122
      %p126 = pneg %p120
      %p127 = scmp.eq.s32.totalorder %s10, 3
      %p128 = por %p126, %p127
      %p129 = scmp.ne.s32.totalorder %s121, %s124
      %p130 = scmp.eq.s32.totalorder %s10, 0
      %p131 = por %p129, %p130
      %p132 = scmp.ne.s32.totalorder %s121, %s124
      %p133 = scmp.eq.s32.totalorder %s15, 3
      %p134 = por %p132, %p133
      %p135 = scmp.ne.s32.totalorder %s124, %s125
      %p136 = scmp.eq.s32.totalorder %s15, 0
      %p137 = por %p135, %p136
      %p138 = scmp.ne.s32.totalorder %s124, %s125
      %p139 = scmp.eq.s32.totalorder %s16, 3
      %p140 = por %p138, %p139
      %p142 = scmp.ne.s32.totalorder %s125, %s141
      %p143 = scmp.eq.s32.totalorder %s16, 0
      %p144 = por %p142, %p143
      %s145 = ssub.s32 %s17, %s36
      %s146 = ssub.s32 %s18, %s32
      %s147 = sor.u32 %s145, %s146
      %p148 = scmp.eq.s32.totalorder %s147, 0
      %s150 = sadd.s32 %s149, 1
      %s151 = scalar_select %p148, %s149, %s150
      %p154 = pneg %p148
      %p155 = scmp.eq.s32.totalorder %s10, 3
      %p156 = por %p154, %p155
      %p157 = scmp.ne.s32.totalorder %s149, %s152
      %p158 = scmp.eq.s32.totalorder %s10, 0
      %p159 = por %p157, %p158
      %p160 = scmp.ne.s32.totalorder %s149, %s152
      %p161 = scmp.eq.s32.totalorder %s15, 3
      %p162 = por %p160, %p161
      %p163 = scmp.ne.s32.totalorder %s152, %s153
      %p164 = scmp.eq.s32.totalorder %s15, 0
      %p165 = por %p163, %p164
      %p166 = scmp.ne.s32.totalorder %s152, %s153
      %p167 = scmp.eq.s32.totalorder %s16, 3
      %p168 = por %p166, %p167
      %p170 = scmp.ne.s32.totalorder %s153, %s169
      %p171 = scmp.eq.s32.totalorder %s16, 0
      %p172 = por %p170, %p171
      %p173 = scmp.le.s32.totalorder 1, %s10
      %p174 = scmp.lt.s32.totalorder %s10, 5
      %p175 = pnand %p173, %p174
      %p176 = pneg %p175
      // Predicated region
      $region9: #{tps_stn_forward.9} parent=5 // pred_check
        _
      $region10: #{tps_stn_forward.9} parent=5 // pred_check_branch
        %178 = sbr.rel (%p175) target = $region12
      $region11: #{tps_stn_forward.9} parent=5 // pred_region
        %s179 = ssub.s32 %s10, 1
      $region12: #{tps_stn_forward.9} parent=5 // pred_fallthru
        _
      %p180 = scmp.lt.s32.totalorder %s10, 4
      // Predicated region
      $region13: #{tps_stn_forward.9} parent=5 // pred_check
        %p181 = pneg %p180
      $region14: #{tps_stn_forward.9} parent=5 // pred_check_branch
        %183 = sbr.rel (%p181) target = $region16
      $region15: #{tps_stn_forward.9} parent=5 // pred_region
        // Predicated region
        $region17: #{tps_stn_forward.9} parent=15 // pred_check
          %p184 = pneg %p51
        $region18: #{tps_stn_forward.9} parent=15 // pred_check_branch
          %186 = sbr.rel (%p184) target = $region20
        $region19: #{tps_stn_forward.9} parent=15 // pred_region
          %s187 = smul.u32 9, %s19
          %p188 = scmp.lt.s32.totalorder %s17, 0
          %s189 = scalar_select %p188, %s17, 0
          %p190 = scmp.lt.s32.totalorder %s187, 17
          %s191 = scalar_select %p190, %s187, 17
          %s192 = smul.addr %s189, 18
          %s193 = sadd.s32 %s191, %s192
          %s194 = smul.addr %s193, 4
          %s195 = scalar_lea.vmem %s0, %s194
          %s196 = smul.u32 9, %s19
        $region20: #{tps_stn_forward.9} parent=15 // pred_fallthru
          _
        // Predicated region
        $region21: #{tps_stn_forward.9} parent=15 // pred_check
          %p197 = pneg %p79
        $region22: #{tps_stn_forward.9} parent=15 // pred_check_branch
          %199 = sbr.rel (%p197) target = $region24
        $region23: #{tps_stn_forward.9} parent=15 // pred_region
          %s200 = sand.u32 %s69, 1
          %s201 = sand.u32 %s69, 1
          %s202 = smul.addr %s201, 1152
          %s203 = scalar_lea.vmem [#allocation3], %s202
          %s204 = smul.u32 144, %s19
          %s205 = smul.u32 2, %s18
          %s206 = smul.addr %s204, 4
          %s207 = sadd.s32 %s205, %s206
          %s208 = smul.addr %s207, 4
          %s209 = scalar_lea.vmem %s1, %s208
          // Predicated region
          $region25: #{tps_stn_forward.9} parent=23 // pred_check
            _
          $region26: #{tps_stn_forward.9} parent=23 // pred_check_branch
            %211 = sbr.rel (0) target = $region28
          $region27: #{tps_stn_forward.9} parent=23 // pred_region
            // Predicated region
            $region29: #{tps_stn_forward.9} parent=27 // pred_check
              _
            $region30: #{tps_stn_forward.9} parent=27 // pred_check_branch
              %213 = sbr.rel (0) target = $region32
            $region31: #{tps_stn_forward.9} parent=27 // pred_region
              // Predicated region
              $region44: #{tps_stn_forward.9} parent=31 // pred_check
                _
              $region45: #{tps_stn_forward.9} parent=31 // pred_check_branch
                %515 = sbr.rel (0) target = $region47
              $region46: #{tps_stn_forward.9} parent=31 // pred_region
                loop: start=0, step=1, limit=1
                $region48: #{tps_stn_forward.9} parent=46 // loop_pre_header
                  _
                $region49: #{tps_stn_forward.9} parent=46 // loop_header
                  %s517 = sphi 0, %s521
                  %p518 = scmp.ge.s32.totalorder %s517, 1
                  %s522 = sphi %s209, %s209
                  %s523 = sphi %s203, %s203
                $region50: #{tps_stn_forward.9} parent=46 // loop_header_branch
                  %520 = sbr.rel (%p518) target = $region54
                $region51: #{tps_stn_forward.9} parent=46 // loop_body
                  %v524 = vld [vmem:[%s522] sm:$0xff]
                  %525 = vst [vmem:[%s523] sm:$0xff] %v524
                  %v526 = vld [vmem:[%s522 + $0x10] sm:$0xff]
                  %527 = vst [vmem:[%s523 + $0x8] sm:$0xff] %v526
                  %v528 = vld [vmem:[%s522 + $0x20] sm:$0xff]
                  %529 = vst [vmem:[%s523 + $0x10] sm:$0xff] %v528
                  %v530 = vld [vmem:[%s522 + $0x30] sm:$0xff]
                  %531 = vst [vmem:[%s523 + $0x18] sm:$0xff] %v530
                  %v532 = vld [vmem:[%s522 + $0x40] sm:$0xff]
                  %533 = vst [vmem:[%s523 + $0x20] sm:$0xff] %v532
                  %v534 = vld [vmem:[%s522 + $0x50] sm:$0xff]
                  %535 = vst [vmem:[%s523 + $0x28] sm:$0xff] %v534
                  %v536 = vld [vmem:[%s522 + $0x60] sm:$0xff]
                  %537 = vst [vmem:[%s523 + $0x30] sm:$0xff] %v536
                  %v538 = vld [vmem:[%s522 + $0x70] sm:$0xff]
                  %539 = vst [vmem:[%s523 + $0x38] sm:$0xff] %v538
                  %v540 = vld [vmem:[%s522 + $0x80] sm:$0xff]
                  %541 = vst [vmem:[%s523 + $0x40] sm:$0xff] %v540
                  %v542 = vld [vmem:[%s522 + $0x90] sm:$0xff]
                  %543 = vst [vmem:[%s523 + $0x48] sm:$0xff] %v542
                  %v544 = vld [vmem:[%s522 + $0xa0] sm:$0xff]
                  %545 = vst [vmem:[%s523 + $0x50] sm:$0xff] %v544
                  %v546 = vld [vmem:[%s522 + $0xb0] sm:$0xff]
                  %547 = vst [vmem:[%s523 + $0x58] sm:$0xff] %v546
                  %v548 = vld [vmem:[%s522 + $0xc0] sm:$0xff]
                  %549 = vst [vmem:[%s523 + $0x60] sm:$0xff] %v548
                  %v550 = vld [vmem:[%s522 + $0xd0] sm:$0xff]
                  %551 = vst [vmem:[%s523 + $0x68] sm:$0xff] %v550
                  %v552 = vld [vmem:[%s522 + $0xe0] sm:$0xff]
                  %553 = vst [vmem:[%s523 + $0x70] sm:$0xff] %v552
                  %v554 = vld [vmem:[%s522 + $0xf0] sm:$0xff]
                  %555 = vst [vmem:[%s523 + $0x78] sm:$0xff] %v554
                  %v556 = vld [vmem:[%s522 + $0x100] sm:$0xff]
                  %557 = vst [vmem:[%s523 + $0x80] sm:$0xff] %v556
                  %v558 = vld [vmem:[%s522 + $0x110] sm:$0xff]
                  %559 = vst [vmem:[%s523 + $0x88] sm:$0xff] %v558
                  %v560 = vld [vmem:[%s522 + $0x120] sm:$0xff]
                  %561 = vst [vmem:[%s523 + $0x90] sm:$0xff] %v560
                  %v562 = vld [vmem:[%s522 + $0x130] sm:$0xff]
                  %563 = vst [vmem:[%s523 + $0x98] sm:$0xff] %v562
                  %v564 = vld [vmem:[%s522 + $0x140] sm:$0xff]
                  %565 = vst [vmem:[%s523 + $0xa0] sm:$0xff] %v564
                  %v566 = vld [vmem:[%s522 + $0x150] sm:$0xff]
                  %567 = vst [vmem:[%s523 + $0xa8] sm:$0xff] %v566
                  %v568 = vld [vmem:[%s522 + $0x160] sm:$0xff]
                  %569 = vst [vmem:[%s523 + $0xb0] sm:$0xff] %v568
                  %v570 = vld [vmem:[%s522 + $0x170] sm:$0xff]
                  %571 = vst [vmem:[%s523 + $0xb8] sm:$0xff] %v570
                  %v572 = vld [vmem:[%s522 + $0x180] sm:$0xff]
                  %573 = vst [vmem:[%s523 + $0xc0] sm:$0xff] %v572
                  %v574 = vld [vmem:[%s522 + $0x190] sm:$0xff]
                  %575 = vst [vmem:[%s523 + $0xc8] sm:$0xff] %v574
                  %v576 = vld [vmem:[%s522 + $0x1a0] sm:$0xff]
                  %577 = vst [vmem:[%s523 + $0xd0] sm:$0xff] %v576
                  %v578 = vld [vmem:[%s522 + $0x1b0] sm:$0xff]
                  %579 = vst [vmem:[%s523 + $0xd8] sm:$0xff] %v578
                  %v580 = vld [vmem:[%s522 + $0x1c0] sm:$0xff]
                  %581 = vst [vmem:[%s523 + $0xe0] sm:$0xff] %v580
                  %v582 = vld [vmem:[%s522 + $0x1d0] sm:$0xff]
                  %583 = vst [vmem:[%s523 + $0xe8] sm:$0xff] %v582
                  %v584 = vld [vmem:[%s522 + $0x1e0] sm:$0xff]
                  %585 = vst [vmem:[%s523 + $0xf0] sm:$0xff] %v584
                  %v586 = vld [vmem:[%s522 + $0x1f0] sm:$0xff]
                  %587 = vst [vmem:[%s523 + $0xf8] sm:$0xff] %v586
                  %v588 = vld [vmem:[%s522 + $0x200] sm:$0xff]
                  %589 = vst [vmem:[%s523 + $0x100] sm:$0xff] %v588
                  %v590 = vld [vmem:[%s522 + $0x210] sm:$0xff]
                  %591 = vst [vmem:[%s523 + $0x108] sm:$0xff] %v590
                  %v592 = vld [vmem:[%s522 + $0x220] sm:$0xff]
                  %593 = vst [vmem:[%s523 + $0x110] sm:$0xff] %v592
                  %v594 = vld [vmem:[%s522 + $0x230] sm:$0xff]
                  %595 = vst [vmem:[%s523 + $0x118] sm:$0xff] %v594
                  %v596 = vld [vmem:[%s522 + $0x240] sm:$0xff]
                  %597 = vst [vmem:[%s523 + $0x120] sm:$0xff] %v596
                  %v598 = vld [vmem:[%s522 + $0x250] sm:$0xff]
                  %599 = vst [vmem:[%s523 + $0x128] sm:$0xff] %v598
                  %v600 = vld [vmem:[%s522 + $0x260] sm:$0xff]
                  %601 = vst [vmem:[%s523 + $0x130] sm:$0xff] %v600
                  %v602 = vld [vmem:[%s522 + $0x270] sm:$0xff]
                  %603 = vst [vmem:[%s523 + $0x138] sm:$0xff] %v602
                  %v604 = vld [vmem:[%s522 + $0x280] sm:$0xff]
                  %605 = vst [vmem:[%s523 + $0x140] sm:$0xff] %v604
                  %v606 = vld [vmem:[%s522 + $0x290] sm:$0xff]
                  %607 = vst [vmem:[%s523 + $0x148] sm:$0xff] %v606
                  %v608 = vld [vmem:[%s522 + $0x2a0] sm:$0xff]
                  %609 = vst [vmem:[%s523 + $0x150] sm:$0xff] %v608
                  %v610 = vld [vmem:[%s522 + $0x2b0] sm:$0xff]
                  %611 = vst [vmem:[%s523 + $0x158] sm:$0xff] %v610
                  %v612 = vld [vmem:[%s522 + $0x2c0] sm:$0xff]
                  %613 = vst [vmem:[%s523 + $0x160] sm:$0xff] %v612
                  %v614 = vld [vmem:[%s522 + $0x2d0] sm:$0xff]
                  %615 = vst [vmem:[%s523 + $0x168] sm:$0xff] %v614
                  %v616 = vld [vmem:[%s522 + $0x2e0] sm:$0xff]
                  %617 = vst [vmem:[%s523 + $0x170] sm:$0xff] %v616
                  %v618 = vld [vmem:[%s522 + $0x2f0] sm:$0xff]
                  %619 = vst [vmem:[%s523 + $0x178] sm:$0xff] %v618
                  %v620 = vld [vmem:[%s522 + $0x300] sm:$0xff]
                  %621 = vst [vmem:[%s523 + $0x180] sm:$0xff] %v620
                  %v622 = vld [vmem:[%s522 + $0x310] sm:$0xff]
                  %623 = vst [vmem:[%s523 + $0x188] sm:$0xff] %v622
                  %v624 = vld [vmem:[%s522 + $0x320] sm:$0xff]
                  %625 = vst [vmem:[%s523 + $0x190] sm:$0xff] %v624
                  %v626 = vld [vmem:[%s522 + $0x330] sm:$0xff]
                  %627 = vst [vmem:[%s523 + $0x198] sm:$0xff] %v626
                  %v628 = vld [vmem:[%s522 + $0x340] sm:$0xff]
                  %629 = vst [vmem:[%s523 + $0x1a0] sm:$0xff] %v628
                  %v630 = vld [vmem:[%s522 + $0x350] sm:$0xff]
                  %631 = vst [vmem:[%s523 + $0x1a8] sm:$0xff] %v630
                  %v632 = vld [vmem:[%s522 + $0x360] sm:$0xff]
                  %633 = vst [vmem:[%s523 + $0x1b0] sm:$0xff] %v632
                  %v634 = vld [vmem:[%s522 + $0x370] sm:$0xff]
                  %635 = vst [vmem:[%s523 + $0x1b8] sm:$0xff] %v634
                  %v636 = vld [vmem:[%s522 + $0x380] sm:$0xff]
                  %637 = vst [vmem:[%s523 + $0x1c0] sm:$0xff] %v636
                  %v638 = vld [vmem:[%s522 + $0x390] sm:$0xff]
                  %639 = vst [vmem:[%s523 + $0x1c8] sm:$0xff] %v638
                  %v640 = vld [vmem:[%s522 + $0x3a0] sm:$0xff]
                  %641 = vst [vmem:[%s523 + $0x1d0] sm:$0xff] %v640
                  %v642 = vld [vmem:[%s522 + $0x3b0] sm:$0xff]
                  %643 = vst [vmem:[%s523 + $0x1d8] sm:$0xff] %v642
                  %v644 = vld [vmem:[%s522 + $0x3c0] sm:$0xff]
                  %645 = vst [vmem:[%s523 + $0x1e0] sm:$0xff] %v644
                  %v646 = vld [vmem:[%s522 + $0x3d0] sm:$0xff]
                  %647 = vst [vmem:[%s523 + $0x1e8] sm:$0xff] %v646
                  %v648 = vld [vmem:[%s522 + $0x3e0] sm:$0xff]
                  %649 = vst [vmem:[%s523 + $0x1f0] sm:$0xff] %v648
                  %v650 = vld [vmem:[%s522 + $0x3f0] sm:$0xff]
                  %651 = vst [vmem:[%s523 + $0x1f8] sm:$0xff] %v650
                  %v652 = vld [vmem:[%s522 + $0x400] sm:$0xff]
                  %653 = vst [vmem:[%s523 + $0x200] sm:$0xff] %v652
                  %v654 = vld [vmem:[%s522 + $0x410] sm:$0xff]
                  %655 = vst [vmem:[%s523 + $0x208] sm:$0xff] %v654
                  %v656 = vld [vmem:[%s522 + $0x420] sm:$0xff]
                  %657 = vst [vmem:[%s523 + $0x210] sm:$0xff] %v656
                  %v658 = vld [vmem:[%s522 + $0x430] sm:$0xff]
                  %659 = vst [vmem:[%s523 + $0x218] sm:$0xff] %v658
                  %v660 = vld [vmem:[%s522 + $0x440] sm:$0xff]
                  %661 = vst [vmem:[%s523 + $0x220] sm:$0xff] %v660
                  %v662 = vld [vmem:[%s522 + $0x450] sm:$0xff]
                  %663 = vst [vmem:[%s523 + $0x228] sm:$0xff] %v662
                  %v664 = vld [vmem:[%s522 + $0x460] sm:$0xff]
                  %665 = vst [vmem:[%s523 + $0x230] sm:$0xff] %v664
                  %v666 = vld [vmem:[%s522 + $0x470] sm:$0xff]
                  %667 = vst [vmem:[%s523 + $0x238] sm:$0xff] %v666
                  %v668 = vld [vmem:[%s522 + $0x480] sm:$0xff]
                  %669 = vst [vmem:[%s523 + $0x240] sm:$0xff] %v668
                  %v670 = vld [vmem:[%s522 + $0x490] sm:$0xff]
                  %671 = vst [vmem:[%s523 + $0x248] sm:$0xff] %v670
                  %v672 = vld [vmem:[%s522 + $0x4a0] sm:$0xff]
                  %673 = vst [vmem:[%s523 + $0x250] sm:$0xff] %v672
                  %v674 = vld [vmem:[%s522 + $0x4b0] sm:$0xff]
                  %675 = vst [vmem:[%s523 + $0x258] sm:$0xff] %v674
                  %v676 = vld [vmem:[%s522 + $0x4c0] sm:$0xff]
                  %677 = vst [vmem:[%s523 + $0x260] sm:$0xff] %v676
                  %v678 = vld [vmem:[%s522 + $0x4d0] sm:$0xff]
                  %679 = vst [vmem:[%s523 + $0x268] sm:$0xff] %v678
                  %v680 = vld [vmem:[%s522 + $0x4e0] sm:$0xff]
                  %681 = vst [vmem:[%s523 + $0x270] sm:$0xff] %v680
                  %v682 = vld [vmem:[%s522 + $0x4f0] sm:$0xff]
                  %683 = vst [vmem:[%s523 + $0x278] sm:$0xff] %v682
                  %v684 = vld [vmem:[%s522 + $0x500] sm:$0xff]
                  %685 = vst [vmem:[%s523 + $0x280] sm:$0xff] %v684
                  %v686 = vld [vmem:[%s522 + $0x510] sm:$0xff]
                  %687 = vst [vmem:[%s523 + $0x288] sm:$0xff] %v686
                  %v688 = vld [vmem:[%s522 + $0x520] sm:$0xff]
                  %689 = vst [vmem:[%s523 + $0x290] sm:$0xff] %v688
                  %v690 = vld [vmem:[%s522 + $0x530] sm:$0xff]
                  %691 = vst [vmem:[%s523 + $0x298] sm:$0xff] %v690
                  %v692 = vld [vmem:[%s522 + $0x540] sm:$0xff]
                  %693 = vst [vmem:[%s523 + $0x2a0] sm:$0xff] %v692
                  %v694 = vld [vmem:[%s522 + $0x550] sm:$0xff]
                  %695 = vst [vmem:[%s523 + $0x2a8] sm:$0xff] %v694
                  %v696 = vld [vmem:[%s522 + $0x560] sm:$0xff]
                  %697 = vst [vmem:[%s523 + $0x2b0] sm:$0xff] %v696
                  %v698 = vld [vmem:[%s522 + $0x570] sm:$0xff]
                  %699 = vst [vmem:[%s523 + $0x2b8] sm:$0xff] %v698
                  %v700 = vld [vmem:[%s522 + $0x580] sm:$0xff]
                  %701 = vst [vmem:[%s523 + $0x2c0] sm:$0xff] %v700
                  %v702 = vld [vmem:[%s522 + $0x590] sm:$0xff]
                  %703 = vst [vmem:[%s523 + $0x2c8] sm:$0xff] %v702
                  %v704 = vld [vmem:[%s522 + $0x5a0] sm:$0xff]
                  %705 = vst [vmem:[%s523 + $0x2d0] sm:$0xff] %v704
                  %v706 = vld [vmem:[%s522 + $0x5b0] sm:$0xff]
                  %707 = vst [vmem:[%s523 + $0x2d8] sm:$0xff] %v706
                  %v708 = vld [vmem:[%s522 + $0x5c0] sm:$0xff]
                  %709 = vst [vmem:[%s523 + $0x2e0] sm:$0xff] %v708
                  %v710 = vld [vmem:[%s522 + $0x5d0] sm:$0xff]
                  %711 = vst [vmem:[%s523 + $0x2e8] sm:$0xff] %v710
                  %v712 = vld [vmem:[%s522 + $0x5e0] sm:$0xff]
                  %713 = vst [vmem:[%s523 + $0x2f0] sm:$0xff] %v712
                  %v714 = vld [vmem:[%s522 + $0x5f0] sm:$0xff]
                  %715 = vst [vmem:[%s523 + $0x2f8] sm:$0xff] %v714
                  %v716 = vld [vmem:[%s522 + $0x600] sm:$0xff]
                  %717 = vst [vmem:[%s523 + $0x300] sm:$0xff] %v716
                  %v718 = vld [vmem:[%s522 + $0x610] sm:$0xff]
                  %719 = vst [vmem:[%s523 + $0x308] sm:$0xff] %v718
                  %v720 = vld [vmem:[%s522 + $0x620] sm:$0xff]
                  %721 = vst [vmem:[%s523 + $0x310] sm:$0xff] %v720
                  %v722 = vld [vmem:[%s522 + $0x630] sm:$0xff]
                  %723 = vst [vmem:[%s523 + $0x318] sm:$0xff] %v722
                  %v724 = vld [vmem:[%s522 + $0x640] sm:$0xff]
                  %725 = vst [vmem:[%s523 + $0x320] sm:$0xff] %v724
                  %v726 = vld [vmem:[%s522 + $0x650] sm:$0xff]
                  %727 = vst [vmem:[%s523 + $0x328] sm:$0xff] %v726
                  %v728 = vld [vmem:[%s522 + $0x660] sm:$0xff]
                  %729 = vst [vmem:[%s523 + $0x330] sm:$0xff] %v728
                  %v730 = vld [vmem:[%s522 + $0x670] sm:$0xff]
                  %731 = vst [vmem:[%s523 + $0x338] sm:$0xff] %v730
                  %v732 = vld [vmem:[%s522 + $0x680] sm:$0xff]
                  %733 = vst [vmem:[%s523 + $0x340] sm:$0xff] %v732
                  %v734 = vld [vmem:[%s522 + $0x690] sm:$0xff]
                  %735 = vst [vmem:[%s523 + $0x348] sm:$0xff] %v734
                  %v736 = vld [vmem:[%s522 + $0x6a0] sm:$0xff]
                  %737 = vst [vmem:[%s523 + $0x350] sm:$0xff] %v736
                  %v738 = vld [vmem:[%s522 + $0x6b0] sm:$0xff]
                  %739 = vst [vmem:[%s523 + $0x358] sm:$0xff] %v738
                  %v740 = vld [vmem:[%s522 + $0x6c0] sm:$0xff]
                  %741 = vst [vmem:[%s523 + $0x360] sm:$0xff] %v740
                  %v742 = vld [vmem:[%s522 + $0x6d0] sm:$0xff]
                  %743 = vst [vmem:[%s523 + $0x368] sm:$0xff] %v742
                  %v744 = vld [vmem:[%s522 + $0x6e0] sm:$0xff]
                  %745 = vst [vmem:[%s523 + $0x370] sm:$0xff] %v744
                  %v746 = vld [vmem:[%s522 + $0x6f0] sm:$0xff]
                  %747 = vst [vmem:[%s523 + $0x378] sm:$0xff] %v746
                  %v748 = vld [vmem:[%s522 + $0x700] sm:$0xff]
                  %749 = vst [vmem:[%s523 + $0x380] sm:$0xff] %v748
                  %v750 = vld [vmem:[%s522 + $0x710] sm:$0xff]
                  %751 = vst [vmem:[%s523 + $0x388] sm:$0xff] %v750
                  %v752 = vld [vmem:[%s522 + $0x720] sm:$0xff]
                  %753 = vst [vmem:[%s523 + $0x390] sm:$0xff] %v752
                  %v754 = vld [vmem:[%s522 + $0x730] sm:$0xff]
                  %755 = vst [vmem:[%s523 + $0x398] sm:$0xff] %v754
                  %v756 = vld [vmem:[%s522 + $0x740] sm:$0xff]
                  %757 = vst [vmem:[%s523 + $0x3a0] sm:$0xff] %v756
                  %v758 = vld [vmem:[%s522 + $0x750] sm:$0xff]
                  %759 = vst [vmem:[%s523 + $0x3a8] sm:$0xff] %v758
                  %v760 = vld [vmem:[%s522 + $0x760] sm:$0xff]
                  %761 = vst [vmem:[%s523 + $0x3b0] sm:$0xff] %v760
                  %v762 = vld [vmem:[%s522 + $0x770] sm:$0xff]
                  %763 = vst [vmem:[%s523 + $0x3b8] sm:$0xff] %v762
                  %v764 = vld [vmem:[%s522 + $0x780] sm:$0xff]
                  %765 = vst [vmem:[%s523 + $0x3c0] sm:$0xff] %v764
                  %v766 = vld [vmem:[%s522 + $0x790] sm:$0xff]
                  %767 = vst [vmem:[%s523 + $0x3c8] sm:$0xff] %v766
                  %v768 = vld [vmem:[%s522 + $0x7a0] sm:$0xff]
                  %769 = vst [vmem:[%s523 + $0x3d0] sm:$0xff] %v768
                  %v770 = vld [vmem:[%s522 + $0x7b0] sm:$0xff]
                  %771 = vst [vmem:[%s523 + $0x3d8] sm:$0xff] %v770
                  %v772 = vld [vmem:[%s522 + $0x7c0] sm:$0xff]
                  %773 = vst [vmem:[%s523 + $0x3e0] sm:$0xff] %v772
                  %v774 = vld [vmem:[%s522 + $0x7d0] sm:$0xff]
                  %775 = vst [vmem:[%s523 + $0x3e8] sm:$0xff] %v774
                  %v776 = vld [vmem:[%s522 + $0x7e0] sm:$0xff]
                  %777 = vst [vmem:[%s523 + $0x3f0] sm:$0xff] %v776
                  %v778 = vld [vmem:[%s522 + $0x7f0] sm:$0xff]
                  %779 = vst [vmem:[%s523 + $0x3f8] sm:$0xff] %v778
                  %v780 = vld [vmem:[%s522 + $0x800] sm:$0xff]
                  %781 = vst [vmem:[%s523 + $0x400] sm:$0xff] %v780
                  %v782 = vld [vmem:[%s522 + $0x810] sm:$0xff]
                  %783 = vst [vmem:[%s523 + $0x408] sm:$0xff] %v782
                  %v784 = vld [vmem:[%s522 + $0x820] sm:$0xff]
                  %785 = vst [vmem:[%s523 + $0x410] sm:$0xff] %v784
                  %v786 = vld [vmem:[%s522 + $0x830] sm:$0xff]
                  %787 = vst [vmem:[%s523 + $0x418] sm:$0xff] %v786
                  %v788 = vld [vmem:[%s522 + $0x840] sm:$0xff]
                  %789 = vst [vmem:[%s523 + $0x420] sm:$0xff] %v788
                  %v790 = vld [vmem:[%s522 + $0x850] sm:$0xff]
                  %791 = vst [vmem:[%s523 + $0x428] sm:$0xff] %v790
                  %v792 = vld [vmem:[%s522 + $0x860] sm:$0xff]
                  %793 = vst [vmem:[%s523 + $0x430] sm:$0xff] %v792
                  %v794 = vld [vmem:[%s522 + $0x870] sm:$0xff]
                  %795 = vst [vmem:[%s523 + $0x438] sm:$0xff] %v794
                  %v796 = vld [vmem:[%s522 + $0x880] sm:$0xff]
                  %797 = vst [vmem:[%s523 + $0x440] sm:$0xff] %v796
                  %v798 = vld [vmem:[%s522 + $0x890] sm:$0xff]
                  %799 = vst [vmem:[%s523 + $0x448] sm:$0xff] %v798
                  %v800 = vld [vmem:[%s522 + $0x8a0] sm:$0xff]
                  %801 = vst [vmem:[%s523 + $0x450] sm:$0xff] %v800
                  %v802 = vld [vmem:[%s522 + $0x8b0] sm:$0xff]
                  %803 = vst [vmem:[%s523 + $0x458] sm:$0xff] %v802
                  %v804 = vld [vmem:[%s522 + $0x8c0] sm:$0xff]
                  %805 = vst [vmem:[%s523 + $0x460] sm:$0xff] %v804
                  %v806 = vld [vmem:[%s522 + $0x8d0] sm:$0xff]
                  %807 = vst [vmem:[%s523 + $0x468] sm:$0xff] %v806
                  %v808 = vld [vmem:[%s522 + $0x8e0] sm:$0xff]
                  %809 = vst [vmem:[%s523 + $0x470] sm:$0xff] %v808
                  %v810 = vld [vmem:[%s522 + $0x8f0] sm:$0xff]
                  %811 = vst [vmem:[%s523 + $0x478] sm:$0xff] %v810
                $region52: #{tps_stn_forward.9} parent=46 // loop_footer
                  %s521 = sadd.s32 1, %s517
                $region53: #{tps_stn_forward.9} parent=46 // loop_footer_branch
                  %516 = sbr.rel target = $region49
                $region54: #{tps_stn_forward.9} parent=46 // loop_exit
                  _
              $region47: #{tps_stn_forward.9} parent=31 // pred_fallthru
                _
              // Predicated region
              $region55: #{tps_stn_forward.9} parent=31 // pred_check
                _
              $region56: #{tps_stn_forward.9} parent=31 // pred_check_branch
                %813 = sbr.rel target = $region58
              $region57: #{tps_stn_forward.9} parent=31 // pred_region
                _
              $region58: #{tps_stn_forward.9} parent=31 // pred_fallthru
                _
            $region32: #{tps_stn_forward.9} parent=27 // pred_fallthru
              _
            // Predicated region
            $region33: #{tps_stn_forward.9} parent=27 // pred_check
              _
            $region34: #{tps_stn_forward.9} parent=27 // pred_check_branch
              %215 = sbr.rel target = $region36
            $region35: #{tps_stn_forward.9} parent=27 // pred_region
              %s217 = ssub.s32 256, 1
              loop: start=0, step=1, limit=1
              $region37: #{tps_stn_forward.9} parent=35 // loop_pre_header
                _
              $region38: #{tps_stn_forward.9} parent=35 // loop_header
                %s219 = sphi 0, %s223
                %p220 = scmp.ge.s32.totalorder %s219, 1
                %s224 = sphi %s209, %s209
                %s225 = sphi %s203, %s203
              $region39: #{tps_stn_forward.9} parent=35 // loop_header_branch
                %222 = sbr.rel (%p220) target = $region43
              $region40: #{tps_stn_forward.9} parent=35 // loop_body
                %v226 = vld [vmem:[%s224] sm:%s217]
                %227 = vst [vmem:[%s225] sm:%s217] %v226
                %v228 = vld [vmem:[%s224 + $0x10] sm:%s217]
                %229 = vst [vmem:[%s225 + $0x8] sm:%s217] %v228
                %v230 = vld [vmem:[%s224 + $0x20] sm:%s217]
                %231 = vst [vmem:[%s225 + $0x10] sm:%s217] %v230
                %v232 = vld [vmem:[%s224 + $0x30] sm:%s217]
                %233 = vst [vmem:[%s225 + $0x18] sm:%s217] %v232
                %v234 = vld [vmem:[%s224 + $0x40] sm:%s217]
                %235 = vst [vmem:[%s225 + $0x20] sm:%s217] %v234
                %v236 = vld [vmem:[%s224 + $0x50] sm:%s217]
                %237 = vst [vmem:[%s225 + $0x28] sm:%s217] %v236
                %v238 = vld [vmem:[%s224 + $0x60] sm:%s217]
                %239 = vst [vmem:[%s225 + $0x30] sm:%s217] %v238
                %v240 = vld [vmem:[%s224 + $0x70] sm:%s217]
                %241 = vst [vmem:[%s225 + $0x38] sm:%s217] %v240
                %v242 = vld [vmem:[%s224 + $0x80] sm:%s217]
                %243 = vst [vmem:[%s225 + $0x40] sm:%s217] %v242
                %v244 = vld [vmem:[%s224 + $0x90] sm:%s217]
                %245 = vst [vmem:[%s225 + $0x48] sm:%s217] %v244
                %v246 = vld [vmem:[%s224 + $0xa0] sm:%s217]
                %247 = vst [vmem:[%s225 + $0x50] sm:%s217] %v246
                %v248 = vld [vmem:[%s224 + $0xb0] sm:%s217]
                %249 = vst [vmem:[%s225 + $0x58] sm:%s217] %v248
                %v250 = vld [vmem:[%s224 + $0xc0] sm:%s217]
                %251 = vst [vmem:[%s225 + $0x60] sm:%s217] %v250
                %v252 = vld [vmem:[%s224 + $0xd0] sm:%s217]
                %253 = vst [vmem:[%s225 + $0x68] sm:%s217] %v252
                %v254 = vld [vmem:[%s224 + $0xe0] sm:%s217]
                %255 = vst [vmem:[%s225 + $0x70] sm:%s217] %v254
                %v256 = vld [vmem:[%s224 + $0xf0] sm:%s217]
                %257 = vst [vmem:[%s225 + $0x78] sm:%s217] %v256
                %v258 = vld [vmem:[%s224 + $0x100] sm:%s217]
                %259 = vst [vmem:[%s225 + $0x80] sm:%s217] %v258
                %v260 = vld [vmem:[%s224 + $0x110] sm:%s217]
                %261 = vst [vmem:[%s225 + $0x88] sm:%s217] %v260
                %v262 = vld [vmem:[%s224 + $0x120] sm:%s217]
                %263 = vst [vmem:[%s225 + $0x90] sm:%s217] %v262
                %v264 = vld [vmem:[%s224 + $0x130] sm:%s217]
                %265 = vst [vmem:[%s225 + $0x98] sm:%s217] %v264
                %v266 = vld [vmem:[%s224 + $0x140] sm:%s217]
                %267 = vst [vmem:[%s225 + $0xa0] sm:%s217] %v266
                %v268 = vld [vmem:[%s224 + $0x150] sm:%s217]
                %269 = vst [vmem:[%s225 + $0xa8] sm:%s217] %v268
                %v270 = vld [vmem:[%s224 + $0x160] sm:%s217]
                %271 = vst [vmem:[%s225 + $0xb0] sm:%s217] %v270
                %v272 = vld [vmem:[%s224 + $0x170] sm:%s217]
                %273 = vst [vmem:[%s225 + $0xb8] sm:%s217] %v272
                %v274 = vld [vmem:[%s224 + $0x180] sm:%s217]
                %275 = vst [vmem:[%s225 + $0xc0] sm:%s217] %v274
                %v276 = vld [vmem:[%s224 + $0x190] sm:%s217]
                %277 = vst [vmem:[%s225 + $0xc8] sm:%s217] %v276
                %v278 = vld [vmem:[%s224 + $0x1a0] sm:%s217]
                %279 = vst [vmem:[%s225 + $0xd0] sm:%s217] %v278
                %v280 = vld [vmem:[%s224 + $0x1b0] sm:%s217]
                %281 = vst [vmem:[%s225 + $0xd8] sm:%s217] %v280
                %v282 = vld [vmem:[%s224 + $0x1c0] sm:%s217]
                %283 = vst [vmem:[%s225 + $0xe0] sm:%s217] %v282
                %v284 = vld [vmem:[%s224 + $0x1d0] sm:%s217]
                %285 = vst [vmem:[%s225 + $0xe8] sm:%s217] %v284
                %v286 = vld [vmem:[%s224 + $0x1e0] sm:%s217]
                %287 = vst [vmem:[%s225 + $0xf0] sm:%s217] %v286
                %v288 = vld [vmem:[%s224 + $0x1f0] sm:%s217]
                %289 = vst [vmem:[%s225 + $0xf8] sm:%s217] %v288
                %v290 = vld [vmem:[%s224 + $0x200] sm:%s217]
                %291 = vst [vmem:[%s225 + $0x100] sm:%s217] %v290
                %v292 = vld [vmem:[%s224 + $0x210] sm:%s217]
                %293 = vst [vmem:[%s225 + $0x108] sm:%s217] %v292
                %v294 = vld [vmem:[%s224 + $0x220] sm:%s217]
                %295 = vst [vmem:[%s225 + $0x110] sm:%s217] %v294
                %v296 = vld [vmem:[%s224 + $0x230] sm:%s217]
                %297 = vst [vmem:[%s225 + $0x118] sm:%s217] %v296
                %v298 = vld [vmem:[%s224 + $0x240] sm:%s217]
                %299 = vst [vmem:[%s225 + $0x120] sm:%s217] %v298
                %v300 = vld [vmem:[%s224 + $0x250] sm:%s217]
                %301 = vst [vmem:[%s225 + $0x128] sm:%s217] %v300
                %v302 = vld [vmem:[%s224 + $0x260] sm:%s217]
                %303 = vst [vmem:[%s225 + $0x130] sm:%s217] %v302
                %v304 = vld [vmem:[%s224 + $0x270] sm:%s217]
                %305 = vst [vmem:[%s225 + $0x138] sm:%s217] %v304
                %v306 = vld [vmem:[%s224 + $0x280] sm:%s217]
                %307 = vst [vmem:[%s225 + $0x140] sm:%s217] %v306
                %v308 = vld [vmem:[%s224 + $0x290] sm:%s217]
                %309 = vst [vmem:[%s225 + $0x148] sm:%s217] %v308
                %v310 = vld [vmem:[%s224 + $0x2a0] sm:%s217]
                %311 = vst [vmem:[%s225 + $0x150] sm:%s217] %v310
                %v312 = vld [vmem:[%s224 + $0x2b0] sm:%s217]
                %313 = vst [vmem:[%s225 + $0x158] sm:%s217] %v312
                %v314 = vld [vmem:[%s224 + $0x2c0] sm:%s217]
                %315 = vst [vmem:[%s225 + $0x160] sm:%s217] %v314
                %v316 = vld [vmem:[%s224 + $0x2d0] sm:%s217]
                %317 = vst [vmem:[%s225 + $0x168] sm:%s217] %v316
                %v318 = vld [vmem:[%s224 + $0x2e0] sm:%s217]
                %319 = vst [vmem:[%s225 + $0x170] sm:%s217] %v318
                %v320 = vld [vmem:[%s224 + $0x2f0] sm:%s217]
                %321 = vst [vmem:[%s225 + $0x178] sm:%s217] %v320
                %v322 = vld [vmem:[%s224 + $0x300] sm:%s217]
                %323 = vst [vmem:[%s225 + $0x180] sm:%s217] %v322
                %v324 = vld [vmem:[%s224 + $0x310] sm:%s217]
                %325 = vst [vmem:[%s225 + $0x188] sm:%s217] %v324
                %v326 = vld [vmem:[%s224 + $0x320] sm:%s217]
                %327 = vst [vmem:[%s225 + $0x190] sm:%s217] %v326
                %v328 = vld [vmem:[%s224 + $0x330] sm:%s217]
                %329 = vst [vmem:[%s225 + $0x198] sm:%s217] %v328
                %v330 = vld [vmem:[%s224 + $0x340] sm:%s217]
                %331 = vst [vmem:[%s225 + $0x1a0] sm:%s217] %v330
                %v332 = vld [vmem:[%s224 + $0x350] sm:%s217]
                %333 = vst [vmem:[%s225 + $0x1a8] sm:%s217] %v332
                %v334 = vld [vmem:[%s224 + $0x360] sm:%s217]
                %335 = vst [vmem:[%s225 + $0x1b0] sm:%s217] %v334
                %v336 = vld [vmem:[%s224 + $0x370] sm:%s217]
                %337 = vst [vmem:[%s225 + $0x1b8] sm:%s217] %v336
                %v338 = vld [vmem:[%s224 + $0x380] sm:%s217]
                %339 = vst [vmem:[%s225 + $0x1c0] sm:%s217] %v338
                %v340 = vld [vmem:[%s224 + $0x390] sm:%s217]
                %341 = vst [vmem:[%s225 + $0x1c8] sm:%s217] %v340
                %v342 = vld [vmem:[%s224 + $0x3a0] sm:%s217]
                %343 = vst [vmem:[%s225 + $0x1d0] sm:%s217] %v342
                %v344 = vld [vmem:[%s224 + $0x3b0] sm:%s217]
                %345 = vst [vmem:[%s225 + $0x1d8] sm:%s217] %v344
                %v346 = vld [vmem:[%s224 + $0x3c0] sm:%s217]
                %347 = vst [vmem:[%s225 + $0x1e0] sm:%s217] %v346
                %v348 = vld [vmem:[%s224 + $0x3d0] sm:%s217]
                %349 = vst [vmem:[%s225 + $0x1e8] sm:%s217] %v348
                %v350 = vld [vmem:[%s224 + $0x3e0] sm:%s217]
                %351 = vst [vmem:[%s225 + $0x1f0] sm:%s217] %v350
                %v352 = vld [vmem:[%s224 + $0x3f0] sm:%s217]
                %353 = vst [vmem:[%s225 + $0x1f8] sm:%s217] %v352
                %v354 = vld [vmem:[%s224 + $0x400] sm:%s217]
                %355 = vst [vmem:[%s225 + $0x200] sm:%s217] %v354
                %v356 = vld [vmem:[%s224 + $0x410] sm:%s217]
                %357 = vst [vmem:[%s225 + $0x208] sm:%s217] %v356
                %v358 = vld [vmem:[%s224 + $0x420] sm:%s217]
                %359 = vst [vmem:[%s225 + $0x210] sm:%s217] %v358
                %v360 = vld [vmem:[%s224 + $0x430] sm:%s217]
                %361 = vst [vmem:[%s225 + $0x218] sm:%s217] %v360
                %v362 = vld [vmem:[%s224 + $0x440] sm:%s217]
                %363 = vst [vmem:[%s225 + $0x220] sm:%s217] %v362
                %v364 = vld [vmem:[%s224 + $0x450] sm:%s217]
                %365 = vst [vmem:[%s225 + $0x228] sm:%s217] %v364
                %v366 = vld [vmem:[%s224 + $0x460] sm:%s217]
                %367 = vst [vmem:[%s225 + $0x230] sm:%s217] %v366
                %v368 = vld [vmem:[%s224 + $0x470] sm:%s217]
                %369 = vst [vmem:[%s225 + $0x238] sm:%s217] %v368
                %v370 = vld [vmem:[%s224 + $0x480] sm:%s217]
                %371 = vst [vmem:[%s225 + $0x240] sm:%s217] %v370
                %v372 = vld [vmem:[%s224 + $0x490] sm:%s217]
                %373 = vst [vmem:[%s225 + $0x248] sm:%s217] %v372
                %v374 = vld [vmem:[%s224 + $0x4a0] sm:%s217]
                %375 = vst [vmem:[%s225 + $0x250] sm:%s217] %v374
                %v376 = vld [vmem:[%s224 + $0x4b0] sm:%s217]
                %377 = vst [vmem:[%s225 + $0x258] sm:%s217] %v376
                %v378 = vld [vmem:[%s224 + $0x4c0] sm:%s217]
                %379 = vst [vmem:[%s225 + $0x260] sm:%s217] %v378
                %v380 = vld [vmem:[%s224 + $0x4d0] sm:%s217]
                %381 = vst [vmem:[%s225 + $0x268] sm:%s217] %v380
                %v382 = vld [vmem:[%s224 + $0x4e0] sm:%s217]
                %383 = vst [vmem:[%s225 + $0x270] sm:%s217] %v382
                %v384 = vld [vmem:[%s224 + $0x4f0] sm:%s217]
                %385 = vst [vmem:[%s225 + $0x278] sm:%s217] %v384
                %v386 = vld [vmem:[%s224 + $0x500] sm:%s217]
                %387 = vst [vmem:[%s225 + $0x280] sm:%s217] %v386
                %v388 = vld [vmem:[%s224 + $0x510] sm:%s217]
                %389 = vst [vmem:[%s225 + $0x288] sm:%s217] %v388
                %v390 = vld [vmem:[%s224 + $0x520] sm:%s217]
                %391 = vst [vmem:[%s225 + $0x290] sm:%s217] %v390
                %v392 = vld [vmem:[%s224 + $0x530] sm:%s217]
                %393 = vst [vmem:[%s225 + $0x298] sm:%s217] %v392
                %v394 = vld [vmem:[%s224 + $0x540] sm:%s217]
                %395 = vst [vmem:[%s225 + $0x2a0] sm:%s217] %v394
                %v396 = vld [vmem:[%s224 + $0x550] sm:%s217]
                %397 = vst [vmem:[%s225 + $0x2a8] sm:%s217] %v396
                %v398 = vld [vmem:[%s224 + $0x560] sm:%s217]
                %399 = vst [vmem:[%s225 + $0x2b0] sm:%s217] %v398
                %v400 = vld [vmem:[%s224 + $0x570] sm:%s217]
                %401 = vst [vmem:[%s225 + $0x2b8] sm:%s217] %v400
                %v402 = vld [vmem:[%s224 + $0x580] sm:%s217]
                %403 = vst [vmem:[%s225 + $0x2c0] sm:%s217] %v402
                %v404 = vld [vmem:[%s224 + $0x590] sm:%s217]
                %405 = vst [vmem:[%s225 + $0x2c8] sm:%s217] %v404
                %v406 = vld [vmem:[%s224 + $0x5a0] sm:%s217]
                %407 = vst [vmem:[%s225 + $0x2d0] sm:%s217] %v406
                %v408 = vld [vmem:[%s224 + $0x5b0] sm:%s217]
                %409 = vst [vmem:[%s225 + $0x2d8] sm:%s217] %v408
                %v410 = vld [vmem:[%s224 + $0x5c0] sm:%s217]
                %411 = vst [vmem:[%s225 + $0x2e0] sm:%s217] %v410
                %v412 = vld [vmem:[%s224 + $0x5d0] sm:%s217]
                %413 = vst [vmem:[%s225 + $0x2e8] sm:%s217] %v412
                %v414 = vld [vmem:[%s224 + $0x5e0] sm:%s217]
                %415 = vst [vmem:[%s225 + $0x2f0] sm:%s217] %v414
                %v416 = vld [vmem:[%s224 + $0x5f0] sm:%s217]
                %417 = vst [vmem:[%s225 + $0x2f8] sm:%s217] %v416
                %v418 = vld [vmem:[%s224 + $0x600] sm:%s217]
                %419 = vst [vmem:[%s225 + $0x300] sm:%s217] %v418
                %v420 = vld [vmem:[%s224 + $0x610] sm:%s217]
                %421 = vst [vmem:[%s225 + $0x308] sm:%s217] %v420
                %v422 = vld [vmem:[%s224 + $0x620] sm:%s217]
                %423 = vst [vmem:[%s225 + $0x310] sm:%s217] %v422
                %v424 = vld [vmem:[%s224 + $0x630] sm:%s217]
                %425 = vst [vmem:[%s225 + $0x318] sm:%s217] %v424
                %v426 = vld [vmem:[%s224 + $0x640] sm:%s217]
                %427 = vst [vmem:[%s225 + $0x320] sm:%s217] %v426
                %v428 = vld [vmem:[%s224 + $0x650] sm:%s217]
                %429 = vst [vmem:[%s225 + $0x328] sm:%s217] %v428
                %v430 = vld [vmem:[%s224 + $0x660] sm:%s217]
                %431 = vst [vmem:[%s225 + $0x330] sm:%s217] %v430
                %v432 = vld [vmem:[%s224 + $0x670] sm:%s217]
                %433 = vst [vmem:[%s225 + $0x338] sm:%s217] %v432
                %v434 = vld [vmem:[%s224 + $0x680] sm:%s217]
                %435 = vst [vmem:[%s225 + $0x340] sm:%s217] %v434
                %v436 = vld [vmem:[%s224 + $0x690] sm:%s217]
                %437 = vst [vmem:[%s225 + $0x348] sm:%s217] %v436
                %v438 = vld [vmem:[%s224 + $0x6a0] sm:%s217]
                %439 = vst [vmem:[%s225 + $0x350] sm:%s217] %v438
                %v440 = vld [vmem:[%s224 + $0x6b0] sm:%s217]
                %441 = vst [vmem:[%s225 + $0x358] sm:%s217] %v440
                %v442 = vld [vmem:[%s224 + $0x6c0] sm:%s217]
                %443 = vst [vmem:[%s225 + $0x360] sm:%s217] %v442
                %v444 = vld [vmem:[%s224 + $0x6d0] sm:%s217]
                %445 = vst [vmem:[%s225 + $0x368] sm:%s217] %v444
                %v446 = vld [vmem:[%s224 + $0x6e0] sm:%s217]
                %447 = vst [vmem:[%s225 + $0x370] sm:%s217] %v446
                %v448 = vld [vmem:[%s224 + $0x6f0] sm:%s217]
                %449 = vst [vmem:[%s225 + $0x378] sm:%s217] %v448
                %v450 = vld [vmem:[%s224 + $0x700] sm:%s217]
                %451 = vst [vmem:[%s225 + $0x380] sm:%s217] %v450
                %v452 = vld [vmem:[%s224 + $0x710] sm:%s217]
                %453 = vst [vmem:[%s225 + $0x388] sm:%s217] %v452
                %v454 = vld [vmem:[%s224 + $0x720] sm:%s217]
                %455 = vst [vmem:[%s225 + $0x390] sm:%s217] %v454
                %v456 = vld [vmem:[%s224 + $0x730] sm:%s217]
                %457 = vst [vmem:[%s225 + $0x398] sm:%s217] %v456
                %v458 = vld [vmem:[%s224 + $0x740] sm:%s217]
                %459 = vst [vmem:[%s225 + $0x3a0] sm:%s217] %v458
                %v460 = vld [vmem:[%s224 + $0x750] sm:%s217]
                %461 = vst [vmem:[%s225 + $0x3a8] sm:%s217] %v460
                %v462 = vld [vmem:[%s224 + $0x760] sm:%s217]
                %463 = vst [vmem:[%s225 + $0x3b0] sm:%s217] %v462
                %v464 = vld [vmem:[%s224 + $0x770] sm:%s217]
                %465 = vst [vmem:[%s225 + $0x3b8] sm:%s217] %v464
                %v466 = vld [vmem:[%s224 + $0x780] sm:%s217]
                %467 = vst [vmem:[%s225 + $0x3c0] sm:%s217] %v466
                %v468 = vld [vmem:[%s224 + $0x790] sm:%s217]
                %469 = vst [vmem:[%s225 + $0x3c8] sm:%s217] %v468
                %v470 = vld [vmem:[%s224 + $0x7a0] sm:%s217]
                %471 = vst [vmem:[%s225 + $0x3d0] sm:%s217] %v470
                %v472 = vld [vmem:[%s224 + $0x7b0] sm:%s217]
                %473 = vst [vmem:[%s225 + $0x3d8] sm:%s217] %v472
                %v474 = vld [vmem:[%s224 + $0x7c0] sm:%s217]
                %475 = vst [vmem:[%s225 + $0x3e0] sm:%s217] %v474
                %v476 = vld [vmem:[%s224 + $0x7d0] sm:%s217]
                %477 = vst [vmem:[%s225 + $0x3e8] sm:%s217] %v476
                %v478 = vld [vmem:[%s224 + $0x7e0] sm:%s217]
                %479 = vst [vmem:[%s225 + $0x3f0] sm:%s217] %v478
                %v480 = vld [vmem:[%s224 + $0x7f0] sm:%s217]
                %481 = vst [vmem:[%s225 + $0x3f8] sm:%s217] %v480
                %v482 = vld [vmem:[%s224 + $0x800] sm:%s217]
                %483 = vst [vmem:[%s225 + $0x400] sm:%s217] %v482
                %v484 = vld [vmem:[%s224 + $0x810] sm:%s217]
                %485 = vst [vmem:[%s225 + $0x408] sm:%s217] %v484
                %v486 = vld [vmem:[%s224 + $0x820] sm:%s217]
                %487 = vst [vmem:[%s225 + $0x410] sm:%s217] %v486
                %v488 = vld [vmem:[%s224 + $0x830] sm:%s217]
                %489 = vst [vmem:[%s225 + $0x418] sm:%s217] %v488
                %v490 = vld [vmem:[%s224 + $0x840] sm:%s217]
                %491 = vst [vmem:[%s225 + $0x420] sm:%s217] %v490
                %v492 = vld [vmem:[%s224 + $0x850] sm:%s217]
                %493 = vst [vmem:[%s225 + $0x428] sm:%s217] %v492
                %v494 = vld [vmem:[%s224 + $0x860] sm:%s217]
                %495 = vst [vmem:[%s225 + $0x430] sm:%s217] %v494
                %v496 = vld [vmem:[%s224 + $0x870] sm:%s217]
                %497 = vst [vmem:[%s225 + $0x438] sm:%s217] %v496
                %v498 = vld [vmem:[%s224 + $0x880] sm:%s217]
                %499 = vst [vmem:[%s225 + $0x440] sm:%s217] %v498
                %v500 = vld [vmem:[%s224 + $0x890] sm:%s217]
                %501 = vst [vmem:[%s225 + $0x448] sm:%s217] %v500
                %v502 = vld [vmem:[%s224 + $0x8a0] sm:%s217]
                %503 = vst [vmem:[%s225 + $0x450] sm:%s217] %v502
                %v504 = vld [vmem:[%s224 + $0x8b0] sm:%s217]
                %505 = vst [vmem:[%s225 + $0x458] sm:%s217] %v504
                %v506 = vld [vmem:[%s224 + $0x8c0] sm:%s217]
                %507 = vst [vmem:[%s225 + $0x460] sm:%s217] %v506
                %v508 = vld [vmem:[%s224 + $0x8d0] sm:%s217]
                %509 = vst [vmem:[%s225 + $0x468] sm:%s217] %v508
                %v510 = vld [vmem:[%s224 + $0x8e0] sm:%s217]
                %511 = vst [vmem:[%s225 + $0x470] sm:%s217] %v510
                %v512 = vld [vmem:[%s224 + $0x8f0] sm:%s217]
                %513 = vst [vmem:[%s225 + $0x478] sm:%s217] %v512
              $region41: #{tps_stn_forward.9} parent=35 // loop_footer
                %s223 = sadd.s32 1, %s219
              $region42: #{tps_stn_forward.9} parent=35 // loop_footer_branch
                %218 = sbr.rel target = $region38
              $region43: #{tps_stn_forward.9} parent=35 // loop_exit
                _
            $region36: #{tps_stn_forward.9} parent=27 // pred_fallthru
              _
          $region28: #{tps_stn_forward.9} parent=23 // pred_fallthru
            _
          %814 = vnop
        $region24: #{tps_stn_forward.9} parent=15 // pred_fallthru
          _
        // Predicated region
        $region59: #{tps_stn_forward.9} parent=15 // pred_check
          %p815 = pneg %p105
        $region60: #{tps_stn_forward.9} parent=15 // pred_check_branch
          %817 = sbr.rel (%p815) target = $region62
        $region61: #{tps_stn_forward.9} parent=15 // pred_region
          %s818 = smul.u32 2, %s18
          %p819 = scmp.lt.s32.totalorder %s818, 3
          %s820 = scalar_select %p819, %s818, 3
          %s821 = scalar_lea.vmem %s2, %s820
          %s822 = smul.u32 2, %s18
        $region62: #{tps_stn_forward.9} parent=15 // pred_fallthru
          _
        // Predicated region
        $region63: #{tps_stn_forward.9} parent=15 // pred_check
          %p823 = pneg %p131
        $region64: #{tps_stn_forward.9} parent=15 // pred_check_branch
          %825 = sbr.rel (%p823) target = $region66
        $region65: #{tps_stn_forward.9} parent=15 // pred_region
          %s826 = smul.u32 2, %s18
          %p827 = scmp.lt.s32.totalorder %s826, 3
          %s828 = scalar_select %p827, %s826, 3
          %s829 = scalar_lea.vmem %s3, %s828
          %s830 = smul.u32 2, %s18
        $region66: #{tps_stn_forward.9} parent=15 // pred_fallthru
          _
      $region16: #{tps_stn_forward.9} parent=5 // pred_fallthru
        _
      %p831 = scmp.le.s32.totalorder 1, %s10
      %p832 = scmp.lt.s32.totalorder %s10, 5
      %p833 = pnand %p831, %p832
      %p834 = pneg %p833
      // Predicated region
      $region67: #{tps_stn_forward.9} parent=5 // pred_check
        _
      $region68: #{tps_stn_forward.9} parent=5 // pred_check_branch
        %836 = sbr.rel (%p833) target = $region70
      $region69: #{tps_stn_forward.9} parent=5 // pred_region
        %s837 = ssub.s32 %s10, 1
        %s838 = sand.u32 %s72, 1
        %s839 = sand.u32 %s72, 1
        %s840 = smul.addr %s839, 1152
        %s841 = scalar_lea.vmem [#allocation3], %s840
        // Predicated region
        $region71: #{tps_stn_forward.9} parent=69 // pred_check
          %p842 = pneg %p85
        $region72: #{tps_stn_forward.9} parent=69 // pred_check_branch
          %844 = sbr.rel (%p842) target = $region74
        $region73: #{tps_stn_forward.9} parent=69 // pred_region
          _
        $region74: #{tps_stn_forward.9} parent=69 // pred_fallthru
          _
        %s845 = smul.u32 9, %s22
        %p846 = scmp.lt.s32.totalorder %s20, 0
        %s847 = scalar_select %p846, %s20, 0
        %p848 = scmp.lt.s32.totalorder %s845, 17
        %s849 = scalar_select %p848, %s845, 17
        %s850 = smul.addr %s847, 18
        %s851 = sadd.s32 %s849, %s850
        %s852 = smul.addr %s851, 4
        %s853 = scalar_lea.vmem %s0, %s852
        %p854 = pneg %p57
        %p855 = pneg %p54
        %s856 = sand.u32 %s72, 1
        %s857 = sand.u32 %s72, 1
        %s858 = smul.addr %s857, 1152
        %s859 = scalar_lea.vmem [#allocation3], %s858
        %p860 = pneg %p85
        %p861 = pneg %p82
        %s862 = smul.u32 2, %s21
        %p863 = scmp.lt.s32.totalorder %s862, 3
        %s864 = scalar_select %p863, %s862, 3
        %s865 = scalar_lea.vmem %s2, %s864
        %p866 = pneg %p111
        %p867 = pneg %p108
        %s868 = smul.u32 2, %s21
        %p869 = scmp.lt.s32.totalorder %s868, 3
        %s870 = scalar_select %p869, %s868, 3
        %s871 = scalar_lea.vmem %s3, %s870
        %p872 = pneg %p137
        %p873 = pneg %p134
        %p874 = pneg %p165
        %p875 = pneg %p162
        %s876 = smul.u32 2, %s21
        %p877 = scmp.lt.s32.totalorder %s20, 0
        %s878 = scalar_select %p877, %s20, 0
        %p879 = scmp.lt.s32.totalorder %s876, 3
        %s880 = scalar_select %p879, %s876, 3
        %s881 = smul.addr %s878, 4
        %s882 = sadd.s32 %s880, %s881
        %s883 = smul.addr %s882, 8
        %s884 = scalar_lea.vmem %s4, %s883
        %s885 = smul.u32 9, %s22
        %p886 = scmp.lt.s32.totalorder %s20, 0
        %s887 = scalar_select %p886, %s20, 0
        %p888 = scmp.lt.s32.totalorder %s885, 17
        %s889 = scalar_select %p888, %s885, 17
        %s890 = smul.addr %s887, 18
        %s891 = sadd.s32 %s889, %s890
        %s892 = smul.addr %s891, 4
        %s893 = scalar_lea.vmem %s0, %s892
        %s894 = smul.u32 9, %s22
        %s895 = smul.u32 144, %s22
        %s896 = smul.u32 2, %s21
        %s897 = smul.u32 2, %s21
        %p898 = scmp.lt.s32.totalorder %s897, 3
        %s899 = scalar_select %p898, %s897, 3
        %s900 = scalar_lea.vmem %s2, %s899
        %s901 = smul.u32 2, %s21
        %s902 = smul.u32 2, %s21
        %p903 = scmp.lt.s32.totalorder %s902, 3
        %s904 = scalar_select %p903, %s902, 3
        %s905 = scalar_lea.vmem %s3, %s904
        %s906 = smul.u32 2, %s21
        %s907 = smul.u32 2, %s21
        %p908 = scmp.lt.s32.totalorder %s20, 0
        %s909 = scalar_select %p908, %s20, 0
        %p910 = scmp.lt.s32.totalorder %s907, 3
        %s911 = scalar_select %p910, %s907, 3
        %s912 = smul.addr %s909, 4
        %s913 = sadd.s32 %s911, %s912
        %s914 = smul.addr %s913, 8
        %s915 = scalar_lea.vmem %s4, %s914
        %s916 = smul.u32 2, %s21
        %p918 = scmp.eq.s32.totalorder %s22, 0
        // Predicated region
        $region75: #{tps_stn_forward.9} parent=69 // pred_check
          %p919 = pneg %p918
        $region76: #{tps_stn_forward.9} parent=69 // pred_check_branch
          %921 = sbr.rel (%p919) target = $region78
        $region77: #{tps_stn_forward.9} parent=69 // pred_region
          %922 = vst [vmem:[#allocation2] sm:$0xff] 0.0
          %923 = vst [vmem:[#allocation2 + $0x8] sm:$0xff] 0.0
        $region78: #{tps_stn_forward.9} parent=69 // pred_fallthru
          _
        %v924 = vld [vmem:[#allocation2] sm:$0xff]
        %v925 = vld [vmem:[#allocation2 + $0x8] sm:$0xff]
        %v926 = vld [vmem:[%s893] sm:$0xff]
        %v927 = vld [vmem:[%s893 + $0x8] sm:$0xff]
        %v928 = vld [vmem:[%s893 + $0x10] sm:$0xff]
        %v929 = vld [vmem:[%s893 + $0x18] sm:$0xff]
        %v930 = vld [vmem:[%s893 + $0x20] sm:$0xf]
        %v931 = vld [vmem:[%s841] sm:$0xff]
        %v932 = vld [vmem:[%s841 + $0x8] sm:$0xff]
        %v933 = vld [vmem:[%s841 + $0x10] sm:$0xff]
        %v934 = vld [vmem:[%s841 + $0x18] sm:$0xff]
        %v935 = vld [vmem:[%s841 + $0x20] sm:$0xff]
        %v936 = vld [vmem:[%s841 + $0x28] sm:$0xff]
        %v937 = vld [vmem:[%s841 + $0x30] sm:$0xff]
        %v938 = vld [vmem:[%s841 + $0x38] sm:$0xff]
        %v939 = vld [vmem:[%s841 + $0x40] sm:$0xff]
        %v940 = vld [vmem:[%s841 + $0x48] sm:$0xff]
        %v941 = vld [vmem:[%s841 + $0x50] sm:$0xff]
        %v942 = vld [vmem:[%s841 + $0x58] sm:$0xff]
        %v943 = vld [vmem:[%s841 + $0x60] sm:$0xff]
        %v944 = vld [vmem:[%s841 + $0x68] sm:$0xff]
        %v945 = vld [vmem:[%s841 + $0x70] sm:$0xff]
        %v946 = vld [vmem:[%s841 + $0x78] sm:$0xff]
        %v947 = vld [vmem:[%s841 + $0x80] sm:$0xff]
        %v948 = vld [vmem:[%s841 + $0x88] sm:$0xff]
        %v949 = vld [vmem:[%s841 + $0x90] sm:$0xff]
        %v950 = vld [vmem:[%s841 + $0x98] sm:$0xff]
        %v951 = vld [vmem:[%s841 + $0xa0] sm:$0xff]
        %v952 = vld [vmem:[%s841 + $0xa8] sm:$0xff]
        %v953 = vld [vmem:[%s841 + $0xb0] sm:$0xff]
        %v954 = vld [vmem:[%s841 + $0xb8] sm:$0xff]
        %v955 = vld [vmem:[%s841 + $0xc0] sm:$0xff]
        %v956 = vld [vmem:[%s841 + $0xc8] sm:$0xff]
        %v957 = vld [vmem:[%s841 + $0xd0] sm:$0xff]
        %v958 = vld [vmem:[%s841 + $0xd8] sm:$0xff]
        %v959 = vld [vmem:[%s841 + $0xe0] sm:$0xff]
        %v960 = vld [vmem:[%s841 + $0xe8] sm:$0xff]
        %v961 = vld [vmem:[%s841 + $0xf0] sm:$0xff]
        %v962 = vld [vmem:[%s841 + $0xf8] sm:$0xff]
        %v963 = vld [vmem:[%s841 + $0x100] sm:$0xff]
        %v964 = vld [vmem:[%s841 + $0x108] sm:$0xff]
        %v965 = vld [vmem:[%s841 + $0x110] sm:$0xff]
        %v966 = vld [vmem:[%s841 + $0x118] sm:$0xff]
        %v967 = vld [vmem:[%s841 + $0x120] sm:$0xff]
        %v968 = vld [vmem:[%s841 + $0x128] sm:$0xff]
        %v969 = vld [vmem:[%s841 + $0x130] sm:$0xff]
        %v970 = vld [vmem:[%s841 + $0x138] sm:$0xff]
        %v971 = vld [vmem:[%s841 + $0x140] sm:$0xff]
        %v972 = vld [vmem:[%s841 + $0x148] sm:$0xff]
        %v973 = vld [vmem:[%s841 + $0x150] sm:$0xff]
        %v974 = vld [vmem:[%s841 + $0x158] sm:$0xff]
        %v975 = vld [vmem:[%s841 + $0x160] sm:$0xff]
        %v976 = vld [vmem:[%s841 + $0x168] sm:$0xff]
        %v977 = vld [vmem:[%s841 + $0x170] sm:$0xff]
        %v978 = vld [vmem:[%s841 + $0x178] sm:$0xff]
        %v979 = vld [vmem:[%s841 + $0x180] sm:$0xff]
        %v980 = vld [vmem:[%s841 + $0x188] sm:$0xff]
        %v981 = vld [vmem:[%s841 + $0x190] sm:$0xff]
        %v982 = vld [vmem:[%s841 + $0x198] sm:$0xff]
        %v983 = vld [vmem:[%s841 + $0x1a0] sm:$0xff]
        %v984 = vld [vmem:[%s841 + $0x1a8] sm:$0xff]
        %v985 = vld [vmem:[%s841 + $0x1b0] sm:$0xff]
        %v986 = vld [vmem:[%s841 + $0x1b8] sm:$0xff]
        %v987 = vld [vmem:[%s841 + $0x1c0] sm:$0xff]
        %v988 = vld [vmem:[%s841 + $0x1c8] sm:$0xff]
        %v989 = vld [vmem:[%s841 + $0x1d0] sm:$0xff]
        %v990 = vld [vmem:[%s841 + $0x1d8] sm:$0xff]
        %v991 = vld [vmem:[%s841 + $0x1e0] sm:$0xff]
        %v992 = vld [vmem:[%s841 + $0x1e8] sm:$0xff]
        %v993 = vld [vmem:[%s841 + $0x1f0] sm:$0xff]
        %v994 = vld [vmem:[%s841 + $0x1f8] sm:$0xff]
        %v995 = vld [vmem:[%s841 + $0x200] sm:$0xff]
        %v996 = vld [vmem:[%s841 + $0x208] sm:$0xff]
        %v997 = vld [vmem:[%s841 + $0x210] sm:$0xff]
        %v998 = vld [vmem:[%s841 + $0x218] sm:$0xff]
        %v999 = vld [vmem:[%s841 + $0x220] sm:$0xff]
        %v1000 = vld [vmem:[%s841 + $0x228] sm:$0xff]
        %v1001 = vld [vmem:[%s841 + $0x230] sm:$0xff]
        %v1002 = vld [vmem:[%s841 + $0x238] sm:$0xff]
        %v1003 = vld [vmem:[%s841 + $0x240] sm:$0xff]
        %v1004 = vld [vmem:[%s841 + $0x248] sm:$0xff]
        %v1005 = vld [vmem:[%s841 + $0x250] sm:$0xff]
        %v1006 = vld [vmem:[%s841 + $0x258] sm:$0xff]
        %v1007 = vld [vmem:[%s841 + $0x260] sm:$0xff]
        %v1008 = vld [vmem:[%s841 + $0x268] sm:$0xff]
        %v1009 = vld [vmem:[%s841 + $0x270] sm:$0xff]
        %v1010 = vld [vmem:[%s841 + $0x278] sm:$0xff]
        %v1011 = vld [vmem:[%s841 + $0x280] sm:$0xff]
        %v1012 = vld [vmem:[%s841 + $0x288] sm:$0xff]
        %v1013 = vld [vmem:[%s841 + $0x290] sm:$0xff]
        %v1014 = vld [vmem:[%s841 + $0x298] sm:$0xff]
        %v1015 = vld [vmem:[%s841 + $0x2a0] sm:$0xff]
        %v1016 = vld [vmem:[%s841 + $0x2a8] sm:$0xff]
        %v1017 = vld [vmem:[%s841 + $0x2b0] sm:$0xff]
        %v1018 = vld [vmem:[%s841 + $0x2b8] sm:$0xff]
        %v1019 = vld [vmem:[%s841 + $0x2c0] sm:$0xff]
        %v1020 = vld [vmem:[%s841 + $0x2c8] sm:$0xff]
        %v1021 = vld [vmem:[%s841 + $0x2d0] sm:$0xff]
        %v1022 = vld [vmem:[%s841 + $0x2d8] sm:$0xff]
        %v1023 = vld [vmem:[%s841 + $0x2e0] sm:$0xff]
        %v1024 = vld [vmem:[%s841 + $0x2e8] sm:$0xff]
        %v1025 = vld [vmem:[%s841 + $0x2f0] sm:$0xff]
        %v1026 = vld [vmem:[%s841 + $0x2f8] sm:$0xff]
        %v1027 = vld [vmem:[%s841 + $0x300] sm:$0xff]
        %v1028 = vld [vmem:[%s841 + $0x308] sm:$0xff]
        %v1029 = vld [vmem:[%s841 + $0x310] sm:$0xff]
        %v1030 = vld [vmem:[%s841 + $0x318] sm:$0xff]
        %v1031 = vld [vmem:[%s841 + $0x320] sm:$0xff]
        %v1032 = vld [vmem:[%s841 + $0x328] sm:$0xff]
        %v1033 = vld [vmem:[%s841 + $0x330] sm:$0xff]
        %v1034 = vld [vmem:[%s841 + $0x338] sm:$0xff]
        %v1035 = vld [vmem:[%s841 + $0x340] sm:$0xff]
        %v1036 = vld [vmem:[%s841 + $0x348] sm:$0xff]
        %v1037 = vld [vmem:[%s841 + $0x350] sm:$0xff]
        %v1038 = vld [vmem:[%s841 + $0x358] sm:$0xff]
        %v1039 = vld [vmem:[%s841 + $0x360] sm:$0xff]
        %v1040 = vld [vmem:[%s841 + $0x368] sm:$0xff]
        %v1041 = vld [vmem:[%s841 + $0x370] sm:$0xff]
        %v1042 = vld [vmem:[%s841 + $0x378] sm:$0xff]
        %v1043 = vld [vmem:[%s841 + $0x380] sm:$0xff]
        %v1044 = vld [vmem:[%s841 + $0x388] sm:$0xff]
        %v1045 = vld [vmem:[%s841 + $0x390] sm:$0xff]
        %v1046 = vld [vmem:[%s841 + $0x398] sm:$0xff]
        %v1047 = vld [vmem:[%s841 + $0x3a0] sm:$0xff]
        %v1048 = vld [vmem:[%s841 + $0x3a8] sm:$0xff]
        %v1049 = vld [vmem:[%s841 + $0x3b0] sm:$0xff]
        %v1050 = vld [vmem:[%s841 + $0x3b8] sm:$0xff]
        %v1051 = vld [vmem:[%s841 + $0x3c0] sm:$0xff]
        %v1052 = vld [vmem:[%s841 + $0x3c8] sm:$0xff]
        %v1053 = vld [vmem:[%s841 + $0x3d0] sm:$0xff]
        %v1054 = vld [vmem:[%s841 + $0x3d8] sm:$0xff]
        %v1055 = vld [vmem:[%s841 + $0x3e0] sm:$0xff]
        %v1056 = vld [vmem:[%s841 + $0x3e8] sm:$0xff]
        %v1057 = vld [vmem:[%s841 + $0x3f0] sm:$0xff]
        %v1058 = vld [vmem:[%s841 + $0x3f8] sm:$0xff]
        %v1059 = vld [vmem:[%s841 + $0x400] sm:$0xff]
        %v1060 = vld [vmem:[%s841 + $0x408] sm:$0xff]
        %v1061 = vld [vmem:[%s841 + $0x410] sm:$0xff]
        %v1062 = vld [vmem:[%s841 + $0x418] sm:$0xff]
        %v1063 = vld [vmem:[%s841 + $0x420] sm:$0xff]
        %v1064 = vld [vmem:[%s841 + $0x428] sm:$0xff]
        %v1065 = vld [vmem:[%s841 + $0x430] sm:$0xff]
        %v1066 = vld [vmem:[%s841 + $0x438] sm:$0xff]
        %v1067 = vld [vmem:[%s841 + $0x440] sm:$0xff]
        %v1068 = vld [vmem:[%s841 + $0x448] sm:$0xff]
        %v1069 = vld [vmem:[%s841 + $0x450] sm:$0xff]
        %v1070 = vld [vmem:[%s841 + $0x458] sm:$0xff]
        %v1071 = vld [vmem:[%s841 + $0x460] sm:$0xff]
        %v1072 = vld [vmem:[%s841 + $0x468] sm:$0xff]
        %v1073 = vld [vmem:[%s841 + $0x470] sm:$0xff]
        %v1074 = vld [vmem:[%s841 + $0x478] sm:$0xff]
        %v1080 = vunpack.c.l.b16 %v926
        %v1081 = vunpack.c.h.b16 %v926
        %v1082 = vunpack.c.l.b16 %v927
        %v1083 = vunpack.c.h.b16 %v927
        %v1084 = vunpack.c.l.b16 %v928
        %v1085 = vunpack.c.h.b16 %v928
        %v1086 = vunpack.c.l.b16 %v929
        %v1087 = vunpack.c.h.b16 %v929
        %v1088 = vunpack.c.l.b16 %v930
        %v1089 = vpack.c.b16 %v1080, %v1080
        %v1090 = vpack.c.b16 %v1081, %v1081
        %v1091 = vpack.c.b16 %v1082, %v1082
        %v1092 = vpack.c.b16 %v1083, %v1083
        %v1093 = vpack.c.b16 %v1084, %v1084
        %v1094 = vpack.c.b16 %v1085, %v1085
        %v1095 = vpack.c.b16 %v1086, %v1086
        %v1096 = vpack.c.b16 %v1087, %v1087
        %v1097 = vpack.c.b16 %v1088, %v1088
        %v1251 = vunpack.c.l.b16 %v931
        %v1252 = vunpack.c.h.b16 %v931
        %v1253 = vunpack.c.l.b16 %v932
        %v1254 = vunpack.c.h.b16 %v932
        %v1255 = vunpack.c.l.b16 %v933
        %v1256 = vunpack.c.h.b16 %v933
        %v1257 = vunpack.c.l.b16 %v934
        %v1258 = vunpack.c.h.b16 %v934
        %v1259 = vunpack.c.l.b16 %v935
        %v1260 = vunpack.c.h.b16 %v935
        %v1261 = vunpack.c.l.b16 %v936
        %v1262 = vunpack.c.h.b16 %v936
        %v1263 = vunpack.c.l.b16 %v937
        %v1264 = vunpack.c.h.b16 %v937
        %v1265 = vunpack.c.l.b16 %v938
        %v1266 = vunpack.c.h.b16 %v938
        %v1267 = vunpack.c.l.b16 %v939
        %v1268 = vunpack.c.h.b16 %v939
        %v1269 = vunpack.c.l.b16 %v940
        %v1270 = vunpack.c.h.b16 %v940
        %v1271 = vunpack.c.l.b16 %v941
        %v1272 = vunpack.c.h.b16 %v941
        %v1273 = vunpack.c.l.b16 %v942
        %v1274 = vunpack.c.h.b16 %v942
        %v1275 = vunpack.c.l.b16 %v943
        %v1276 = vunpack.c.h.b16 %v943
        %v1277 = vunpack.c.l.b16 %v944
        %v1278 = vunpack.c.h.b16 %v944
        %v1279 = vunpack.c.l.b16 %v945
        %v1280 = vunpack.c.h.b16 %v945
        %v1281 = vunpack.c.l.b16 %v946
        %v1282 = vunpack.c.h.b16 %v946
        %v1283 = vunpack.c.l.b16 %v947
        %v1284 = vunpack.c.h.b16 %v947
        %v1285 = vunpack.c.l.b16 %v948
        %v1286 = vunpack.c.h.b16 %v948
        %v1287 = vunpack.c.l.b16 %v949
        %v1288 = vunpack.c.h.b16 %v949
        %v1289 = vunpack.c.l.b16 %v950
        %v1290 = vunpack.c.h.b16 %v950
        %v1291 = vunpack.c.l.b16 %v951
        %v1292 = vunpack.c.h.b16 %v951
        %v1293 = vunpack.c.l.b16 %v952
        %v1294 = vunpack.c.h.b16 %v952
        %v1295 = vunpack.c.l.b16 %v953
        %v1296 = vunpack.c.h.b16 %v953
        %v1297 = vunpack.c.l.b16 %v954
        %v1298 = vunpack.c.h.b16 %v954
        %v1299 = vunpack.c.l.b16 %v955
        %v1300 = vunpack.c.h.b16 %v955
        %v1301 = vunpack.c.l.b16 %v956
        %v1302 = vunpack.c.h.b16 %v956
        %v1303 = vunpack.c.l.b16 %v957
        %v1304 = vunpack.c.h.b16 %v957
        %v1305 = vunpack.c.l.b16 %v958
        %v1306 = vunpack.c.h.b16 %v958
        %v1307 = vunpack.c.l.b16 %v959
        %v1308 = vunpack.c.h.b16 %v959
        %v1309 = vunpack.c.l.b16 %v960
        %v1310 = vunpack.c.h.b16 %v960
        %v1311 = vunpack.c.l.b16 %v961
        %v1312 = vunpack.c.h.b16 %v961
        %v1313 = vunpack.c.l.b16 %v962
        %v1314 = vunpack.c.h.b16 %v962
        %v1315 = vunpack.c.l.b16 %v963
        %v1316 = vunpack.c.h.b16 %v963
        %v1317 = vunpack.c.l.b16 %v964
        %v1318 = vunpack.c.h.b16 %v964
        %v1319 = vunpack.c.l.b16 %v965
        %v1320 = vunpack.c.h.b16 %v965
        %v1321 = vunpack.c.l.b16 %v966
        %v1322 = vunpack.c.h.b16 %v966
        %v1323 = vunpack.c.l.b16 %v967
        %v1324 = vunpack.c.h.b16 %v967
        %v1325 = vunpack.c.l.b16 %v968
        %v1326 = vunpack.c.h.b16 %v968
        %v1327 = vunpack.c.l.b16 %v969
        %v1328 = vunpack.c.h.b16 %v969
        %v1329 = vunpack.c.l.b16 %v970
        %v1330 = vunpack.c.h.b16 %v970
        %v1331 = vunpack.c.l.b16 %v971
        %v1332 = vunpack.c.h.b16 %v971
        %v1333 = vunpack.c.l.b16 %v972
        %v1334 = vunpack.c.h.b16 %v972
        %v1335 = vunpack.c.l.b16 %v973
        %v1336 = vunpack.c.h.b16 %v973
        %v1337 = vunpack.c.l.b16 %v974
        %v1338 = vunpack.c.h.b16 %v974
        %v1339 = vunpack.c.l.b16 %v975
        %v1340 = vunpack.c.h.b16 %v975
        %v1341 = vunpack.c.l.b16 %v976
        %v1342 = vunpack.c.h.b16 %v976
        %v1343 = vunpack.c.l.b16 %v977
        %v1344 = vunpack.c.h.b16 %v977
        %v1345 = vunpack.c.l.b16 %v978
        %v1346 = vunpack.c.h.b16 %v978
        %v1347 = vunpack.c.l.b16 %v979
        %v1348 = vunpack.c.h.b16 %v979
        %v1349 = vunpack.c.l.b16 %v980
        %v1350 = vunpack.c.h.b16 %v980
        %v1351 = vunpack.c.l.b16 %v981
        %v1352 = vunpack.c.h.b16 %v981
        %v1353 = vunpack.c.l.b16 %v982
        %v1354 = vunpack.c.h.b16 %v982
        %v1355 = vunpack.c.l.b16 %v983
        %v1356 = vunpack.c.h.b16 %v983
        %v1357 = vunpack.c.l.b16 %v984
        %v1358 = vunpack.c.h.b16 %v984
        %v1359 = vunpack.c.l.b16 %v985
        %v1360 = vunpack.c.h.b16 %v985
        %v1361 = vunpack.c.l.b16 %v986
        %v1362 = vunpack.c.h.b16 %v986
        %v1363 = vunpack.c.l.b16 %v987
        %v1364 = vunpack.c.h.b16 %v987
        %v1365 = vunpack.c.l.b16 %v988
        %v1366 = vunpack.c.h.b16 %v988
        %v1367 = vunpack.c.l.b16 %v989
        %v1368 = vunpack.c.h.b16 %v989
        %v1369 = vunpack.c.l.b16 %v990
        %v1370 = vunpack.c.h.b16 %v990
        %v1371 = vunpack.c.l.b16 %v991
        %v1372 = vunpack.c.h.b16 %v991
        %v1373 = vunpack.c.l.b16 %v992
        %v1374 = vunpack.c.h.b16 %v992
        %v1375 = vunpack.c.l.b16 %v993
        %v1376 = vunpack.c.h.b16 %v993
        %v1377 = vunpack.c.l.b16 %v994
        %v1378 = vunpack.c.h.b16 %v994
        %v1379 = vunpack.c.l.b16 %v995
        %v1380 = vunpack.c.h.b16 %v995
        %v1381 = vunpack.c.l.b16 %v996
        %v1382 = vunpack.c.h.b16 %v996
        %v1383 = vunpack.c.l.b16 %v997
        %v1384 = vunpack.c.h.b16 %v997
        %v1385 = vunpack.c.l.b16 %v998
        %v1386 = vunpack.c.h.b16 %v998
        %v1387 = vunpack.c.l.b16 %v999
        %v1388 = vunpack.c.h.b16 %v999
        %v1389 = vunpack.c.l.b16 %v1000
        %v1390 = vunpack.c.h.b16 %v1000
        %v1391 = vunpack.c.l.b16 %v1001
        %v1392 = vunpack.c.h.b16 %v1001
        %v1393 = vunpack.c.l.b16 %v1002
        %v1394 = vunpack.c.h.b16 %v1002
        %v1395 = vunpack.c.l.b16 %v1003
        %v1396 = vunpack.c.h.b16 %v1003
        %v1397 = vunpack.c.l.b16 %v1004
        %v1398 = vunpack.c.h.b16 %v1004
        %v1399 = vunpack.c.l.b16 %v1005
        %v1400 = vunpack.c.h.b16 %v1005
        %v1401 = vunpack.c.l.b16 %v1006
        %v1402 = vunpack.c.h.b16 %v1006
        %v1403 = vunpack.c.l.b16 %v1007
        %v1404 = vunpack.c.h.b16 %v1007
        %v1405 = vunpack.c.l.b16 %v1008
        %v1406 = vunpack.c.h.b16 %v1008
        %v1407 = vunpack.c.l.b16 %v1009
        %v1408 = vunpack.c.h.b16 %v1009
        %v1409 = vunpack.c.l.b16 %v1010
        %v1410 = vunpack.c.h.b16 %v1010
        %v1411 = vunpack.c.l.b16 %v1011
        %v1412 = vunpack.c.h.b16 %v1011
        %v1413 = vunpack.c.l.b16 %v1012
        %v1414 = vunpack.c.h.b16 %v1012
        %v1415 = vunpack.c.l.b16 %v1013
        %v1416 = vunpack.c.h.b16 %v1013
        %v1417 = vunpack.c.l.b16 %v1014
        %v1418 = vunpack.c.h.b16 %v1014
        %v1419 = vunpack.c.l.b16 %v1015
        %v1420 = vunpack.c.h.b16 %v1015
        %v1421 = vunpack.c.l.b16 %v1016
        %v1422 = vunpack.c.h.b16 %v1016
        %v1423 = vunpack.c.l.b16 %v1017
        %v1424 = vunpack.c.h.b16 %v1017
        %v1425 = vunpack.c.l.b16 %v1018
        %v1426 = vunpack.c.h.b16 %v1018
        %v1427 = vunpack.c.l.b16 %v1019
        %v1428 = vunpack.c.h.b16 %v1019
        %v1429 = vunpack.c.l.b16 %v1020
        %v1430 = vunpack.c.h.b16 %v1020
        %v1431 = vunpack.c.l.b16 %v1021
        %v1432 = vunpack.c.h.b16 %v1021
        %v1433 = vunpack.c.l.b16 %v1022
        %v1434 = vunpack.c.h.b16 %v1022
        %v1435 = vunpack.c.l.b16 %v1023
        %v1436 = vunpack.c.h.b16 %v1023
        %v1437 = vunpack.c.l.b16 %v1024
        %v1438 = vunpack.c.h.b16 %v1024
        %v1439 = vunpack.c.l.b16 %v1025
        %v1440 = vunpack.c.h.b16 %v1025
        %v1441 = vunpack.c.l.b16 %v1026
        %v1442 = vunpack.c.h.b16 %v1026
        %v1443 = vunpack.c.l.b16 %v1027
        %v1444 = vunpack.c.h.b16 %v1027
        %v1445 = vunpack.c.l.b16 %v1028
        %v1446 = vunpack.c.h.b16 %v1028
        %v1447 = vunpack.c.l.b16 %v1029
        %v1448 = vunpack.c.h.b16 %v1029
        %v1449 = vunpack.c.l.b16 %v1030
        %v1450 = vunpack.c.h.b16 %v1030
        %v1451 = vunpack.c.l.b16 %v1031
        %v1452 = vunpack.c.h.b16 %v1031
        %v1453 = vunpack.c.l.b16 %v1032
        %v1454 = vunpack.c.h.b16 %v1032
        %v1455 = vunpack.c.l.b16 %v1033
        %v1456 = vunpack.c.h.b16 %v1033
        %v1457 = vunpack.c.l.b16 %v1034
        %v1458 = vunpack.c.h.b16 %v1034
        %v1459 = vunpack.c.l.b16 %v1035
        %v1460 = vunpack.c.h.b16 %v1035
        %v1461 = vunpack.c.l.b16 %v1036
        %v1462 = vunpack.c.h.b16 %v1036
        %v1463 = vunpack.c.l.b16 %v1037
        %v1464 = vunpack.c.h.b16 %v1037
        %v1465 = vunpack.c.l.b16 %v1038
        %v1466 = vunpack.c.h.b16 %v1038
        %v1467 = vunpack.c.l.b16 %v1039
        %v1468 = vunpack.c.h.b16 %v1039
        %v1469 = vunpack.c.l.b16 %v1040
        %v1470 = vunpack.c.h.b16 %v1040
        %v1471 = vunpack.c.l.b16 %v1041
        %v1472 = vunpack.c.h.b16 %v1041
        %v1473 = vunpack.c.l.b16 %v1042
        %v1474 = vunpack.c.h.b16 %v1042
        %v1475 = vunpack.c.l.b16 %v1043
        %v1476 = vunpack.c.h.b16 %v1043
        %v1477 = vunpack.c.l.b16 %v1044
        %v1478 = vunpack.c.h.b16 %v1044
        %v1479 = vunpack.c.l.b16 %v1045
        %v1480 = vunpack.c.h.b16 %v1045
        %v1481 = vunpack.c.l.b16 %v1046
        %v1482 = vunpack.c.h.b16 %v1046
        %v1483 = vunpack.c.l.b16 %v1047
        %v1484 = vunpack.c.h.b16 %v1047
        %v1485 = vunpack.c.l.b16 %v1048
        %v1486 = vunpack.c.h.b16 %v1048
        %v1487 = vunpack.c.l.b16 %v1049
        %v1488 = vunpack.c.h.b16 %v1049
        %v1489 = vunpack.c.l.b16 %v1050
        %v1490 = vunpack.c.h.b16 %v1050
        %v1491 = vunpack.c.l.b16 %v1051
        %v1492 = vunpack.c.h.b16 %v1051
        %v1493 = vunpack.c.l.b16 %v1052
        %v1494 = vunpack.c.h.b16 %v1052
        %v1495 = vunpack.c.l.b16 %v1053
        %v1496 = vunpack.c.h.b16 %v1053
        %v1497 = vunpack.c.l.b16 %v1054
        %v1498 = vunpack.c.h.b16 %v1054
        %v1499 = vunpack.c.l.b16 %v1055
        %v1500 = vunpack.c.h.b16 %v1055
        %v1501 = vunpack.c.l.b16 %v1056
        %v1502 = vunpack.c.h.b16 %v1056
        %v1503 = vunpack.c.l.b16 %v1057
        %v1504 = vunpack.c.h.b16 %v1057
        %v1505 = vunpack.c.l.b16 %v1058
        %v1506 = vunpack.c.h.b16 %v1058
        %v1507 = vunpack.c.l.b16 %v1059
        %v1508 = vunpack.c.h.b16 %v1059
        %v1509 = vunpack.c.l.b16 %v1060
        %v1510 = vunpack.c.h.b16 %v1060
        %v1511 = vunpack.c.l.b16 %v1061
        %v1512 = vunpack.c.h.b16 %v1061
        %v1513 = vunpack.c.l.b16 %v1062
        %v1514 = vunpack.c.h.b16 %v1062
        %v1515 = vunpack.c.l.b16 %v1063
        %v1516 = vunpack.c.h.b16 %v1063
        %v1517 = vunpack.c.l.b16 %v1064
        %v1518 = vunpack.c.h.b16 %v1064
        %v1519 = vunpack.c.l.b16 %v1065
        %v1520 = vunpack.c.h.b16 %v1065
        %v1521 = vunpack.c.l.b16 %v1066
        %v1522 = vunpack.c.h.b16 %v1066
        %v1523 = vunpack.c.l.b16 %v1067
        %v1524 = vunpack.c.h.b16 %v1067
        %v1525 = vunpack.c.l.b16 %v1068
        %v1526 = vunpack.c.h.b16 %v1068
        %v1527 = vunpack.c.l.b16 %v1069
        %v1528 = vunpack.c.h.b16 %v1069
        %v1529 = vunpack.c.l.b16 %v1070
        %v1530 = vunpack.c.h.b16 %v1070
        %v1531 = vunpack.c.l.b16 %v1071
        %v1532 = vunpack.c.h.b16 %v1071
        %v1533 = vunpack.c.l.b16 %v1072
        %v1534 = vunpack.c.h.b16 %v1072
        %v1535 = vunpack.c.l.b16 %v1073
        %v1536 = vunpack.c.h.b16 %v1073
        %v1537 = vunpack.c.l.b16 %v1074
        %v1538 = vunpack.c.h.b16 %v1074
        %v1539 = vpack.c.b16 %v1253, %v1251
        %v1540 = vpack.c.b16 %v1254, %v1252
        %v1541 = vpack.c.b16 %v1257, %v1255
        %v1542 = vpack.c.b16 %v1258, %v1256
        %v1543 = vpack.c.b16 %v1261, %v1259
        %v1544 = vpack.c.b16 %v1262, %v1260
        %v1545 = vpack.c.b16 %v1265, %v1263
        %v1546 = vpack.c.b16 %v1266, %v1264
        %v1547 = vpack.c.b16 %v1269, %v1267
        %v1548 = vpack.c.b16 %v1270, %v1268
        %v1549 = vpack.c.b16 %v1273, %v1271
        %v1550 = vpack.c.b16 %v1274, %v1272
        %v1551 = vpack.c.b16 %v1277, %v1275
        %v1552 = vpack.c.b16 %v1278, %v1276
        %v1553 = vpack.c.b16 %v1281, %v1279
        %v1554 = vpack.c.b16 %v1282, %v1280
        %v1555 = vpack.c.b16 %v1285, %v1283
        %v1556 = vpack.c.b16 %v1286, %v1284
        %v1557 = vpack.c.b16 %v1289, %v1287
        %v1558 = vpack.c.b16 %v1290, %v1288
        %v1559 = vpack.c.b16 %v1293, %v1291
        %v1560 = vpack.c.b16 %v1294, %v1292
        %v1561 = vpack.c.b16 %v1297, %v1295
        %v1562 = vpack.c.b16 %v1298, %v1296
        %v1563 = vpack.c.b16 %v1301, %v1299
        %v1564 = vpack.c.b16 %v1302, %v1300
        %v1565 = vpack.c.b16 %v1305, %v1303
        %v1566 = vpack.c.b16 %v1306, %v1304
        %v1567 = vpack.c.b16 %v1309, %v1307
        %v1568 = vpack.c.b16 %v1310, %v1308
        %v1569 = vpack.c.b16 %v1313, %v1311
        %v1570 = vpack.c.b16 %v1314, %v1312
        %v1571 = vpack.c.b16 %v1317, %v1315
        %v1572 = vpack.c.b16 %v1318, %v1316
        %v1573 = vpack.c.b16 %v1321, %v1319
        %v1574 = vpack.c.b16 %v1322, %v1320
        %v1575 = vpack.c.b16 %v1325, %v1323
        %v1576 = vpack.c.b16 %v1326, %v1324
        %v1577 = vpack.c.b16 %v1329, %v1327
        %v1578 = vpack.c.b16 %v1330, %v1328
        %v1579 = vpack.c.b16 %v1333, %v1331
        %v1580 = vpack.c.b16 %v1334, %v1332
        %v1581 = vpack.c.b16 %v1337, %v1335
        %v1582 = vpack.c.b16 %v1338, %v1336
        %v1583 = vpack.c.b16 %v1341, %v1339
        %v1584 = vpack.c.b16 %v1342, %v1340
        %v1585 = vpack.c.b16 %v1345, %v1343
        %v1586 = vpack.c.b16 %v1346, %v1344
        %v1587 = vpack.c.b16 %v1349, %v1347
        %v1588 = vpack.c.b16 %v1350, %v1348
        %v1589 = vpack.c.b16 %v1353, %v1351
        %v1590 = vpack.c.b16 %v1354, %v1352
        %v1591 = vpack.c.b16 %v1357, %v1355
        %v1592 = vpack.c.b16 %v1358, %v1356
        %v1593 = vpack.c.b16 %v1361, %v1359
        %v1594 = vpack.c.b16 %v1362, %v1360
        %v1595 = vpack.c.b16 %v1365, %v1363
        %v1596 = vpack.c.b16 %v1366, %v1364
        %v1597 = vpack.c.b16 %v1369, %v1367
        %v1598 = vpack.c.b16 %v1370, %v1368
        %v1599 = vpack.c.b16 %v1373, %v1371
        %v1600 = vpack.c.b16 %v1374, %v1372
        %v1601 = vpack.c.b16 %v1377, %v1375
        %v1602 = vpack.c.b16 %v1378, %v1376
        %v1603 = vpack.c.b16 %v1381, %v1379
        %v1604 = vpack.c.b16 %v1382, %v1380
        %v1605 = vpack.c.b16 %v1385, %v1383
        %v1606 = vpack.c.b16 %v1386, %v1384
        %v1607 = vpack.c.b16 %v1389, %v1387
        %v1608 = vpack.c.b16 %v1390, %v1388
        %v1609 = vpack.c.b16 %v1393, %v1391
        %v1610 = vpack.c.b16 %v1394, %v1392
        %v1611 = vpack.c.b16 %v1397, %v1395
        %v1612 = vpack.c.b16 %v1398, %v1396
        %v1613 = vpack.c.b16 %v1401, %v1399
        %v1614 = vpack.c.b16 %v1402, %v1400
        %v1615 = vpack.c.b16 %v1405, %v1403
        %v1616 = vpack.c.b16 %v1406, %v1404
        %v1617 = vpack.c.b16 %v1409, %v1407
        %v1618 = vpack.c.b16 %v1410, %v1408
        %v1619 = vpack.c.b16 %v1413, %v1411
        %v1620 = vpack.c.b16 %v1414, %v1412
        %v1621 = vpack.c.b16 %v1417, %v1415
        %v1622 = vpack.c.b16 %v1418, %v1416
        %v1623 = vpack.c.b16 %v1421, %v1419
        %v1624 = vpack.c.b16 %v1422, %v1420
        %v1625 = vpack.c.b16 %v1425, %v1423
        %v1626 = vpack.c.b16 %v1426, %v1424
        %v1627 = vpack.c.b16 %v1429, %v1427
        %v1628 = vpack.c.b16 %v1430, %v1428
        %v1629 = vpack.c.b16 %v1433, %v1431
        %v1630 = vpack.c.b16 %v1434, %v1432
        %v1631 = vpack.c.b16 %v1437, %v1435
        %v1632 = vpack.c.b16 %v1438, %v1436
        %v1633 = vpack.c.b16 %v1441, %v1439
        %v1634 = vpack.c.b16 %v1442, %v1440
        %v1635 = vpack.c.b16 %v1445, %v1443
        %v1636 = vpack.c.b16 %v1446, %v1444
        %v1637 = vpack.c.b16 %v1449, %v1447
        %v1638 = vpack.c.b16 %v1450, %v1448
        %v1639 = vpack.c.b16 %v1453, %v1451
        %v1640 = vpack.c.b16 %v1454, %v1452
        %v1641 = vpack.c.b16 %v1457, %v1455
        %v1642 = vpack.c.b16 %v1458, %v1456
        %v1643 = vpack.c.b16 %v1461, %v1459
        %v1644 = vpack.c.b16 %v1462, %v1460
        %v1645 = vpack.c.b16 %v1465, %v1463
        %v1646 = vpack.c.b16 %v1466, %v1464
        %v1647 = vpack.c.b16 %v1469, %v1467
        %v1648 = vpack.c.b16 %v1470, %v1468
        %v1649 = vpack.c.b16 %v1473, %v1471
        %v1650 = vpack.c.b16 %v1474, %v1472
        %v1651 = vpack.c.b16 %v1477, %v1475
        %v1652 = vpack.c.b16 %v1478, %v1476
        %v1653 = vpack.c.b16 %v1481, %v1479
        %v1654 = vpack.c.b16 %v1482, %v1480
        %v1655 = vpack.c.b16 %v1485, %v1483
        %v1656 = vpack.c.b16 %v1486, %v1484
        %v1657 = vpack.c.b16 %v1489, %v1487
        %v1658 = vpack.c.b16 %v1490, %v1488
        %v1659 = vpack.c.b16 %v1493, %v1491
        %v1660 = vpack.c.b16 %v1494, %v1492
        %v1661 = vpack.c.b16 %v1497, %v1495
        %v1662 = vpack.c.b16 %v1498, %v1496
        %v1663 = vpack.c.b16 %v1501, %v1499
        %v1664 = vpack.c.b16 %v1502, %v1500
        %v1665 = vpack.c.b16 %v1505, %v1503
        %v1666 = vpack.c.b16 %v1506, %v1504
        %v1667 = vpack.c.b16 %v1509, %v1507
        %v1668 = vpack.c.b16 %v1510, %v1508
        %v1669 = vpack.c.b16 %v1513, %v1511
        %v1670 = vpack.c.b16 %v1514, %v1512
        %v1671 = vpack.c.b16 %v1517, %v1515
        %v1672 = vpack.c.b16 %v1518, %v1516
        %v1673 = vpack.c.b16 %v1521, %v1519
        %v1674 = vpack.c.b16 %v1522, %v1520
        %v1675 = vpack.c.b16 %v1525, %v1523
        %v1676 = vpack.c.b16 %v1526, %v1524
        %v1677 = vpack.c.b16 %v1529, %v1527
        %v1678 = vpack.c.b16 %v1530, %v1528
        %v1679 = vpack.c.b16 %v1533, %v1531
        %v1680 = vpack.c.b16 %v1534, %v1532
        %v1681 = vpack.c.b16 %v1537, %v1535
        %v1682 = vpack.c.b16 %v1538, %v1536
        %1827 = vmatprep.subr.bf16.mxu0 %v1554
        %1828 = vmatpush1.bf16.msra.mxu0 %v1553
        %1829 = vmatprep.subr.bf16.mxu0 %v1552
        %1830 = vmatpush1.bf16.msra.mxu0 %v1551
        %1831 = vmatprep.subr.bf16.mxu0 %v1550
        %1832 = vmatpush1.bf16.msra.mxu0 %v1549
        %1833 = vmatprep.subr.bf16.mxu0 %v1548
        %1834 = vmatpush1.bf16.msra.mxu0 %v1547
        %1835 = vmatprep.subr.bf16.mxu0 %v1546
        %1836 = vmatpush1.bf16.msra.mxu0 %v1545
        %1837 = vmatprep.subr.bf16.mxu0 %v1544
        %1838 = vmatpush1.bf16.msra.mxu0 %v1543
        %1839 = vmatprep.subr.bf16.mxu0 %v1542
        %1840 = vmatpush1.bf16.msra.mxu0 %v1541
        %1841 = vmatprep.subr.bf16.mxu0 %v1540
        %1842 = vmatpush1.bf16.msra.mxu0 %v1539
        %1843 = vmatprep.subr.bf16.mxu0 %v1570
        %1844 = vmatpush2.bf16.msra.mxu0 %v1569
        %1845 = vmatprep.subr.bf16.mxu0 %v1568
        %1846 = vmatpush2.bf16.msra.mxu0 %v1567
        %1847 = vmatprep.subr.bf16.mxu0 %v1566
        %1848 = vmatpush2.bf16.msra.mxu0 %v1565
        %1849 = vmatprep.subr.bf16.mxu0 %v1564
        %1850 = vmatpush2.bf16.msra.mxu0 %v1563
        %1851 = vmatprep.subr.bf16.mxu0 %v1562
        %1852 = vmatpush2.bf16.msra.mxu0 %v1561
        %1853 = vmatprep.subr.bf16.mxu0 %v1560
        %1854 = vmatpush2.bf16.msra.mxu0 %v1559
        %1855 = vmatprep.subr.bf16.mxu0 %v1558
        %1856 = vmatpush2.bf16.msra.mxu0 %v1557
        %1857 = vmatprep.subr.bf16.mxu0 %v1556
        %1858 = vmatpush2.bf16.msra.mxu0 %v1555
        %1859 = vmatprep.mubr.bf16.mxu0 %v1090
        %1860 = vmatmul.mubr.bf16.gmra.mxu0 %v1089
        %v1861 = vpop.f32.mrf.mxu0
        %v1862 = vadd.f32 0.0, %v1861
        %v1863 = vpop.f32.mrf.mxu0
        %v1864 = vadd.f32 0.0, %v1863
        %v1865 = vpop.f32.mrf.mxu0
        %v1866 = vpop.f32.mrf.mxu0
        %1867 = vdwg.mxu0
        %1868 = vmatprep.subr.bf16.mxu0 %v1586
        %1869 = vmatpush1.bf16.msra.mxu0 %v1585
        %1870 = vmatprep.subr.bf16.mxu0 %v1584
        %1871 = vmatpush1.bf16.msra.mxu0 %v1583
        %1872 = vmatprep.subr.bf16.mxu0 %v1582
        %1873 = vmatpush1.bf16.msra.mxu0 %v1581
        %1874 = vmatprep.subr.bf16.mxu0 %v1580
        %1875 = vmatpush1.bf16.msra.mxu0 %v1579
        %1876 = vmatprep.subr.bf16.mxu0 %v1578
        %1877 = vmatpush1.bf16.msra.mxu0 %v1577
        %1878 = vmatprep.subr.bf16.mxu0 %v1576
        %1879 = vmatpush1.bf16.msra.mxu0 %v1575
        %1880 = vmatprep.subr.bf16.mxu0 %v1574
        %1881 = vmatpush1.bf16.msra.mxu0 %v1573
        %1882 = vmatprep.subr.bf16.mxu0 %v1572
        %1883 = vmatpush1.bf16.msra.mxu0 %v1571
        %1884 = vmatprep.subr.bf16.mxu0 %v1602
        %1885 = vmatpush2.bf16.msra.mxu0 %v1601
        %1886 = vmatprep.subr.bf16.mxu0 %v1600
        %1887 = vmatpush2.bf16.msra.mxu0 %v1599
        %1888 = vmatprep.subr.bf16.mxu0 %v1598
        %1889 = vmatpush2.bf16.msra.mxu0 %v1597
        %1890 = vmatprep.subr.bf16.mxu0 %v1596
        %1891 = vmatpush2.bf16.msra.mxu0 %v1595
        %1892 = vmatprep.subr.bf16.mxu0 %v1594
        %1893 = vmatpush2.bf16.msra.mxu0 %v1593
        %1894 = vmatprep.subr.bf16.mxu0 %v1592
        %1895 = vmatpush2.bf16.msra.mxu0 %v1591
        %1896 = vmatprep.subr.bf16.mxu0 %v1590
        %1897 = vmatpush2.bf16.msra.mxu0 %v1589
        %1898 = vmatprep.subr.bf16.mxu0 %v1588
        %1899 = vmatpush2.bf16.msra.mxu0 %v1587
        %1900 = vmatprep.mubr.bf16.mxu0 %v1092
        %1901 = vmatmul.mubr.bf16.gmra.mxu0 %v1091
        %v1902 = vpop.f32.mrf.mxu0
        %v1903 = vadd.f32 %v1862, %v1902
        %v1904 = vpop.f32.mrf.mxu0
        %v1905 = vadd.f32 %v1864, %v1904
        %v1906 = vpop.f32.mrf.mxu0
        %v1907 = vpop.f32.mrf.mxu0
        %1908 = vdwg.mxu0
        %1909 = vmatprep.subr.bf16.mxu0 %v1618
        %1910 = vmatpush1.bf16.msra.mxu0 %v1617
        %1911 = vmatprep.subr.bf16.mxu0 %v1616
        %1912 = vmatpush1.bf16.msra.mxu0 %v1615
        %1913 = vmatprep.subr.bf16.mxu0 %v1614
        %1914 = vmatpush1.bf16.msra.mxu0 %v1613
        %1915 = vmatprep.subr.bf16.mxu0 %v1612
        %1916 = vmatpush1.bf16.msra.mxu0 %v1611
        %1917 = vmatprep.subr.bf16.mxu0 %v1610
        %1918 = vmatpush1.bf16.msra.mxu0 %v1609
        %1919 = vmatprep.subr.bf16.mxu0 %v1608
        %1920 = vmatpush1.bf16.msra.mxu0 %v1607
        %1921 = vmatprep.subr.bf16.mxu0 %v1606
        %1922 = vmatpush1.bf16.msra.mxu0 %v1605
        %1923 = vmatprep.subr.bf16.mxu0 %v1604
        %1924 = vmatpush1.bf16.msra.mxu0 %v1603
        %1925 = vmatprep.subr.bf16.mxu0 %v1634
        %1926 = vmatpush2.bf16.msra.mxu0 %v1633
        %1927 = vmatprep.subr.bf16.mxu0 %v1632
        %1928 = vmatpush2.bf16.msra.mxu0 %v1631
        %1929 = vmatprep.subr.bf16.mxu0 %v1630
        %1930 = vmatpush2.bf16.msra.mxu0 %v1629
        %1931 = vmatprep.subr.bf16.mxu0 %v1628
        %1932 = vmatpush2.bf16.msra.mxu0 %v1627
        %1933 = vmatprep.subr.bf16.mxu0 %v1626
        %1934 = vmatpush2.bf16.msra.mxu0 %v1625
        %1935 = vmatprep.subr.bf16.mxu0 %v1624
        %1936 = vmatpush2.bf16.msra.mxu0 %v1623
        %1937 = vmatprep.subr.bf16.mxu0 %v1622
        %1938 = vmatpush2.bf16.msra.mxu0 %v1621
        %1939 = vmatprep.subr.bf16.mxu0 %v1620
        %1940 = vmatpush2.bf16.msra.mxu0 %v1619
        %1941 = vmatprep.mubr.bf16.mxu0 %v1094
        %1942 = vmatmul.mubr.bf16.gmra.mxu0 %v1093
        %v1943 = vpop.f32.mrf.mxu0
        %v1944 = vadd.f32 %v1903, %v1943
        %v1945 = vpop.f32.mrf.mxu0
        %v1946 = vadd.f32 %v1905, %v1945
        %v1947 = vpop.f32.mrf.mxu0
        %v1948 = vpop.f32.mrf.mxu0
        %1949 = vdwg.mxu0
        %1950 = vmatprep.subr.bf16.mxu0 %v1650
        %1951 = vmatpush1.bf16.msra.mxu0 %v1649
        %1952 = vmatprep.subr.bf16.mxu0 %v1648
        %1953 = vmatpush1.bf16.msra.mxu0 %v1647
        %1954 = vmatprep.subr.bf16.mxu0 %v1646
        %1955 = vmatpush1.bf16.msra.mxu0 %v1645
        %1956 = vmatprep.subr.bf16.mxu0 %v1644
        %1957 = vmatpush1.bf16.msra.mxu0 %v1643
        %1958 = vmatprep.subr.bf16.mxu0 %v1642
        %1959 = vmatpush1.bf16.msra.mxu0 %v1641
        %1960 = vmatprep.subr.bf16.mxu0 %v1640
        %1961 = vmatpush1.bf16.msra.mxu0 %v1639
        %1962 = vmatprep.subr.bf16.mxu0 %v1638
        %1963 = vmatpush1.bf16.msra.mxu0 %v1637
        %1964 = vmatprep.subr.bf16.mxu0 %v1636
        %1965 = vmatpush1.bf16.msra.mxu0 %v1635
        %1966 = vmatprep.subr.bf16.mxu0 %v1666
        %1967 = vmatpush2.bf16.msra.mxu0 %v1665
        %1968 = vmatprep.subr.bf16.mxu0 %v1664
        %1969 = vmatpush2.bf16.msra.mxu0 %v1663
        %1970 = vmatprep.subr.bf16.mxu0 %v1662
        %1971 = vmatpush2.bf16.msra.mxu0 %v1661
        %1972 = vmatprep.subr.bf16.mxu0 %v1660
        %1973 = vmatpush2.bf16.msra.mxu0 %v1659
        %1974 = vmatprep.subr.bf16.mxu0 %v1658
        %1975 = vmatpush2.bf16.msra.mxu0 %v1657
        %1976 = vmatprep.subr.bf16.mxu0 %v1656
        %1977 = vmatpush2.bf16.msra.mxu0 %v1655
        %1978 = vmatprep.subr.bf16.mxu0 %v1654
        %1979 = vmatpush2.bf16.msra.mxu0 %v1653
        %1980 = vmatprep.subr.bf16.mxu0 %v1652
        %1981 = vmatpush2.bf16.msra.mxu0 %v1651
        %1982 = vmatprep.mubr.bf16.mxu0 %v1096
        %1983 = vmatmul.mubr.bf16.gmra.mxu0 %v1095
        %v1984 = vpop.f32.mrf.mxu0
        %v1985 = vadd.f32 %v1944, %v1984
        %v1986 = vpop.f32.mrf.mxu0
        %v1987 = vadd.f32 %v1946, %v1986
        %v1988 = vpop.f32.mrf.mxu0
        %v1989 = vpop.f32.mrf.mxu0
        %1990 = vdwg.mxu0
        %1991 = vmatprep.subr.bf16.mxu0 %v1682
        %1992 = vmatpush1.bf16.msra.mxu0 %v1681
        %1993 = vmatprep.subr.bf16.mxu0 %v1680
        %1994 = vmatpush1.bf16.msra.mxu0 %v1679
        %1995 = vmatprep.subr.bf16.mxu0 %v1678
        %1996 = vmatpush1.bf16.msra.mxu0 %v1677
        %1997 = vmatprep.subr.bf16.mxu0 %v1676
        %1998 = vmatpush1.bf16.msra.mxu0 %v1675
        %1999 = vmatprep.subr.bf16.mxu0 %v1674
        %2000 = vmatpush1.bf16.msra.mxu0 %v1673
        %2001 = vmatprep.subr.bf16.mxu0 %v1672
        %2002 = vmatpush1.bf16.msra.mxu0 %v1671
        %2003 = vmatprep.subr.bf16.mxu0 %v1670
        %2004 = vmatpush1.bf16.msra.mxu0 %v1669
        %2005 = vmatprep.subr.bf16.mxu0 %v1668
        %2006 = vmatpush1.bf16.msra.mxu0 %v1667
        %2007 = vmatprep.subr.bf16.mxu0 0
        %2008 = vmatpush2.bf16.msra.mxu0 0
        %2009 = vmatprep.subr.bf16.mxu0 0
        %2010 = vmatpush2.bf16.msra.mxu0 0
        %2011 = vmatprep.subr.bf16.mxu0 0
        %2012 = vmatpush2.bf16.msra.mxu0 0
        %2013 = vmatprep.subr.bf16.mxu0 0
        %2014 = vmatpush2.bf16.msra.mxu0 0
        %2015 = vmatprep.subr.bf16.mxu0 0
        %2016 = vmatpush2.bf16.msra.mxu0 0
        %2017 = vmatprep.subr.bf16.mxu0 0
        %2018 = vmatpush2.bf16.msra.mxu0 0
        %2019 = vmatprep.subr.bf16.mxu0 0
        %2020 = vmatpush2.bf16.msra.mxu0 0
        %2021 = vmatprep.subr.bf16.mxu0 0
        %2022 = vmatpush2.bf16.msra.mxu0 0
        %2023 = vmatprep.mubr.bf16.mxu0 0
        %2024 = vmatmul.mubr.bf16.gmra.mxu0 %v1097
        %v2025 = vpop.f32.mrf.mxu0
        %v2026 = vadd.f32 %v1985, %v2025
        %v2027 = vpop.f32.mrf.mxu0
        %v2028 = vadd.f32 %v1987, %v2027
        %v2029 = vpop.f32.mrf.mxu0
        %v2030 = vpop.f32.mrf.mxu0
        %2031 = vdwg.mxu0
        %v2032 = vadd.f32 %v924, %v2026
        %v2033 = vadd.f32 %v925, %v2028
        %2034 = vst [vmem:[#allocation2] sm:$0xff] %v2032
        %2035 = vst [vmem:[#allocation2 + $0x8] sm:$0xff] %v2033
        %p2036 = scmp.eq.s32.totalorder %s22, 1
        // Predicated region
        $region79: #{tps_stn_forward.9} parent=69 // pred_check
          %p2037 = pneg %p2036
        $region80: #{tps_stn_forward.9} parent=69 // pred_check_branch
          %2039 = sbr.rel (%p2037) target = $region82
        $region81: #{tps_stn_forward.9} parent=69 // pred_region
          %v2040 = vld [vmem:[#allocation2] sm:$0xff]
          %v2041 = vld [vmem:[#allocation2 + $0x8] sm:$0xff]
          %v2042 = vld [vmem:[%s900] sm:$0x3]
          %v2044 = vlaneseq
          %v2045 = vshrl.u32 %v2044, 7
          %v2046 = vsub.s32 0, %v2045
          %v2047 = vrot.slane %v2042, %v2046
          %v2048 = vlaneseq
          %v2049 = vshrl.u32 %v2048, 7
          %v2050 = vsub.s32 1, %v2049
          %v2051 = vrot.slane %v2042, %v2050
          %v2054 = vmul.f32 %v2040, %v2047
          %v2055 = vmul.f32 %v2041, %v2051
          %v2056 = vld [vmem:[%s905] sm:$0x3]
          %v2058 = vlaneseq
          %v2059 = vshrl.u32 %v2058, 7
          %v2060 = vsub.s32 0, %v2059
          %v2061 = vrot.slane %v2056, %v2060
          %v2062 = vlaneseq
          %v2063 = vshrl.u32 %v2062, 7
          %v2064 = vsub.s32 1, %v2063
          %v2065 = vrot.slane %v2056, %v2064
          %v2068 = vadd.f32 %v2054, %v2061
          %v2069 = vadd.f32 %v2055, %v2065
          %v2070 = vmax.f32 %v2068, 0.0
          %v2071 = vmax.f32 %v2069, 0.0
          %2072 = vst [vmem:[%s915] sm:$0xff] %v2070
          %2073 = vst [vmem:[%s915 + $0x8] sm:$0xff] %v2071
        $region82: #{tps_stn_forward.9} parent=69 // pred_fallthru
          _
        %s2074 = smul.u32 2, %s21
        %p2075 = scmp.lt.s32.totalorder %s20, 0
        %s2076 = scalar_select %p2075, %s20, 0
        %p2077 = scmp.lt.s32.totalorder %s2074, 3
        %s2078 = scalar_select %p2077, %s2074, 3
        %s2079 = smul.addr %s2076, 4
        %s2080 = sadd.s32 %s2078, %s2079
        %s2081 = smul.addr %s2080, 8
        %s2082 = scalar_lea.vmem %s4, %s2081
        // Predicated region
        $region83: #{tps_stn_forward.9} parent=69 // pred_check
          %p2083 = pneg %p162
        $region84: #{tps_stn_forward.9} parent=69 // pred_check_branch
          %2085 = sbr.rel (%p2083) target = $region86
        $region85: #{tps_stn_forward.9} parent=69 // pred_region
          %s2086 = smul.u32 2, %s21
        $region86: #{tps_stn_forward.9} parent=69 // pred_fallthru
          _
      $region70: #{tps_stn_forward.9} parent=5 // pred_fallthru
        _
      %p2087 = scmp.le.s32.totalorder 2, %s10
      // Predicated region
      $region87: #{tps_stn_forward.9} parent=5 // pred_check
        %p2088 = pneg %p2087
      $region88: #{tps_stn_forward.9} parent=5 // pred_check_branch
        %2090 = sbr.rel (%p2088) target = $region90
      $region89: #{tps_stn_forward.9} parent=5 // pred_region
        %s2091 = ssub.s32 %s10, 2
        // Predicated region
        $region91: #{tps_stn_forward.9} parent=89 // pred_check
          %p2092 = pneg %p168
        $region92: #{tps_stn_forward.9} parent=89 // pred_check_branch
          %2094 = sbr.rel (%p2092) target = $region94
        $region93: #{tps_stn_forward.9} parent=89 // pred_region
          %s2095 = smul.u32 2, %s24
          %p2096 = scmp.lt.s32.totalorder %s23, 0
          %s2097 = scalar_select %p2096, %s23, 0
          %p2098 = scmp.lt.s32.totalorder %s2095, 3
          %s2099 = scalar_select %p2098, %s2095, 3
          %s2100 = smul.addr %s2097, 4
          %s2101 = sadd.s32 %s2099, %s2100
          %s2102 = smul.addr %s2101, 8
          %s2103 = scalar_lea.vmem %s4, %s2102
        $region94: #{tps_stn_forward.9} parent=89 // pred_fallthru
          _
      $region90: #{tps_stn_forward.9} parent=5 // pred_fallthru
        _
    $region6: #{tps_stn_forward.9} parent=1 // loop_footer
      %s14 = sadd.s32 1, %s10
    $region7: #{tps_stn_forward.9} parent=1 // loop_footer_branch
      %9 = sbr.rel target = $region3
    $region8: #{tps_stn_forward.9} parent=1 // loop_exit
      _

// kernel: tps_stn_forward.10
$region0: #{tps_stn_forward.10}
  #allocation0 [shape = 'u32[]', space=smem, size = 0x4, offset = 0x4, fixed_abs, tag = 'smem constant byte address 0x4 - core index']
  #allocation1 [shape = 'u32[144,128]{1,0:T(1,128)}', space=vmem, size = 0x12000, scoped, tag = 'internal scratch']
  %s0 = inlined_call_operand.vmem [shape: f32[8,512], index: 0, kind: input, shape index: {}]
  %s1 = inlined_call_operand.vmem [shape: f32[512,256], index: 1, kind: input, shape index: {}]
  %s2 = inlined_call_operand.vmem [shape: f32[1,256], index: 2, kind: input, shape index: {}]
  %s3 = inlined_call_operand.vmem [shape: f32[256,40], index: 3, kind: input, shape index: {}]
  %s4 = inlined_call_operand.vmem [shape: f32[1,40], index: 4, kind: input, shape index: {}]
  %s5 = inlined_call_operand.vmem [shape: f32[8,40], index: 5, kind: output, shape index: {}]
  %s6 = sld [smem:[#allocation0]]
  $region30: #{tps_stn_forward.10} parent=0
    _
  %s8 = ssub.s32 1, %s6
  %s9 = scalar_select 0, %s8, %s6
  // Predicated region
  $region2: #{tps_stn_forward.10} parent=0 // pred_check
    _
  $region3: #{tps_stn_forward.10} parent=0 // pred_check_branch
    %11 = sbr.rel (0) target = $region5
  $region4: #{tps_stn_forward.10} parent=0 // pred_region
    _
  $region5: #{tps_stn_forward.10} parent=0 // pred_fallthru
    _
  // Predicated region
  $region6: #{tps_stn_forward.10} parent=0 // pred_check
    _
  $region7: #{tps_stn_forward.10} parent=0 // pred_check_branch
    %13 = sbr.rel (0) target = $region9
  $region8: #{tps_stn_forward.10} parent=0 // pred_region
    _
  $region9: #{tps_stn_forward.10} parent=0 // pred_fallthru
    _
  // Predicated region
  $region10: #{tps_stn_forward.10} parent=0 // pred_check
    _
  $region11: #{tps_stn_forward.10} parent=0 // pred_check_branch
    %15 = sbr.rel (0) target = $region13
  $region12: #{tps_stn_forward.10} parent=0 // pred_region
    _
  $region13: #{tps_stn_forward.10} parent=0 // pred_fallthru
    _
  // Predicated region
  $region14: #{tps_stn_forward.10} parent=0 // pred_check
    _
  $region15: #{tps_stn_forward.10} parent=0 // pred_check_branch
    %17 = sbr.rel (0) target = $region17
  $region16: #{tps_stn_forward.10} parent=0 // pred_region
    _
  $region17: #{tps_stn_forward.10} parent=0 // pred_fallthru
    _
  // Predicated region
  $region18: #{tps_stn_forward.10} parent=0 // pred_check
    _
  $region19: #{tps_stn_forward.10} parent=0 // pred_check_branch
    %19 = sbr.rel (0) target = $region21
  $region20: #{tps_stn_forward.10} parent=0 // pred_region
    _
  $region21: #{tps_stn_forward.10} parent=0 // pred_fallthru
    _
  %v20 = vld [vmem:[%s0] sm:$0xff]
  %v21 = vld [vmem:[%s0 + $0x8] sm:$0xff]
  %v22 = vld [vmem:[%s0 + $0x10] sm:$0xff]
  %v23 = vld [vmem:[%s0 + $0x18] sm:$0xff]
  %v24 = vld [vmem:[%s1] sm:$0xff]
  %v25 = vld [vmem:[%s1 + $0x8] sm:$0xff]
  %v26 = vld [vmem:[%s1 + $0x10] sm:$0xff]
  %v27 = vld [vmem:[%s1 + $0x18] sm:$0xff]
  %v28 = vld [vmem:[%s1 + $0x20] sm:$0xff]
  %v29 = vld [vmem:[%s1 + $0x28] sm:$0xff]
  %v30 = vld [vmem:[%s1 + $0x30] sm:$0xff]
  %v31 = vld [vmem:[%s1 + $0x38] sm:$0xff]
  %v32 = vld [vmem:[%s1 + $0x40] sm:$0xff]
  %v33 = vld [vmem:[%s1 + $0x48] sm:$0xff]
  %v34 = vld [vmem:[%s1 + $0x50] sm:$0xff]
  %v35 = vld [vmem:[%s1 + $0x58] sm:$0xff]
  %v36 = vld [vmem:[%s1 + $0x60] sm:$0xff]
  %v37 = vld [vmem:[%s1 + $0x68] sm:$0xff]
  %v38 = vld [vmem:[%s1 + $0x70] sm:$0xff]
  %v39 = vld [vmem:[%s1 + $0x78] sm:$0xff]
  %v40 = vld [vmem:[%s1 + $0x80] sm:$0xff]
  %v41 = vld [vmem:[%s1 + $0x88] sm:$0xff]
  %v42 = vld [vmem:[%s1 + $0x90] sm:$0xff]
  %v43 = vld [vmem:[%s1 + $0x98] sm:$0xff]
  %v44 = vld [vmem:[%s1 + $0xa0] sm:$0xff]
  %v45 = vld [vmem:[%s1 + $0xa8] sm:$0xff]
  %v46 = vld [vmem:[%s1 + $0xb0] sm:$0xff]
  %v47 = vld [vmem:[%s1 + $0xb8] sm:$0xff]
  %v48 = vld [vmem:[%s1 + $0xc0] sm:$0xff]
  %v49 = vld [vmem:[%s1 + $0xc8] sm:$0xff]
  %v50 = vld [vmem:[%s1 + $0xd0] sm:$0xff]
  %v51 = vld [vmem:[%s1 + $0xd8] sm:$0xff]
  %v52 = vld [vmem:[%s1 + $0xe0] sm:$0xff]
  %v53 = vld [vmem:[%s1 + $0xe8] sm:$0xff]
  %v54 = vld [vmem:[%s1 + $0xf0] sm:$0xff]
  %v55 = vld [vmem:[%s1 + $0xf8] sm:$0xff]
  %v56 = vld [vmem:[%s1 + $0x100] sm:$0xff]
  %v57 = vld [vmem:[%s1 + $0x108] sm:$0xff]
  %v58 = vld [vmem:[%s1 + $0x110] sm:$0xff]
  %v59 = vld [vmem:[%s1 + $0x118] sm:$0xff]
  %v60 = vld [vmem:[%s1 + $0x120] sm:$0xff]
  %v61 = vld [vmem:[%s1 + $0x128] sm:$0xff]
  %v62 = vld [vmem:[%s1 + $0x130] sm:$0xff]
  %v63 = vld [vmem:[%s1 + $0x138] sm:$0xff]
  %v64 = vld [vmem:[%s1 + $0x140] sm:$0xff]
  %v65 = vld [vmem:[%s1 + $0x148] sm:$0xff]
  %v66 = vld [vmem:[%s1 + $0x150] sm:$0xff]
  %v67 = vld [vmem:[%s1 + $0x158] sm:$0xff]
  %v68 = vld [vmem:[%s1 + $0x160] sm:$0xff]
  %v69 = vld [vmem:[%s1 + $0x168] sm:$0xff]
  %v70 = vld [vmem:[%s1 + $0x170] sm:$0xff]
  %v71 = vld [vmem:[%s1 + $0x178] sm:$0xff]
  %v72 = vld [vmem:[%s1 + $0x180] sm:$0xff]
  %v73 = vld [vmem:[%s1 + $0x188] sm:$0xff]
  %v74 = vld [vmem:[%s1 + $0x190] sm:$0xff]
  %v75 = vld [vmem:[%s1 + $0x198] sm:$0xff]
  %v76 = vld [vmem:[%s1 + $0x1a0] sm:$0xff]
  %v77 = vld [vmem:[%s1 + $0x1a8] sm:$0xff]
  %v78 = vld [vmem:[%s1 + $0x1b0] sm:$0xff]
  %v79 = vld [vmem:[%s1 + $0x1b8] sm:$0xff]
  %v80 = vld [vmem:[%s1 + $0x1c0] sm:$0xff]
  %v81 = vld [vmem:[%s1 + $0x1c8] sm:$0xff]
  %v82 = vld [vmem:[%s1 + $0x1d0] sm:$0xff]
  %v83 = vld [vmem:[%s1 + $0x1d8] sm:$0xff]
  %v84 = vld [vmem:[%s1 + $0x1e0] sm:$0xff]
  %v85 = vld [vmem:[%s1 + $0x1e8] sm:$0xff]
  %v86 = vld [vmem:[%s1 + $0x1f0] sm:$0xff]
  %v87 = vld [vmem:[%s1 + $0x1f8] sm:$0xff]
  %v88 = vld [vmem:[%s1 + $0x200] sm:$0xff]
  %v89 = vld [vmem:[%s1 + $0x208] sm:$0xff]
  %v90 = vld [vmem:[%s1 + $0x210] sm:$0xff]
  %v91 = vld [vmem:[%s1 + $0x218] sm:$0xff]
  %v92 = vld [vmem:[%s1 + $0x220] sm:$0xff]
  %v93 = vld [vmem:[%s1 + $0x228] sm:$0xff]
  %v94 = vld [vmem:[%s1 + $0x230] sm:$0xff]
  %v95 = vld [vmem:[%s1 + $0x238] sm:$0xff]
  %v96 = vld [vmem:[%s1 + $0x240] sm:$0xff]
  %v97 = vld [vmem:[%s1 + $0x248] sm:$0xff]
  %v98 = vld [vmem:[%s1 + $0x250] sm:$0xff]
  %v99 = vld [vmem:[%s1 + $0x258] sm:$0xff]
  %v100 = vld [vmem:[%s1 + $0x260] sm:$0xff]
  %v101 = vld [vmem:[%s1 + $0x268] sm:$0xff]
  %v102 = vld [vmem:[%s1 + $0x270] sm:$0xff]
  %v103 = vld [vmem:[%s1 + $0x278] sm:$0xff]
  %v104 = vld [vmem:[%s1 + $0x280] sm:$0xff]
  %v105 = vld [vmem:[%s1 + $0x288] sm:$0xff]
  %v106 = vld [vmem:[%s1 + $0x290] sm:$0xff]
  %v107 = vld [vmem:[%s1 + $0x298] sm:$0xff]
  %v108 = vld [vmem:[%s1 + $0x2a0] sm:$0xff]
  %v109 = vld [vmem:[%s1 + $0x2a8] sm:$0xff]
  %v110 = vld [vmem:[%s1 + $0x2b0] sm:$0xff]
  %v111 = vld [vmem:[%s1 + $0x2b8] sm:$0xff]
  %v112 = vld [vmem:[%s1 + $0x2c0] sm:$0xff]
  %v113 = vld [vmem:[%s1 + $0x2c8] sm:$0xff]
  %v114 = vld [vmem:[%s1 + $0x2d0] sm:$0xff]
  %v115 = vld [vmem:[%s1 + $0x2d8] sm:$0xff]
  %v116 = vld [vmem:[%s1 + $0x2e0] sm:$0xff]
  %v117 = vld [vmem:[%s1 + $0x2e8] sm:$0xff]
  %v118 = vld [vmem:[%s1 + $0x2f0] sm:$0xff]
  %v119 = vld [vmem:[%s1 + $0x2f8] sm:$0xff]
  %v120 = vld [vmem:[%s1 + $0x300] sm:$0xff]
  %v121 = vld [vmem:[%s1 + $0x308] sm:$0xff]
  %v122 = vld [vmem:[%s1 + $0x310] sm:$0xff]
  %v123 = vld [vmem:[%s1 + $0x318] sm:$0xff]
  %v124 = vld [vmem:[%s1 + $0x320] sm:$0xff]
  %v125 = vld [vmem:[%s1 + $0x328] sm:$0xff]
  %v126 = vld [vmem:[%s1 + $0x330] sm:$0xff]
  %v127 = vld [vmem:[%s1 + $0x338] sm:$0xff]
  %v128 = vld [vmem:[%s1 + $0x340] sm:$0xff]
  %v129 = vld [vmem:[%s1 + $0x348] sm:$0xff]
  %v130 = vld [vmem:[%s1 + $0x350] sm:$0xff]
  %v131 = vld [vmem:[%s1 + $0x358] sm:$0xff]
  %v132 = vld [vmem:[%s1 + $0x360] sm:$0xff]
  %v133 = vld [vmem:[%s1 + $0x368] sm:$0xff]
  %v134 = vld [vmem:[%s1 + $0x370] sm:$0xff]
  %v135 = vld [vmem:[%s1 + $0x378] sm:$0xff]
  %v136 = vld [vmem:[%s1 + $0x380] sm:$0xff]
  %v137 = vld [vmem:[%s1 + $0x388] sm:$0xff]
  %v138 = vld [vmem:[%s1 + $0x390] sm:$0xff]
  %v139 = vld [vmem:[%s1 + $0x398] sm:$0xff]
  %v140 = vld [vmem:[%s1 + $0x3a0] sm:$0xff]
  %v141 = vld [vmem:[%s1 + $0x3a8] sm:$0xff]
  %v142 = vld [vmem:[%s1 + $0x3b0] sm:$0xff]
  %v143 = vld [vmem:[%s1 + $0x3b8] sm:$0xff]
  %v144 = vld [vmem:[%s1 + $0x3c0] sm:$0xff]
  %v145 = vld [vmem:[%s1 + $0x3c8] sm:$0xff]
  %v146 = vld [vmem:[%s1 + $0x3d0] sm:$0xff]
  %v147 = vld [vmem:[%s1 + $0x3d8] sm:$0xff]
  %v148 = vld [vmem:[%s1 + $0x3e0] sm:$0xff]
  %v149 = vld [vmem:[%s1 + $0x3e8] sm:$0xff]
  %v150 = vld [vmem:[%s1 + $0x3f0] sm:$0xff]
  %v151 = vld [vmem:[%s1 + $0x3f8] sm:$0xff]
  %v152 = vld [vmem:[%s2] sm:$0x3]
  %v154 = vlaneseq
  %v155 = vshrl.u32 %v154, 7
  %v156 = vsub.s32 0, %v155
  %v157 = vrot.slane %v152, %v156
  %v158 = vlaneseq
  %v159 = vshrl.u32 %v158, 7
  %v160 = vsub.s32 1, %v159
  %v161 = vrot.slane %v152, %v160
  %164 = vmatprep.subr.mxu0 %v55
  %165 = vmatpush1.msra.mxu0 %v54
  %166 = vmatprep.subr.mxu0 %v53
  %167 = vmatpush1.msra.mxu0 %v52
  %168 = vmatprep.subr.mxu0 %v51
  %169 = vmatpush1.msra.mxu0 %v50
  %170 = vmatprep.subr.mxu0 %v49
  %171 = vmatpush1.msra.mxu0 %v48
  %172 = vmatprep.subr.mxu0 %v47
  %173 = vmatpush1.msra.mxu0 %v46
  %174 = vmatprep.subr.mxu0 %v45
  %175 = vmatpush1.msra.mxu0 %v44
  %176 = vmatprep.subr.mxu0 %v43
  %177 = vmatpush1.msra.mxu0 %v42
  %178 = vmatprep.subr.mxu0 %v41
  %179 = vmatpush1.msra.mxu0 %v40
  %180 = vmatprep.subr.mxu0 %v39
  %181 = vmatpush1.msra.mxu0 %v38
  %182 = vmatprep.subr.mxu0 %v37
  %183 = vmatpush1.msra.mxu0 %v36
  %184 = vmatprep.subr.mxu0 %v35
  %185 = vmatpush1.msra.mxu0 %v34
  %186 = vmatprep.subr.mxu0 %v33
  %187 = vmatpush1.msra.mxu0 %v32
  %188 = vmatprep.subr.mxu0 %v31
  %189 = vmatpush1.msra.mxu0 %v30
  %190 = vmatprep.subr.mxu0 %v29
  %191 = vmatpush1.msra.mxu0 %v28
  %192 = vmatprep.subr.mxu0 %v27
  %193 = vmatpush1.msra.mxu0 %v26
  %194 = vmatprep.subr.mxu0 %v25
  %195 = vmatpush1.msra.mxu0 %v24
  %196 = vmatprep.subr.mxu0 %v87
  %197 = vmatpush2.msra.mxu0 %v86
  %198 = vmatprep.subr.mxu0 %v85
  %199 = vmatpush2.msra.mxu0 %v84
  %200 = vmatprep.subr.mxu0 %v83
  %201 = vmatpush2.msra.mxu0 %v82
  %202 = vmatprep.subr.mxu0 %v81
  %203 = vmatpush2.msra.mxu0 %v80
  %204 = vmatprep.subr.mxu0 %v79
  %205 = vmatpush2.msra.mxu0 %v78
  %206 = vmatprep.subr.mxu0 %v77
  %207 = vmatpush2.msra.mxu0 %v76
  %208 = vmatprep.subr.mxu0 %v75
  %209 = vmatpush2.msra.mxu0 %v74
  %210 = vmatprep.subr.mxu0 %v73
  %211 = vmatpush2.msra.mxu0 %v72
  %212 = vmatprep.subr.mxu0 %v71
  %213 = vmatpush2.msra.mxu0 %v70
  %214 = vmatprep.subr.mxu0 %v69
  %215 = vmatpush2.msra.mxu0 %v68
  %216 = vmatprep.subr.mxu0 %v67
  %217 = vmatpush2.msra.mxu0 %v66
  %218 = vmatprep.subr.mxu0 %v65
  %219 = vmatpush2.msra.mxu0 %v64
  %220 = vmatprep.subr.mxu0 %v63
  %221 = vmatpush2.msra.mxu0 %v62
  %222 = vmatprep.subr.mxu0 %v61
  %223 = vmatpush2.msra.mxu0 %v60
  %224 = vmatprep.subr.mxu0 %v59
  %225 = vmatpush2.msra.mxu0 %v58
  %226 = vmatprep.subr.mxu0 %v57
  %227 = vmatpush2.msra.mxu0 %v56
  %228 = vmatprep.mubr.f32.mxu0 %v21
  %229 = vmatmul.mubr.f32.gmra.mxu0 %v20
  %v230 = vpop.f32.mrf.mxu0
  %v231 = vadd.f32 %v157, %v230
  %v232 = vpop.f32.mrf.mxu0
  %v233 = vadd.f32 %v161, %v232
  %234 = vdwg.mxu0
  %235 = vmatprep.subr.mxu0 %v119
  %236 = vmatpush1.msra.mxu0 %v118
  %237 = vmatprep.subr.mxu0 %v117
  %238 = vmatpush1.msra.mxu0 %v116
  %239 = vmatprep.subr.mxu0 %v115
  %240 = vmatpush1.msra.mxu0 %v114
  %241 = vmatprep.subr.mxu0 %v113
  %242 = vmatpush1.msra.mxu0 %v112
  %243 = vmatprep.subr.mxu0 %v111
  %244 = vmatpush1.msra.mxu0 %v110
  %245 = vmatprep.subr.mxu0 %v109
  %246 = vmatpush1.msra.mxu0 %v108
  %247 = vmatprep.subr.mxu0 %v107
  %248 = vmatpush1.msra.mxu0 %v106
  %249 = vmatprep.subr.mxu0 %v105
  %250 = vmatpush1.msra.mxu0 %v104
  %251 = vmatprep.subr.mxu0 %v103
  %252 = vmatpush1.msra.mxu0 %v102
  %253 = vmatprep.subr.mxu0 %v101
  %254 = vmatpush1.msra.mxu0 %v100
  %255 = vmatprep.subr.mxu0 %v99
  %256 = vmatpush1.msra.mxu0 %v98
  %257 = vmatprep.subr.mxu0 %v97
  %258 = vmatpush1.msra.mxu0 %v96
  %259 = vmatprep.subr.mxu0 %v95
  %260 = vmatpush1.msra.mxu0 %v94
  %261 = vmatprep.subr.mxu0 %v93
  %262 = vmatpush1.msra.mxu0 %v92
  %263 = vmatprep.subr.mxu0 %v91
  %264 = vmatpush1.msra.mxu0 %v90
  %265 = vmatprep.subr.mxu0 %v89
  %266 = vmatpush1.msra.mxu0 %v88
  %267 = vmatprep.subr.mxu0 %v151
  %268 = vmatpush2.msra.mxu0 %v150
  %269 = vmatprep.subr.mxu0 %v149
  %270 = vmatpush2.msra.mxu0 %v148
  %271 = vmatprep.subr.mxu0 %v147
  %272 = vmatpush2.msra.mxu0 %v146
  %273 = vmatprep.subr.mxu0 %v145
  %274 = vmatpush2.msra.mxu0 %v144
  %275 = vmatprep.subr.mxu0 %v143
  %276 = vmatpush2.msra.mxu0 %v142
  %277 = vmatprep.subr.mxu0 %v141
  %278 = vmatpush2.msra.mxu0 %v140
  %279 = vmatprep.subr.mxu0 %v139
  %280 = vmatpush2.msra.mxu0 %v138
  %281 = vmatprep.subr.mxu0 %v137
  %282 = vmatpush2.msra.mxu0 %v136
  %283 = vmatprep.subr.mxu0 %v135
  %284 = vmatpush2.msra.mxu0 %v134
  %285 = vmatprep.subr.mxu0 %v133
  %286 = vmatpush2.msra.mxu0 %v132
  %287 = vmatprep.subr.mxu0 %v131
  %288 = vmatpush2.msra.mxu0 %v130
  %289 = vmatprep.subr.mxu0 %v129
  %290 = vmatpush2.msra.mxu0 %v128
  %291 = vmatprep.subr.mxu0 %v127
  %292 = vmatpush2.msra.mxu0 %v126
  %293 = vmatprep.subr.mxu0 %v125
  %294 = vmatpush2.msra.mxu0 %v124
  %295 = vmatprep.subr.mxu0 %v123
  %296 = vmatpush2.msra.mxu0 %v122
  %297 = vmatprep.subr.mxu0 %v121
  %298 = vmatpush2.msra.mxu0 %v120
  %299 = vmatprep.mubr.f32.mxu0 %v23
  %300 = vmatmul.mubr.f32.gmra.mxu0 %v22
  %v301 = vpop.f32.mrf.mxu0
  %v302 = vadd.f32 %v231, %v301
  %v303 = vpop.f32.mrf.mxu0
  %v304 = vadd.f32 %v233, %v303
  %305 = vdwg.mxu0
  %v306 = vmax.f32 %v302, 0.0
  %v307 = vmax.f32 %v304, 0.0
  %v308 = vld [vmem:[%s3] sm:$0xff]
  %v309 = vld [vmem:[%s3 + $0x8] sm:$0xff]
  %v310 = vld [vmem:[%s3 + $0x10] sm:$0xff]
  %v311 = vld [vmem:[%s3 + $0x18] sm:$0xff]
  %v312 = vld [vmem:[%s3 + $0x20] sm:$0xff]
  %v313 = vld [vmem:[%s3 + $0x28] sm:$0xff]
  %v314 = vld [vmem:[%s3 + $0x30] sm:$0xff]
  %v315 = vld [vmem:[%s3 + $0x38] sm:$0xff]
  %v316 = vld [vmem:[%s3 + $0x40] sm:$0xff]
  %v317 = vld [vmem:[%s3 + $0x48] sm:$0xff]
  %v318 = vld [vmem:[%s3 + $0x50] sm:$0xff]
  %v319 = vld [vmem:[%s3 + $0x58] sm:$0xff]
  %v320 = vld [vmem:[%s3 + $0x60] sm:$0xff]
  %v321 = vld [vmem:[%s3 + $0x68] sm:$0xff]
  %v322 = vld [vmem:[%s3 + $0x70] sm:$0xff]
  %v323 = vld [vmem:[%s3 + $0x78] sm:$0xff]
  %v324 = vld [vmem:[%s3 + $0x80] sm:$0xff]
  %v325 = vld [vmem:[%s3 + $0x88] sm:$0xff]
  %v326 = vld [vmem:[%s3 + $0x90] sm:$0xff]
  %v327 = vld [vmem:[%s3 + $0x98] sm:$0xff]
  %v328 = vld [vmem:[%s3 + $0xa0] sm:$0xff]
  %v329 = vld [vmem:[%s3 + $0xa8] sm:$0xff]
  %v330 = vld [vmem:[%s3 + $0xb0] sm:$0xff]
  %v331 = vld [vmem:[%s3 + $0xb8] sm:$0xff]
  %v332 = vld [vmem:[%s3 + $0xc0] sm:$0xff]
  %v333 = vld [vmem:[%s3 + $0xc8] sm:$0xff]
  %v334 = vld [vmem:[%s3 + $0xd0] sm:$0xff]
  %v335 = vld [vmem:[%s3 + $0xd8] sm:$0xff]
  %v336 = vld [vmem:[%s3 + $0xe0] sm:$0xff]
  %v337 = vld [vmem:[%s3 + $0xe8] sm:$0xff]
  %v338 = vld [vmem:[%s3 + $0xf0] sm:$0xff]
  %v339 = vld [vmem:[%s3 + $0xf8] sm:$0xff]
  %v340 = vld [vmem:[%s4] sm:$0x1]
  %v342 = vlaneseq
  %v343 = vshrl.u32 %v342, 7
  %v344 = vsub.s32 0, %v343
  %v345 = vrot.slane %v340, %v344
  %347 = vmatprep.subr.mxu0 0.0
  %348 = vmatpush1.msra.mxu0 %v323
  %349 = vmatprep.subr.mxu0 0.0
  %350 = vmatpush1.msra.mxu0 %v322
  %351 = vmatprep.subr.mxu0 0.0
  %352 = vmatpush1.msra.mxu0 %v321
  %353 = vmatprep.subr.mxu0 0.0
  %354 = vmatpush1.msra.mxu0 %v320
  %355 = vmatprep.subr.mxu0 0.0
  %356 = vmatpush1.msra.mxu0 %v319
  %357 = vmatprep.subr.mxu0 0.0
  %358 = vmatpush1.msra.mxu0 %v318
  %359 = vmatprep.subr.mxu0 0.0
  %360 = vmatpush1.msra.mxu0 %v317
  %361 = vmatprep.subr.mxu0 0.0
  %362 = vmatpush1.msra.mxu0 %v316
  %363 = vmatprep.subr.mxu0 0.0
  %364 = vmatpush1.msra.mxu0 %v315
  %365 = vmatprep.subr.mxu0 0.0
  %366 = vmatpush1.msra.mxu0 %v314
  %367 = vmatprep.subr.mxu0 0.0
  %368 = vmatpush1.msra.mxu0 %v313
  %369 = vmatprep.subr.mxu0 0.0
  %370 = vmatpush1.msra.mxu0 %v312
  %371 = vmatprep.subr.mxu0 0.0
  %372 = vmatpush1.msra.mxu0 %v311
  %373 = vmatprep.subr.mxu0 0.0
  %374 = vmatpush1.msra.mxu0 %v310
  %375 = vmatprep.subr.mxu0 0.0
  %376 = vmatpush1.msra.mxu0 %v309
  %377 = vmatprep.subr.mxu0 0.0
  %378 = vmatpush1.msra.mxu0 %v308
  %379 = vmatprep.subr.mxu0 0.0
  %380 = vmatpush2.msra.mxu0 %v339
  %381 = vmatprep.subr.mxu0 0.0
  %382 = vmatpush2.msra.mxu0 %v338
  %383 = vmatprep.subr.mxu0 0.0
  %384 = vmatpush2.msra.mxu0 %v337
  %385 = vmatprep.subr.mxu0 0.0
  %386 = vmatpush2.msra.mxu0 %v336
  %387 = vmatprep.subr.mxu0 0.0
  %388 = vmatpush2.msra.mxu0 %v335
  %389 = vmatprep.subr.mxu0 0.0
  %390 = vmatpush2.msra.mxu0 %v334
  %391 = vmatprep.subr.mxu0 0.0
  %392 = vmatpush2.msra.mxu0 %v333
  %393 = vmatprep.subr.mxu0 0.0
  %394 = vmatpush2.msra.mxu0 %v332
  %395 = vmatprep.subr.mxu0 0.0
  %396 = vmatpush2.msra.mxu0 %v331
  %397 = vmatprep.subr.mxu0 0.0
  %398 = vmatpush2.msra.mxu0 %v330
  %399 = vmatprep.subr.mxu0 0.0
  %400 = vmatpush2.msra.mxu0 %v329
  %401 = vmatprep.subr.mxu0 0.0
  %402 = vmatpush2.msra.mxu0 %v328
  %403 = vmatprep.subr.mxu0 0.0
  %404 = vmatpush2.msra.mxu0 %v327
  %405 = vmatprep.subr.mxu0 0.0
  %406 = vmatpush2.msra.mxu0 %v326
  %407 = vmatprep.subr.mxu0 0.0
  %408 = vmatpush2.msra.mxu0 %v325
  %409 = vmatprep.subr.mxu0 0.0
  %410 = vmatpush2.msra.mxu0 %v324
  %411 = vmatprep.mubr.f32.mxu0 %v307
  %412 = vmatmul.mubr.f32.gmra.mxu0 %v306
  %v413 = vpop.f32.mrf.mxu0
  %v414 = vadd.f32 %v345, %v413
  %v415 = vpop.f32.mrf.mxu0
  %416 = vdwg.mxu0
  %vm417 = vcmask 326656
  %418 = vst.msk [vmem:[%s5] sm:$0xff] %vm417, %v414
  // Predicated region
  $region22: #{tps_stn_forward.10} parent=0 // pred_check
    _
  $region23: #{tps_stn_forward.10} parent=0 // pred_check_branch
    %420 = sbr.rel (0) target = $region25
  $region24: #{tps_stn_forward.10} parent=0 // pred_region
    _
  $region25: #{tps_stn_forward.10} parent=0 // pred_fallthru
    _
  // Predicated region
  $region26: #{tps_stn_forward.10} parent=0 // pred_check
    _
  $region27: #{tps_stn_forward.10} parent=0 // pred_check_branch
    %422 = sbr.rel (0) target = $region29
  $region28: #{tps_stn_forward.10} parent=0 // pred_region
    _
  $region29: #{tps_stn_forward.10} parent=0 // pred_fallthru
    _

// kernel: tps_stn_forward.11
$region0: #{tps_stn_forward.11}
  #allocation0 [shape = 'u32[]', space=smem, size = 0x4, offset = 0x4, fixed_abs, tag = 'smem constant byte address 0x4 - core index']
  #allocation1 [shape = 'u32[144,128]{1,0:T(1,128)}', space=vmem, size = 0x12000, scoped, tag = 'internal scratch']
  %s0 = inlined_call_operand.vmem [shape: f32[23,256], index: 0, kind: input, shape index: {}]
  %s1 = inlined_call_operand.vmem [shape: f32[2,2,23], index: 1, kind: input, shape index: {}]
  %s2 = inlined_call_operand.vmem [shape: f32[2,16,16], index: 2, kind: input, shape index: {}]
  %s3 = inlined_call_operand.vmem [shape: f32[2,1,256], index: 3, kind: output, shape index: {}]
  %s4 = sld [smem:[#allocation0]]
  $region45: #{tps_stn_forward.11} parent=0
    _
  %s6 = ssub.s32 1, %s4
  %s7 = scalar_select 0, %s6, %s4
  loop: start=0, step=1, limit=4
  $region2: #{tps_stn_forward.11} parent=0 // loop_pre_header
    _
  $region3: #{tps_stn_forward.11} parent=0 // loop_header
    %s9 = sphi 0, %s13
    %p10 = scmp.ge.s32.totalorder %s9, 4
    %s16 = sphi 0, %s28
    %s17 = sphi 0, %s24
    %s18 = sphi 0, %s16
    %s19 = sphi 0, %s17
    %s20 = sphi 0, %s18
    %s21 = sphi 0, %s19
    %s31 = sphi 0, %s33
    %s34 = sphi 0, %s31
    %s35 = sphi 0, %s34
    %s51 = sphi 0, %s35
    %s57 = sphi 0, %s59
    %s60 = sphi 0, %s57
    %s61 = sphi 0, %s60
    %s77 = sphi 0, %s61
    %s83 = sphi 0, %s85
    %s86 = sphi 0, %s83
    %s87 = sphi 0, %s86
    %s103 = sphi 0, %s87
    %s111 = sphi 0, %s113
    %s114 = sphi 0, %s111
    %s115 = sphi 0, %s114
    %s131 = sphi 0, %s115
  $region4: #{tps_stn_forward.11} parent=0 // loop_header_branch
    %12 = sbr.rel (%p10) target = $region8
  $region5: #{tps_stn_forward.11} parent=0 // loop_body
    %s14 = ssub.s32 %s9, 1
    %s15 = ssub.s32 %s9, 2
    %s22 = sadd.s32 1, %s17
    %p23 = scmp.ge.s32.totalorder %s22, 1
    %s24 = scalar_select %p23, 0, %s22
    %s25 = sadd.s32 1, %s16
    %s26 = scalar_select %p23, %s25, %s16
    %p27 = scmp.ge.s32.totalorder %s26, 2
    %s28 = scalar_select %p27, 0, %s26
    %s29 = ssub.s32 %s17, %s24
    %p30 = scmp.eq.s32.totalorder %s29, 0
    %s32 = sadd.s32 %s31, 1
    %s33 = scalar_select %p30, %s31, %s32
    %p36 = pneg %p30
    %p37 = scmp.eq.s32.totalorder %s9, 1
    %p38 = por %p36, %p37
    %p39 = scmp.ne.s32.totalorder %s31, %s34
    %p40 = scmp.eq.s32.totalorder %s9, 0
    %p41 = por %p39, %p40
    %p42 = scmp.ne.s32.totalorder %s31, %s34
    %p43 = scmp.eq.s32.totalorder %s14, 1
    %p44 = por %p42, %p43
    %p45 = scmp.ne.s32.totalorder %s34, %s35
    %p46 = scmp.eq.s32.totalorder %s14, 0
    %p47 = por %p45, %p46
    %p48 = scmp.ne.s32.totalorder %s34, %s35
    %p49 = scmp.eq.s32.totalorder %s15, 1
    %p50 = por %p48, %p49
    %p52 = scmp.ne.s32.totalorder %s35, %s51
    %p53 = scmp.eq.s32.totalorder %s15, 0
    %p54 = por %p52, %p53
    %s55 = ssub.s32 %s16, %s28
    %p56 = scmp.eq.s32.totalorder %s55, 0
    %s58 = sadd.s32 %s57, 1
    %s59 = scalar_select %p56, %s57, %s58
    %p62 = pneg %p56
    %p63 = scmp.eq.s32.totalorder %s9, 1
    %p64 = por %p62, %p63
    %p65 = scmp.ne.s32.totalorder %s57, %s60
    %p66 = scmp.eq.s32.totalorder %s9, 0
    %p67 = por %p65, %p66
    %p68 = scmp.ne.s32.totalorder %s57, %s60
    %p69 = scmp.eq.s32.totalorder %s14, 1
    %p70 = por %p68, %p69
    %p71 = scmp.ne.s32.totalorder %s60, %s61
    %p72 = scmp.eq.s32.totalorder %s14, 0
    %p73 = por %p71, %p72
    %p74 = scmp.ne.s32.totalorder %s60, %s61
    %p75 = scmp.eq.s32.totalorder %s15, 1
    %p76 = por %p74, %p75
    %p78 = scmp.ne.s32.totalorder %s61, %s77
    %p79 = scmp.eq.s32.totalorder %s15, 0
    %p80 = por %p78, %p79
    %s81 = ssub.s32 %s16, %s28
    %p82 = scmp.eq.s32.totalorder %s81, 0
    %s84 = sadd.s32 %s83, 1
    %s85 = scalar_select %p82, %s83, %s84
    %p88 = pneg %p82
    %p89 = scmp.eq.s32.totalorder %s9, 1
    %p90 = por %p88, %p89
    %p91 = scmp.ne.s32.totalorder %s83, %s86
    %p92 = scmp.eq.s32.totalorder %s9, 0
    %p93 = por %p91, %p92
    %p94 = scmp.ne.s32.totalorder %s83, %s86
    %p95 = scmp.eq.s32.totalorder %s14, 1
    %p96 = por %p94, %p95
    %p97 = scmp.ne.s32.totalorder %s86, %s87
    %p98 = scmp.eq.s32.totalorder %s14, 0
    %p99 = por %p97, %p98
    %p100 = scmp.ne.s32.totalorder %s86, %s87
    %p101 = scmp.eq.s32.totalorder %s15, 1
    %p102 = por %p100, %p101
    %p104 = scmp.ne.s32.totalorder %s87, %s103
    %p105 = scmp.eq.s32.totalorder %s15, 0
    %p106 = por %p104, %p105
    %s107 = ssub.s32 %s16, %s28
    %s108 = ssub.s32 %s17, %s24
    %s109 = sor.u32 %s107, %s108
    %p110 = scmp.eq.s32.totalorder %s109, 0
    %s112 = sadd.s32 %s111, 1
    %s113 = scalar_select %p110, %s111, %s112
    %p116 = pneg %p110
    %p117 = scmp.eq.s32.totalorder %s9, 1
    %p118 = por %p116, %p117
    %p119 = scmp.ne.s32.totalorder %s111, %s114
    %p120 = scmp.eq.s32.totalorder %s9, 0
    %p121 = por %p119, %p120
    %p122 = scmp.ne.s32.totalorder %s111, %s114
    %p123 = scmp.eq.s32.totalorder %s14, 1
    %p124 = por %p122, %p123
    %p125 = scmp.ne.s32.totalorder %s114, %s115
    %p126 = scmp.eq.s32.totalorder %s14, 0
    %p127 = por %p125, %p126
    %p128 = scmp.ne.s32.totalorder %s114, %s115
    %p129 = scmp.eq.s32.totalorder %s15, 1
    %p130 = por %p128, %p129
    %p132 = scmp.ne.s32.totalorder %s115, %s131
    %p133 = scmp.eq.s32.totalorder %s15, 0
    %p134 = por %p132, %p133
    %p135 = scmp.le.s32.totalorder 1, %s9
    %p136 = scmp.lt.s32.totalorder %s9, 3
    %p137 = pnand %p135, %p136
    %p138 = pneg %p137
    // Predicated region
    $region9: #{tps_stn_forward.11} parent=5 // pred_check
      _
    $region10: #{tps_stn_forward.11} parent=5 // pred_check_branch
      %140 = sbr.rel (%p137) target = $region12
    $region11: #{tps_stn_forward.11} parent=5 // pred_region
      %s141 = ssub.s32 %s9, 1
      // Predicated region
      $region13: #{tps_stn_forward.11} parent=11 // pred_check
        %p142 = pneg %p47
      $region14: #{tps_stn_forward.11} parent=11 // pred_check_branch
        %144 = sbr.rel (%p142) target = $region16
      $region15: #{tps_stn_forward.11} parent=11 // pred_region
        %s145 = smul.u32 2, %s19
        %p146 = scmp.lt.s32.totalorder %s145, 1
        %s147 = scalar_select %p146, %s145, 1
        %s148 = smul.addr %s147, 8
        %s149 = scalar_lea.vmem %s0, %s148
        %s150 = smul.u32 2, %s19
      $region16: #{tps_stn_forward.11} parent=11 // pred_fallthru
        _
    $region12: #{tps_stn_forward.11} parent=5 // pred_fallthru
      _
    %p151 = scmp.lt.s32.totalorder %s9, 2
    // Predicated region
    $region17: #{tps_stn_forward.11} parent=5 // pred_check
      %p152 = pneg %p151
    $region18: #{tps_stn_forward.11} parent=5 // pred_check_branch
      %154 = sbr.rel (%p152) target = $region20
    $region19: #{tps_stn_forward.11} parent=5 // pred_region
      // Predicated region
      $region21: #{tps_stn_forward.11} parent=19 // pred_check
        %p155 = pneg %p67
      $region22: #{tps_stn_forward.11} parent=19 // pred_check_branch
        %157 = sbr.rel (%p155) target = $region24
      $region23: #{tps_stn_forward.11} parent=19 // pred_region
        %p158 = scmp.lt.s32.totalorder %s16, 1
        %s159 = scalar_select %p158, %s16, 1
        %s160 = smul.addr %s159, 2
        %s161 = scalar_lea.vmem %s1, %s160
      $region24: #{tps_stn_forward.11} parent=19 // pred_fallthru
        _
      // Predicated region
      $region25: #{tps_stn_forward.11} parent=19 // pred_check
        %p162 = pneg %p93
      $region26: #{tps_stn_forward.11} parent=19 // pred_check_branch
        %164 = sbr.rel (%p162) target = $region28
      $region27: #{tps_stn_forward.11} parent=19 // pred_region
        %p165 = scmp.lt.s32.totalorder %s16, 1
        %s166 = scalar_select %p165, %s16, 1
        %s167 = smul.addr %s166, 2
        %s168 = smul.addr %s167, 8
        %s169 = scalar_lea.vmem %s2, %s168
      $region28: #{tps_stn_forward.11} parent=19 // pred_fallthru
        _
    $region20: #{tps_stn_forward.11} parent=5 // pred_fallthru
      _
    %p170 = scmp.le.s32.totalorder 1, %s9
    %p171 = scmp.lt.s32.totalorder %s9, 3
    %p172 = pnand %p170, %p171
    %p173 = pneg %p172
    // Predicated region
    $region29: #{tps_stn_forward.11} parent=5 // pred_check
      _
    $region30: #{tps_stn_forward.11} parent=5 // pred_check_branch
      %175 = sbr.rel (%p172) target = $region32
    $region31: #{tps_stn_forward.11} parent=5 // pred_region
      %s176 = ssub.s32 %s9, 1
      %s177 = smul.u32 2, %s19
      %p178 = scmp.lt.s32.totalorder %s177, 1
      %s179 = scalar_select %p178, %s177, 1
      %s180 = smul.addr %s179, 8
      %s181 = scalar_lea.vmem %s0, %s180
      %p182 = pneg %p47
      %p183 = pneg %p44
      %p184 = scmp.lt.s32.totalorder %s18, 1
      %s185 = scalar_select %p184, %s18, 1
      %s186 = smul.addr %s185, 2
      %s187 = scalar_lea.vmem %s1, %s186
      %p188 = pneg %p73
      %p189 = pneg %p70
      %p190 = scmp.lt.s32.totalorder %s18, 1
      %s191 = scalar_select %p190, %s18, 1
      %s192 = smul.addr %s191, 2
      %s193 = smul.addr %s192, 8
      %s194 = scalar_lea.vmem %s2, %s193
      %p195 = pneg %p99
      %p196 = pneg %p96
      %p197 = pneg %p127
      %p198 = pneg %p124
      %s199 = smul.u32 2, %s19
      %p200 = scmp.lt.s32.totalorder %s18, 1
      %s201 = scalar_select %p200, %s18, 1
      %p202 = scmp.lt.s32.totalorder %s199, 1
      %s203 = scalar_select %p202, %s199, 1
      %s204 = smul.addr %s201, 2
      %s205 = sadd.s32 %s203, %s204
      %s206 = scalar_lea.vmem %s3, %s205
      %s207 = smul.u32 2, %s19
      %p208 = scmp.lt.s32.totalorder %s207, 1
      %s209 = scalar_select %p208, %s207, 1
      %s210 = smul.addr %s209, 8
      %s211 = scalar_lea.vmem %s0, %s210
      %s212 = smul.u32 2, %s19
      %p213 = scmp.lt.s32.totalorder %s18, 1
      %s214 = scalar_select %p213, %s18, 1
      %s215 = smul.addr %s214, 2
      %s216 = scalar_lea.vmem %s1, %s215
      %p217 = scmp.lt.s32.totalorder %s18, 1
      %s218 = scalar_select %p217, %s18, 1
      %s219 = smul.addr %s218, 2
      %s220 = smul.addr %s219, 8
      %s221 = scalar_lea.vmem %s2, %s220
      %s222 = smul.u32 2, %s19
      %p223 = scmp.lt.s32.totalorder %s18, 1
      %s224 = scalar_select %p223, %s18, 1
      %p225 = scmp.lt.s32.totalorder %s222, 1
      %s226 = scalar_select %p225, %s222, 1
      %s227 = smul.addr %s224, 2
      %s228 = sadd.s32 %s226, %s227
      %s229 = scalar_lea.vmem %s3, %s228
      %s230 = smul.u32 2, %s19
      %v231 = vld [vmem:[%s216] sm:$0x3]
      %v232 = vld [vmem:[%s211] sm:$0xff]
      %v233 = vld [vmem:[%s211 + $0x8] sm:$0xff]
      %v234 = vld [vmem:[%s211 + $0x10] sm:$0xff]
      %v235 = vld [vmem:[%s211 + $0x18] sm:$0xff]
      %v236 = vld [vmem:[%s211 + $0x20] sm:$0x7f]
      %v237 = vld [vmem:[%s211 + $0x28] sm:$0x7f]
      %vm238 = vcmask 187392
      %v240 = vsel %vm238, %v231, 0
      %vm242 = vcmask 1046528
      %v244 = vsel %vm242, %v236, 0
      %v247 = vsel %vm242, %v237, 0
      %249 = vmatprep.subr.mxu0 0.0
      %250 = vmatpush1.msra.mxu0 0.0
      %251 = vmatprep.subr.mxu0 0.0
      %252 = vmatpush1.msra.mxu0 0.0
      %253 = vmatprep.subr.mxu0 0.0
      %254 = vmatpush1.msra.mxu0 0.0
      %255 = vmatprep.subr.mxu0 0.0
      %256 = vmatpush1.msra.mxu0 0.0
      %257 = vmatprep.subr.mxu0 0.0
      %258 = vmatpush1.msra.mxu0 0.0
      %259 = vmatprep.subr.mxu0 0.0
      %260 = vmatpush1.msra.mxu0 0.0
      %261 = vmatprep.subr.mxu0 0.0
      %262 = vmatpush1.msra.mxu0 0.0
      %263 = vmatprep.subr.mxu0 0.0
      %264 = vmatpush1.msra.mxu0 0.0
      %265 = vmatprep.subr.mxu0 0.0
      %266 = vmatpush1.msra.mxu0 0.0
      %267 = vmatprep.subr.mxu0 0.0
      %268 = vmatpush1.msra.mxu0 0.0
      %269 = vmatprep.subr.mxu0 0.0
      %270 = vmatpush1.msra.mxu0 0.0
      %271 = vmatprep.subr.mxu0 0.0
      %272 = vmatpush1.msra.mxu0 0.0
      %273 = vmatprep.subr.mxu0 0.0
      %274 = vmatpush1.msra.mxu0 0.0
      %275 = vmatprep.subr.mxu0 %v247
      %276 = vmatpush1.msra.mxu0 %v244
      %277 = vmatprep.subr.mxu0 %v235
      %278 = vmatpush1.msra.mxu0 %v234
      %279 = vmatprep.subr.mxu0 %v233
      %280 = vmatpush1.msra.mxu0 %v232
      %281 = vmatprep.subr.mxu0 0.0
      %282 = vmatpush2.msra.mxu0 0.0
      %283 = vmatprep.subr.mxu0 0.0
      %284 = vmatpush2.msra.mxu0 0.0
      %285 = vmatprep.subr.mxu0 0.0
      %286 = vmatpush2.msra.mxu0 0.0
      %287 = vmatprep.subr.mxu0 0.0
      %288 = vmatpush2.msra.mxu0 0.0
      %289 = vmatprep.subr.mxu0 0.0
      %290 = vmatpush2.msra.mxu0 0.0
      %291 = vmatprep.subr.mxu0 0.0
      %292 = vmatpush2.msra.mxu0 0.0
      %293 = vmatprep.subr.mxu0 0.0
      %294 = vmatpush2.msra.mxu0 0.0
      %295 = vmatprep.subr.mxu0 0.0
      %296 = vmatpush2.msra.mxu0 0.0
      %297 = vmatprep.subr.mxu0 0.0
      %298 = vmatpush2.msra.mxu0 0.0
      %299 = vmatprep.subr.mxu0 0.0
      %300 = vmatpush2.msra.mxu0 0.0
      %301 = vmatprep.subr.mxu0 0.0
      %302 = vmatpush2.msra.mxu0 0.0
      %303 = vmatprep.subr.mxu0 0.0
      %304 = vmatpush2.msra.mxu0 0.0
      %305 = vmatprep.subr.mxu0 0.0
      %306 = vmatpush2.msra.mxu0 0.0
      %307 = vmatprep.subr.mxu0 0.0
      %308 = vmatpush2.msra.mxu0 0.0
      %309 = vmatprep.subr.mxu0 0.0
      %310 = vmatpush2.msra.mxu0 0.0
      %311 = vmatprep.subr.mxu0 0.0
      %312 = vmatpush2.msra.mxu0 0.0
      %313 = vmatprep.mubr.f32.mxu0 0.0
      %314 = vmatmul.mubr.f32.gmra.mxu0 %v240
      %v315 = vpop.f32.mrf.mxu0
      %v316 = vadd.f32 0.0, %v315
      %v317 = vpop.f32.mrf.mxu0
      %v318 = vadd.f32 0.0, %v317
      %319 = vdwg.mxu0
      %v320 = vadd.f32 %v316, 1.0
      %v321 = vadd.f32 %v318, 1.0
      %v322 = vmul.f32 %v320, 0.5
      %v323 = vmul.f32 %v321, 0.5
      %v324 = vmul.f32 %v322, 15.0
      %v325 = vmul.f32 %v323, 15.0
      %v326 = vmax.f32 %v324, 0.0
      %v327 = vmax.f32 %v325, 0.0
      %v328 = vmin.f32 %v326, 15.0
      %v329 = vmin.f32 %v327, 15.0
      %v330 = vfloor.f32 %v328
      %v331 = vfloor.f32 %v329
      %v332 = vsub.f32 %v328, %v330
      %v333 = vsub.f32 %v329, %v331
      %v334 = vsub.f32 1.0, %v332
      %v335 = vsub.f32 1.0, %v333
      %v336 = vcvt.f32.s32.to.zero.pseudo %v330
      %v337 = vcvt.f32.s32.to.zero.pseudo %v331
      %v338 = vadd.s32 %v336, 1
      %v339 = vadd.s32 %v337, 1
      %vm340 = vcmp.lt.s32.totalorder %v338, 15
      %v341 = vsel %vm340, %v338, 15
      %vm342 = vcmp.lt.s32.totalorder %v339, 15
      %v343 = vsel %vm342, %v339, 15
      %v344 = vlaneseq
      %v345 = vshrl.u32 %v344, 7
      %v346 = vadd.s32 %v345, 8
      %v347 = vlaneseq
      %v348 = vshrl.u32 %v347, 7
      %v349 = vsub.s32 0, %v348
      %v350 = vrot.slane %v336, %v349
      %v351 = vlaneseq
      %v352 = vshrl.u32 %v351, 7
      %v353 = vsub.s32 0, %v352
      %v354 = vrot.slane %v337, %v353
      %vm355 = vcmp.eq.s32.totalorder %v345, %v350
      %vm356 = vcmp.eq.s32.totalorder %v345, %v354
      %vm357 = vcmp.eq.s32.totalorder %v346, %v350
      %vm358 = vcmp.eq.s32.totalorder %v346, %v354
      %v359 = vsel %vm355, 1, 0
      %v360 = vsel %vm356, 1, 0
      %v361 = vsel %vm357, 1, 0
      %v362 = vsel %vm358, 1, 0
      %v363 = vcvt.s32.f32 %v359
      %v364 = vcvt.s32.f32 %v360
      %v365 = vcvt.s32.f32 %v361
      %v366 = vcvt.s32.f32 %v362
      %v367 = vlaneseq
      %v368 = vshrl.u32 %v367, 7
      %v369 = vsub.s32 0, %v368
      %v370 = vrot.slane %v334, %v369
      %v371 = vlaneseq
      %v372 = vshrl.u32 %v371, 7
      %v373 = vsub.s32 0, %v372
      %v374 = vrot.slane %v335, %v373
      %v375 = vmul.f32 %v370, %v363
      %v376 = vmul.f32 %v374, %v364
      %v377 = vmul.f32 %v370, %v365
      %v378 = vmul.f32 %v374, %v366
      %v379 = vlaneseq
      %v380 = vshrl.u32 %v379, 7
      %v381 = vsub.s32 0, %v380
      %v382 = vrot.slane %v341, %v381
      %v383 = vlaneseq
      %v384 = vshrl.u32 %v383, 7
      %v385 = vsub.s32 0, %v384
      %v386 = vrot.slane %v343, %v385
      %vm387 = vcmp.eq.s32.totalorder %v345, %v382
      %vm388 = vcmp.eq.s32.totalorder %v345, %v386
      %vm389 = vcmp.eq.s32.totalorder %v346, %v382
      %vm390 = vcmp.eq.s32.totalorder %v346, %v386
      %v391 = vsel %vm387, 1, 0
      %v392 = vsel %vm388, 1, 0
      %v393 = vsel %vm389, 1, 0
      %v394 = vsel %vm390, 1, 0
      %v395 = vcvt.s32.f32 %v391
      %v396 = vcvt.s32.f32 %v392
      %v397 = vcvt.s32.f32 %v393
      %v398 = vcvt.s32.f32 %v394
      %v399 = vlaneseq
      %v400 = vshrl.u32 %v399, 7
      %v401 = vsub.s32 0, %v400
      %v402 = vrot.slane %v332, %v401
      %v403 = vlaneseq
      %v404 = vshrl.u32 %v403, 7
      %v405 = vsub.s32 0, %v404
      %v406 = vrot.slane %v333, %v405
      %v407 = vmul.f32 %v402, %v395
      %v408 = vmul.f32 %v406, %v396
      %v409 = vmul.f32 %v402, %v397
      %v410 = vmul.f32 %v406, %v398
      %v411 = vadd.f32 %v375, %v407
      %v412 = vadd.f32 %v376, %v408
      %v413 = vadd.f32 %v377, %v409
      %v414 = vadd.f32 %v378, %v410
      %v415 = vlaneseq
      %v416 = vshrl.u32 %v415, 7
      %v417 = vsub.s32 1, %v416
      %v418 = vrot.slane %v336, %v417
      %v419 = vlaneseq
      %v420 = vshrl.u32 %v419, 7
      %v421 = vsub.s32 1, %v420
      %v422 = vrot.slane %v337, %v421
      %vm423 = vcmp.eq.s32.totalorder %v345, %v418
      %vm424 = vcmp.eq.s32.totalorder %v345, %v422
      %vm425 = vcmp.eq.s32.totalorder %v346, %v418
      %vm426 = vcmp.eq.s32.totalorder %v346, %v422
      %v427 = vsel %vm423, 1, 0
      %v428 = vsel %vm424, 1, 0
      %v429 = vsel %vm425, 1, 0
      %v430 = vsel %vm426, 1, 0
      %v431 = vcvt.s32.f32 %v427
      %v432 = vcvt.s32.f32 %v428
      %v433 = vcvt.s32.f32 %v429
      %v434 = vcvt.s32.f32 %v430
      %v435 = vlaneseq
      %v436 = vshrl.u32 %v435, 7
      %v437 = vsub.s32 1, %v436
      %v438 = vrot.slane %v334, %v437
      %v439 = vlaneseq
      %v440 = vshrl.u32 %v439, 7
      %v441 = vsub.s32 1, %v440
      %v442 = vrot.slane %v335, %v441
      %v443 = vmul.f32 %v438, %v431
      %v444 = vmul.f32 %v442, %v432
      %v445 = vmul.f32 %v438, %v433
      %v446 = vmul.f32 %v442, %v434
      %v447 = vlaneseq
      %v448 = vshrl.u32 %v447, 7
      %v449 = vsub.s32 1, %v448
      %v450 = vrot.slane %v341, %v449
      %v451 = vlaneseq
      %v452 = vshrl.u32 %v451, 7
      %v453 = vsub.s32 1, %v452
      %v454 = vrot.slane %v343, %v453
      %vm455 = vcmp.eq.s32.totalorder %v345, %v450
      %vm456 = vcmp.eq.s32.totalorder %v345, %v454
      %vm457 = vcmp.eq.s32.totalorder %v346, %v450
      %vm458 = vcmp.eq.s32.totalorder %v346, %v454
      %v459 = vsel %vm455, 1, 0
      %v460 = vsel %vm456, 1, 0
      %v461 = vsel %vm457, 1, 0
      %v462 = vsel %vm458, 1, 0
      %v463 = vcvt.s32.f32 %v459
      %v464 = vcvt.s32.f32 %v460
      %v465 = vcvt.s32.f32 %v461
      %v466 = vcvt.s32.f32 %v462
      %v467 = vlaneseq
      %v468 = vshrl.u32 %v467, 7
      %v469 = vsub.s32 1, %v468
      %v470 = vrot.slane %v332, %v469
      %v471 = vlaneseq
      %v472 = vshrl.u32 %v471, 7
      %v473 = vsub.s32 1, %v472
      %v474 = vrot.slane %v333, %v473
      %v475 = vmul.f32 %v470, %v463
      %v476 = vmul.f32 %v474, %v464
      %v477 = vmul.f32 %v470, %v465
      %v478 = vmul.f32 %v474, %v466
      %v479 = vadd.f32 %v443, %v475
      %v480 = vadd.f32 %v444, %v476
      %v481 = vadd.f32 %v445, %v477
      %v482 = vadd.f32 %v446, %v478
      %v483 = vld [vmem:[%s221] sm:$0xff]
      %v484 = vld [vmem:[%s221 + $0x8] sm:$0xff]
      %vm485 = vcmask 130048
      %v487 = vsel %vm485, %v483, 0
      %v490 = vsel %vm485, %v484, 0
      %492 = vmatprep.subr.mxu0 0.0
      %493 = vmatpush1.msra.mxu0 0.0
      %494 = vmatprep.subr.mxu0 0.0
      %495 = vmatpush1.msra.mxu0 0.0
      %496 = vmatprep.subr.mxu0 0.0
      %497 = vmatpush1.msra.mxu0 0.0
      %498 = vmatprep.subr.mxu0 0.0
      %499 = vmatpush1.msra.mxu0 0.0
      %500 = vmatprep.subr.mxu0 0.0
      %501 = vmatpush1.msra.mxu0 0.0
      %502 = vmatprep.subr.mxu0 0.0
      %503 = vmatpush1.msra.mxu0 0.0
      %504 = vmatprep.subr.mxu0 0.0
      %505 = vmatpush1.msra.mxu0 0.0
      %506 = vmatprep.subr.mxu0 0.0
      %507 = vmatpush1.msra.mxu0 0.0
      %508 = vmatprep.subr.mxu0 0.0
      %509 = vmatpush1.msra.mxu0 0.0
      %510 = vmatprep.subr.mxu0 0.0
      %511 = vmatpush1.msra.mxu0 0.0
      %512 = vmatprep.subr.mxu0 0.0
      %513 = vmatpush1.msra.mxu0 0.0
      %514 = vmatprep.subr.mxu0 0.0
      %515 = vmatpush1.msra.mxu0 0.0
      %516 = vmatprep.subr.mxu0 0.0
      %517 = vmatpush1.msra.mxu0 0.0
      %518 = vmatprep.subr.mxu0 0.0
      %519 = vmatpush1.msra.mxu0 0.0
      %520 = vmatprep.subr.mxu0 %v414
      %521 = vmatpush1.msra.mxu0 %v413
      %522 = vmatprep.subr.mxu0 %v412
      %523 = vmatpush1.msra.mxu0 %v411
      %524 = vmatprep.subr.mxu0 0.0
      %525 = vmatpush2.msra.mxu0 0.0
      %526 = vmatprep.subr.mxu0 0.0
      %527 = vmatpush2.msra.mxu0 0.0
      %528 = vmatprep.subr.mxu0 0.0
      %529 = vmatpush2.msra.mxu0 0.0
      %530 = vmatprep.subr.mxu0 0.0
      %531 = vmatpush2.msra.mxu0 0.0
      %532 = vmatprep.subr.mxu0 0.0
      %533 = vmatpush2.msra.mxu0 0.0
      %534 = vmatprep.subr.mxu0 0.0
      %535 = vmatpush2.msra.mxu0 0.0
      %536 = vmatprep.subr.mxu0 0.0
      %537 = vmatpush2.msra.mxu0 0.0
      %538 = vmatprep.subr.mxu0 0.0
      %539 = vmatpush2.msra.mxu0 0.0
      %540 = vmatprep.subr.mxu0 0.0
      %541 = vmatpush2.msra.mxu0 0.0
      %542 = vmatprep.subr.mxu0 0.0
      %543 = vmatpush2.msra.mxu0 0.0
      %544 = vmatprep.subr.mxu0 0.0
      %545 = vmatpush2.msra.mxu0 0.0
      %546 = vmatprep.subr.mxu0 0.0
      %547 = vmatpush2.msra.mxu0 0.0
      %548 = vmatprep.subr.mxu0 0.0
      %549 = vmatpush2.msra.mxu0 0.0
      %550 = vmatprep.subr.mxu0 0.0
      %551 = vmatpush2.msra.mxu0 0.0
      %552 = vmatprep.subr.mxu0 0.0
      %553 = vmatpush2.msra.mxu0 0.0
      %554 = vmatprep.subr.mxu0 0.0
      %555 = vmatpush2.msra.mxu0 0.0
      %556 = vmatprep.mubr.f32.mxu0 0.0
      %557 = vmatmul.mubr.f32.gmra.mxu0 %v487
      %v558 = vpop.f32.mrf.mxu0
      %v559 = vadd.f32 0.0, %v558
      %v560 = vpop.f32.mrf.mxu0
      %v561 = vadd.f32 0.0, %v560
      %562 = vmatprep.mubr.f32.mxu0 0.0
      %563 = vmatmul.mubr.f32.gmra.mxu0 %v490
      %v564 = vpop.f32.mrf.mxu0
      %v565 = vadd.f32 0.0, %v564
      %v566 = vpop.f32.mrf.mxu0
      %v567 = vadd.f32 0.0, %v566
      %568 = vdwg.mxu0
      %v569 = vmul.f32 %v559, %v479
      %v570 = vmul.f32 %v561, %v480
      %v571 = vmul.f32 %v565, %v481
      %v572 = vmul.f32 %v567, %v482
      %v573 = vadd.f32 %v569, %v571
      %v574 = vrot.slane %v573, 4
      %v575 = vadd.f32 %v573, %v574
      %v576 = vrot.slane %v575, 2
      %v577 = vadd.f32 %v575, %v576
      %v578 = vrot.slane %v577, 1
      %v579 = vadd.f32 %v577, %v578
      %v580 = vadd.f32 %v570, %v572
      %v581 = vrot.slane %v580, 4
      %v582 = vadd.f32 %v580, %v581
      %v583 = vrot.slane %v582, 2
      %v584 = vadd.f32 %v582, %v583
      %v585 = vrot.slane %v584, 1
      %v586 = vadd.f32 %v584, %v585
      %v589 = vcombine.low %v579, %v586
      %v591 = vunpack.c.l.s4 1966171168
      %v592 = vunpack.c.0.s8 %v591
      %v593 = vlaneseq
      %v594 = vshrl.u32 %v593, 7
      %v595 = vsub.s32 %v592, %v594
      %v596 = vrot.slane %v589, %v595
      %v598 = vunpack.c.l.s4 1966171168
      %v599 = vunpack.c.0.s8 %v598
      %v600 = vlaneseq
      %v601 = vshrl.u32 %v600, 7
      %v602 = vsub.s32 %v599, %v601
      %v603 = vrot.slane %v596, %v602
      %v605 = vlaneseq
      %vm606 = vcmp.ge.s32.totalorder %v605, 0
      %vm607 = vcmp.lt.s32.totalorder %v605, 256
      %vm608 = vmand %vm606, %vm607
      %609 = vst.msk [vmem:[%s229] sm:$0x3] %vm608, %v603
      %s610 = smul.u32 2, %s19
      %p611 = scmp.lt.s32.totalorder %s18, 1
      %s612 = scalar_select %p611, %s18, 1
      %p613 = scmp.lt.s32.totalorder %s610, 1
      %s614 = scalar_select %p613, %s610, 1
      %s615 = smul.addr %s612, 2
      %s616 = sadd.s32 %s614, %s615
      %s617 = scalar_lea.vmem %s3, %s616
      // Predicated region
      $region33: #{tps_stn_forward.11} parent=31 // pred_check
        %p618 = pneg %p124
      $region34: #{tps_stn_forward.11} parent=31 // pred_check_branch
        %620 = sbr.rel (%p618) target = $region36
      $region35: #{tps_stn_forward.11} parent=31 // pred_region
        %s621 = smul.u32 2, %s19
      $region36: #{tps_stn_forward.11} parent=31 // pred_fallthru
        _
    $region32: #{tps_stn_forward.11} parent=5 // pred_fallthru
      _
    %p622 = scmp.le.s32.totalorder 2, %s9
    // Predicated region
    $region37: #{tps_stn_forward.11} parent=5 // pred_check
      %p623 = pneg %p622
    $region38: #{tps_stn_forward.11} parent=5 // pred_check_branch
      %625 = sbr.rel (%p623) target = $region40
    $region39: #{tps_stn_forward.11} parent=5 // pred_region
      %s626 = ssub.s32 %s9, 2
      // Predicated region
      $region41: #{tps_stn_forward.11} parent=39 // pred_check
        %p627 = pneg %p130
      $region42: #{tps_stn_forward.11} parent=39 // pred_check_branch
        %629 = sbr.rel (%p627) target = $region44
      $region43: #{tps_stn_forward.11} parent=39 // pred_region
        %s630 = smul.u32 2, %s21
        %p631 = scmp.lt.s32.totalorder %s20, 1
        %s632 = scalar_select %p631, %s20, 1
        %p633 = scmp.lt.s32.totalorder %s630, 1
        %s634 = scalar_select %p633, %s630, 1
        %s635 = smul.addr %s632, 2
        %s636 = sadd.s32 %s634, %s635
        %s637 = scalar_lea.vmem %s3, %s636
      $region44: #{tps_stn_forward.11} parent=39 // pred_fallthru
        _
    $region40: #{tps_stn_forward.11} parent=5 // pred_fallthru
      _
  $region6: #{tps_stn_forward.11} parent=0 // loop_footer
    %s13 = sadd.s32 1, %s9
  $region7: #{tps_stn_forward.11} parent=0 // loop_footer_branch
    %8 = sbr.rel target = $region3
  $region8: #{tps_stn_forward.11} parent=0 // loop_exit
    _

</llo_original>
